<compile_context>
chip_gen: v6e
topology: v6e:2x2x1
jax: 0.10.0
libtpu: 0.0.40
codegen_flags: <defaults>
</compile_context>

<pallas_src>
import jax
import jax.numpy as jnp
from jax.experimental import pallas as pl
from jax.experimental.pallas import tpu as pltpu
import numpy as np


def mapping_kernel(x_ref, w_in1_ref, b_in1_ref, w_inr_ref, b_inr_ref,
                   w_o1_ref, b_o1_ref, w_o2_ref, b_o2_ref, alpha_ref, out_ref):
    # x_ref    : (TM, K_pad)            f32  (pipelined over batch)
    # w_in1_ref: (K_pad, 512)           bf16 (whole array, VMEM-resident)
    # b_in1_ref: (1, 512)               f32
    # w_inr_ref: (3, 512, 512)          bf16
    # b_inr_ref: (3, 512)               f32
    # w_o1_ref : (512, n_heads*512)     bf16 (both heads' first layers fused)
    # b_o1_ref : (1, n_heads*512)       f32
    # w_o2_ref : (n_heads, 512, 1024)   bf16
    # b_o2_ref : (n_heads, 1024)        f32
    # alpha_ref: (6,)                   f32 in SMEM (PReLU slopes)
    # out_ref  : (TM, n_heads*1024)     f32  [head0 | head1], lane-dense
    n_hidden_layers = w_inr_ref.shape[0]      # 3
    hidden = w_inr_ref.shape[1]               # 512
    n_heads = w_o2_ref.shape[0]               # 2
    out_w = w_o2_ref.shape[2]                 # 1024

    def prelu(y, a):
        return jnp.where(y > 0.0, y, a * y)

    # ---- mlp_in trunk (bf16 MXU matmuls, f32 accumulate) --------------------
    h = jnp.dot(x_ref[...].astype(jnp.bfloat16), w_in1_ref[...],
                preferred_element_type=jnp.float32)
    h = prelu(h + b_in1_ref[...], alpha_ref[0])
    for l in range(n_hidden_layers):
        h = jnp.dot(h.astype(jnp.bfloat16), w_inr_ref[l],
                    preferred_element_type=jnp.float32)
        h = prelu(h + b_inr_ref[l:l + 1, :], alpha_ref[1 + l])

    # ---- mlp_out heads -------------------------------------------------------
    # First layers of both heads fused into one wide (512 -> n_heads*512) dot.
    g_cat = jnp.dot(h.astype(jnp.bfloat16), w_o1_ref[...],
                    preferred_element_type=jnp.float32) + b_o1_ref[...]
    for j in range(n_heads):
        g = prelu(g_cat[:, j * hidden:(j + 1) * hidden],
                  alpha_ref[1 + n_hidden_layers + j])
        y = jnp.dot(g.astype(jnp.bfloat16), w_o2_ref[j],
                    preferred_element_type=jnp.float32) + b_o2_ref[j:j + 1, :]
        # sigmoid: exp on the EUP, approx reciprocal also on the EUP slot.
        y = pl.reciprocal(1.0 + jnp.exp(-y), approx=True)
        out_ref[:, j * out_w:(j + 1) * out_w] = y.astype(out_ref.dtype)


def init_mapping_params(key, in_dim, hidden=512, planes=512, n_heads=2,
                        n_hidden_layers=3):
    """Parameters matching Mapping(in_dim). Weights stored (in, out), bf16."""
    ks = jax.random.split(key, 8)

    def kaiming(k, fan_in, shape):
        w = jnp.sqrt(2.0 / fan_in) * jax.random.normal(k, shape, jnp.float32)
        return w.astype(jnp.bfloat16)          # MXU-native storage dtype

    return dict(
        w_in1=kaiming(ks[0], in_dim, (in_dim, hidden)),
        b_in1=0.1 * jax.random.normal(ks[1], (1, hidden), jnp.float32),
        w_in_rest=kaiming(ks[2], hidden, (n_hidden_layers, hidden, hidden)),
        b_in_rest=0.1 * jax.random.normal(ks[3], (n_hidden_layers, hidden),
                                          jnp.float32),
        w_out1=kaiming(ks[4], hidden, (n_heads, hidden, hidden)),
        b_out1=0.1 * jax.random.normal(ks[5], (n_heads, hidden), jnp.float32),
        w_out2=kaiming(ks[6], hidden, (n_heads, hidden, 2 * planes)),
        b_out2=0.1 * jax.random.normal(ks[7], (n_heads, 2 * planes), jnp.float32),
        # nn.PReLU() default is one scalar slope per module (init 0.25);
        # distinct values here just exercise correct per-layer indexing.
        alphas=jnp.array([0.25, 0.20, 0.30, 0.25, 0.15, 0.35], jnp.float32),
    )


def mapping_forward(x, params):
    """Forward of Mapping: returns [[s00, s01], [s10, s11]], each (B, 512, 1, 1)."""
    B, in_dim = x.shape
    hidden = params["w_in1"].shape[1]
    n_heads = params["w_out1"].shape[0]
    out_w = params["w_out2"].shape[2]          # 2 * planes
    planes = out_w // 2

    # Lane-align the first contraction: zero-pad K to a multiple of 128.
    K_pad = max(128, ((in_dim + 127) // 128) * 128)
    w_in1 = params["w_in1"]
    if K_pad != in_dim:
        w_in1 = jnp.pad(w_in1, ((0, K_pad - in_dim), (0, 0)))

    # Fuse both heads' first-layer weights into one (512, n_heads*512) matmul.
    # (One-time layout plumbing; can be hoisted/cached at param-load time.)
    w_o1_cat = jnp.concatenate([params["w_out1"][j] for j in range(n_heads)],
                               axis=1)
    b_o1_cat = params["b_out1"].reshape(1, n_heads * hidden)

    # Batch tiling: rows are sublanes -> multiple of 8; cap at 256 to fill the
    # 256-wide MXU rows of v6e/v7x (v5e's 128-row MXU just takes two passes).
    TM = min(256, ((B + 7) // 8) * 8)
    B_pad = ((B + TM - 1) // TM) * TM
    x_p = x
    if B_pad != B or K_pad != in_dim:
        x_p = jnp.pad(x, ((0, B_pad - B), (0, K_pad - in_dim)))
    grid = (B_pad // TM,)

    # Grid-invariant weights/biases: whole-array VMEM refs (no pipelining,
    # therefore no double-buffering -> ~4.9 MB resident instead of ~18 MB).
    vmem_whole = pl.BlockSpec(memory_space=pltpu.MemorySpace.VMEM)

    out2d = pl.pallas_call(
        mapping_kernel,
        out_shape=jax.ShapeDtypeStruct((B_pad, n_heads * out_w), jnp.float32),
        grid_spec=pltpu.PrefetchScalarGridSpec(
            num_scalar_prefetch=0,
            grid=grid,
            in_specs=[
                pl.BlockSpec((TM, K_pad), lambda m: (m, 0)),          # x (pipelined)
                vmem_whole,                                           # w_in1
                vmem_whole,                                           # b_in1
                vmem_whole,                                           # w_in_rest
                vmem_whole,                                           # b_in_rest
                vmem_whole,                                           # w_o1_cat
                vmem_whole,                                           # b_o1_cat
                vmem_whole,                                           # w_out2
                vmem_whole,                                           # b_out2
                pl.BlockSpec(memory_space=pltpu.MemorySpace.SMEM),    # alphas
            ],
            out_specs=pl.BlockSpec((TM, n_heads * out_w), lambda m: (m, 0)),
        ),
        compiler_params=pltpu.CompilerParams(
            dimension_semantics=("parallel",),
            vmem_limit_bytes=32 * 1024 * 1024,
        ),
    )(x_p, w_in1, params["b_in1"],
      params["w_in_rest"], params["b_in_rest"],
      w_o1_cat, b_o1_cat,
      params["w_out2"], params["b_out2"],
      params["alphas"])

    out2d = out2d[:B]
    # view(B, -1, 1, 1) + torch.chunk(chunks=2, dim=1) -> wrapper-side slices.
    s_list = []
    for j in range(n_heads):
        head = out2d[:, j * out_w:(j + 1) * out_w].reshape(B, out_w, 1, 1)
        s_list.append([head[:, :planes], head[:, planes:]])
    return s_list


def mapping_reference(x, params):
    """Pure-JAX bf16-aware reference mirroring the kernel's arithmetic
    (bf16 operands, f32 accumulation), exact sigmoid."""
    def prelu(y, a):
        return jnp.where(y > 0.0, y, a * y)

    def bdot(a, w):
        return jnp.dot(a.astype(jnp.bfloat16), w.astype(jnp.bfloat16),
                       preferred_element_type=jnp.float32)

    B = x.shape[0]
    n_hidden_layers = params["w_in_rest"].shape[0]
    n_heads = params["w_out1"].shape[0]
    out_w = params["w_out2"].shape[2]
    planes = out_w // 2

    h = prelu(bdot(x, params["w_in1"]) + params["b_in1"], params["alphas"][0])
    for l in range(n_hidden_layers):
        h = prelu(bdot(h, params["w_in_rest"][l]) + params["b_in_rest"][l],
                  params["alphas"][1 + l])

    s_list = []
    for j in range(n_heads):
        g = prelu(bdot(h, params["w_out1"][j]) + params["b_out1"][j],
                  params["alphas"][1 + n_hidden_layers + j])
        y = bdot(g, params["w_out2"][j]) + params["b_out2"][j]
        y = 1.0 / (1.0 + jnp.exp(-y))
        y = y.reshape(B, out_w, 1, 1)
        s_list.append([y[:, :planes], y[:, planes:]])
    return s_list


if __name__ == "__main__":
    # Small deterministic setup: Mapping(in_dim=32), batch=2.
    # (hidden=512 and planes=512 are fixed by the module definition.)
    B, in_dim = 2, 32
    key = jax.random.PRNGKey(0)
    kx, kp = jax.random.split(key)

    x = jax.random.normal(kx, (B, in_dim), dtype=jnp.float32)
    params = init_mapping_params(kp, in_dim)

    s_list = mapping_forward(x, params)
    s_list = jax.block_until_ready(s_list)

    ref_list = mapping_reference(x, params)
    for got_pair, ref_pair in zip(s_list, ref_list):
        for got, ref in zip(got_pair, ref_pair):
            assert got.shape == (B, 512, 1, 1)
            np.testing.assert_allclose(np.asarray(got), np.asarray(ref),
                                       rtol=5e-3, atol=5e-3)

    print("KERNEL_OK")
</pallas_src>

<mosaic_0001>
module attributes {stable_mosaic.version = 11 : i64} {
  func.func @mapping_kernel(%arg0: i32, %arg1: memref<8x128xf32, #tpu.memory_space<vmem>>, %arg2: memref<128x512xbf16, #tpu.memory_space<vmem>>, %arg3: memref<1x512xf32, #tpu.memory_space<vmem>>, %arg4: memref<3x512x512xbf16, #tpu.memory_space<vmem>>, %arg5: memref<3x512xf32, #tpu.memory_space<vmem>>, %arg6: memref<512x1024xbf16, #tpu.memory_space<vmem>>, %arg7: memref<1x1024xf32, #tpu.memory_space<vmem>>, %arg8: memref<2x512x1024xbf16, #tpu.memory_space<vmem>>, %arg9: memref<2x1024xf32, #tpu.memory_space<vmem>>, %arg10: memref<6xf32, #tpu.memory_space<smem>>, %arg11: memref<8x2048xf32, #tpu.memory_space<vmem>>) attributes {dimension_semantics = [#tpu.dimension_semantics<parallel>], iteration_bounds = array<i64: 1>, scalar_prefetch = 0 : i64, scratch_operands = 0 : i64, tpu.core_type = #tpu.core_type<tc>, window_params = [{transform_indices = @transform_0, window_bounds = array<i64: 8, 128>}, {pipeline_mode = #tpu.pipeline_mode<synchronous>, transform_indices = @transform_1, window_bounds = array<i64: 128, 512>}, {pipeline_mode = #tpu.pipeline_mode<synchronous>, transform_indices = @transform_2, window_bounds = array<i64: 1, 512>}, {pipeline_mode = #tpu.pipeline_mode<synchronous>, transform_indices = @transform_3, window_bounds = array<i64: 3, 512, 512>}, {pipeline_mode = #tpu.pipeline_mode<synchronous>, transform_indices = @transform_4, window_bounds = array<i64: 3, 512>}, {pipeline_mode = #tpu.pipeline_mode<synchronous>, transform_indices = @transform_5, window_bounds = array<i64: 512, 1024>}, {pipeline_mode = #tpu.pipeline_mode<synchronous>, transform_indices = @transform_6, window_bounds = array<i64: 1, 1024>}, {pipeline_mode = #tpu.pipeline_mode<synchronous>, transform_indices = @transform_7, window_bounds = array<i64: 2, 512, 1024>}, {pipeline_mode = #tpu.pipeline_mode<synchronous>, transform_indices = @transform_8, window_bounds = array<i64: 2, 1024>}, {transform_indices = @transform_9, window_bounds = array<i64: 6>}, {transform_indices = @transform_10, window_bounds = array<i64: 8, 2048>}]} {
    %c0 = arith.constant 0 : index
    %c0_0 = arith.constant 0 : index
    %0 = vector.load %arg1[%c0, %c0_0] : memref<8x128xf32, #tpu.memory_space<vmem>>, vector<8x128xf32>
    %1 = arith.truncf %0 : vector<8x128xf32> to vector<8x128xbf16>
    %c0_1 = arith.constant 0 : index
    %c0_2 = arith.constant 0 : index
    %2 = vector.load %arg2[%c0_1, %c0_2] : memref<128x512xbf16, #tpu.memory_space<vmem>>, vector<128x512xbf16>
    %cst = arith.constant dense<0.000000e+00> : vector<8x512xf32>
    %3 = tpu.matmul %1, %2, %cst {dimension_numbers = #tpu.dot_dimension_numbers<[1], [0], [0], [1], [0, 0, 1, 1], [], []>} : vector<8x128xbf16>, vector<128x512xbf16>, vector<8x512xf32> -> vector<8x512xf32>
    %c0_3 = arith.constant 0 : index
    %c0_4 = arith.constant 0 : index
    %4 = vector.load %arg3[%c0_3, %c0_4] : memref<1x512xf32, #tpu.memory_space<vmem>>, vector<1x512xf32>
    %5 = vector.broadcast %4 : vector<1x512xf32> to vector<8x512xf32>
    %6 = arith.addf %3, %5 : vector<8x512xf32>
    %c0_5 = arith.constant 0 : index
    %7 = memref.load %arg10[%c0_5] : memref<6xf32, #tpu.memory_space<smem>>
    %cst_6 = arith.constant 0.000000e+00 : f32
    %8 = vector.broadcast %cst_6 : f32 to vector<8x512xf32>
    %9 = arith.cmpf ogt, %6, %8 : vector<8x512xf32>
    %10 = vector.broadcast %7 : f32 to vector<8x512xf32>
    %11 = arith.mulf %10, %6 : vector<8x512xf32>
    %12 = arith.select %9, %6, %11 : vector<8x512xi1>, vector<8x512xf32>
    %13 = arith.truncf %12 : vector<8x512xf32> to vector<8x512xbf16>
    %c0_7 = arith.constant 0 : index
    %c0_8 = arith.constant 0 : index
    %c0_9 = arith.constant 0 : index
    %14 = vector.load %arg4[%c0_7, %c0_8, %c0_9] : memref<3x512x512xbf16, #tpu.memory_space<vmem>>, vector<1x512x512xbf16>
    %15 = vector.shape_cast %14 : vector<1x512x512xbf16> to vector<512x512xbf16>
    %cst_10 = arith.constant dense<0.000000e+00> : vector<8x512xf32>
    %16 = tpu.matmul %13, %15, %cst_10 {dimension_numbers = #tpu.dot_dimension_numbers<[1], [0], [0], [1], [0, 0, 1, 1], [], []>} : vector<8x512xbf16>, vector<512x512xbf16>, vector<8x512xf32> -> vector<8x512xf32>
    %c0_11 = arith.constant 0 : index
    %c0_12 = arith.constant 0 : index
    %17 = vector.load %arg5[%c0_11, %c0_12] : memref<3x512xf32, #tpu.memory_space<vmem>>, vector<1x512xf32>
    %18 = vector.broadcast %17 : vector<1x512xf32> to vector<8x512xf32>
    %19 = arith.addf %16, %18 : vector<8x512xf32>
    %c1 = arith.constant 1 : index
    %20 = memref.load %arg10[%c1] : memref<6xf32, #tpu.memory_space<smem>>
    %cst_13 = arith.constant 0.000000e+00 : f32
    %21 = vector.broadcast %cst_13 : f32 to vector<8x512xf32>
    %22 = arith.cmpf ogt, %19, %21 : vector<8x512xf32>
    %23 = vector.broadcast %20 : f32 to vector<8x512xf32>
    %24 = arith.mulf %23, %19 : vector<8x512xf32>
    %25 = arith.select %22, %19, %24 : vector<8x512xi1>, vector<8x512xf32>
    %26 = arith.truncf %25 : vector<8x512xf32> to vector<8x512xbf16>
    %c1_14 = arith.constant 1 : index
    %c0_15 = arith.constant 0 : index
    %c0_16 = arith.constant 0 : index
    %27 = vector.load %arg4[%c1_14, %c0_15, %c0_16] : memref<3x512x512xbf16, #tpu.memory_space<vmem>>, vector<1x512x512xbf16>
    %28 = vector.shape_cast %27 : vector<1x512x512xbf16> to vector<512x512xbf16>
    %cst_17 = arith.constant dense<0.000000e+00> : vector<8x512xf32>
    %29 = tpu.matmul %26, %28, %cst_17 {dimension_numbers = #tpu.dot_dimension_numbers<[1], [0], [0], [1], [0, 0, 1, 1], [], []>} : vector<8x512xbf16>, vector<512x512xbf16>, vector<8x512xf32> -> vector<8x512xf32>
    %c1_18 = arith.constant 1 : index
    %c0_19 = arith.constant 0 : index
    %30 = vector.load %arg5[%c1_18, %c0_19] : memref<3x512xf32, #tpu.memory_space<vmem>>, vector<1x512xf32>
    %31 = vector.broadcast %30 : vector<1x512xf32> to vector<8x512xf32>
    %32 = arith.addf %29, %31 : vector<8x512xf32>
    %c2 = arith.constant 2 : index
    %33 = memref.load %arg10[%c2] : memref<6xf32, #tpu.memory_space<smem>>
    %cst_20 = arith.constant 0.000000e+00 : f32
    %34 = vector.broadcast %cst_20 : f32 to vector<8x512xf32>
    %35 = arith.cmpf ogt, %32, %34 : vector<8x512xf32>
    %36 = vector.broadcast %33 : f32 to vector<8x512xf32>
    %37 = arith.mulf %36, %32 : vector<8x512xf32>
    %38 = arith.select %35, %32, %37 : vector<8x512xi1>, vector<8x512xf32>
    %39 = arith.truncf %38 : vector<8x512xf32> to vector<8x512xbf16>
    %c2_21 = arith.constant 2 : index
    %c0_22 = arith.constant 0 : index
    %c0_23 = arith.constant 0 : index
    %40 = vector.load %arg4[%c2_21, %c0_22, %c0_23] : memref<3x512x512xbf16, #tpu.memory_space<vmem>>, vector<1x512x512xbf16>
    %41 = vector.shape_cast %40 : vector<1x512x512xbf16> to vector<512x512xbf16>
    %cst_24 = arith.constant dense<0.000000e+00> : vector<8x512xf32>
    %42 = tpu.matmul %39, %41, %cst_24 {dimension_numbers = #tpu.dot_dimension_numbers<[1], [0], [0], [1], [0, 0, 1, 1], [], []>} : vector<8x512xbf16>, vector<512x512xbf16>, vector<8x512xf32> -> vector<8x512xf32>
    %c2_25 = arith.constant 2 : index
    %c0_26 = arith.constant 0 : index
    %43 = vector.load %arg5[%c2_25, %c0_26] : memref<3x512xf32, #tpu.memory_space<vmem>>, vector<1x512xf32>
    %44 = vector.broadcast %43 : vector<1x512xf32> to vector<8x512xf32>
    %45 = arith.addf %42, %44 : vector<8x512xf32>
    %c3 = arith.constant 3 : index
    %46 = memref.load %arg10[%c3] : memref<6xf32, #tpu.memory_space<smem>>
    %cst_27 = arith.constant 0.000000e+00 : f32
    %47 = vector.broadcast %cst_27 : f32 to vector<8x512xf32>
    %48 = arith.cmpf ogt, %45, %47 : vector<8x512xf32>
    %49 = vector.broadcast %46 : f32 to vector<8x512xf32>
    %50 = arith.mulf %49, %45 : vector<8x512xf32>
    %51 = arith.select %48, %45, %50 : vector<8x512xi1>, vector<8x512xf32>
    %52 = arith.truncf %51 : vector<8x512xf32> to vector<8x512xbf16>
    %c0_28 = arith.constant 0 : index
    %c0_29 = arith.constant 0 : index
    %53 = vector.load %arg6[%c0_28, %c0_29] : memref<512x1024xbf16, #tpu.memory_space<vmem>>, vector<512x1024xbf16>
    %cst_30 = arith.constant dense<0.000000e+00> : vector<8x1024xf32>
    %54 = tpu.matmul %52, %53, %cst_30 {dimension_numbers = #tpu.dot_dimension_numbers<[1], [0], [0], [1], [0, 0, 1, 1], [], []>} : vector<8x512xbf16>, vector<512x1024xbf16>, vector<8x1024xf32> -> vector<8x1024xf32>
    %c0_31 = arith.constant 0 : index
    %c0_32 = arith.constant 0 : index
    %55 = vector.load %arg7[%c0_31, %c0_32] : memref<1x1024xf32, #tpu.memory_space<vmem>>, vector<1x1024xf32>
    %56 = vector.broadcast %55 : vector<1x1024xf32> to vector<8x1024xf32>
    %57 = arith.addf %54, %56 : vector<8x1024xf32>
    %58 = vector.extract_strided_slice %57 {offsets = [0, 0], sizes = [8, 512], strides = [1, 1]} : vector<8x1024xf32> to vector<8x512xf32>
    %c4 = arith.constant 4 : index
    %59 = memref.load %arg10[%c4] : memref<6xf32, #tpu.memory_space<smem>>
    %cst_33 = arith.constant 0.000000e+00 : f32
    %60 = vector.broadcast %cst_33 : f32 to vector<8x512xf32>
    %61 = arith.cmpf ogt, %58, %60 : vector<8x512xf32>
    %62 = vector.broadcast %59 : f32 to vector<8x512xf32>
    %63 = arith.mulf %62, %58 : vector<8x512xf32>
    %64 = arith.select %61, %58, %63 : vector<8x512xi1>, vector<8x512xf32>
    %65 = arith.truncf %64 : vector<8x512xf32> to vector<8x512xbf16>
    %c0_34 = arith.constant 0 : index
    %c0_35 = arith.constant 0 : index
    %c0_36 = arith.constant 0 : index
    %66 = vector.load %arg8[%c0_34, %c0_35, %c0_36] : memref<2x512x1024xbf16, #tpu.memory_space<vmem>>, vector<1x512x1024xbf16>
    %67 = vector.shape_cast %66 : vector<1x512x1024xbf16> to vector<512x1024xbf16>
    %cst_37 = arith.constant dense<0.000000e+00> : vector<8x1024xf32>
    %68 = tpu.matmul %65, %67, %cst_37 {dimension_numbers = #tpu.dot_dimension_numbers<[1], [0], [0], [1], [0, 0, 1, 1], [], []>} : vector<8x512xbf16>, vector<512x1024xbf16>, vector<8x1024xf32> -> vector<8x1024xf32>
    %c0_38 = arith.constant 0 : index
    %c0_39 = arith.constant 0 : index
    %69 = vector.load %arg9[%c0_38, %c0_39] : memref<2x1024xf32, #tpu.memory_space<vmem>>, vector<1x1024xf32>
    %70 = vector.broadcast %69 : vector<1x1024xf32> to vector<8x1024xf32>
    %71 = arith.addf %68, %70 : vector<8x1024xf32>
    %cst_40 = arith.constant 0.000000e+00 : f32
    %72 = vector.broadcast %cst_40 : f32 to vector<8x1024xf32>
    %73 = arith.subf %72, %71 : vector<8x1024xf32>
    %74 = math.exp %73 : vector<8x1024xf32>
    %cst_41 = arith.constant 1.000000e+00 : f32
    %75 = vector.broadcast %cst_41 : f32 to vector<8x1024xf32>
    %76 = arith.addf %75, %74 : vector<8x1024xf32>
    %77 = tpu.reciprocal %76 {approx = true} : vector<8x1024xf32> -> vector<8x1024xf32>
    %c0_42 = arith.constant 0 : index
    %c0_43 = arith.constant 0 : index
    %78 = vector.load %arg11[%c0_42, %c0_43] : memref<8x2048xf32, #tpu.memory_space<vmem>>, vector<8x1024xf32>
    tpu.vector_store %arg11[%c0_42, %c0_43], %77 {strides = array<i32>} : memref<8x2048xf32, #tpu.memory_space<vmem>>, vector<8x1024xf32>,
    %79 = vector.extract_strided_slice %57 {offsets = [0, 512], sizes = [8, 512], strides = [1, 1]} : vector<8x1024xf32> to vector<8x512xf32>
    %c5 = arith.constant 5 : index
    %80 = memref.load %arg10[%c5] : memref<6xf32, #tpu.memory_space<smem>>
    %cst_44 = arith.constant 0.000000e+00 : f32
    %81 = vector.broadcast %cst_44 : f32 to vector<8x512xf32>
    %82 = arith.cmpf ogt, %79, %81 : vector<8x512xf32>
    %83 = vector.broadcast %80 : f32 to vector<8x512xf32>
    %84 = arith.mulf %83, %79 : vector<8x512xf32>
    %85 = arith.select %82, %79, %84 : vector<8x512xi1>, vector<8x512xf32>
    %86 = arith.truncf %85 : vector<8x512xf32> to vector<8x512xbf16>
    %c1_45 = arith.constant 1 : index
    %c0_46 = arith.constant 0 : index
    %c0_47 = arith.constant 0 : index
    %87 = vector.load %arg8[%c1_45, %c0_46, %c0_47] : memref<2x512x1024xbf16, #tpu.memory_space<vmem>>, vector<1x512x1024xbf16>
    %88 = vector.shape_cast %87 : vector<1x512x1024xbf16> to vector<512x1024xbf16>
    %cst_48 = arith.constant dense<0.000000e+00> : vector<8x1024xf32>
    %89 = tpu.matmul %86, %88, %cst_48 {dimension_numbers = #tpu.dot_dimension_numbers<[1], [0], [0], [1], [0, 0, 1, 1], [], []>} : vector<8x512xbf16>, vector<512x1024xbf16>, vector<8x1024xf32> -> vector<8x1024xf32>
    %c1_49 = arith.constant 1 : index
    %c0_50 = arith.constant 0 : index
    %90 = vector.load %arg9[%c1_49, %c0_50] : memref<2x1024xf32, #tpu.memory_space<vmem>>, vector<1x1024xf32>
    %91 = vector.broadcast %90 : vector<1x1024xf32> to vector<8x1024xf32>
    %92 = arith.addf %89, %91 : vector<8x1024xf32>
    %cst_51 = arith.constant 0.000000e+00 : f32
    %93 = vector.broadcast %cst_51 : f32 to vector<8x1024xf32>
    %94 = arith.subf %93, %92 : vector<8x1024xf32>
    %95 = math.exp %94 : vector<8x1024xf32>
    %cst_52 = arith.constant 1.000000e+00 : f32
    %96 = vector.broadcast %cst_52 : f32 to vector<8x1024xf32>
    %97 = arith.addf %96, %95 : vector<8x1024xf32>
    %98 = tpu.reciprocal %97 {approx = true} : vector<8x1024xf32> -> vector<8x1024xf32>
    %c0_53 = arith.constant 0 : index
    %c1024 = arith.constant 1024 : index
    %99 = vector.load %arg11[%c0_53, %c1024] : memref<8x2048xf32, #tpu.memory_space<vmem>>, vector<8x1024xf32>
    tpu.vector_store %arg11[%c0_53, %c1024], %98 {strides = array<i32>} : memref<8x2048xf32, #tpu.memory_space<vmem>>, vector<8x1024xf32>,
    return
  }
  func.func @transform_0(%arg0: i32) -> (i32, i32) {
    %c0_i32 = arith.constant 0 : i32
    %c0_i32_0 = arith.constant 0 : i32
    return %arg0, %c0_i32 : i32, i32
  }
  func.func @transform_1(%arg0: i32) -> (i32, i32) {
    %c0_i32 = arith.constant 0 : i32
    %c0_i32_0 = arith.constant 0 : i32
    %c0_i32_1 = arith.constant 0 : i32
    return %c0_i32, %c0_i32_0 : i32, i32
  }
  func.func @transform_2(%arg0: i32) -> (i32, i32) {
    %c0_i32 = arith.constant 0 : i32
    %c0_i32_0 = arith.constant 0 : i32
    %c0_i32_1 = arith.constant 0 : i32
    return %c0_i32, %c0_i32_0 : i32, i32
  }
  func.func @transform_3(%arg0: i32) -> (i32, i32, i32) {
    %c0_i32 = arith.constant 0 : i32
    %c0_i32_0 = arith.constant 0 : i32
    %c0_i32_1 = arith.constant 0 : i32
    %c0_i32_2 = arith.constant 0 : i32
    return %c0_i32, %c0_i32_0, %c0_i32_1 : i32, i32, i32
  }
  func.func @transform_4(%arg0: i32) -> (i32, i32) {
    %c0_i32 = arith.constant 0 : i32
    %c0_i32_0 = arith.constant 0 : i32
    %c0_i32_1 = arith.constant 0 : i32
    return %c0_i32, %c0_i32_0 : i32, i32
  }
  func.func @transform_5(%arg0: i32) -> (i32, i32) {
    %c0_i32 = arith.constant 0 : i32
    %c0_i32_0 = arith.constant 0 : i32
    %c0_i32_1 = arith.constant 0 : i32
    return %c0_i32, %c0_i32_0 : i32, i32
  }
  func.func @transform_6(%arg0: i32) -> (i32, i32) {
    %c0_i32 = arith.constant 0 : i32
    %c0_i32_0 = arith.constant 0 : i32
    %c0_i32_1 = arith.constant 0 : i32
    return %c0_i32, %c0_i32_0 : i32, i32
  }
  func.func @transform_7(%arg0: i32) -> (i32, i32, i32) {
    %c0_i32 = arith.constant 0 : i32
    %c0_i32_0 = arith.constant 0 : i32
    %c0_i32_1 = arith.constant 0 : i32
    %c0_i32_2 = arith.constant 0 : i32
    return %c0_i32, %c0_i32_0, %c0_i32_1 : i32, i32, i32
  }
  func.func @transform_8(%arg0: i32) -> (i32, i32) {
    %c0_i32 = arith.constant 0 : i32
    %c0_i32_0 = arith.constant 0 : i32
    %c0_i32_1 = arith.constant 0 : i32
    return %c0_i32, %c0_i32_0 : i32, i32
  }
  func.func @transform_9(%arg0: i32) -> i32 {
    %c0_i32 = arith.constant 0 : i32
    %c0_i32_0 = arith.constant 0 : i32
    return %c0_i32 : i32
  }
  func.func @transform_10(%arg0: i32) -> (i32, i32) {
    %c0_i32 = arith.constant 0 : i32
    %c0_i32_0 = arith.constant 0 : i32
    return %arg0, %c0_i32 : i32, i32
  }
}

</mosaic_0001>

<llo_original>
// kernel: tpu_custom_call.1
$region0: #{tpu_custom_call.1}
  #allocation0 [shape = 'u32[]', space=smem, size = 0x4, offset = 0x4, fixed_abs, tag = 'smem constant byte address 0x4 - core index']
  #allocation1 [shape = 'u32[144,128]{1,0:T(1,128)}', space=vmem, size = 0x12000, scoped, tag = 'internal scratch']
  %s0 = inlined_call_operand.hbm [shape: f32[8,128], index: 0, kind: input, shape index: {}]
  %s1 = inlined_call_operand.hbm [shape: bf16[128,512], index: 1, kind: input, shape index: {}]
  %s2 = inlined_call_operand.hbm [shape: f32[1,512], index: 2, kind: input, shape index: {}]
  %s3 = inlined_call_operand.hbm [shape: bf16[3,512,512], index: 3, kind: input, shape index: {}]
  %s4 = inlined_call_operand.hbm [shape: f32[3,512], index: 4, kind: input, shape index: {}]
  %s5 = inlined_call_operand.hbm [shape: bf16[512,1024], index: 5, kind: input, shape index: {}]
  %s6 = inlined_call_operand.hbm [shape: f32[1,1024], index: 6, kind: input, shape index: {}]
  %s7 = inlined_call_operand.hbm [shape: bf16[2,512,1024], index: 7, kind: input, shape index: {}]
  %s8 = inlined_call_operand.hbm [shape: f32[2,1024], index: 8, kind: input, shape index: {}]
  %s9 = inlined_call_operand.hbm [shape: f32[6], index: 9, kind: input, shape index: {}]
  %s10 = inlined_call_operand.hbm [shape: f32[8,2048], index: 10, kind: output, shape index: {}]
  %s11 = sld [smem:[#allocation0]]
  $region90: #{tpu_custom_call.1} parent=0
    _
  %s13 = ssub.s32 1, %s11
  %s14 = scalar_select 0, %s13, %s11
  $region1: #{tpu_custom_call.1} parent=0
    #allocation2 [shape = 'u8[4096]{0}', space=vmem, size = 0x1000, scoped, tag = 'input window, operand 0, single buffered']
    #allocation3 [shape = 's32[1]{0}', space=sflag, size = 0x4, scoped, tag = 'scoped memory for tpu_custom_call.1']
    #allocation4 [shape = 's32[1]{0}', space=sflag, size = 0x4, scoped, tag = 'scoped memory for tpu_custom_call.1']
    #allocation5 [shape = 's32[1]{0}', space=sflag, size = 0x4, scoped, tag = 'scoped memory for tpu_custom_call.1']
    #allocation6 [shape = 'u8[131072]{0}', space=vmem, size = 0x20000, scoped, tag = 'input window, operand 1, single buffered']
    #allocation7 [shape = 's32[1]{0}', space=sflag, size = 0x4, scoped, tag = 'scoped memory for tpu_custom_call.1']
    #allocation8 [shape = 'u8[2048]{0}', space=vmem, size = 0x800, scoped, tag = 'input window, operand 2, single buffered']
    #allocation9 [shape = 'u8[1572864]{0}', space=vmem, size = 0x180000, scoped, tag = 'input window, operand 3, single buffered']
    #allocation10 [shape = 's32[1]{0}', space=sflag, size = 0x4, scoped, tag = 'scoped memory for tpu_custom_call.1']
    #allocation11 [shape = 'u8[8192]{0}', space=vmem, size = 0x2000, scoped, tag = 'input window, operand 4, single buffered']
    #allocation12 [shape = 'u8[1048576]{0}', space=vmem, size = 0x100000, scoped, tag = 'input window, operand 5, single buffered']
    #allocation13 [shape = 's32[1]{0}', space=sflag, size = 0x4, scoped, tag = 'scoped memory for tpu_custom_call.1']
    #allocation14 [shape = 'u8[4096]{0}', space=vmem, size = 0x1000, scoped, tag = 'input window, operand 6, single buffered']
    #allocation15 [shape = 'u8[2097152]{0}', space=vmem, size = 0x200000, scoped, tag = 'input window, operand 7, single buffered']
    #allocation16 [shape = 's32[1]{0}', space=sflag, size = 0x4, scoped, tag = 'scoped memory for tpu_custom_call.1']
    #allocation17 [shape = 'u8[8192]{0}', space=vmem, size = 0x2000, scoped, tag = 'input window, operand 8, single buffered']
    #allocation18 [shape = 'u8[512]{0}', space=smem, size = 0x200, scoped, tag = 'input window, operand 9, single buffered']
    #allocation19 [shape = 'u8[65536]{0}', space=vmem, size = 0x10000, scoped, tag = 'output window, operand 0, single buffered']
    %15 = vsyncpa [#allocation3], 0
    %16 = vsyncpa [#allocation7], 0
    %17 = vsyncpa [#allocation10], 0
    %18 = vsyncpa [#allocation13], 0
    %19 = vsyncpa [#allocation16], 0
    %20 = vsyncpa [#allocation5], 0
    %21 = vsyncpa [#allocation4], 0
    // Predicated region
    $region2: #{tpu_custom_call.1} parent=1 // pred_check
      _
    $region3: #{tpu_custom_call.1} parent=1 // pred_check_branch
      %23 = sbr.rel (0) target = $region5
    $region4: #{tpu_custom_call.1} parent=1 // pred_region
      %s25 = ssub.s32 128, 128
      %26 = vsyncadd [#allocation3], %s25
      %s28 = sshll.u32 [#allocation2], 4
      %s29 = int_to_ptr.vmem [resolvable:$true] %s28
      %31 = dma.hbm_to_vmem [thread:$0]  %s0, 128, %s29, [#allocation3]
    $region5: #{tpu_custom_call.1} parent=1 // pred_fallthru
      _
    // Predicated region
    $region6: #{tpu_custom_call.1} parent=1 // pred_check
      _
    $region7: #{tpu_custom_call.1} parent=1 // pred_check_branch
      %33 = sbr.rel (0) target = $region9
    $region8: #{tpu_custom_call.1} parent=1 // pred_region
      %s35 = ssub.s32 4096, 4096
      %36 = vsyncadd [#allocation7], %s35
      %s37 = sshll.u32 [#allocation6], 4
      %s38 = int_to_ptr.vmem [resolvable:$true] %s37
      %43 = dma.hbm_to_vmem [thread:$0]  %s1, 4096, %s38, [#allocation7], 256, 256, 16
    $region9: #{tpu_custom_call.1} parent=1 // pred_fallthru
      _
    // Predicated region
    $region10: #{tpu_custom_call.1} parent=1 // pred_check
      _
    $region11: #{tpu_custom_call.1} parent=1 // pred_check_branch
      %45 = sbr.rel (0) target = $region13
    $region12: #{tpu_custom_call.1} parent=1 // pred_region
      %s47 = ssub.s32 64, 64
      %48 = vsyncadd [#allocation7], %s47
      %s50 = sshll.u32 [#allocation8], 4
      %s51 = int_to_ptr.vmem [resolvable:$true] %s50
      %53 = dma.hbm_to_vmem [thread:$0]  %s2, 64, %s51, [#allocation7]
    $region13: #{tpu_custom_call.1} parent=1 // pred_fallthru
      _
    // Predicated region
    $region14: #{tpu_custom_call.1} parent=1 // pred_check
      _
    $region15: #{tpu_custom_call.1} parent=1 // pred_check_branch
      %55 = sbr.rel (0) target = $region17
    $region16: #{tpu_custom_call.1} parent=1 // pred_region
      %s57 = ssub.s32 49152, 49152
      %58 = vsyncadd [#allocation10], %s57
      %s59 = sshll.u32 [#allocation9], 4
      %s60 = int_to_ptr.vmem [resolvable:$true] %s59
      %65 = dma.hbm_to_vmem [thread:$0]  %s3, 49152, %s60, [#allocation10], 256, 256, 16
    $region17: #{tpu_custom_call.1} parent=1 // pred_fallthru
      _
    // Predicated region
    $region18: #{tpu_custom_call.1} parent=1 // pred_check
      _
    $region19: #{tpu_custom_call.1} parent=1 // pred_check_branch
      %67 = sbr.rel (0) target = $region21
    $region20: #{tpu_custom_call.1} parent=1 // pred_region
      %s69 = ssub.s32 256, 256
      %70 = vsyncadd [#allocation10], %s69
      %s72 = sshll.u32 [#allocation11], 4
      %s73 = int_to_ptr.vmem [resolvable:$true] %s72
      %75 = dma.hbm_to_vmem [thread:$0]  %s4, 256, %s73, [#allocation10]
    $region21: #{tpu_custom_call.1} parent=1 // pred_fallthru
      _
    // Predicated region
    $region22: #{tpu_custom_call.1} parent=1 // pred_check
      _
    $region23: #{tpu_custom_call.1} parent=1 // pred_check_branch
      %77 = sbr.rel (0) target = $region25
    $region24: #{tpu_custom_call.1} parent=1 // pred_region
      %s79 = ssub.s32 32768, 32768
      %80 = vsyncadd [#allocation13], %s79
      %s81 = sshll.u32 [#allocation12], 4
      %s82 = int_to_ptr.vmem [resolvable:$true] %s81
      %87 = dma.hbm_to_vmem [thread:$0]  %s5, 32768, %s82, [#allocation13], 512, 512, 32
    $region25: #{tpu_custom_call.1} parent=1 // pred_fallthru
      _
    // Predicated region
    $region26: #{tpu_custom_call.1} parent=1 // pred_check
      _
    $region27: #{tpu_custom_call.1} parent=1 // pred_check_branch
      %89 = sbr.rel (0) target = $region29
    $region28: #{tpu_custom_call.1} parent=1 // pred_region
      %s91 = ssub.s32 128, 128
      %92 = vsyncadd [#allocation13], %s91
      %s94 = sshll.u32 [#allocation14], 4
      %s95 = int_to_ptr.vmem [resolvable:$true] %s94
      %97 = dma.hbm_to_vmem [thread:$0]  %s6, 128, %s95, [#allocation13]
    $region29: #{tpu_custom_call.1} parent=1 // pred_fallthru
      _
    // Predicated region
    $region30: #{tpu_custom_call.1} parent=1 // pred_check
      _
    $region31: #{tpu_custom_call.1} parent=1 // pred_check_branch
      %99 = sbr.rel (0) target = $region33
    $region32: #{tpu_custom_call.1} parent=1 // pred_region
      %s101 = ssub.s32 65536, 65536
      %102 = vsyncadd [#allocation16], %s101
      %s103 = sshll.u32 [#allocation15], 4
      %s104 = int_to_ptr.vmem [resolvable:$true] %s103
      %109 = dma.hbm_to_vmem [thread:$0]  %s7, 65536, %s104, [#allocation16], 512, 512, 32
    $region33: #{tpu_custom_call.1} parent=1 // pred_fallthru
      _
    // Predicated region
    $region34: #{tpu_custom_call.1} parent=1 // pred_check
      _
    $region35: #{tpu_custom_call.1} parent=1 // pred_check_branch
      %111 = sbr.rel (0) target = $region37
    $region36: #{tpu_custom_call.1} parent=1 // pred_region
      %s113 = ssub.s32 256, 256
      %114 = vsyncadd [#allocation16], %s113
      %s116 = sshll.u32 [#allocation17], 4
      %s117 = int_to_ptr.vmem [resolvable:$true] %s116
      %119 = dma.hbm_to_vmem [thread:$0]  %s8, 256, %s117, [#allocation16]
    $region37: #{tpu_custom_call.1} parent=1 // pred_fallthru
      _
    // Predicated region
    $region38: #{tpu_custom_call.1} parent=1 // pred_check
      _
    $region39: #{tpu_custom_call.1} parent=1 // pred_check_branch
      %121 = sbr.rel (0) target = $region41
    $region40: #{tpu_custom_call.1} parent=1 // pred_region
      %s123 = ssub.s32 16, 16
      %124 = vsyncadd [#allocation5], %s123
      %127 = dma.hbm_to_smem %s9, 16, [#allocation18], [#allocation5]
    $region41: #{tpu_custom_call.1} parent=1 // pred_fallthru
      _
    // Predicated region
    $region42: #{tpu_custom_call.1} parent=1 // pred_check
      _
    $region43: #{tpu_custom_call.1} parent=1 // pred_check_branch
      %129 = sbr.rel (0) target = $region45
    $region44: #{tpu_custom_call.1} parent=1 // pred_region
      %130 = dma.done [#allocation3], 128
    $region45: #{tpu_custom_call.1} parent=1 // pred_fallthru
      _
    // Predicated region
    $region46: #{tpu_custom_call.1} parent=1 // pred_check
      _
    $region47: #{tpu_custom_call.1} parent=1 // pred_check_branch
      %132 = sbr.rel (0) target = $region49
    $region48: #{tpu_custom_call.1} parent=1 // pred_region
      %133 = dma.done [#allocation7], 4096
    $region49: #{tpu_custom_call.1} parent=1 // pred_fallthru
      _
    // Predicated region
    $region50: #{tpu_custom_call.1} parent=1 // pred_check
      _
    $region51: #{tpu_custom_call.1} parent=1 // pred_check_branch
      %135 = sbr.rel (0) target = $region53
    $region52: #{tpu_custom_call.1} parent=1 // pred_region
      %136 = dma.done [#allocation7], 64
    $region53: #{tpu_custom_call.1} parent=1 // pred_fallthru
      _
    // Predicated region
    $region54: #{tpu_custom_call.1} parent=1 // pred_check
      _
    $region55: #{tpu_custom_call.1} parent=1 // pred_check_branch
      %138 = sbr.rel (0) target = $region57
    $region56: #{tpu_custom_call.1} parent=1 // pred_region
      %139 = dma.done [#allocation10], 49152
    $region57: #{tpu_custom_call.1} parent=1 // pred_fallthru
      _
    // Predicated region
    $region58: #{tpu_custom_call.1} parent=1 // pred_check
      _
    $region59: #{tpu_custom_call.1} parent=1 // pred_check_branch
      %141 = sbr.rel (0) target = $region61
    $region60: #{tpu_custom_call.1} parent=1 // pred_region
      %142 = dma.done [#allocation10], 256
    $region61: #{tpu_custom_call.1} parent=1 // pred_fallthru
      _
    // Predicated region
    $region62: #{tpu_custom_call.1} parent=1 // pred_check
      _
    $region63: #{tpu_custom_call.1} parent=1 // pred_check_branch
      %144 = sbr.rel (0) target = $region65
    $region64: #{tpu_custom_call.1} parent=1 // pred_region
      %145 = dma.done [#allocation13], 32768
    $region65: #{tpu_custom_call.1} parent=1 // pred_fallthru
      _
    // Predicated region
    $region66: #{tpu_custom_call.1} parent=1 // pred_check
      _
    $region67: #{tpu_custom_call.1} parent=1 // pred_check_branch
      %147 = sbr.rel (0) target = $region69
    $region68: #{tpu_custom_call.1} parent=1 // pred_region
      %148 = dma.done [#allocation13], 128
    $region69: #{tpu_custom_call.1} parent=1 // pred_fallthru
      _
    // Predicated region
    $region70: #{tpu_custom_call.1} parent=1 // pred_check
      _
    $region71: #{tpu_custom_call.1} parent=1 // pred_check_branch
      %150 = sbr.rel (0) target = $region73
    $region72: #{tpu_custom_call.1} parent=1 // pred_region
      %151 = dma.done [#allocation16], 65536
    $region73: #{tpu_custom_call.1} parent=1 // pred_fallthru
      _
    // Predicated region
    $region74: #{tpu_custom_call.1} parent=1 // pred_check
      _
    $region75: #{tpu_custom_call.1} parent=1 // pred_check_branch
      %153 = sbr.rel (0) target = $region77
    $region76: #{tpu_custom_call.1} parent=1 // pred_region
      %154 = dma.done [#allocation16], 256
    $region77: #{tpu_custom_call.1} parent=1 // pred_fallthru
      _
    // Predicated region
    $region78: #{tpu_custom_call.1} parent=1 // pred_check
      _
    $region79: #{tpu_custom_call.1} parent=1 // pred_check_branch
      %156 = sbr.rel (0) target = $region81
    $region80: #{tpu_custom_call.1} parent=1 // pred_region
      %157 = dma.done [#allocation5], 16
    $region81: #{tpu_custom_call.1} parent=1 // pred_fallthru
      _
    %158 = sfence
    %v160 = vld [vmem:[#allocation2] sm:$0xff]
    %v161 = vpack.c.bf16 %v160, %v160
    %v162 = vld [vmem:[#allocation6] sm:$0xff]
    %v163 = vld [vmem:[#allocation6 + $0x8] sm:$0xff]
    %v164 = vld [vmem:[#allocation6 + $0x10] sm:$0xff]
    %v165 = vld [vmem:[#allocation6 + $0x18] sm:$0xff]
    %v166 = vld [vmem:[#allocation6 + $0x20] sm:$0xff]
    %v167 = vld [vmem:[#allocation6 + $0x28] sm:$0xff]
    %v168 = vld [vmem:[#allocation6 + $0x30] sm:$0xff]
    %v169 = vld [vmem:[#allocation6 + $0x38] sm:$0xff]
    %v170 = vld [vmem:[#allocation6 + $0x40] sm:$0xff]
    %v171 = vld [vmem:[#allocation6 + $0x48] sm:$0xff]
    %v172 = vld [vmem:[#allocation6 + $0x50] sm:$0xff]
    %v173 = vld [vmem:[#allocation6 + $0x58] sm:$0xff]
    %v174 = vld [vmem:[#allocation6 + $0x60] sm:$0xff]
    %v175 = vld [vmem:[#allocation6 + $0x68] sm:$0xff]
    %v176 = vld [vmem:[#allocation6 + $0x70] sm:$0xff]
    %v177 = vld [vmem:[#allocation6 + $0x78] sm:$0xff]
    %v178 = vld [vmem:[#allocation6 + $0x80] sm:$0xff]
    %v179 = vld [vmem:[#allocation6 + $0x88] sm:$0xff]
    %v180 = vld [vmem:[#allocation6 + $0x90] sm:$0xff]
    %v181 = vld [vmem:[#allocation6 + $0x98] sm:$0xff]
    %v182 = vld [vmem:[#allocation6 + $0xa0] sm:$0xff]
    %v183 = vld [vmem:[#allocation6 + $0xa8] sm:$0xff]
    %v184 = vld [vmem:[#allocation6 + $0xb0] sm:$0xff]
    %v185 = vld [vmem:[#allocation6 + $0xb8] sm:$0xff]
    %v186 = vld [vmem:[#allocation6 + $0xc0] sm:$0xff]
    %v187 = vld [vmem:[#allocation6 + $0xc8] sm:$0xff]
    %v188 = vld [vmem:[#allocation6 + $0xd0] sm:$0xff]
    %v189 = vld [vmem:[#allocation6 + $0xd8] sm:$0xff]
    %v190 = vld [vmem:[#allocation6 + $0xe0] sm:$0xff]
    %v191 = vld [vmem:[#allocation6 + $0xe8] sm:$0xff]
    %v192 = vld [vmem:[#allocation6 + $0xf0] sm:$0xff]
    %v193 = vld [vmem:[#allocation6 + $0xf8] sm:$0xff]
    %v194 = vld [vmem:[#allocation8] sm:$0xf]
    %v196 = vlaneseq
    %v197 = vshrl.u32 %v196, 7
    %v198 = vsub.s32 0, %v197
    %v199 = vrot.slane %v194, %v198
    %v200 = vlaneseq
    %v201 = vshrl.u32 %v200, 7
    %v202 = vsub.s32 1, %v201
    %v203 = vrot.slane %v194, %v202
    %v204 = vlaneseq
    %v205 = vshrl.u32 %v204, 7
    %v206 = vsub.s32 2, %v205
    %v207 = vrot.slane %v194, %v206
    %v208 = vlaneseq
    %v209 = vshrl.u32 %v208, 7
    %v210 = vsub.s32 3, %v209
    %v211 = vrot.slane %v194, %v210
    %v248 = vunpack.c.l.b16 %v162
    %v249 = vunpack.c.h.b16 %v162
    %v250 = vunpack.c.l.b16 %v163
    %v251 = vunpack.c.h.b16 %v163
    %v252 = vunpack.c.l.b16 %v164
    %v253 = vunpack.c.h.b16 %v164
    %v254 = vunpack.c.l.b16 %v165
    %v255 = vunpack.c.h.b16 %v165
    %v256 = vunpack.c.l.b16 %v166
    %v257 = vunpack.c.h.b16 %v166
    %v258 = vunpack.c.l.b16 %v167
    %v259 = vunpack.c.h.b16 %v167
    %v260 = vunpack.c.l.b16 %v168
    %v261 = vunpack.c.h.b16 %v168
    %v262 = vunpack.c.l.b16 %v169
    %v263 = vunpack.c.h.b16 %v169
    %v264 = vunpack.c.l.b16 %v170
    %v265 = vunpack.c.h.b16 %v170
    %v266 = vunpack.c.l.b16 %v171
    %v267 = vunpack.c.h.b16 %v171
    %v268 = vunpack.c.l.b16 %v172
    %v269 = vunpack.c.h.b16 %v172
    %v270 = vunpack.c.l.b16 %v173
    %v271 = vunpack.c.h.b16 %v173
    %v272 = vunpack.c.l.b16 %v174
    %v273 = vunpack.c.h.b16 %v174
    %v274 = vunpack.c.l.b16 %v175
    %v275 = vunpack.c.h.b16 %v175
    %v276 = vunpack.c.l.b16 %v176
    %v277 = vunpack.c.h.b16 %v176
    %v278 = vunpack.c.l.b16 %v177
    %v279 = vunpack.c.h.b16 %v177
    %v280 = vunpack.c.l.b16 %v178
    %v281 = vunpack.c.h.b16 %v178
    %v282 = vunpack.c.l.b16 %v179
    %v283 = vunpack.c.h.b16 %v179
    %v284 = vunpack.c.l.b16 %v180
    %v285 = vunpack.c.h.b16 %v180
    %v286 = vunpack.c.l.b16 %v181
    %v287 = vunpack.c.h.b16 %v181
    %v288 = vunpack.c.l.b16 %v182
    %v289 = vunpack.c.h.b16 %v182
    %v290 = vunpack.c.l.b16 %v183
    %v291 = vunpack.c.h.b16 %v183
    %v292 = vunpack.c.l.b16 %v184
    %v293 = vunpack.c.h.b16 %v184
    %v294 = vunpack.c.l.b16 %v185
    %v295 = vunpack.c.h.b16 %v185
    %v296 = vunpack.c.l.b16 %v186
    %v297 = vunpack.c.h.b16 %v186
    %v298 = vunpack.c.l.b16 %v187
    %v299 = vunpack.c.h.b16 %v187
    %v300 = vunpack.c.l.b16 %v188
    %v301 = vunpack.c.h.b16 %v188
    %v302 = vunpack.c.l.b16 %v189
    %v303 = vunpack.c.h.b16 %v189
    %v304 = vunpack.c.l.b16 %v190
    %v305 = vunpack.c.h.b16 %v190
    %v306 = vunpack.c.l.b16 %v191
    %v307 = vunpack.c.h.b16 %v191
    %v308 = vunpack.c.l.b16 %v192
    %v309 = vunpack.c.h.b16 %v192
    %v310 = vunpack.c.l.b16 %v193
    %v311 = vunpack.c.h.b16 %v193
    %v312 = vpack.c.b16 %v252, %v248
    %v313 = vpack.c.b16 %v253, %v249
    %v314 = vpack.c.b16 %v254, %v250
    %v315 = vpack.c.b16 %v255, %v251
    %v316 = vpack.c.b16 %v260, %v256
    %v317 = vpack.c.b16 %v261, %v257
    %v318 = vpack.c.b16 %v262, %v258
    %v319 = vpack.c.b16 %v263, %v259
    %v320 = vpack.c.b16 %v268, %v264
    %v321 = vpack.c.b16 %v269, %v265
    %v322 = vpack.c.b16 %v270, %v266
    %v323 = vpack.c.b16 %v271, %v267
    %v324 = vpack.c.b16 %v276, %v272
    %v325 = vpack.c.b16 %v277, %v273
    %v326 = vpack.c.b16 %v278, %v274
    %v327 = vpack.c.b16 %v279, %v275
    %v328 = vpack.c.b16 %v284, %v280
    %v329 = vpack.c.b16 %v285, %v281
    %v330 = vpack.c.b16 %v286, %v282
    %v331 = vpack.c.b16 %v287, %v283
    %v332 = vpack.c.b16 %v292, %v288
    %v333 = vpack.c.b16 %v293, %v289
    %v334 = vpack.c.b16 %v294, %v290
    %v335 = vpack.c.b16 %v295, %v291
    %v336 = vpack.c.b16 %v300, %v296
    %v337 = vpack.c.b16 %v301, %v297
    %v338 = vpack.c.b16 %v302, %v298
    %v339 = vpack.c.b16 %v303, %v299
    %v340 = vpack.c.b16 %v308, %v304
    %v341 = vpack.c.b16 %v309, %v305
    %v342 = vpack.c.b16 %v310, %v306
    %v343 = vpack.c.b16 %v311, %v307
    %376 = vmatprep.subr.bf16.mxu0 %v341
    %377 = vmatpush1.bf16.msra.mxu0 %v340
    %378 = vmatprep.subr.bf16.mxu0 %v337
    %379 = vmatpush1.bf16.msra.mxu0 %v336
    %380 = vmatprep.subr.bf16.mxu0 %v333
    %381 = vmatpush1.bf16.msra.mxu0 %v332
    %382 = vmatprep.subr.bf16.mxu0 %v329
    %383 = vmatpush1.bf16.msra.mxu0 %v328
    %384 = vmatprep.subr.bf16.mxu0 %v325
    %385 = vmatpush1.bf16.msra.mxu0 %v324
    %386 = vmatprep.subr.bf16.mxu0 %v321
    %387 = vmatpush1.bf16.msra.mxu0 %v320
    %388 = vmatprep.subr.bf16.mxu0 %v317
    %389 = vmatpush1.bf16.msra.mxu0 %v316
    %390 = vmatprep.subr.bf16.mxu0 %v313
    %391 = vmatpush1.bf16.msra.mxu0 %v312
    %392 = vmatprep.subr.bf16.mxu0 0
    %393 = vmatpush2.bf16.msra.mxu0 0
    %394 = vmatprep.subr.bf16.mxu0 0
    %395 = vmatpush2.bf16.msra.mxu0 0
    %396 = vmatprep.subr.bf16.mxu0 0
    %397 = vmatpush2.bf16.msra.mxu0 0
    %398 = vmatprep.subr.bf16.mxu0 0
    %399 = vmatpush2.bf16.msra.mxu0 0
    %400 = vmatprep.subr.bf16.mxu0 0
    %401 = vmatpush2.bf16.msra.mxu0 0
    %402 = vmatprep.subr.bf16.mxu0 0
    %403 = vmatpush2.bf16.msra.mxu0 0
    %404 = vmatprep.subr.bf16.mxu0 0
    %405 = vmatpush2.bf16.msra.mxu0 0
    %406 = vmatprep.subr.bf16.mxu0 0
    %407 = vmatpush2.bf16.msra.mxu0 0
    %408 = vmatprep.mubr.bf16.mxu0 0
    %409 = vmatmul.mubr.bf16.gmra.mxu0 %v161
    %v410 = vpop.f32.mrf.mxu0
    %v411 = vadd.f32 %v199, %v410
    %v412 = vpop.f32.mrf.mxu0
    %v413 = vadd.f32 %v203, %v412
    %v414 = vpop.f32.mrf.mxu0
    %v415 = vpop.f32.mrf.mxu0
    %416 = vdwg.mxu0
    %417 = vmatprep.subr.bf16.mxu0 %v343
    %418 = vmatpush1.bf16.msra.mxu0 %v342
    %419 = vmatprep.subr.bf16.mxu0 %v339
    %420 = vmatpush1.bf16.msra.mxu0 %v338
    %421 = vmatprep.subr.bf16.mxu0 %v335
    %422 = vmatpush1.bf16.msra.mxu0 %v334
    %423 = vmatprep.subr.bf16.mxu0 %v331
    %424 = vmatpush1.bf16.msra.mxu0 %v330
    %425 = vmatprep.subr.bf16.mxu0 %v327
    %426 = vmatpush1.bf16.msra.mxu0 %v326
    %427 = vmatprep.subr.bf16.mxu0 %v323
    %428 = vmatpush1.bf16.msra.mxu0 %v322
    %429 = vmatprep.subr.bf16.mxu0 %v319
    %430 = vmatpush1.bf16.msra.mxu0 %v318
    %431 = vmatprep.subr.bf16.mxu0 %v315
    %432 = vmatpush1.bf16.msra.mxu0 %v314
    %433 = vmatprep.subr.bf16.mxu0 0
    %434 = vmatpush2.bf16.msra.mxu0 0
    %435 = vmatprep.subr.bf16.mxu0 0
    %436 = vmatpush2.bf16.msra.mxu0 0
    %437 = vmatprep.subr.bf16.mxu0 0
    %438 = vmatpush2.bf16.msra.mxu0 0
    %439 = vmatprep.subr.bf16.mxu0 0
    %440 = vmatpush2.bf16.msra.mxu0 0
    %441 = vmatprep.subr.bf16.mxu0 0
    %442 = vmatpush2.bf16.msra.mxu0 0
    %443 = vmatprep.subr.bf16.mxu0 0
    %444 = vmatpush2.bf16.msra.mxu0 0
    %445 = vmatprep.subr.bf16.mxu0 0
    %446 = vmatpush2.bf16.msra.mxu0 0
    %447 = vmatprep.subr.bf16.mxu0 0
    %448 = vmatpush2.bf16.msra.mxu0 0
    %449 = vmatprep.mubr.bf16.mxu0 0
    %450 = vmatmul.mubr.bf16.gmra.mxu0 %v161
    %v451 = vpop.f32.mrf.mxu0
    %v452 = vadd.f32 %v207, %v451
    %v453 = vpop.f32.mrf.mxu0
    %v454 = vadd.f32 %v211, %v453
    %v455 = vpop.f32.mrf.mxu0
    %v456 = vpop.f32.mrf.mxu0
    %457 = vdwg.mxu0
    %s458 = sld [smem:[#allocation18]]
    %vm459 = vcmp.gt.f32.partialorder %v411, 0.0
    %vm460 = vcmp.gt.f32.partialorder %v413, 0.0
    %vm461 = vcmp.gt.f32.partialorder %v452, 0.0
    %vm462 = vcmp.gt.f32.partialorder %v454, 0.0
    %v463 = vstv %s458
    %v464 = vmul.f32 %v463, %v411
    %v465 = vmul.f32 %v463, %v413
    %v466 = vmul.f32 %v463, %v452
    %v467 = vmul.f32 %v463, %v454
    %v468 = vsel %vm459, %v411, %v464
    %v469 = vsel %vm460, %v413, %v465
    %v470 = vsel %vm461, %v452, %v466
    %v471 = vsel %vm462, %v454, %v467
    %v472 = vpack.c.bf16 %v468, %v468
    %v473 = vpack.c.bf16 %v469, %v469
    %v474 = vpack.c.bf16 %v470, %v470
    %v475 = vpack.c.bf16 %v471, %v471
    %v476 = vld [vmem:[#allocation9] sm:$0xff]
    %v477 = vld [vmem:[#allocation9 + $0x8] sm:$0xff]
    %v478 = vld [vmem:[#allocation9 + $0x10] sm:$0xff]
    %v479 = vld [vmem:[#allocation9 + $0x18] sm:$0xff]
    %v480 = vld [vmem:[#allocation9 + $0x20] sm:$0xff]
    %v481 = vld [vmem:[#allocation9 + $0x28] sm:$0xff]
    %v482 = vld [vmem:[#allocation9 + $0x30] sm:$0xff]
    %v483 = vld [vmem:[#allocation9 + $0x38] sm:$0xff]
    %v484 = vld [vmem:[#allocation9 + $0x40] sm:$0xff]
    %v485 = vld [vmem:[#allocation9 + $0x48] sm:$0xff]
    %v486 = vld [vmem:[#allocation9 + $0x50] sm:$0xff]
    %v487 = vld [vmem:[#allocation9 + $0x58] sm:$0xff]
    %v488 = vld [vmem:[#allocation9 + $0x60] sm:$0xff]
    %v489 = vld [vmem:[#allocation9 + $0x68] sm:$0xff]
    %v490 = vld [vmem:[#allocation9 + $0x70] sm:$0xff]
    %v491 = vld [vmem:[#allocation9 + $0x78] sm:$0xff]
    %v492 = vld [vmem:[#allocation9 + $0x80] sm:$0xff]
    %v493 = vld [vmem:[#allocation9 + $0x88] sm:$0xff]
    %v494 = vld [vmem:[#allocation9 + $0x90] sm:$0xff]
    %v495 = vld [vmem:[#allocation9 + $0x98] sm:$0xff]
    %v496 = vld [vmem:[#allocation9 + $0xa0] sm:$0xff]
    %v497 = vld [vmem:[#allocation9 + $0xa8] sm:$0xff]
    %v498 = vld [vmem:[#allocation9 + $0xb0] sm:$0xff]
    %v499 = vld [vmem:[#allocation9 + $0xb8] sm:$0xff]
    %v500 = vld [vmem:[#allocation9 + $0xc0] sm:$0xff]
    %v501 = vld [vmem:[#allocation9 + $0xc8] sm:$0xff]
    %v502 = vld [vmem:[#allocation9 + $0xd0] sm:$0xff]
    %v503 = vld [vmem:[#allocation9 + $0xd8] sm:$0xff]
    %v504 = vld [vmem:[#allocation9 + $0xe0] sm:$0xff]
    %v505 = vld [vmem:[#allocation9 + $0xe8] sm:$0xff]
    %v506 = vld [vmem:[#allocation9 + $0xf0] sm:$0xff]
    %v507 = vld [vmem:[#allocation9 + $0xf8] sm:$0xff]
    %v508 = vld [vmem:[#allocation9 + $0x100] sm:$0xff]
    %v509 = vld [vmem:[#allocation9 + $0x108] sm:$0xff]
    %v510 = vld [vmem:[#allocation9 + $0x110] sm:$0xff]
    %v511 = vld [vmem:[#allocation9 + $0x118] sm:$0xff]
    %v512 = vld [vmem:[#allocation9 + $0x120] sm:$0xff]
    %v513 = vld [vmem:[#allocation9 + $0x128] sm:$0xff]
    %v514 = vld [vmem:[#allocation9 + $0x130] sm:$0xff]
    %v515 = vld [vmem:[#allocation9 + $0x138] sm:$0xff]
    %v516 = vld [vmem:[#allocation9 + $0x140] sm:$0xff]
    %v517 = vld [vmem:[#allocation9 + $0x148] sm:$0xff]
    %v518 = vld [vmem:[#allocation9 + $0x150] sm:$0xff]
    %v519 = vld [vmem:[#allocation9 + $0x158] sm:$0xff]
    %v520 = vld [vmem:[#allocation9 + $0x160] sm:$0xff]
    %v521 = vld [vmem:[#allocation9 + $0x168] sm:$0xff]
    %v522 = vld [vmem:[#allocation9 + $0x170] sm:$0xff]
    %v523 = vld [vmem:[#allocation9 + $0x178] sm:$0xff]
    %v524 = vld [vmem:[#allocation9 + $0x180] sm:$0xff]
    %v525 = vld [vmem:[#allocation9 + $0x188] sm:$0xff]
    %v526 = vld [vmem:[#allocation9 + $0x190] sm:$0xff]
    %v527 = vld [vmem:[#allocation9 + $0x198] sm:$0xff]
    %v528 = vld [vmem:[#allocation9 + $0x1a0] sm:$0xff]
    %v529 = vld [vmem:[#allocation9 + $0x1a8] sm:$0xff]
    %v530 = vld [vmem:[#allocation9 + $0x1b0] sm:$0xff]
    %v531 = vld [vmem:[#allocation9 + $0x1b8] sm:$0xff]
    %v532 = vld [vmem:[#allocation9 + $0x1c0] sm:$0xff]
    %v533 = vld [vmem:[#allocation9 + $0x1c8] sm:$0xff]
    %v534 = vld [vmem:[#allocation9 + $0x1d0] sm:$0xff]
    %v535 = vld [vmem:[#allocation9 + $0x1d8] sm:$0xff]
    %v536 = vld [vmem:[#allocation9 + $0x1e0] sm:$0xff]
    %v537 = vld [vmem:[#allocation9 + $0x1e8] sm:$0xff]
    %v538 = vld [vmem:[#allocation9 + $0x1f0] sm:$0xff]
    %v539 = vld [vmem:[#allocation9 + $0x1f8] sm:$0xff]
    %v540 = vld [vmem:[#allocation9 + $0x200] sm:$0xff]
    %v541 = vld [vmem:[#allocation9 + $0x208] sm:$0xff]
    %v542 = vld [vmem:[#allocation9 + $0x210] sm:$0xff]
    %v543 = vld [vmem:[#allocation9 + $0x218] sm:$0xff]
    %v544 = vld [vmem:[#allocation9 + $0x220] sm:$0xff]
    %v545 = vld [vmem:[#allocation9 + $0x228] sm:$0xff]
    %v546 = vld [vmem:[#allocation9 + $0x230] sm:$0xff]
    %v547 = vld [vmem:[#allocation9 + $0x238] sm:$0xff]
    %v548 = vld [vmem:[#allocation9 + $0x240] sm:$0xff]
    %v549 = vld [vmem:[#allocation9 + $0x248] sm:$0xff]
    %v550 = vld [vmem:[#allocation9 + $0x250] sm:$0xff]
    %v551 = vld [vmem:[#allocation9 + $0x258] sm:$0xff]
    %v552 = vld [vmem:[#allocation9 + $0x260] sm:$0xff]
    %v553 = vld [vmem:[#allocation9 + $0x268] sm:$0xff]
    %v554 = vld [vmem:[#allocation9 + $0x270] sm:$0xff]
    %v555 = vld [vmem:[#allocation9 + $0x278] sm:$0xff]
    %v556 = vld [vmem:[#allocation9 + $0x280] sm:$0xff]
    %v557 = vld [vmem:[#allocation9 + $0x288] sm:$0xff]
    %v558 = vld [vmem:[#allocation9 + $0x290] sm:$0xff]
    %v559 = vld [vmem:[#allocation9 + $0x298] sm:$0xff]
    %v560 = vld [vmem:[#allocation9 + $0x2a0] sm:$0xff]
    %v561 = vld [vmem:[#allocation9 + $0x2a8] sm:$0xff]
    %v562 = vld [vmem:[#allocation9 + $0x2b0] sm:$0xff]
    %v563 = vld [vmem:[#allocation9 + $0x2b8] sm:$0xff]
    %v564 = vld [vmem:[#allocation9 + $0x2c0] sm:$0xff]
    %v565 = vld [vmem:[#allocation9 + $0x2c8] sm:$0xff]
    %v566 = vld [vmem:[#allocation9 + $0x2d0] sm:$0xff]
    %v567 = vld [vmem:[#allocation9 + $0x2d8] sm:$0xff]
    %v568 = vld [vmem:[#allocation9 + $0x2e0] sm:$0xff]
    %v569 = vld [vmem:[#allocation9 + $0x2e8] sm:$0xff]
    %v570 = vld [vmem:[#allocation9 + $0x2f0] sm:$0xff]
    %v571 = vld [vmem:[#allocation9 + $0x2f8] sm:$0xff]
    %v572 = vld [vmem:[#allocation9 + $0x300] sm:$0xff]
    %v573 = vld [vmem:[#allocation9 + $0x308] sm:$0xff]
    %v574 = vld [vmem:[#allocation9 + $0x310] sm:$0xff]
    %v575 = vld [vmem:[#allocation9 + $0x318] sm:$0xff]
    %v576 = vld [vmem:[#allocation9 + $0x320] sm:$0xff]
    %v577 = vld [vmem:[#allocation9 + $0x328] sm:$0xff]
    %v578 = vld [vmem:[#allocation9 + $0x330] sm:$0xff]
    %v579 = vld [vmem:[#allocation9 + $0x338] sm:$0xff]
    %v580 = vld [vmem:[#allocation9 + $0x340] sm:$0xff]
    %v581 = vld [vmem:[#allocation9 + $0x348] sm:$0xff]
    %v582 = vld [vmem:[#allocation9 + $0x350] sm:$0xff]
    %v583 = vld [vmem:[#allocation9 + $0x358] sm:$0xff]
    %v584 = vld [vmem:[#allocation9 + $0x360] sm:$0xff]
    %v585 = vld [vmem:[#allocation9 + $0x368] sm:$0xff]
    %v586 = vld [vmem:[#allocation9 + $0x370] sm:$0xff]
    %v587 = vld [vmem:[#allocation9 + $0x378] sm:$0xff]
    %v588 = vld [vmem:[#allocation9 + $0x380] sm:$0xff]
    %v589 = vld [vmem:[#allocation9 + $0x388] sm:$0xff]
    %v590 = vld [vmem:[#allocation9 + $0x390] sm:$0xff]
    %v591 = vld [vmem:[#allocation9 + $0x398] sm:$0xff]
    %v592 = vld [vmem:[#allocation9 + $0x3a0] sm:$0xff]
    %v593 = vld [vmem:[#allocation9 + $0x3a8] sm:$0xff]
    %v594 = vld [vmem:[#allocation9 + $0x3b0] sm:$0xff]
    %v595 = vld [vmem:[#allocation9 + $0x3b8] sm:$0xff]
    %v596 = vld [vmem:[#allocation9 + $0x3c0] sm:$0xff]
    %v597 = vld [vmem:[#allocation9 + $0x3c8] sm:$0xff]
    %v598 = vld [vmem:[#allocation9 + $0x3d0] sm:$0xff]
    %v599 = vld [vmem:[#allocation9 + $0x3d8] sm:$0xff]
    %v600 = vld [vmem:[#allocation9 + $0x3e0] sm:$0xff]
    %v601 = vld [vmem:[#allocation9 + $0x3e8] sm:$0xff]
    %v602 = vld [vmem:[#allocation9 + $0x3f0] sm:$0xff]
    %v603 = vld [vmem:[#allocation9 + $0x3f8] sm:$0xff]
    %v604 = vld [vmem:[#allocation11] ss:$4 sm:$0xf]
    %v606 = vlaneseq
    %v607 = vshrl.u32 %v606, 7
    %v608 = vsub.s32 0, %v607
    %v609 = vrot.slane %v604, %v608
    %v610 = vlaneseq
    %v611 = vshrl.u32 %v610, 7
    %v612 = vsub.s32 1, %v611
    %v613 = vrot.slane %v604, %v612
    %v614 = vlaneseq
    %v615 = vshrl.u32 %v614, 7
    %v616 = vsub.s32 2, %v615
    %v617 = vrot.slane %v604, %v616
    %v618 = vlaneseq
    %v619 = vshrl.u32 %v618, 7
    %v620 = vsub.s32 3, %v619
    %v621 = vrot.slane %v604, %v620
    %v754 = vunpack.c.l.b16 %v476
    %v755 = vunpack.c.h.b16 %v476
    %v756 = vunpack.c.l.b16 %v477
    %v757 = vunpack.c.h.b16 %v477
    %v758 = vunpack.c.l.b16 %v478
    %v759 = vunpack.c.h.b16 %v478
    %v760 = vunpack.c.l.b16 %v479
    %v761 = vunpack.c.h.b16 %v479
    %v762 = vunpack.c.l.b16 %v480
    %v763 = vunpack.c.h.b16 %v480
    %v764 = vunpack.c.l.b16 %v481
    %v765 = vunpack.c.h.b16 %v481
    %v766 = vunpack.c.l.b16 %v482
    %v767 = vunpack.c.h.b16 %v482
    %v768 = vunpack.c.l.b16 %v483
    %v769 = vunpack.c.h.b16 %v483
    %v770 = vunpack.c.l.b16 %v484
    %v771 = vunpack.c.h.b16 %v484
    %v772 = vunpack.c.l.b16 %v485
    %v773 = vunpack.c.h.b16 %v485
    %v774 = vunpack.c.l.b16 %v486
    %v775 = vunpack.c.h.b16 %v486
    %v776 = vunpack.c.l.b16 %v487
    %v777 = vunpack.c.h.b16 %v487
    %v778 = vunpack.c.l.b16 %v488
    %v779 = vunpack.c.h.b16 %v488
    %v780 = vunpack.c.l.b16 %v489
    %v781 = vunpack.c.h.b16 %v489
    %v782 = vunpack.c.l.b16 %v490
    %v783 = vunpack.c.h.b16 %v490
    %v784 = vunpack.c.l.b16 %v491
    %v785 = vunpack.c.h.b16 %v491
    %v786 = vunpack.c.l.b16 %v492
    %v787 = vunpack.c.h.b16 %v492
    %v788 = vunpack.c.l.b16 %v493
    %v789 = vunpack.c.h.b16 %v493
    %v790 = vunpack.c.l.b16 %v494
    %v791 = vunpack.c.h.b16 %v494
    %v792 = vunpack.c.l.b16 %v495
    %v793 = vunpack.c.h.b16 %v495
    %v794 = vunpack.c.l.b16 %v496
    %v795 = vunpack.c.h.b16 %v496
    %v796 = vunpack.c.l.b16 %v497
    %v797 = vunpack.c.h.b16 %v497
    %v798 = vunpack.c.l.b16 %v498
    %v799 = vunpack.c.h.b16 %v498
    %v800 = vunpack.c.l.b16 %v499
    %v801 = vunpack.c.h.b16 %v499
    %v802 = vunpack.c.l.b16 %v500
    %v803 = vunpack.c.h.b16 %v500
    %v804 = vunpack.c.l.b16 %v501
    %v805 = vunpack.c.h.b16 %v501
    %v806 = vunpack.c.l.b16 %v502
    %v807 = vunpack.c.h.b16 %v502
    %v808 = vunpack.c.l.b16 %v503
    %v809 = vunpack.c.h.b16 %v503
    %v810 = vunpack.c.l.b16 %v504
    %v811 = vunpack.c.h.b16 %v504
    %v812 = vunpack.c.l.b16 %v505
    %v813 = vunpack.c.h.b16 %v505
    %v814 = vunpack.c.l.b16 %v506
    %v815 = vunpack.c.h.b16 %v506
    %v816 = vunpack.c.l.b16 %v507
    %v817 = vunpack.c.h.b16 %v507
    %v818 = vunpack.c.l.b16 %v508
    %v819 = vunpack.c.h.b16 %v508
    %v820 = vunpack.c.l.b16 %v509
    %v821 = vunpack.c.h.b16 %v509
    %v822 = vunpack.c.l.b16 %v510
    %v823 = vunpack.c.h.b16 %v510
    %v824 = vunpack.c.l.b16 %v511
    %v825 = vunpack.c.h.b16 %v511
    %v826 = vunpack.c.l.b16 %v512
    %v827 = vunpack.c.h.b16 %v512
    %v828 = vunpack.c.l.b16 %v513
    %v829 = vunpack.c.h.b16 %v513
    %v830 = vunpack.c.l.b16 %v514
    %v831 = vunpack.c.h.b16 %v514
    %v832 = vunpack.c.l.b16 %v515
    %v833 = vunpack.c.h.b16 %v515
    %v834 = vunpack.c.l.b16 %v516
    %v835 = vunpack.c.h.b16 %v516
    %v836 = vunpack.c.l.b16 %v517
    %v837 = vunpack.c.h.b16 %v517
    %v838 = vunpack.c.l.b16 %v518
    %v839 = vunpack.c.h.b16 %v518
    %v840 = vunpack.c.l.b16 %v519
    %v841 = vunpack.c.h.b16 %v519
    %v842 = vunpack.c.l.b16 %v520
    %v843 = vunpack.c.h.b16 %v520
    %v844 = vunpack.c.l.b16 %v521
    %v845 = vunpack.c.h.b16 %v521
    %v846 = vunpack.c.l.b16 %v522
    %v847 = vunpack.c.h.b16 %v522
    %v848 = vunpack.c.l.b16 %v523
    %v849 = vunpack.c.h.b16 %v523
    %v850 = vunpack.c.l.b16 %v524
    %v851 = vunpack.c.h.b16 %v524
    %v852 = vunpack.c.l.b16 %v525
    %v853 = vunpack.c.h.b16 %v525
    %v854 = vunpack.c.l.b16 %v526
    %v855 = vunpack.c.h.b16 %v526
    %v856 = vunpack.c.l.b16 %v527
    %v857 = vunpack.c.h.b16 %v527
    %v858 = vunpack.c.l.b16 %v528
    %v859 = vunpack.c.h.b16 %v528
    %v860 = vunpack.c.l.b16 %v529
    %v861 = vunpack.c.h.b16 %v529
    %v862 = vunpack.c.l.b16 %v530
    %v863 = vunpack.c.h.b16 %v530
    %v864 = vunpack.c.l.b16 %v531
    %v865 = vunpack.c.h.b16 %v531
    %v866 = vunpack.c.l.b16 %v532
    %v867 = vunpack.c.h.b16 %v532
    %v868 = vunpack.c.l.b16 %v533
    %v869 = vunpack.c.h.b16 %v533
    %v870 = vunpack.c.l.b16 %v534
    %v871 = vunpack.c.h.b16 %v534
    %v872 = vunpack.c.l.b16 %v535
    %v873 = vunpack.c.h.b16 %v535
    %v874 = vunpack.c.l.b16 %v536
    %v875 = vunpack.c.h.b16 %v536
    %v876 = vunpack.c.l.b16 %v537
    %v877 = vunpack.c.h.b16 %v537
    %v878 = vunpack.c.l.b16 %v538
    %v879 = vunpack.c.h.b16 %v538
    %v880 = vunpack.c.l.b16 %v539
    %v881 = vunpack.c.h.b16 %v539
    %v882 = vunpack.c.l.b16 %v540
    %v883 = vunpack.c.h.b16 %v540
    %v884 = vunpack.c.l.b16 %v541
    %v885 = vunpack.c.h.b16 %v541
    %v886 = vunpack.c.l.b16 %v542
    %v887 = vunpack.c.h.b16 %v542
    %v888 = vunpack.c.l.b16 %v543
    %v889 = vunpack.c.h.b16 %v543
    %v890 = vunpack.c.l.b16 %v544
    %v891 = vunpack.c.h.b16 %v544
    %v892 = vunpack.c.l.b16 %v545
    %v893 = vunpack.c.h.b16 %v545
    %v894 = vunpack.c.l.b16 %v546
    %v895 = vunpack.c.h.b16 %v546
    %v896 = vunpack.c.l.b16 %v547
    %v897 = vunpack.c.h.b16 %v547
    %v898 = vunpack.c.l.b16 %v548
    %v899 = vunpack.c.h.b16 %v548
    %v900 = vunpack.c.l.b16 %v549
    %v901 = vunpack.c.h.b16 %v549
    %v902 = vunpack.c.l.b16 %v550
    %v903 = vunpack.c.h.b16 %v550
    %v904 = vunpack.c.l.b16 %v551
    %v905 = vunpack.c.h.b16 %v551
    %v906 = vunpack.c.l.b16 %v552
    %v907 = vunpack.c.h.b16 %v552
    %v908 = vunpack.c.l.b16 %v553
    %v909 = vunpack.c.h.b16 %v553
    %v910 = vunpack.c.l.b16 %v554
    %v911 = vunpack.c.h.b16 %v554
    %v912 = vunpack.c.l.b16 %v555
    %v913 = vunpack.c.h.b16 %v555
    %v914 = vunpack.c.l.b16 %v556
    %v915 = vunpack.c.h.b16 %v556
    %v916 = vunpack.c.l.b16 %v557
    %v917 = vunpack.c.h.b16 %v557
    %v918 = vunpack.c.l.b16 %v558
    %v919 = vunpack.c.h.b16 %v558
    %v920 = vunpack.c.l.b16 %v559
    %v921 = vunpack.c.h.b16 %v559
    %v922 = vunpack.c.l.b16 %v560
    %v923 = vunpack.c.h.b16 %v560
    %v924 = vunpack.c.l.b16 %v561
    %v925 = vunpack.c.h.b16 %v561
    %v926 = vunpack.c.l.b16 %v562
    %v927 = vunpack.c.h.b16 %v562
    %v928 = vunpack.c.l.b16 %v563
    %v929 = vunpack.c.h.b16 %v563
    %v930 = vunpack.c.l.b16 %v564
    %v931 = vunpack.c.h.b16 %v564
    %v932 = vunpack.c.l.b16 %v565
    %v933 = vunpack.c.h.b16 %v565
    %v934 = vunpack.c.l.b16 %v566
    %v935 = vunpack.c.h.b16 %v566
    %v936 = vunpack.c.l.b16 %v567
    %v937 = vunpack.c.h.b16 %v567
    %v938 = vunpack.c.l.b16 %v568
    %v939 = vunpack.c.h.b16 %v568
    %v940 = vunpack.c.l.b16 %v569
    %v941 = vunpack.c.h.b16 %v569
    %v942 = vunpack.c.l.b16 %v570
    %v943 = vunpack.c.h.b16 %v570
    %v944 = vunpack.c.l.b16 %v571
    %v945 = vunpack.c.h.b16 %v571
    %v946 = vunpack.c.l.b16 %v572
    %v947 = vunpack.c.h.b16 %v572
    %v948 = vunpack.c.l.b16 %v573
    %v949 = vunpack.c.h.b16 %v573
    %v950 = vunpack.c.l.b16 %v574
    %v951 = vunpack.c.h.b16 %v574
    %v952 = vunpack.c.l.b16 %v575
    %v953 = vunpack.c.h.b16 %v575
    %v954 = vunpack.c.l.b16 %v576
    %v955 = vunpack.c.h.b16 %v576
    %v956 = vunpack.c.l.b16 %v577
    %v957 = vunpack.c.h.b16 %v577
    %v958 = vunpack.c.l.b16 %v578
    %v959 = vunpack.c.h.b16 %v578
    %v960 = vunpack.c.l.b16 %v579
    %v961 = vunpack.c.h.b16 %v579
    %v962 = vunpack.c.l.b16 %v580
    %v963 = vunpack.c.h.b16 %v580
    %v964 = vunpack.c.l.b16 %v581
    %v965 = vunpack.c.h.b16 %v581
    %v966 = vunpack.c.l.b16 %v582
    %v967 = vunpack.c.h.b16 %v582
    %v968 = vunpack.c.l.b16 %v583
    %v969 = vunpack.c.h.b16 %v583
    %v970 = vunpack.c.l.b16 %v584
    %v971 = vunpack.c.h.b16 %v584
    %v972 = vunpack.c.l.b16 %v585
    %v973 = vunpack.c.h.b16 %v585
    %v974 = vunpack.c.l.b16 %v586
    %v975 = vunpack.c.h.b16 %v586
    %v976 = vunpack.c.l.b16 %v587
    %v977 = vunpack.c.h.b16 %v587
    %v978 = vunpack.c.l.b16 %v588
    %v979 = vunpack.c.h.b16 %v588
    %v980 = vunpack.c.l.b16 %v589
    %v981 = vunpack.c.h.b16 %v589
    %v982 = vunpack.c.l.b16 %v590
    %v983 = vunpack.c.h.b16 %v590
    %v984 = vunpack.c.l.b16 %v591
    %v985 = vunpack.c.h.b16 %v591
    %v986 = vunpack.c.l.b16 %v592
    %v987 = vunpack.c.h.b16 %v592
    %v988 = vunpack.c.l.b16 %v593
    %v989 = vunpack.c.h.b16 %v593
    %v990 = vunpack.c.l.b16 %v594
    %v991 = vunpack.c.h.b16 %v594
    %v992 = vunpack.c.l.b16 %v595
    %v993 = vunpack.c.h.b16 %v595
    %v994 = vunpack.c.l.b16 %v596
    %v995 = vunpack.c.h.b16 %v596
    %v996 = vunpack.c.l.b16 %v597
    %v997 = vunpack.c.h.b16 %v597
    %v998 = vunpack.c.l.b16 %v598
    %v999 = vunpack.c.h.b16 %v598
    %v1000 = vunpack.c.l.b16 %v599
    %v1001 = vunpack.c.h.b16 %v599
    %v1002 = vunpack.c.l.b16 %v600
    %v1003 = vunpack.c.h.b16 %v600
    %v1004 = vunpack.c.l.b16 %v601
    %v1005 = vunpack.c.h.b16 %v601
    %v1006 = vunpack.c.l.b16 %v602
    %v1007 = vunpack.c.h.b16 %v602
    %v1008 = vunpack.c.l.b16 %v603
    %v1009 = vunpack.c.h.b16 %v603
    %v1010 = vpack.c.b16 %v758, %v754
    %v1011 = vpack.c.b16 %v759, %v755
    %v1012 = vpack.c.b16 %v760, %v756
    %v1013 = vpack.c.b16 %v761, %v757
    %v1014 = vpack.c.b16 %v766, %v762
    %v1015 = vpack.c.b16 %v767, %v763
    %v1016 = vpack.c.b16 %v768, %v764
    %v1017 = vpack.c.b16 %v769, %v765
    %v1018 = vpack.c.b16 %v774, %v770
    %v1019 = vpack.c.b16 %v775, %v771
    %v1020 = vpack.c.b16 %v776, %v772
    %v1021 = vpack.c.b16 %v777, %v773
    %v1022 = vpack.c.b16 %v782, %v778
    %v1023 = vpack.c.b16 %v783, %v779
    %v1024 = vpack.c.b16 %v784, %v780
    %v1025 = vpack.c.b16 %v785, %v781
    %v1026 = vpack.c.b16 %v790, %v786
    %v1027 = vpack.c.b16 %v791, %v787
    %v1028 = vpack.c.b16 %v792, %v788
    %v1029 = vpack.c.b16 %v793, %v789
    %v1030 = vpack.c.b16 %v798, %v794
    %v1031 = vpack.c.b16 %v799, %v795
    %v1032 = vpack.c.b16 %v800, %v796
    %v1033 = vpack.c.b16 %v801, %v797
    %v1034 = vpack.c.b16 %v806, %v802
    %v1035 = vpack.c.b16 %v807, %v803
    %v1036 = vpack.c.b16 %v808, %v804
    %v1037 = vpack.c.b16 %v809, %v805
    %v1038 = vpack.c.b16 %v814, %v810
    %v1039 = vpack.c.b16 %v815, %v811
    %v1040 = vpack.c.b16 %v816, %v812
    %v1041 = vpack.c.b16 %v817, %v813
    %v1042 = vpack.c.b16 %v822, %v818
    %v1043 = vpack.c.b16 %v823, %v819
    %v1044 = vpack.c.b16 %v824, %v820
    %v1045 = vpack.c.b16 %v825, %v821
    %v1046 = vpack.c.b16 %v830, %v826
    %v1047 = vpack.c.b16 %v831, %v827
    %v1048 = vpack.c.b16 %v832, %v828
    %v1049 = vpack.c.b16 %v833, %v829
    %v1050 = vpack.c.b16 %v838, %v834
    %v1051 = vpack.c.b16 %v839, %v835
    %v1052 = vpack.c.b16 %v840, %v836
    %v1053 = vpack.c.b16 %v841, %v837
    %v1054 = vpack.c.b16 %v846, %v842
    %v1055 = vpack.c.b16 %v847, %v843
    %v1056 = vpack.c.b16 %v848, %v844
    %v1057 = vpack.c.b16 %v849, %v845
    %v1058 = vpack.c.b16 %v854, %v850
    %v1059 = vpack.c.b16 %v855, %v851
    %v1060 = vpack.c.b16 %v856, %v852
    %v1061 = vpack.c.b16 %v857, %v853
    %v1062 = vpack.c.b16 %v862, %v858
    %v1063 = vpack.c.b16 %v863, %v859
    %v1064 = vpack.c.b16 %v864, %v860
    %v1065 = vpack.c.b16 %v865, %v861
    %v1066 = vpack.c.b16 %v870, %v866
    %v1067 = vpack.c.b16 %v871, %v867
    %v1068 = vpack.c.b16 %v872, %v868
    %v1069 = vpack.c.b16 %v873, %v869
    %v1070 = vpack.c.b16 %v878, %v874
    %v1071 = vpack.c.b16 %v879, %v875
    %v1072 = vpack.c.b16 %v880, %v876
    %v1073 = vpack.c.b16 %v881, %v877
    %v1074 = vpack.c.b16 %v886, %v882
    %v1075 = vpack.c.b16 %v887, %v883
    %v1076 = vpack.c.b16 %v888, %v884
    %v1077 = vpack.c.b16 %v889, %v885
    %v1078 = vpack.c.b16 %v894, %v890
    %v1079 = vpack.c.b16 %v895, %v891
    %v1080 = vpack.c.b16 %v896, %v892
    %v1081 = vpack.c.b16 %v897, %v893
    %v1082 = vpack.c.b16 %v902, %v898
    %v1083 = vpack.c.b16 %v903, %v899
    %v1084 = vpack.c.b16 %v904, %v900
    %v1085 = vpack.c.b16 %v905, %v901
    %v1086 = vpack.c.b16 %v910, %v906
    %v1087 = vpack.c.b16 %v911, %v907
    %v1088 = vpack.c.b16 %v912, %v908
    %v1089 = vpack.c.b16 %v913, %v909
    %v1090 = vpack.c.b16 %v918, %v914
    %v1091 = vpack.c.b16 %v919, %v915
    %v1092 = vpack.c.b16 %v920, %v916
    %v1093 = vpack.c.b16 %v921, %v917
    %v1094 = vpack.c.b16 %v926, %v922
    %v1095 = vpack.c.b16 %v927, %v923
    %v1096 = vpack.c.b16 %v928, %v924
    %v1097 = vpack.c.b16 %v929, %v925
    %v1098 = vpack.c.b16 %v934, %v930
    %v1099 = vpack.c.b16 %v935, %v931
    %v1100 = vpack.c.b16 %v936, %v932
    %v1101 = vpack.c.b16 %v937, %v933
    %v1102 = vpack.c.b16 %v942, %v938
    %v1103 = vpack.c.b16 %v943, %v939
    %v1104 = vpack.c.b16 %v944, %v940
    %v1105 = vpack.c.b16 %v945, %v941
    %v1106 = vpack.c.b16 %v950, %v946
    %v1107 = vpack.c.b16 %v951, %v947
    %v1108 = vpack.c.b16 %v952, %v948
    %v1109 = vpack.c.b16 %v953, %v949
    %v1110 = vpack.c.b16 %v958, %v954
    %v1111 = vpack.c.b16 %v959, %v955
    %v1112 = vpack.c.b16 %v960, %v956
    %v1113 = vpack.c.b16 %v961, %v957
    %v1114 = vpack.c.b16 %v966, %v962
    %v1115 = vpack.c.b16 %v967, %v963
    %v1116 = vpack.c.b16 %v968, %v964
    %v1117 = vpack.c.b16 %v969, %v965
    %v1118 = vpack.c.b16 %v974, %v970
    %v1119 = vpack.c.b16 %v975, %v971
    %v1120 = vpack.c.b16 %v976, %v972
    %v1121 = vpack.c.b16 %v977, %v973
    %v1122 = vpack.c.b16 %v982, %v978
    %v1123 = vpack.c.b16 %v983, %v979
    %v1124 = vpack.c.b16 %v984, %v980
    %v1125 = vpack.c.b16 %v985, %v981
    %v1126 = vpack.c.b16 %v990, %v986
    %v1127 = vpack.c.b16 %v991, %v987
    %v1128 = vpack.c.b16 %v992, %v988
    %v1129 = vpack.c.b16 %v993, %v989
    %v1130 = vpack.c.b16 %v998, %v994
    %v1131 = vpack.c.b16 %v999, %v995
    %v1132 = vpack.c.b16 %v1000, %v996
    %v1133 = vpack.c.b16 %v1001, %v997
    %v1134 = vpack.c.b16 %v1006, %v1002
    %v1135 = vpack.c.b16 %v1007, %v1003
    %v1136 = vpack.c.b16 %v1008, %v1004
    %v1137 = vpack.c.b16 %v1009, %v1005
    %1266 = vmatprep.subr.bf16.mxu0 %v1039
    %1267 = vmatpush1.bf16.msra.mxu0 %v1038
    %1268 = vmatprep.subr.bf16.mxu0 %v1035
    %1269 = vmatpush1.bf16.msra.mxu0 %v1034
    %1270 = vmatprep.subr.bf16.mxu0 %v1031
    %1271 = vmatpush1.bf16.msra.mxu0 %v1030
    %1272 = vmatprep.subr.bf16.mxu0 %v1027
    %1273 = vmatpush1.bf16.msra.mxu0 %v1026
    %1274 = vmatprep.subr.bf16.mxu0 %v1023
    %1275 = vmatpush1.bf16.msra.mxu0 %v1022
    %1276 = vmatprep.subr.bf16.mxu0 %v1019
    %1277 = vmatpush1.bf16.msra.mxu0 %v1018
    %1278 = vmatprep.subr.bf16.mxu0 %v1015
    %1279 = vmatpush1.bf16.msra.mxu0 %v1014
    %1280 = vmatprep.subr.bf16.mxu0 %v1011
    %1281 = vmatpush1.bf16.msra.mxu0 %v1010
    %1282 = vmatprep.subr.bf16.mxu0 %v1071
    %1283 = vmatpush2.bf16.msra.mxu0 %v1070
    %1284 = vmatprep.subr.bf16.mxu0 %v1067
    %1285 = vmatpush2.bf16.msra.mxu0 %v1066
    %1286 = vmatprep.subr.bf16.mxu0 %v1063
    %1287 = vmatpush2.bf16.msra.mxu0 %v1062
    %1288 = vmatprep.subr.bf16.mxu0 %v1059
    %1289 = vmatpush2.bf16.msra.mxu0 %v1058
    %1290 = vmatprep.subr.bf16.mxu0 %v1055
    %1291 = vmatpush2.bf16.msra.mxu0 %v1054
    %1292 = vmatprep.subr.bf16.mxu0 %v1051
    %1293 = vmatpush2.bf16.msra.mxu0 %v1050
    %1294 = vmatprep.subr.bf16.mxu0 %v1047
    %1295 = vmatpush2.bf16.msra.mxu0 %v1046
    %1296 = vmatprep.subr.bf16.mxu0 %v1043
    %1297 = vmatpush2.bf16.msra.mxu0 %v1042
    %1298 = vmatprep.mubr.bf16.mxu0 %v473
    %1299 = vmatmul.mubr.bf16.gmra.mxu0 %v472
    %v1300 = vpop.f32.mrf.mxu0
    %v1301 = vadd.f32 %v609, %v1300
    %v1302 = vpop.f32.mrf.mxu0
    %v1303 = vadd.f32 %v613, %v1302
    %v1304 = vpop.f32.mrf.mxu0
    %v1305 = vpop.f32.mrf.mxu0
    %1306 = vdwg.mxu0
    %1307 = vmatprep.subr.bf16.mxu0 %v1103
    %1308 = vmatpush1.bf16.msra.mxu0 %v1102
    %1309 = vmatprep.subr.bf16.mxu0 %v1099
    %1310 = vmatpush1.bf16.msra.mxu0 %v1098
    %1311 = vmatprep.subr.bf16.mxu0 %v1095
    %1312 = vmatpush1.bf16.msra.mxu0 %v1094
    %1313 = vmatprep.subr.bf16.mxu0 %v1091
    %1314 = vmatpush1.bf16.msra.mxu0 %v1090
    %1315 = vmatprep.subr.bf16.mxu0 %v1087
    %1316 = vmatpush1.bf16.msra.mxu0 %v1086
    %1317 = vmatprep.subr.bf16.mxu0 %v1083
    %1318 = vmatpush1.bf16.msra.mxu0 %v1082
    %1319 = vmatprep.subr.bf16.mxu0 %v1079
    %1320 = vmatpush1.bf16.msra.mxu0 %v1078
    %1321 = vmatprep.subr.bf16.mxu0 %v1075
    %1322 = vmatpush1.bf16.msra.mxu0 %v1074
    %1323 = vmatprep.subr.bf16.mxu0 %v1135
    %1324 = vmatpush2.bf16.msra.mxu0 %v1134
    %1325 = vmatprep.subr.bf16.mxu0 %v1131
    %1326 = vmatpush2.bf16.msra.mxu0 %v1130
    %1327 = vmatprep.subr.bf16.mxu0 %v1127
    %1328 = vmatpush2.bf16.msra.mxu0 %v1126
    %1329 = vmatprep.subr.bf16.mxu0 %v1123
    %1330 = vmatpush2.bf16.msra.mxu0 %v1122
    %1331 = vmatprep.subr.bf16.mxu0 %v1119
    %1332 = vmatpush2.bf16.msra.mxu0 %v1118
    %1333 = vmatprep.subr.bf16.mxu0 %v1115
    %1334 = vmatpush2.bf16.msra.mxu0 %v1114
    %1335 = vmatprep.subr.bf16.mxu0 %v1111
    %1336 = vmatpush2.bf16.msra.mxu0 %v1110
    %1337 = vmatprep.subr.bf16.mxu0 %v1107
    %1338 = vmatpush2.bf16.msra.mxu0 %v1106
    %1339 = vmatprep.mubr.bf16.mxu0 %v475
    %1340 = vmatmul.mubr.bf16.gmra.mxu0 %v474
    %v1341 = vpop.f32.mrf.mxu0
    %v1342 = vadd.f32 %v1301, %v1341
    %v1343 = vpop.f32.mrf.mxu0
    %v1344 = vadd.f32 %v1303, %v1343
    %v1345 = vpop.f32.mrf.mxu0
    %v1346 = vpop.f32.mrf.mxu0
    %1347 = vdwg.mxu0
    %1348 = vmatprep.subr.bf16.mxu0 %v1041
    %1349 = vmatpush1.bf16.msra.mxu0 %v1040
    %1350 = vmatprep.subr.bf16.mxu0 %v1037
    %1351 = vmatpush1.bf16.msra.mxu0 %v1036
    %1352 = vmatprep.subr.bf16.mxu0 %v1033
    %1353 = vmatpush1.bf16.msra.mxu0 %v1032
    %1354 = vmatprep.subr.bf16.mxu0 %v1029
    %1355 = vmatpush1.bf16.msra.mxu0 %v1028
    %1356 = vmatprep.subr.bf16.mxu0 %v1025
    %1357 = vmatpush1.bf16.msra.mxu0 %v1024
    %1358 = vmatprep.subr.bf16.mxu0 %v1021
    %1359 = vmatpush1.bf16.msra.mxu0 %v1020
    %1360 = vmatprep.subr.bf16.mxu0 %v1017
    %1361 = vmatpush1.bf16.msra.mxu0 %v1016
    %1362 = vmatprep.subr.bf16.mxu0 %v1013
    %1363 = vmatpush1.bf16.msra.mxu0 %v1012
    %1364 = vmatprep.subr.bf16.mxu0 %v1073
    %1365 = vmatpush2.bf16.msra.mxu0 %v1072
    %1366 = vmatprep.subr.bf16.mxu0 %v1069
    %1367 = vmatpush2.bf16.msra.mxu0 %v1068
    %1368 = vmatprep.subr.bf16.mxu0 %v1065
    %1369 = vmatpush2.bf16.msra.mxu0 %v1064
    %1370 = vmatprep.subr.bf16.mxu0 %v1061
    %1371 = vmatpush2.bf16.msra.mxu0 %v1060
    %1372 = vmatprep.subr.bf16.mxu0 %v1057
    %1373 = vmatpush2.bf16.msra.mxu0 %v1056
    %1374 = vmatprep.subr.bf16.mxu0 %v1053
    %1375 = vmatpush2.bf16.msra.mxu0 %v1052
    %1376 = vmatprep.subr.bf16.mxu0 %v1049
    %1377 = vmatpush2.bf16.msra.mxu0 %v1048
    %1378 = vmatprep.subr.bf16.mxu0 %v1045
    %1379 = vmatpush2.bf16.msra.mxu0 %v1044
    %1380 = vmatprep.mubr.bf16.mxu0 %v473
    %1381 = vmatmul.mubr.bf16.gmra.mxu0 %v472
    %v1382 = vpop.f32.mrf.mxu0
    %v1383 = vadd.f32 %v617, %v1382
    %v1384 = vpop.f32.mrf.mxu0
    %v1385 = vadd.f32 %v621, %v1384
    %v1386 = vpop.f32.mrf.mxu0
    %v1387 = vpop.f32.mrf.mxu0
    %1388 = vdwg.mxu0
    %1389 = vmatprep.subr.bf16.mxu0 %v1105
    %1390 = vmatpush1.bf16.msra.mxu0 %v1104
    %1391 = vmatprep.subr.bf16.mxu0 %v1101
    %1392 = vmatpush1.bf16.msra.mxu0 %v1100
    %1393 = vmatprep.subr.bf16.mxu0 %v1097
    %1394 = vmatpush1.bf16.msra.mxu0 %v1096
    %1395 = vmatprep.subr.bf16.mxu0 %v1093
    %1396 = vmatpush1.bf16.msra.mxu0 %v1092
    %1397 = vmatprep.subr.bf16.mxu0 %v1089
    %1398 = vmatpush1.bf16.msra.mxu0 %v1088
    %1399 = vmatprep.subr.bf16.mxu0 %v1085
    %1400 = vmatpush1.bf16.msra.mxu0 %v1084
    %1401 = vmatprep.subr.bf16.mxu0 %v1081
    %1402 = vmatpush1.bf16.msra.mxu0 %v1080
    %1403 = vmatprep.subr.bf16.mxu0 %v1077
    %1404 = vmatpush1.bf16.msra.mxu0 %v1076
    %1405 = vmatprep.subr.bf16.mxu0 %v1137
    %1406 = vmatpush2.bf16.msra.mxu0 %v1136
    %1407 = vmatprep.subr.bf16.mxu0 %v1133
    %1408 = vmatpush2.bf16.msra.mxu0 %v1132
    %1409 = vmatprep.subr.bf16.mxu0 %v1129
    %1410 = vmatpush2.bf16.msra.mxu0 %v1128
    %1411 = vmatprep.subr.bf16.mxu0 %v1125
    %1412 = vmatpush2.bf16.msra.mxu0 %v1124
    %1413 = vmatprep.subr.bf16.mxu0 %v1121
    %1414 = vmatpush2.bf16.msra.mxu0 %v1120
    %1415 = vmatprep.subr.bf16.mxu0 %v1117
    %1416 = vmatpush2.bf16.msra.mxu0 %v1116
    %1417 = vmatprep.subr.bf16.mxu0 %v1113
    %1418 = vmatpush2.bf16.msra.mxu0 %v1112
    %1419 = vmatprep.subr.bf16.mxu0 %v1109
    %1420 = vmatpush2.bf16.msra.mxu0 %v1108
    %1421 = vmatprep.mubr.bf16.mxu0 %v475
    %1422 = vmatmul.mubr.bf16.gmra.mxu0 %v474
    %v1423 = vpop.f32.mrf.mxu0
    %v1424 = vadd.f32 %v1383, %v1423
    %v1425 = vpop.f32.mrf.mxu0
    %v1426 = vadd.f32 %v1385, %v1425
    %v1427 = vpop.f32.mrf.mxu0
    %v1428 = vpop.f32.mrf.mxu0
    %1429 = vdwg.mxu0
    %s1430 = sld [smem:[#allocation18 + $0x1]]
    %vm1431 = vcmp.gt.f32.partialorder %v1342, 0.0
    %vm1432 = vcmp.gt.f32.partialorder %v1344, 0.0
    %vm1433 = vcmp.gt.f32.partialorder %v1424, 0.0
    %vm1434 = vcmp.gt.f32.partialorder %v1426, 0.0
    %v1435 = vstv %s1430
    %v1436 = vmul.f32 %v1435, %v1342
    %v1437 = vmul.f32 %v1435, %v1344
    %v1438 = vmul.f32 %v1435, %v1424
    %v1439 = vmul.f32 %v1435, %v1426
    %v1440 = vsel %vm1431, %v1342, %v1436
    %v1441 = vsel %vm1432, %v1344, %v1437
    %v1442 = vsel %vm1433, %v1424, %v1438
    %v1443 = vsel %vm1434, %v1426, %v1439
    %v1444 = vpack.c.bf16 %v1440, %v1440
    %v1445 = vpack.c.bf16 %v1441, %v1441
    %v1446 = vpack.c.bf16 %v1442, %v1442
    %v1447 = vpack.c.bf16 %v1443, %v1443
    %s1448 = scalar_lea.vmem [#allocation9], 1024
    %v1449 = vld [vmem:[%s1448] sm:$0xff]
    %v1450 = vld [vmem:[%s1448 + $0x8] sm:$0xff]
    %v1451 = vld [vmem:[%s1448 + $0x10] sm:$0xff]
    %v1452 = vld [vmem:[%s1448 + $0x18] sm:$0xff]
    %v1453 = vld [vmem:[%s1448 + $0x20] sm:$0xff]
    %v1454 = vld [vmem:[%s1448 + $0x28] sm:$0xff]
    %v1455 = vld [vmem:[%s1448 + $0x30] sm:$0xff]
    %v1456 = vld [vmem:[%s1448 + $0x38] sm:$0xff]
    %v1457 = vld [vmem:[%s1448 + $0x40] sm:$0xff]
    %v1458 = vld [vmem:[%s1448 + $0x48] sm:$0xff]
    %v1459 = vld [vmem:[%s1448 + $0x50] sm:$0xff]
    %v1460 = vld [vmem:[%s1448 + $0x58] sm:$0xff]
    %v1461 = vld [vmem:[%s1448 + $0x60] sm:$0xff]
    %v1462 = vld [vmem:[%s1448 + $0x68] sm:$0xff]
    %v1463 = vld [vmem:[%s1448 + $0x70] sm:$0xff]
    %v1464 = vld [vmem:[%s1448 + $0x78] sm:$0xff]
    %v1465 = vld [vmem:[%s1448 + $0x80] sm:$0xff]
    %v1466 = vld [vmem:[%s1448 + $0x88] sm:$0xff]
    %v1467 = vld [vmem:[%s1448 + $0x90] sm:$0xff]
    %v1468 = vld [vmem:[%s1448 + $0x98] sm:$0xff]
    %v1469 = vld [vmem:[%s1448 + $0xa0] sm:$0xff]
    %v1470 = vld [vmem:[%s1448 + $0xa8] sm:$0xff]
    %v1471 = vld [vmem:[%s1448 + $0xb0] sm:$0xff]
    %v1472 = vld [vmem:[%s1448 + $0xb8] sm:$0xff]
    %v1473 = vld [vmem:[%s1448 + $0xc0] sm:$0xff]
    %v1474 = vld [vmem:[%s1448 + $0xc8] sm:$0xff]
    %v1475 = vld [vmem:[%s1448 + $0xd0] sm:$0xff]
    %v1476 = vld [vmem:[%s1448 + $0xd8] sm:$0xff]
    %v1477 = vld [vmem:[%s1448 + $0xe0] sm:$0xff]
    %v1478 = vld [vmem:[%s1448 + $0xe8] sm:$0xff]
    %v1479 = vld [vmem:[%s1448 + $0xf0] sm:$0xff]
    %v1480 = vld [vmem:[%s1448 + $0xf8] sm:$0xff]
    %v1481 = vld [vmem:[%s1448 + $0x100] sm:$0xff]
    %v1482 = vld [vmem:[%s1448 + $0x108] sm:$0xff]
    %v1483 = vld [vmem:[%s1448 + $0x110] sm:$0xff]
    %v1484 = vld [vmem:[%s1448 + $0x118] sm:$0xff]
    %v1485 = vld [vmem:[%s1448 + $0x120] sm:$0xff]
    %v1486 = vld [vmem:[%s1448 + $0x128] sm:$0xff]
    %v1487 = vld [vmem:[%s1448 + $0x130] sm:$0xff]
    %v1488 = vld [vmem:[%s1448 + $0x138] sm:$0xff]
    %v1489 = vld [vmem:[%s1448 + $0x140] sm:$0xff]
    %v1490 = vld [vmem:[%s1448 + $0x148] sm:$0xff]
    %v1491 = vld [vmem:[%s1448 + $0x150] sm:$0xff]
    %v1492 = vld [vmem:[%s1448 + $0x158] sm:$0xff]
    %v1493 = vld [vmem:[%s1448 + $0x160] sm:$0xff]
    %v1494 = vld [vmem:[%s1448 + $0x168] sm:$0xff]
    %v1495 = vld [vmem:[%s1448 + $0x170] sm:$0xff]
    %v1496 = vld [vmem:[%s1448 + $0x178] sm:$0xff]
    %v1497 = vld [vmem:[%s1448 + $0x180] sm:$0xff]
    %v1498 = vld [vmem:[%s1448 + $0x188] sm:$0xff]
    %v1499 = vld [vmem:[%s1448 + $0x190] sm:$0xff]
    %v1500 = vld [vmem:[%s1448 + $0x198] sm:$0xff]
    %v1501 = vld [vmem:[%s1448 + $0x1a0] sm:$0xff]
    %v1502 = vld [vmem:[%s1448 + $0x1a8] sm:$0xff]
    %v1503 = vld [vmem:[%s1448 + $0x1b0] sm:$0xff]
    %v1504 = vld [vmem:[%s1448 + $0x1b8] sm:$0xff]
    %v1505 = vld [vmem:[%s1448 + $0x1c0] sm:$0xff]
    %v1506 = vld [vmem:[%s1448 + $0x1c8] sm:$0xff]
    %v1507 = vld [vmem:[%s1448 + $0x1d0] sm:$0xff]
    %v1508 = vld [vmem:[%s1448 + $0x1d8] sm:$0xff]
    %v1509 = vld [vmem:[%s1448 + $0x1e0] sm:$0xff]
    %v1510 = vld [vmem:[%s1448 + $0x1e8] sm:$0xff]
    %v1511 = vld [vmem:[%s1448 + $0x1f0] sm:$0xff]
    %v1512 = vld [vmem:[%s1448 + $0x1f8] sm:$0xff]
    %v1513 = vld [vmem:[%s1448 + $0x200] sm:$0xff]
    %v1514 = vld [vmem:[%s1448 + $0x208] sm:$0xff]
    %v1515 = vld [vmem:[%s1448 + $0x210] sm:$0xff]
    %v1516 = vld [vmem:[%s1448 + $0x218] sm:$0xff]
    %v1517 = vld [vmem:[%s1448 + $0x220] sm:$0xff]
    %v1518 = vld [vmem:[%s1448 + $0x228] sm:$0xff]
    %v1519 = vld [vmem:[%s1448 + $0x230] sm:$0xff]
    %v1520 = vld [vmem:[%s1448 + $0x238] sm:$0xff]
    %v1521 = vld [vmem:[%s1448 + $0x240] sm:$0xff]
    %v1522 = vld [vmem:[%s1448 + $0x248] sm:$0xff]
    %v1523 = vld [vmem:[%s1448 + $0x250] sm:$0xff]
    %v1524 = vld [vmem:[%s1448 + $0x258] sm:$0xff]
    %v1525 = vld [vmem:[%s1448 + $0x260] sm:$0xff]
    %v1526 = vld [vmem:[%s1448 + $0x268] sm:$0xff]
    %v1527 = vld [vmem:[%s1448 + $0x270] sm:$0xff]
    %v1528 = vld [vmem:[%s1448 + $0x278] sm:$0xff]
    %v1529 = vld [vmem:[%s1448 + $0x280] sm:$0xff]
    %v1530 = vld [vmem:[%s1448 + $0x288] sm:$0xff]
    %v1531 = vld [vmem:[%s1448 + $0x290] sm:$0xff]
    %v1532 = vld [vmem:[%s1448 + $0x298] sm:$0xff]
    %v1533 = vld [vmem:[%s1448 + $0x2a0] sm:$0xff]
    %v1534 = vld [vmem:[%s1448 + $0x2a8] sm:$0xff]
    %v1535 = vld [vmem:[%s1448 + $0x2b0] sm:$0xff]
    %v1536 = vld [vmem:[%s1448 + $0x2b8] sm:$0xff]
    %v1537 = vld [vmem:[%s1448 + $0x2c0] sm:$0xff]
    %v1538 = vld [vmem:[%s1448 + $0x2c8] sm:$0xff]
    %v1539 = vld [vmem:[%s1448 + $0x2d0] sm:$0xff]
    %v1540 = vld [vmem:[%s1448 + $0x2d8] sm:$0xff]
    %v1541 = vld [vmem:[%s1448 + $0x2e0] sm:$0xff]
    %v1542 = vld [vmem:[%s1448 + $0x2e8] sm:$0xff]
    %v1543 = vld [vmem:[%s1448 + $0x2f0] sm:$0xff]
    %v1544 = vld [vmem:[%s1448 + $0x2f8] sm:$0xff]
    %v1545 = vld [vmem:[%s1448 + $0x300] sm:$0xff]
    %v1546 = vld [vmem:[%s1448 + $0x308] sm:$0xff]
    %v1547 = vld [vmem:[%s1448 + $0x310] sm:$0xff]
    %v1548 = vld [vmem:[%s1448 + $0x318] sm:$0xff]
    %v1549 = vld [vmem:[%s1448 + $0x320] sm:$0xff]
    %v1550 = vld [vmem:[%s1448 + $0x328] sm:$0xff]
    %v1551 = vld [vmem:[%s1448 + $0x330] sm:$0xff]
    %v1552 = vld [vmem:[%s1448 + $0x338] sm:$0xff]
    %v1553 = vld [vmem:[%s1448 + $0x340] sm:$0xff]
    %v1554 = vld [vmem:[%s1448 + $0x348] sm:$0xff]
    %v1555 = vld [vmem:[%s1448 + $0x350] sm:$0xff]
    %v1556 = vld [vmem:[%s1448 + $0x358] sm:$0xff]
    %v1557 = vld [vmem:[%s1448 + $0x360] sm:$0xff]
    %v1558 = vld [vmem:[%s1448 + $0x368] sm:$0xff]
    %v1559 = vld [vmem:[%s1448 + $0x370] sm:$0xff]
    %v1560 = vld [vmem:[%s1448 + $0x378] sm:$0xff]
    %v1561 = vld [vmem:[%s1448 + $0x380] sm:$0xff]
    %v1562 = vld [vmem:[%s1448 + $0x388] sm:$0xff]
    %v1563 = vld [vmem:[%s1448 + $0x390] sm:$0xff]
    %v1564 = vld [vmem:[%s1448 + $0x398] sm:$0xff]
    %v1565 = vld [vmem:[%s1448 + $0x3a0] sm:$0xff]
    %v1566 = vld [vmem:[%s1448 + $0x3a8] sm:$0xff]
    %v1567 = vld [vmem:[%s1448 + $0x3b0] sm:$0xff]
    %v1568 = vld [vmem:[%s1448 + $0x3b8] sm:$0xff]
    %v1569 = vld [vmem:[%s1448 + $0x3c0] sm:$0xff]
    %v1570 = vld [vmem:[%s1448 + $0x3c8] sm:$0xff]
    %v1571 = vld [vmem:[%s1448 + $0x3d0] sm:$0xff]
    %v1572 = vld [vmem:[%s1448 + $0x3d8] sm:$0xff]
    %v1573 = vld [vmem:[%s1448 + $0x3e0] sm:$0xff]
    %v1574 = vld [vmem:[%s1448 + $0x3e8] sm:$0xff]
    %v1575 = vld [vmem:[%s1448 + $0x3f0] sm:$0xff]
    %v1576 = vld [vmem:[%s1448 + $0x3f8] sm:$0xff]
    %s1577 = scalar_lea.vmem [#allocation11], 1
    %v1578 = vld [vmem:[%s1577] ss:$4 sm:$0xf]
    %v1580 = vlaneseq
    %v1581 = vshrl.u32 %v1580, 7
    %v1582 = vsub.s32 0, %v1581
    %v1583 = vrot.slane %v1578, %v1582
    %v1584 = vlaneseq
    %v1585 = vshrl.u32 %v1584, 7
    %v1586 = vsub.s32 1, %v1585
    %v1587 = vrot.slane %v1578, %v1586
    %v1588 = vlaneseq
    %v1589 = vshrl.u32 %v1588, 7
    %v1590 = vsub.s32 2, %v1589
    %v1591 = vrot.slane %v1578, %v1590
    %v1592 = vlaneseq
    %v1593 = vshrl.u32 %v1592, 7
    %v1594 = vsub.s32 3, %v1593
    %v1595 = vrot.slane %v1578, %v1594
    %v1728 = vunpack.c.l.b16 %v1449
    %v1729 = vunpack.c.h.b16 %v1449
    %v1730 = vunpack.c.l.b16 %v1450
    %v1731 = vunpack.c.h.b16 %v1450
    %v1732 = vunpack.c.l.b16 %v1451
    %v1733 = vunpack.c.h.b16 %v1451
    %v1734 = vunpack.c.l.b16 %v1452
    %v1735 = vunpack.c.h.b16 %v1452
    %v1736 = vunpack.c.l.b16 %v1453
    %v1737 = vunpack.c.h.b16 %v1453
    %v1738 = vunpack.c.l.b16 %v1454
    %v1739 = vunpack.c.h.b16 %v1454
    %v1740 = vunpack.c.l.b16 %v1455
    %v1741 = vunpack.c.h.b16 %v1455
    %v1742 = vunpack.c.l.b16 %v1456
    %v1743 = vunpack.c.h.b16 %v1456
    %v1744 = vunpack.c.l.b16 %v1457
    %v1745 = vunpack.c.h.b16 %v1457
    %v1746 = vunpack.c.l.b16 %v1458
    %v1747 = vunpack.c.h.b16 %v1458
    %v1748 = vunpack.c.l.b16 %v1459
    %v1749 = vunpack.c.h.b16 %v1459
    %v1750 = vunpack.c.l.b16 %v1460
    %v1751 = vunpack.c.h.b16 %v1460
    %v1752 = vunpack.c.l.b16 %v1461
    %v1753 = vunpack.c.h.b16 %v1461
    %v1754 = vunpack.c.l.b16 %v1462
    %v1755 = vunpack.c.h.b16 %v1462
    %v1756 = vunpack.c.l.b16 %v1463
    %v1757 = vunpack.c.h.b16 %v1463
    %v1758 = vunpack.c.l.b16 %v1464
    %v1759 = vunpack.c.h.b16 %v1464
    %v1760 = vunpack.c.l.b16 %v1465
    %v1761 = vunpack.c.h.b16 %v1465
    %v1762 = vunpack.c.l.b16 %v1466
    %v1763 = vunpack.c.h.b16 %v1466
    %v1764 = vunpack.c.l.b16 %v1467
    %v1765 = vunpack.c.h.b16 %v1467
    %v1766 = vunpack.c.l.b16 %v1468
    %v1767 = vunpack.c.h.b16 %v1468
    %v1768 = vunpack.c.l.b16 %v1469
    %v1769 = vunpack.c.h.b16 %v1469
    %v1770 = vunpack.c.l.b16 %v1470
    %v1771 = vunpack.c.h.b16 %v1470
    %v1772 = vunpack.c.l.b16 %v1471
    %v1773 = vunpack.c.h.b16 %v1471
    %v1774 = vunpack.c.l.b16 %v1472
    %v1775 = vunpack.c.h.b16 %v1472
    %v1776 = vunpack.c.l.b16 %v1473
    %v1777 = vunpack.c.h.b16 %v1473
    %v1778 = vunpack.c.l.b16 %v1474
    %v1779 = vunpack.c.h.b16 %v1474
    %v1780 = vunpack.c.l.b16 %v1475
    %v1781 = vunpack.c.h.b16 %v1475
    %v1782 = vunpack.c.l.b16 %v1476
    %v1783 = vunpack.c.h.b16 %v1476
    %v1784 = vunpack.c.l.b16 %v1477
    %v1785 = vunpack.c.h.b16 %v1477
    %v1786 = vunpack.c.l.b16 %v1478
    %v1787 = vunpack.c.h.b16 %v1478
    %v1788 = vunpack.c.l.b16 %v1479
    %v1789 = vunpack.c.h.b16 %v1479
    %v1790 = vunpack.c.l.b16 %v1480
    %v1791 = vunpack.c.h.b16 %v1480
    %v1792 = vunpack.c.l.b16 %v1481
    %v1793 = vunpack.c.h.b16 %v1481
    %v1794 = vunpack.c.l.b16 %v1482
    %v1795 = vunpack.c.h.b16 %v1482
    %v1796 = vunpack.c.l.b16 %v1483
    %v1797 = vunpack.c.h.b16 %v1483
    %v1798 = vunpack.c.l.b16 %v1484
    %v1799 = vunpack.c.h.b16 %v1484
    %v1800 = vunpack.c.l.b16 %v1485
    %v1801 = vunpack.c.h.b16 %v1485
    %v1802 = vunpack.c.l.b16 %v1486
    %v1803 = vunpack.c.h.b16 %v1486
    %v1804 = vunpack.c.l.b16 %v1487
    %v1805 = vunpack.c.h.b16 %v1487
    %v1806 = vunpack.c.l.b16 %v1488
    %v1807 = vunpack.c.h.b16 %v1488
    %v1808 = vunpack.c.l.b16 %v1489
    %v1809 = vunpack.c.h.b16 %v1489
    %v1810 = vunpack.c.l.b16 %v1490
    %v1811 = vunpack.c.h.b16 %v1490
    %v1812 = vunpack.c.l.b16 %v1491
    %v1813 = vunpack.c.h.b16 %v1491
    %v1814 = vunpack.c.l.b16 %v1492
    %v1815 = vunpack.c.h.b16 %v1492
    %v1816 = vunpack.c.l.b16 %v1493
    %v1817 = vunpack.c.h.b16 %v1493
    %v1818 = vunpack.c.l.b16 %v1494
    %v1819 = vunpack.c.h.b16 %v1494
    %v1820 = vunpack.c.l.b16 %v1495
    %v1821 = vunpack.c.h.b16 %v1495
    %v1822 = vunpack.c.l.b16 %v1496
    %v1823 = vunpack.c.h.b16 %v1496
    %v1824 = vunpack.c.l.b16 %v1497
    %v1825 = vunpack.c.h.b16 %v1497
    %v1826 = vunpack.c.l.b16 %v1498
    %v1827 = vunpack.c.h.b16 %v1498
    %v1828 = vunpack.c.l.b16 %v1499
    %v1829 = vunpack.c.h.b16 %v1499
    %v1830 = vunpack.c.l.b16 %v1500
    %v1831 = vunpack.c.h.b16 %v1500
    %v1832 = vunpack.c.l.b16 %v1501
    %v1833 = vunpack.c.h.b16 %v1501
    %v1834 = vunpack.c.l.b16 %v1502
    %v1835 = vunpack.c.h.b16 %v1502
    %v1836 = vunpack.c.l.b16 %v1503
    %v1837 = vunpack.c.h.b16 %v1503
    %v1838 = vunpack.c.l.b16 %v1504
    %v1839 = vunpack.c.h.b16 %v1504
    %v1840 = vunpack.c.l.b16 %v1505
    %v1841 = vunpack.c.h.b16 %v1505
    %v1842 = vunpack.c.l.b16 %v1506
    %v1843 = vunpack.c.h.b16 %v1506
    %v1844 = vunpack.c.l.b16 %v1507
    %v1845 = vunpack.c.h.b16 %v1507
    %v1846 = vunpack.c.l.b16 %v1508
    %v1847 = vunpack.c.h.b16 %v1508
    %v1848 = vunpack.c.l.b16 %v1509
    %v1849 = vunpack.c.h.b16 %v1509
    %v1850 = vunpack.c.l.b16 %v1510
    %v1851 = vunpack.c.h.b16 %v1510
    %v1852 = vunpack.c.l.b16 %v1511
    %v1853 = vunpack.c.h.b16 %v1511
    %v1854 = vunpack.c.l.b16 %v1512
    %v1855 = vunpack.c.h.b16 %v1512
    %v1856 = vunpack.c.l.b16 %v1513
    %v1857 = vunpack.c.h.b16 %v1513
    %v1858 = vunpack.c.l.b16 %v1514
    %v1859 = vunpack.c.h.b16 %v1514
    %v1860 = vunpack.c.l.b16 %v1515
    %v1861 = vunpack.c.h.b16 %v1515
    %v1862 = vunpack.c.l.b16 %v1516
    %v1863 = vunpack.c.h.b16 %v1516
    %v1864 = vunpack.c.l.b16 %v1517
    %v1865 = vunpack.c.h.b16 %v1517
    %v1866 = vunpack.c.l.b16 %v1518
    %v1867 = vunpack.c.h.b16 %v1518
    %v1868 = vunpack.c.l.b16 %v1519
    %v1869 = vunpack.c.h.b16 %v1519
    %v1870 = vunpack.c.l.b16 %v1520
    %v1871 = vunpack.c.h.b16 %v1520
    %v1872 = vunpack.c.l.b16 %v1521
    %v1873 = vunpack.c.h.b16 %v1521
    %v1874 = vunpack.c.l.b16 %v1522
    %v1875 = vunpack.c.h.b16 %v1522
    %v1876 = vunpack.c.l.b16 %v1523
    %v1877 = vunpack.c.h.b16 %v1523
    %v1878 = vunpack.c.l.b16 %v1524
    %v1879 = vunpack.c.h.b16 %v1524
    %v1880 = vunpack.c.l.b16 %v1525
    %v1881 = vunpack.c.h.b16 %v1525
    %v1882 = vunpack.c.l.b16 %v1526
    %v1883 = vunpack.c.h.b16 %v1526
    %v1884 = vunpack.c.l.b16 %v1527
    %v1885 = vunpack.c.h.b16 %v1527
    %v1886 = vunpack.c.l.b16 %v1528
    %v1887 = vunpack.c.h.b16 %v1528
    %v1888 = vunpack.c.l.b16 %v1529
    %v1889 = vunpack.c.h.b16 %v1529
    %v1890 = vunpack.c.l.b16 %v1530
    %v1891 = vunpack.c.h.b16 %v1530
    %v1892 = vunpack.c.l.b16 %v1531
    %v1893 = vunpack.c.h.b16 %v1531
    %v1894 = vunpack.c.l.b16 %v1532
    %v1895 = vunpack.c.h.b16 %v1532
    %v1896 = vunpack.c.l.b16 %v1533
    %v1897 = vunpack.c.h.b16 %v1533
    %v1898 = vunpack.c.l.b16 %v1534
    %v1899 = vunpack.c.h.b16 %v1534
    %v1900 = vunpack.c.l.b16 %v1535
    %v1901 = vunpack.c.h.b16 %v1535
    %v1902 = vunpack.c.l.b16 %v1536
    %v1903 = vunpack.c.h.b16 %v1536
    %v1904 = vunpack.c.l.b16 %v1537
    %v1905 = vunpack.c.h.b16 %v1537
    %v1906 = vunpack.c.l.b16 %v1538
    %v1907 = vunpack.c.h.b16 %v1538
    %v1908 = vunpack.c.l.b16 %v1539
    %v1909 = vunpack.c.h.b16 %v1539
    %v1910 = vunpack.c.l.b16 %v1540
    %v1911 = vunpack.c.h.b16 %v1540
    %v1912 = vunpack.c.l.b16 %v1541
    %v1913 = vunpack.c.h.b16 %v1541
    %v1914 = vunpack.c.l.b16 %v1542
    %v1915 = vunpack.c.h.b16 %v1542
    %v1916 = vunpack.c.l.b16 %v1543
    %v1917 = vunpack.c.h.b16 %v1543
    %v1918 = vunpack.c.l.b16 %v1544
    %v1919 = vunpack.c.h.b16 %v1544
    %v1920 = vunpack.c.l.b16 %v1545
    %v1921 = vunpack.c.h.b16 %v1545
    %v1922 = vunpack.c.l.b16 %v1546
    %v1923 = vunpack.c.h.b16 %v1546
    %v1924 = vunpack.c.l.b16 %v1547
    %v1925 = vunpack.c.h.b16 %v1547
    %v1926 = vunpack.c.l.b16 %v1548
    %v1927 = vunpack.c.h.b16 %v1548
    %v1928 = vunpack.c.l.b16 %v1549
    %v1929 = vunpack.c.h.b16 %v1549
    %v1930 = vunpack.c.l.b16 %v1550
    %v1931 = vunpack.c.h.b16 %v1550
    %v1932 = vunpack.c.l.b16 %v1551
    %v1933 = vunpack.c.h.b16 %v1551
    %v1934 = vunpack.c.l.b16 %v1552
    %v1935 = vunpack.c.h.b16 %v1552
    %v1936 = vunpack.c.l.b16 %v1553
    %v1937 = vunpack.c.h.b16 %v1553
    %v1938 = vunpack.c.l.b16 %v1554
    %v1939 = vunpack.c.h.b16 %v1554
    %v1940 = vunpack.c.l.b16 %v1555
    %v1941 = vunpack.c.h.b16 %v1555
    %v1942 = vunpack.c.l.b16 %v1556
    %v1943 = vunpack.c.h.b16 %v1556
    %v1944 = vunpack.c.l.b16 %v1557
    %v1945 = vunpack.c.h.b16 %v1557
    %v1946 = vunpack.c.l.b16 %v1558
    %v1947 = vunpack.c.h.b16 %v1558
    %v1948 = vunpack.c.l.b16 %v1559
    %v1949 = vunpack.c.h.b16 %v1559
    %v1950 = vunpack.c.l.b16 %v1560
    %v1951 = vunpack.c.h.b16 %v1560
    %v1952 = vunpack.c.l.b16 %v1561
    %v1953 = vunpack.c.h.b16 %v1561
    %v1954 = vunpack.c.l.b16 %v1562
    %v1955 = vunpack.c.h.b16 %v1562
    %v1956 = vunpack.c.l.b16 %v1563
    %v1957 = vunpack.c.h.b16 %v1563
    %v1958 = vunpack.c.l.b16 %v1564
    %v1959 = vunpack.c.h.b16 %v1564
    %v1960 = vunpack.c.l.b16 %v1565
    %v1961 = vunpack.c.h.b16 %v1565
    %v1962 = vunpack.c.l.b16 %v1566
    %v1963 = vunpack.c.h.b16 %v1566
    %v1964 = vunpack.c.l.b16 %v1567
    %v1965 = vunpack.c.h.b16 %v1567
    %v1966 = vunpack.c.l.b16 %v1568
    %v1967 = vunpack.c.h.b16 %v1568
    %v1968 = vunpack.c.l.b16 %v1569
    %v1969 = vunpack.c.h.b16 %v1569
    %v1970 = vunpack.c.l.b16 %v1570
    %v1971 = vunpack.c.h.b16 %v1570
    %v1972 = vunpack.c.l.b16 %v1571
    %v1973 = vunpack.c.h.b16 %v1571
    %v1974 = vunpack.c.l.b16 %v1572
    %v1975 = vunpack.c.h.b16 %v1572
    %v1976 = vunpack.c.l.b16 %v1573
    %v1977 = vunpack.c.h.b16 %v1573
    %v1978 = vunpack.c.l.b16 %v1574
    %v1979 = vunpack.c.h.b16 %v1574
    %v1980 = vunpack.c.l.b16 %v1575
    %v1981 = vunpack.c.h.b16 %v1575
    %v1982 = vunpack.c.l.b16 %v1576
    %v1983 = vunpack.c.h.b16 %v1576
    %v1984 = vpack.c.b16 %v1732, %v1728
    %v1985 = vpack.c.b16 %v1733, %v1729
    %v1986 = vpack.c.b16 %v1734, %v1730
    %v1987 = vpack.c.b16 %v1735, %v1731
    %v1988 = vpack.c.b16 %v1740, %v1736
    %v1989 = vpack.c.b16 %v1741, %v1737
    %v1990 = vpack.c.b16 %v1742, %v1738
    %v1991 = vpack.c.b16 %v1743, %v1739
    %v1992 = vpack.c.b16 %v1748, %v1744
    %v1993 = vpack.c.b16 %v1749, %v1745
    %v1994 = vpack.c.b16 %v1750, %v1746
    %v1995 = vpack.c.b16 %v1751, %v1747
    %v1996 = vpack.c.b16 %v1756, %v1752
    %v1997 = vpack.c.b16 %v1757, %v1753
    %v1998 = vpack.c.b16 %v1758, %v1754
    %v1999 = vpack.c.b16 %v1759, %v1755
    %v2000 = vpack.c.b16 %v1764, %v1760
    %v2001 = vpack.c.b16 %v1765, %v1761
    %v2002 = vpack.c.b16 %v1766, %v1762
    %v2003 = vpack.c.b16 %v1767, %v1763
    %v2004 = vpack.c.b16 %v1772, %v1768
    %v2005 = vpack.c.b16 %v1773, %v1769
    %v2006 = vpack.c.b16 %v1774, %v1770
    %v2007 = vpack.c.b16 %v1775, %v1771
    %v2008 = vpack.c.b16 %v1780, %v1776
    %v2009 = vpack.c.b16 %v1781, %v1777
    %v2010 = vpack.c.b16 %v1782, %v1778
    %v2011 = vpack.c.b16 %v1783, %v1779
    %v2012 = vpack.c.b16 %v1788, %v1784
    %v2013 = vpack.c.b16 %v1789, %v1785
    %v2014 = vpack.c.b16 %v1790, %v1786
    %v2015 = vpack.c.b16 %v1791, %v1787
    %v2016 = vpack.c.b16 %v1796, %v1792
    %v2017 = vpack.c.b16 %v1797, %v1793
    %v2018 = vpack.c.b16 %v1798, %v1794
    %v2019 = vpack.c.b16 %v1799, %v1795
    %v2020 = vpack.c.b16 %v1804, %v1800
    %v2021 = vpack.c.b16 %v1805, %v1801
    %v2022 = vpack.c.b16 %v1806, %v1802
    %v2023 = vpack.c.b16 %v1807, %v1803
    %v2024 = vpack.c.b16 %v1812, %v1808
    %v2025 = vpack.c.b16 %v1813, %v1809
    %v2026 = vpack.c.b16 %v1814, %v1810
    %v2027 = vpack.c.b16 %v1815, %v1811
    %v2028 = vpack.c.b16 %v1820, %v1816
    %v2029 = vpack.c.b16 %v1821, %v1817
    %v2030 = vpack.c.b16 %v1822, %v1818
    %v2031 = vpack.c.b16 %v1823, %v1819
    %v2032 = vpack.c.b16 %v1828, %v1824
    %v2033 = vpack.c.b16 %v1829, %v1825
    %v2034 = vpack.c.b16 %v1830, %v1826
    %v2035 = vpack.c.b16 %v1831, %v1827
    %v2036 = vpack.c.b16 %v1836, %v1832
    %v2037 = vpack.c.b16 %v1837, %v1833
    %v2038 = vpack.c.b16 %v1838, %v1834
    %v2039 = vpack.c.b16 %v1839, %v1835
    %v2040 = vpack.c.b16 %v1844, %v1840
    %v2041 = vpack.c.b16 %v1845, %v1841
    %v2042 = vpack.c.b16 %v1846, %v1842
    %v2043 = vpack.c.b16 %v1847, %v1843
    %v2044 = vpack.c.b16 %v1852, %v1848
    %v2045 = vpack.c.b16 %v1853, %v1849
    %v2046 = vpack.c.b16 %v1854, %v1850
    %v2047 = vpack.c.b16 %v1855, %v1851
    %v2048 = vpack.c.b16 %v1860, %v1856
    %v2049 = vpack.c.b16 %v1861, %v1857
    %v2050 = vpack.c.b16 %v1862, %v1858
    %v2051 = vpack.c.b16 %v1863, %v1859
    %v2052 = vpack.c.b16 %v1868, %v1864
    %v2053 = vpack.c.b16 %v1869, %v1865
    %v2054 = vpack.c.b16 %v1870, %v1866
    %v2055 = vpack.c.b16 %v1871, %v1867
    %v2056 = vpack.c.b16 %v1876, %v1872
    %v2057 = vpack.c.b16 %v1877, %v1873
    %v2058 = vpack.c.b16 %v1878, %v1874
    %v2059 = vpack.c.b16 %v1879, %v1875
    %v2060 = vpack.c.b16 %v1884, %v1880
    %v2061 = vpack.c.b16 %v1885, %v1881
    %v2062 = vpack.c.b16 %v1886, %v1882
    %v2063 = vpack.c.b16 %v1887, %v1883
    %v2064 = vpack.c.b16 %v1892, %v1888
    %v2065 = vpack.c.b16 %v1893, %v1889
    %v2066 = vpack.c.b16 %v1894, %v1890
    %v2067 = vpack.c.b16 %v1895, %v1891
    %v2068 = vpack.c.b16 %v1900, %v1896
    %v2069 = vpack.c.b16 %v1901, %v1897
    %v2070 = vpack.c.b16 %v1902, %v1898
    %v2071 = vpack.c.b16 %v1903, %v1899
    %v2072 = vpack.c.b16 %v1908, %v1904
    %v2073 = vpack.c.b16 %v1909, %v1905
    %v2074 = vpack.c.b16 %v1910, %v1906
    %v2075 = vpack.c.b16 %v1911, %v1907
    %v2076 = vpack.c.b16 %v1916, %v1912
    %v2077 = vpack.c.b16 %v1917, %v1913
    %v2078 = vpack.c.b16 %v1918, %v1914
    %v2079 = vpack.c.b16 %v1919, %v1915
    %v2080 = vpack.c.b16 %v1924, %v1920
    %v2081 = vpack.c.b16 %v1925, %v1921
    %v2082 = vpack.c.b16 %v1926, %v1922
    %v2083 = vpack.c.b16 %v1927, %v1923
    %v2084 = vpack.c.b16 %v1932, %v1928
    %v2085 = vpack.c.b16 %v1933, %v1929
    %v2086 = vpack.c.b16 %v1934, %v1930
    %v2087 = vpack.c.b16 %v1935, %v1931
    %v2088 = vpack.c.b16 %v1940, %v1936
    %v2089 = vpack.c.b16 %v1941, %v1937
    %v2090 = vpack.c.b16 %v1942, %v1938
    %v2091 = vpack.c.b16 %v1943, %v1939
    %v2092 = vpack.c.b16 %v1948, %v1944
    %v2093 = vpack.c.b16 %v1949, %v1945
    %v2094 = vpack.c.b16 %v1950, %v1946
    %v2095 = vpack.c.b16 %v1951, %v1947
    %v2096 = vpack.c.b16 %v1956, %v1952
    %v2097 = vpack.c.b16 %v1957, %v1953
    %v2098 = vpack.c.b16 %v1958, %v1954
    %v2099 = vpack.c.b16 %v1959, %v1955
    %v2100 = vpack.c.b16 %v1964, %v1960
    %v2101 = vpack.c.b16 %v1965, %v1961
    %v2102 = vpack.c.b16 %v1966, %v1962
    %v2103 = vpack.c.b16 %v1967, %v1963
    %v2104 = vpack.c.b16 %v1972, %v1968
    %v2105 = vpack.c.b16 %v1973, %v1969
    %v2106 = vpack.c.b16 %v1974, %v1970
    %v2107 = vpack.c.b16 %v1975, %v1971
    %v2108 = vpack.c.b16 %v1980, %v1976
    %v2109 = vpack.c.b16 %v1981, %v1977
    %v2110 = vpack.c.b16 %v1982, %v1978
    %v2111 = vpack.c.b16 %v1983, %v1979
    %2240 = vmatprep.subr.bf16.mxu0 %v2013
    %2241 = vmatpush1.bf16.msra.mxu0 %v2012
    %2242 = vmatprep.subr.bf16.mxu0 %v2009
    %2243 = vmatpush1.bf16.msra.mxu0 %v2008
    %2244 = vmatprep.subr.bf16.mxu0 %v2005
    %2245 = vmatpush1.bf16.msra.mxu0 %v2004
    %2246 = vmatprep.subr.bf16.mxu0 %v2001
    %2247 = vmatpush1.bf16.msra.mxu0 %v2000
    %2248 = vmatprep.subr.bf16.mxu0 %v1997
    %2249 = vmatpush1.bf16.msra.mxu0 %v1996
    %2250 = vmatprep.subr.bf16.mxu0 %v1993
    %2251 = vmatpush1.bf16.msra.mxu0 %v1992
    %2252 = vmatprep.subr.bf16.mxu0 %v1989
    %2253 = vmatpush1.bf16.msra.mxu0 %v1988
    %2254 = vmatprep.subr.bf16.mxu0 %v1985
    %2255 = vmatpush1.bf16.msra.mxu0 %v1984
    %2256 = vmatprep.subr.bf16.mxu0 %v2045
    %2257 = vmatpush2.bf16.msra.mxu0 %v2044
    %2258 = vmatprep.subr.bf16.mxu0 %v2041
    %2259 = vmatpush2.bf16.msra.mxu0 %v2040
    %2260 = vmatprep.subr.bf16.mxu0 %v2037
    %2261 = vmatpush2.bf16.msra.mxu0 %v2036
    %2262 = vmatprep.subr.bf16.mxu0 %v2033
    %2263 = vmatpush2.bf16.msra.mxu0 %v2032
    %2264 = vmatprep.subr.bf16.mxu0 %v2029
    %2265 = vmatpush2.bf16.msra.mxu0 %v2028
    %2266 = vmatprep.subr.bf16.mxu0 %v2025
    %2267 = vmatpush2.bf16.msra.mxu0 %v2024
    %2268 = vmatprep.subr.bf16.mxu0 %v2021
    %2269 = vmatpush2.bf16.msra.mxu0 %v2020
    %2270 = vmatprep.subr.bf16.mxu0 %v2017
    %2271 = vmatpush2.bf16.msra.mxu0 %v2016
    %2272 = vmatprep.mubr.bf16.mxu0 %v1445
    %2273 = vmatmul.mubr.bf16.gmra.mxu0 %v1444
    %v2274 = vpop.f32.mrf.mxu0
    %v2275 = vadd.f32 %v1583, %v2274
    %v2276 = vpop.f32.mrf.mxu0
    %v2277 = vadd.f32 %v1587, %v2276
    %v2278 = vpop.f32.mrf.mxu0
    %v2279 = vpop.f32.mrf.mxu0
    %2280 = vdwg.mxu0
    %2281 = vmatprep.subr.bf16.mxu0 %v2077
    %2282 = vmatpush1.bf16.msra.mxu0 %v2076
    %2283 = vmatprep.subr.bf16.mxu0 %v2073
    %2284 = vmatpush1.bf16.msra.mxu0 %v2072
    %2285 = vmatprep.subr.bf16.mxu0 %v2069
    %2286 = vmatpush1.bf16.msra.mxu0 %v2068
    %2287 = vmatprep.subr.bf16.mxu0 %v2065
    %2288 = vmatpush1.bf16.msra.mxu0 %v2064
    %2289 = vmatprep.subr.bf16.mxu0 %v2061
    %2290 = vmatpush1.bf16.msra.mxu0 %v2060
    %2291 = vmatprep.subr.bf16.mxu0 %v2057
    %2292 = vmatpush1.bf16.msra.mxu0 %v2056
    %2293 = vmatprep.subr.bf16.mxu0 %v2053
    %2294 = vmatpush1.bf16.msra.mxu0 %v2052
    %2295 = vmatprep.subr.bf16.mxu0 %v2049
    %2296 = vmatpush1.bf16.msra.mxu0 %v2048
    %2297 = vmatprep.subr.bf16.mxu0 %v2109
    %2298 = vmatpush2.bf16.msra.mxu0 %v2108
    %2299 = vmatprep.subr.bf16.mxu0 %v2105
    %2300 = vmatpush2.bf16.msra.mxu0 %v2104
    %2301 = vmatprep.subr.bf16.mxu0 %v2101
    %2302 = vmatpush2.bf16.msra.mxu0 %v2100
    %2303 = vmatprep.subr.bf16.mxu0 %v2097
    %2304 = vmatpush2.bf16.msra.mxu0 %v2096
    %2305 = vmatprep.subr.bf16.mxu0 %v2093
    %2306 = vmatpush2.bf16.msra.mxu0 %v2092
    %2307 = vmatprep.subr.bf16.mxu0 %v2089
    %2308 = vmatpush2.bf16.msra.mxu0 %v2088
    %2309 = vmatprep.subr.bf16.mxu0 %v2085
    %2310 = vmatpush2.bf16.msra.mxu0 %v2084
    %2311 = vmatprep.subr.bf16.mxu0 %v2081
    %2312 = vmatpush2.bf16.msra.mxu0 %v2080
    %2313 = vmatprep.mubr.bf16.mxu0 %v1447
    %2314 = vmatmul.mubr.bf16.gmra.mxu0 %v1446
    %v2315 = vpop.f32.mrf.mxu0
    %v2316 = vadd.f32 %v2275, %v2315
    %v2317 = vpop.f32.mrf.mxu0
    %v2318 = vadd.f32 %v2277, %v2317
    %v2319 = vpop.f32.mrf.mxu0
    %v2320 = vpop.f32.mrf.mxu0
    %2321 = vdwg.mxu0
    %2322 = vmatprep.subr.bf16.mxu0 %v2015
    %2323 = vmatpush1.bf16.msra.mxu0 %v2014
    %2324 = vmatprep.subr.bf16.mxu0 %v2011
    %2325 = vmatpush1.bf16.msra.mxu0 %v2010
    %2326 = vmatprep.subr.bf16.mxu0 %v2007
    %2327 = vmatpush1.bf16.msra.mxu0 %v2006
    %2328 = vmatprep.subr.bf16.mxu0 %v2003
    %2329 = vmatpush1.bf16.msra.mxu0 %v2002
    %2330 = vmatprep.subr.bf16.mxu0 %v1999
    %2331 = vmatpush1.bf16.msra.mxu0 %v1998
    %2332 = vmatprep.subr.bf16.mxu0 %v1995
    %2333 = vmatpush1.bf16.msra.mxu0 %v1994
    %2334 = vmatprep.subr.bf16.mxu0 %v1991
    %2335 = vmatpush1.bf16.msra.mxu0 %v1990
    %2336 = vmatprep.subr.bf16.mxu0 %v1987
    %2337 = vmatpush1.bf16.msra.mxu0 %v1986
    %2338 = vmatprep.subr.bf16.mxu0 %v2047
    %2339 = vmatpush2.bf16.msra.mxu0 %v2046
    %2340 = vmatprep.subr.bf16.mxu0 %v2043
    %2341 = vmatpush2.bf16.msra.mxu0 %v2042
    %2342 = vmatprep.subr.bf16.mxu0 %v2039
    %2343 = vmatpush2.bf16.msra.mxu0 %v2038
    %2344 = vmatprep.subr.bf16.mxu0 %v2035
    %2345 = vmatpush2.bf16.msra.mxu0 %v2034
    %2346 = vmatprep.subr.bf16.mxu0 %v2031
    %2347 = vmatpush2.bf16.msra.mxu0 %v2030
    %2348 = vmatprep.subr.bf16.mxu0 %v2027
    %2349 = vmatpush2.bf16.msra.mxu0 %v2026
    %2350 = vmatprep.subr.bf16.mxu0 %v2023
    %2351 = vmatpush2.bf16.msra.mxu0 %v2022
    %2352 = vmatprep.subr.bf16.mxu0 %v2019
    %2353 = vmatpush2.bf16.msra.mxu0 %v2018
    %2354 = vmatprep.mubr.bf16.mxu0 %v1445
    %2355 = vmatmul.mubr.bf16.gmra.mxu0 %v1444
    %v2356 = vpop.f32.mrf.mxu0
    %v2357 = vadd.f32 %v1591, %v2356
    %v2358 = vpop.f32.mrf.mxu0
    %v2359 = vadd.f32 %v1595, %v2358
    %v2360 = vpop.f32.mrf.mxu0
    %v2361 = vpop.f32.mrf.mxu0
    %2362 = vdwg.mxu0
    %2363 = vmatprep.subr.bf16.mxu0 %v2079
    %2364 = vmatpush1.bf16.msra.mxu0 %v2078
    %2365 = vmatprep.subr.bf16.mxu0 %v2075
    %2366 = vmatpush1.bf16.msra.mxu0 %v2074
    %2367 = vmatprep.subr.bf16.mxu0 %v2071
    %2368 = vmatpush1.bf16.msra.mxu0 %v2070
    %2369 = vmatprep.subr.bf16.mxu0 %v2067
    %2370 = vmatpush1.bf16.msra.mxu0 %v2066
    %2371 = vmatprep.subr.bf16.mxu0 %v2063
    %2372 = vmatpush1.bf16.msra.mxu0 %v2062
    %2373 = vmatprep.subr.bf16.mxu0 %v2059
    %2374 = vmatpush1.bf16.msra.mxu0 %v2058
    %2375 = vmatprep.subr.bf16.mxu0 %v2055
    %2376 = vmatpush1.bf16.msra.mxu0 %v2054
    %2377 = vmatprep.subr.bf16.mxu0 %v2051
    %2378 = vmatpush1.bf16.msra.mxu0 %v2050
    %2379 = vmatprep.subr.bf16.mxu0 %v2111
    %2380 = vmatpush2.bf16.msra.mxu0 %v2110
    %2381 = vmatprep.subr.bf16.mxu0 %v2107
    %2382 = vmatpush2.bf16.msra.mxu0 %v2106
    %2383 = vmatprep.subr.bf16.mxu0 %v2103
    %2384 = vmatpush2.bf16.msra.mxu0 %v2102
    %2385 = vmatprep.subr.bf16.mxu0 %v2099
    %2386 = vmatpush2.bf16.msra.mxu0 %v2098
    %2387 = vmatprep.subr.bf16.mxu0 %v2095
    %2388 = vmatpush2.bf16.msra.mxu0 %v2094
    %2389 = vmatprep.subr.bf16.mxu0 %v2091
    %2390 = vmatpush2.bf16.msra.mxu0 %v2090
    %2391 = vmatprep.subr.bf16.mxu0 %v2087
    %2392 = vmatpush2.bf16.msra.mxu0 %v2086
    %2393 = vmatprep.subr.bf16.mxu0 %v2083
    %2394 = vmatpush2.bf16.msra.mxu0 %v2082
    %2395 = vmatprep.mubr.bf16.mxu0 %v1447
    %2396 = vmatmul.mubr.bf16.gmra.mxu0 %v1446
    %v2397 = vpop.f32.mrf.mxu0
    %v2398 = vadd.f32 %v2357, %v2397
    %v2399 = vpop.f32.mrf.mxu0
    %v2400 = vadd.f32 %v2359, %v2399
    %v2401 = vpop.f32.mrf.mxu0
    %v2402 = vpop.f32.mrf.mxu0
    %2403 = vdwg.mxu0
    %s2404 = sld [smem:[#allocation18 + $0x2]]
    %vm2405 = vcmp.gt.f32.partialorder %v2316, 0.0
    %vm2406 = vcmp.gt.f32.partialorder %v2318, 0.0
    %vm2407 = vcmp.gt.f32.partialorder %v2398, 0.0
    %vm2408 = vcmp.gt.f32.partialorder %v2400, 0.0
    %v2409 = vstv %s2404
    %v2410 = vmul.f32 %v2409, %v2316
    %v2411 = vmul.f32 %v2409, %v2318
    %v2412 = vmul.f32 %v2409, %v2398
    %v2413 = vmul.f32 %v2409, %v2400
    %v2414 = vsel %vm2405, %v2316, %v2410
    %v2415 = vsel %vm2406, %v2318, %v2411
    %v2416 = vsel %vm2407, %v2398, %v2412
    %v2417 = vsel %vm2408, %v2400, %v2413
    %v2418 = vpack.c.bf16 %v2414, %v2414
    %v2419 = vpack.c.bf16 %v2415, %v2415
    %v2420 = vpack.c.bf16 %v2416, %v2416
    %v2421 = vpack.c.bf16 %v2417, %v2417
    %s2422 = scalar_lea.vmem [#allocation9], 2048
    %v2423 = vld [vmem:[%s2422] sm:$0xff]
    %v2424 = vld [vmem:[%s2422 + $0x8] sm:$0xff]
    %v2425 = vld [vmem:[%s2422 + $0x10] sm:$0xff]
    %v2426 = vld [vmem:[%s2422 + $0x18] sm:$0xff]
    %v2427 = vld [vmem:[%s2422 + $0x20] sm:$0xff]
    %v2428 = vld [vmem:[%s2422 + $0x28] sm:$0xff]
    %v2429 = vld [vmem:[%s2422 + $0x30] sm:$0xff]
    %v2430 = vld [vmem:[%s2422 + $0x38] sm:$0xff]
    %v2431 = vld [vmem:[%s2422 + $0x40] sm:$0xff]
    %v2432 = vld [vmem:[%s2422 + $0x48] sm:$0xff]
    %v2433 = vld [vmem:[%s2422 + $0x50] sm:$0xff]
    %v2434 = vld [vmem:[%s2422 + $0x58] sm:$0xff]
    %v2435 = vld [vmem:[%s2422 + $0x60] sm:$0xff]
    %v2436 = vld [vmem:[%s2422 + $0x68] sm:$0xff]
    %v2437 = vld [vmem:[%s2422 + $0x70] sm:$0xff]
    %v2438 = vld [vmem:[%s2422 + $0x78] sm:$0xff]
    %v2439 = vld [vmem:[%s2422 + $0x80] sm:$0xff]
    %v2440 = vld [vmem:[%s2422 + $0x88] sm:$0xff]
    %v2441 = vld [vmem:[%s2422 + $0x90] sm:$0xff]
    %v2442 = vld [vmem:[%s2422 + $0x98] sm:$0xff]
    %v2443 = vld [vmem:[%s2422 + $0xa0] sm:$0xff]
    %v2444 = vld [vmem:[%s2422 + $0xa8] sm:$0xff]
    %v2445 = vld [vmem:[%s2422 + $0xb0] sm:$0xff]
    %v2446 = vld [vmem:[%s2422 + $0xb8] sm:$0xff]
    %v2447 = vld [vmem:[%s2422 + $0xc0] sm:$0xff]
    %v2448 = vld [vmem:[%s2422 + $0xc8] sm:$0xff]
    %v2449 = vld [vmem:[%s2422 + $0xd0] sm:$0xff]
    %v2450 = vld [vmem:[%s2422 + $0xd8] sm:$0xff]
    %v2451 = vld [vmem:[%s2422 + $0xe0] sm:$0xff]
    %v2452 = vld [vmem:[%s2422 + $0xe8] sm:$0xff]
    %v2453 = vld [vmem:[%s2422 + $0xf0] sm:$0xff]
    %v2454 = vld [vmem:[%s2422 + $0xf8] sm:$0xff]
    %v2455 = vld [vmem:[%s2422 + $0x100] sm:$0xff]
    %v2456 = vld [vmem:[%s2422 + $0x108] sm:$0xff]
    %v2457 = vld [vmem:[%s2422 + $0x110] sm:$0xff]
    %v2458 = vld [vmem:[%s2422 + $0x118] sm:$0xff]
    %v2459 = vld [vmem:[%s2422 + $0x120] sm:$0xff]
    %v2460 = vld [vmem:[%s2422 + $0x128] sm:$0xff]
    %v2461 = vld [vmem:[%s2422 + $0x130] sm:$0xff]
    %v2462 = vld [vmem:[%s2422 + $0x138] sm:$0xff]
    %v2463 = vld [vmem:[%s2422 + $0x140] sm:$0xff]
    %v2464 = vld [vmem:[%s2422 + $0x148] sm:$0xff]
    %v2465 = vld [vmem:[%s2422 + $0x150] sm:$0xff]
    %v2466 = vld [vmem:[%s2422 + $0x158] sm:$0xff]
    %v2467 = vld [vmem:[%s2422 + $0x160] sm:$0xff]
    %v2468 = vld [vmem:[%s2422 + $0x168] sm:$0xff]
    %v2469 = vld [vmem:[%s2422 + $0x170] sm:$0xff]
    %v2470 = vld [vmem:[%s2422 + $0x178] sm:$0xff]
    %v2471 = vld [vmem:[%s2422 + $0x180] sm:$0xff]
    %v2472 = vld [vmem:[%s2422 + $0x188] sm:$0xff]
    %v2473 = vld [vmem:[%s2422 + $0x190] sm:$0xff]
    %v2474 = vld [vmem:[%s2422 + $0x198] sm:$0xff]
    %v2475 = vld [vmem:[%s2422 + $0x1a0] sm:$0xff]
    %v2476 = vld [vmem:[%s2422 + $0x1a8] sm:$0xff]
    %v2477 = vld [vmem:[%s2422 + $0x1b0] sm:$0xff]
    %v2478 = vld [vmem:[%s2422 + $0x1b8] sm:$0xff]
    %v2479 = vld [vmem:[%s2422 + $0x1c0] sm:$0xff]
    %v2480 = vld [vmem:[%s2422 + $0x1c8] sm:$0xff]
    %v2481 = vld [vmem:[%s2422 + $0x1d0] sm:$0xff]
    %v2482 = vld [vmem:[%s2422 + $0x1d8] sm:$0xff]
    %v2483 = vld [vmem:[%s2422 + $0x1e0] sm:$0xff]
    %v2484 = vld [vmem:[%s2422 + $0x1e8] sm:$0xff]
    %v2485 = vld [vmem:[%s2422 + $0x1f0] sm:$0xff]
    %v2486 = vld [vmem:[%s2422 + $0x1f8] sm:$0xff]
    %v2487 = vld [vmem:[%s2422 + $0x200] sm:$0xff]
    %v2488 = vld [vmem:[%s2422 + $0x208] sm:$0xff]
    %v2489 = vld [vmem:[%s2422 + $0x210] sm:$0xff]
    %v2490 = vld [vmem:[%s2422 + $0x218] sm:$0xff]
    %v2491 = vld [vmem:[%s2422 + $0x220] sm:$0xff]
    %v2492 = vld [vmem:[%s2422 + $0x228] sm:$0xff]
    %v2493 = vld [vmem:[%s2422 + $0x230] sm:$0xff]
    %v2494 = vld [vmem:[%s2422 + $0x238] sm:$0xff]
    %v2495 = vld [vmem:[%s2422 + $0x240] sm:$0xff]
    %v2496 = vld [vmem:[%s2422 + $0x248] sm:$0xff]
    %v2497 = vld [vmem:[%s2422 + $0x250] sm:$0xff]
    %v2498 = vld [vmem:[%s2422 + $0x258] sm:$0xff]
    %v2499 = vld [vmem:[%s2422 + $0x260] sm:$0xff]
    %v2500 = vld [vmem:[%s2422 + $0x268] sm:$0xff]
    %v2501 = vld [vmem:[%s2422 + $0x270] sm:$0xff]
    %v2502 = vld [vmem:[%s2422 + $0x278] sm:$0xff]
    %v2503 = vld [vmem:[%s2422 + $0x280] sm:$0xff]
    %v2504 = vld [vmem:[%s2422 + $0x288] sm:$0xff]
    %v2505 = vld [vmem:[%s2422 + $0x290] sm:$0xff]
    %v2506 = vld [vmem:[%s2422 + $0x298] sm:$0xff]
    %v2507 = vld [vmem:[%s2422 + $0x2a0] sm:$0xff]
    %v2508 = vld [vmem:[%s2422 + $0x2a8] sm:$0xff]
    %v2509 = vld [vmem:[%s2422 + $0x2b0] sm:$0xff]
    %v2510 = vld [vmem:[%s2422 + $0x2b8] sm:$0xff]
    %v2511 = vld [vmem:[%s2422 + $0x2c0] sm:$0xff]
    %v2512 = vld [vmem:[%s2422 + $0x2c8] sm:$0xff]
    %v2513 = vld [vmem:[%s2422 + $0x2d0] sm:$0xff]
    %v2514 = vld [vmem:[%s2422 + $0x2d8] sm:$0xff]
    %v2515 = vld [vmem:[%s2422 + $0x2e0] sm:$0xff]
    %v2516 = vld [vmem:[%s2422 + $0x2e8] sm:$0xff]
    %v2517 = vld [vmem:[%s2422 + $0x2f0] sm:$0xff]
    %v2518 = vld [vmem:[%s2422 + $0x2f8] sm:$0xff]
    %v2519 = vld [vmem:[%s2422 + $0x300] sm:$0xff]
    %v2520 = vld [vmem:[%s2422 + $0x308] sm:$0xff]
    %v2521 = vld [vmem:[%s2422 + $0x310] sm:$0xff]
    %v2522 = vld [vmem:[%s2422 + $0x318] sm:$0xff]
    %v2523 = vld [vmem:[%s2422 + $0x320] sm:$0xff]
    %v2524 = vld [vmem:[%s2422 + $0x328] sm:$0xff]
    %v2525 = vld [vmem:[%s2422 + $0x330] sm:$0xff]
    %v2526 = vld [vmem:[%s2422 + $0x338] sm:$0xff]
    %v2527 = vld [vmem:[%s2422 + $0x340] sm:$0xff]
    %v2528 = vld [vmem:[%s2422 + $0x348] sm:$0xff]
    %v2529 = vld [vmem:[%s2422 + $0x350] sm:$0xff]
    %v2530 = vld [vmem:[%s2422 + $0x358] sm:$0xff]
    %v2531 = vld [vmem:[%s2422 + $0x360] sm:$0xff]
    %v2532 = vld [vmem:[%s2422 + $0x368] sm:$0xff]
    %v2533 = vld [vmem:[%s2422 + $0x370] sm:$0xff]
    %v2534 = vld [vmem:[%s2422 + $0x378] sm:$0xff]
    %v2535 = vld [vmem:[%s2422 + $0x380] sm:$0xff]
    %v2536 = vld [vmem:[%s2422 + $0x388] sm:$0xff]
    %v2537 = vld [vmem:[%s2422 + $0x390] sm:$0xff]
    %v2538 = vld [vmem:[%s2422 + $0x398] sm:$0xff]
    %v2539 = vld [vmem:[%s2422 + $0x3a0] sm:$0xff]
    %v2540 = vld [vmem:[%s2422 + $0x3a8] sm:$0xff]
    %v2541 = vld [vmem:[%s2422 + $0x3b0] sm:$0xff]
    %v2542 = vld [vmem:[%s2422 + $0x3b8] sm:$0xff]
    %v2543 = vld [vmem:[%s2422 + $0x3c0] sm:$0xff]
    %v2544 = vld [vmem:[%s2422 + $0x3c8] sm:$0xff]
    %v2545 = vld [vmem:[%s2422 + $0x3d0] sm:$0xff]
    %v2546 = vld [vmem:[%s2422 + $0x3d8] sm:$0xff]
    %v2547 = vld [vmem:[%s2422 + $0x3e0] sm:$0xff]
    %v2548 = vld [vmem:[%s2422 + $0x3e8] sm:$0xff]
    %v2549 = vld [vmem:[%s2422 + $0x3f0] sm:$0xff]
    %v2550 = vld [vmem:[%s2422 + $0x3f8] sm:$0xff]
    %s2551 = scalar_lea.vmem [#allocation11], 2
    %v2552 = vld [vmem:[%s2551] ss:$4 sm:$0xf]
    %v2554 = vlaneseq
    %v2555 = vshrl.u32 %v2554, 7
    %v2556 = vsub.s32 0, %v2555
    %v2557 = vrot.slane %v2552, %v2556
    %v2558 = vlaneseq
    %v2559 = vshrl.u32 %v2558, 7
    %v2560 = vsub.s32 1, %v2559
    %v2561 = vrot.slane %v2552, %v2560
    %v2562 = vlaneseq
    %v2563 = vshrl.u32 %v2562, 7
    %v2564 = vsub.s32 2, %v2563
    %v2565 = vrot.slane %v2552, %v2564
    %v2566 = vlaneseq
    %v2567 = vshrl.u32 %v2566, 7
    %v2568 = vsub.s32 3, %v2567
    %v2569 = vrot.slane %v2552, %v2568
    %v2702 = vunpack.c.l.b16 %v2423
    %v2703 = vunpack.c.h.b16 %v2423
    %v2704 = vunpack.c.l.b16 %v2424
    %v2705 = vunpack.c.h.b16 %v2424
    %v2706 = vunpack.c.l.b16 %v2425
    %v2707 = vunpack.c.h.b16 %v2425
    %v2708 = vunpack.c.l.b16 %v2426
    %v2709 = vunpack.c.h.b16 %v2426
    %v2710 = vunpack.c.l.b16 %v2427
    %v2711 = vunpack.c.h.b16 %v2427
    %v2712 = vunpack.c.l.b16 %v2428
    %v2713 = vunpack.c.h.b16 %v2428
    %v2714 = vunpack.c.l.b16 %v2429
    %v2715 = vunpack.c.h.b16 %v2429
    %v2716 = vunpack.c.l.b16 %v2430
    %v2717 = vunpack.c.h.b16 %v2430
    %v2718 = vunpack.c.l.b16 %v2431
    %v2719 = vunpack.c.h.b16 %v2431
    %v2720 = vunpack.c.l.b16 %v2432
    %v2721 = vunpack.c.h.b16 %v2432
    %v2722 = vunpack.c.l.b16 %v2433
    %v2723 = vunpack.c.h.b16 %v2433
    %v2724 = vunpack.c.l.b16 %v2434
    %v2725 = vunpack.c.h.b16 %v2434
    %v2726 = vunpack.c.l.b16 %v2435
    %v2727 = vunpack.c.h.b16 %v2435
    %v2728 = vunpack.c.l.b16 %v2436
    %v2729 = vunpack.c.h.b16 %v2436
    %v2730 = vunpack.c.l.b16 %v2437
    %v2731 = vunpack.c.h.b16 %v2437
    %v2732 = vunpack.c.l.b16 %v2438
    %v2733 = vunpack.c.h.b16 %v2438
    %v2734 = vunpack.c.l.b16 %v2439
    %v2735 = vunpack.c.h.b16 %v2439
    %v2736 = vunpack.c.l.b16 %v2440
    %v2737 = vunpack.c.h.b16 %v2440
    %v2738 = vunpack.c.l.b16 %v2441
    %v2739 = vunpack.c.h.b16 %v2441
    %v2740 = vunpack.c.l.b16 %v2442
    %v2741 = vunpack.c.h.b16 %v2442
    %v2742 = vunpack.c.l.b16 %v2443
    %v2743 = vunpack.c.h.b16 %v2443
    %v2744 = vunpack.c.l.b16 %v2444
    %v2745 = vunpack.c.h.b16 %v2444
    %v2746 = vunpack.c.l.b16 %v2445
    %v2747 = vunpack.c.h.b16 %v2445
    %v2748 = vunpack.c.l.b16 %v2446
    %v2749 = vunpack.c.h.b16 %v2446
    %v2750 = vunpack.c.l.b16 %v2447
    %v2751 = vunpack.c.h.b16 %v2447
    %v2752 = vunpack.c.l.b16 %v2448
    %v2753 = vunpack.c.h.b16 %v2448
    %v2754 = vunpack.c.l.b16 %v2449
    %v2755 = vunpack.c.h.b16 %v2449
    %v2756 = vunpack.c.l.b16 %v2450
    %v2757 = vunpack.c.h.b16 %v2450
    %v2758 = vunpack.c.l.b16 %v2451
    %v2759 = vunpack.c.h.b16 %v2451
    %v2760 = vunpack.c.l.b16 %v2452
    %v2761 = vunpack.c.h.b16 %v2452
    %v2762 = vunpack.c.l.b16 %v2453
    %v2763 = vunpack.c.h.b16 %v2453
    %v2764 = vunpack.c.l.b16 %v2454
    %v2765 = vunpack.c.h.b16 %v2454
    %v2766 = vunpack.c.l.b16 %v2455
    %v2767 = vunpack.c.h.b16 %v2455
    %v2768 = vunpack.c.l.b16 %v2456
    %v2769 = vunpack.c.h.b16 %v2456
    %v2770 = vunpack.c.l.b16 %v2457
    %v2771 = vunpack.c.h.b16 %v2457
    %v2772 = vunpack.c.l.b16 %v2458
    %v2773 = vunpack.c.h.b16 %v2458
    %v2774 = vunpack.c.l.b16 %v2459
    %v2775 = vunpack.c.h.b16 %v2459
    %v2776 = vunpack.c.l.b16 %v2460
    %v2777 = vunpack.c.h.b16 %v2460
    %v2778 = vunpack.c.l.b16 %v2461
    %v2779 = vunpack.c.h.b16 %v2461
    %v2780 = vunpack.c.l.b16 %v2462
    %v2781 = vunpack.c.h.b16 %v2462
    %v2782 = vunpack.c.l.b16 %v2463
    %v2783 = vunpack.c.h.b16 %v2463
    %v2784 = vunpack.c.l.b16 %v2464
    %v2785 = vunpack.c.h.b16 %v2464
    %v2786 = vunpack.c.l.b16 %v2465
    %v2787 = vunpack.c.h.b16 %v2465
    %v2788 = vunpack.c.l.b16 %v2466
    %v2789 = vunpack.c.h.b16 %v2466
    %v2790 = vunpack.c.l.b16 %v2467
    %v2791 = vunpack.c.h.b16 %v2467
    %v2792 = vunpack.c.l.b16 %v2468
    %v2793 = vunpack.c.h.b16 %v2468
    %v2794 = vunpack.c.l.b16 %v2469
    %v2795 = vunpack.c.h.b16 %v2469
    %v2796 = vunpack.c.l.b16 %v2470
    %v2797 = vunpack.c.h.b16 %v2470
    %v2798 = vunpack.c.l.b16 %v2471
    %v2799 = vunpack.c.h.b16 %v2471
    %v2800 = vunpack.c.l.b16 %v2472
    %v2801 = vunpack.c.h.b16 %v2472
    %v2802 = vunpack.c.l.b16 %v2473
    %v2803 = vunpack.c.h.b16 %v2473
    %v2804 = vunpack.c.l.b16 %v2474
    %v2805 = vunpack.c.h.b16 %v2474
    %v2806 = vunpack.c.l.b16 %v2475
    %v2807 = vunpack.c.h.b16 %v2475
    %v2808 = vunpack.c.l.b16 %v2476
    %v2809 = vunpack.c.h.b16 %v2476
    %v2810 = vunpack.c.l.b16 %v2477
    %v2811 = vunpack.c.h.b16 %v2477
    %v2812 = vunpack.c.l.b16 %v2478
    %v2813 = vunpack.c.h.b16 %v2478
    %v2814 = vunpack.c.l.b16 %v2479
    %v2815 = vunpack.c.h.b16 %v2479
    %v2816 = vunpack.c.l.b16 %v2480
    %v2817 = vunpack.c.h.b16 %v2480
    %v2818 = vunpack.c.l.b16 %v2481
    %v2819 = vunpack.c.h.b16 %v2481
    %v2820 = vunpack.c.l.b16 %v2482
    %v2821 = vunpack.c.h.b16 %v2482
    %v2822 = vunpack.c.l.b16 %v2483
    %v2823 = vunpack.c.h.b16 %v2483
    %v2824 = vunpack.c.l.b16 %v2484
    %v2825 = vunpack.c.h.b16 %v2484
    %v2826 = vunpack.c.l.b16 %v2485
    %v2827 = vunpack.c.h.b16 %v2485
    %v2828 = vunpack.c.l.b16 %v2486
    %v2829 = vunpack.c.h.b16 %v2486
    %v2830 = vunpack.c.l.b16 %v2487
    %v2831 = vunpack.c.h.b16 %v2487
    %v2832 = vunpack.c.l.b16 %v2488
    %v2833 = vunpack.c.h.b16 %v2488
    %v2834 = vunpack.c.l.b16 %v2489
    %v2835 = vunpack.c.h.b16 %v2489
    %v2836 = vunpack.c.l.b16 %v2490
    %v2837 = vunpack.c.h.b16 %v2490
    %v2838 = vunpack.c.l.b16 %v2491
    %v2839 = vunpack.c.h.b16 %v2491
    %v2840 = vunpack.c.l.b16 %v2492
    %v2841 = vunpack.c.h.b16 %v2492
    %v2842 = vunpack.c.l.b16 %v2493
    %v2843 = vunpack.c.h.b16 %v2493
    %v2844 = vunpack.c.l.b16 %v2494
    %v2845 = vunpack.c.h.b16 %v2494
    %v2846 = vunpack.c.l.b16 %v2495
    %v2847 = vunpack.c.h.b16 %v2495
    %v2848 = vunpack.c.l.b16 %v2496
    %v2849 = vunpack.c.h.b16 %v2496
    %v2850 = vunpack.c.l.b16 %v2497
    %v2851 = vunpack.c.h.b16 %v2497
    %v2852 = vunpack.c.l.b16 %v2498
    %v2853 = vunpack.c.h.b16 %v2498
    %v2854 = vunpack.c.l.b16 %v2499
    %v2855 = vunpack.c.h.b16 %v2499
    %v2856 = vunpack.c.l.b16 %v2500
    %v2857 = vunpack.c.h.b16 %v2500
    %v2858 = vunpack.c.l.b16 %v2501
    %v2859 = vunpack.c.h.b16 %v2501
    %v2860 = vunpack.c.l.b16 %v2502
    %v2861 = vunpack.c.h.b16 %v2502
    %v2862 = vunpack.c.l.b16 %v2503
    %v2863 = vunpack.c.h.b16 %v2503
    %v2864 = vunpack.c.l.b16 %v2504
    %v2865 = vunpack.c.h.b16 %v2504
    %v2866 = vunpack.c.l.b16 %v2505
    %v2867 = vunpack.c.h.b16 %v2505
    %v2868 = vunpack.c.l.b16 %v2506
    %v2869 = vunpack.c.h.b16 %v2506
    %v2870 = vunpack.c.l.b16 %v2507
    %v2871 = vunpack.c.h.b16 %v2507
    %v2872 = vunpack.c.l.b16 %v2508
    %v2873 = vunpack.c.h.b16 %v2508
    %v2874 = vunpack.c.l.b16 %v2509
    %v2875 = vunpack.c.h.b16 %v2509
    %v2876 = vunpack.c.l.b16 %v2510
    %v2877 = vunpack.c.h.b16 %v2510
    %v2878 = vunpack.c.l.b16 %v2511
    %v2879 = vunpack.c.h.b16 %v2511
    %v2880 = vunpack.c.l.b16 %v2512
    %v2881 = vunpack.c.h.b16 %v2512
    %v2882 = vunpack.c.l.b16 %v2513
    %v2883 = vunpack.c.h.b16 %v2513
    %v2884 = vunpack.c.l.b16 %v2514
    %v2885 = vunpack.c.h.b16 %v2514
    %v2886 = vunpack.c.l.b16 %v2515
    %v2887 = vunpack.c.h.b16 %v2515
    %v2888 = vunpack.c.l.b16 %v2516
    %v2889 = vunpack.c.h.b16 %v2516
    %v2890 = vunpack.c.l.b16 %v2517
    %v2891 = vunpack.c.h.b16 %v2517
    %v2892 = vunpack.c.l.b16 %v2518
    %v2893 = vunpack.c.h.b16 %v2518
    %v2894 = vunpack.c.l.b16 %v2519
    %v2895 = vunpack.c.h.b16 %v2519
    %v2896 = vunpack.c.l.b16 %v2520
    %v2897 = vunpack.c.h.b16 %v2520
    %v2898 = vunpack.c.l.b16 %v2521
    %v2899 = vunpack.c.h.b16 %v2521
    %v2900 = vunpack.c.l.b16 %v2522
    %v2901 = vunpack.c.h.b16 %v2522
    %v2902 = vunpack.c.l.b16 %v2523
    %v2903 = vunpack.c.h.b16 %v2523
    %v2904 = vunpack.c.l.b16 %v2524
    %v2905 = vunpack.c.h.b16 %v2524
    %v2906 = vunpack.c.l.b16 %v2525
    %v2907 = vunpack.c.h.b16 %v2525
    %v2908 = vunpack.c.l.b16 %v2526
    %v2909 = vunpack.c.h.b16 %v2526
    %v2910 = vunpack.c.l.b16 %v2527
    %v2911 = vunpack.c.h.b16 %v2527
    %v2912 = vunpack.c.l.b16 %v2528
    %v2913 = vunpack.c.h.b16 %v2528
    %v2914 = vunpack.c.l.b16 %v2529
    %v2915 = vunpack.c.h.b16 %v2529
    %v2916 = vunpack.c.l.b16 %v2530
    %v2917 = vunpack.c.h.b16 %v2530
    %v2918 = vunpack.c.l.b16 %v2531
    %v2919 = vunpack.c.h.b16 %v2531
    %v2920 = vunpack.c.l.b16 %v2532
    %v2921 = vunpack.c.h.b16 %v2532
    %v2922 = vunpack.c.l.b16 %v2533
    %v2923 = vunpack.c.h.b16 %v2533
    %v2924 = vunpack.c.l.b16 %v2534
    %v2925 = vunpack.c.h.b16 %v2534
    %v2926 = vunpack.c.l.b16 %v2535
    %v2927 = vunpack.c.h.b16 %v2535
    %v2928 = vunpack.c.l.b16 %v2536
    %v2929 = vunpack.c.h.b16 %v2536
    %v2930 = vunpack.c.l.b16 %v2537
    %v2931 = vunpack.c.h.b16 %v2537
    %v2932 = vunpack.c.l.b16 %v2538
    %v2933 = vunpack.c.h.b16 %v2538
    %v2934 = vunpack.c.l.b16 %v2539
    %v2935 = vunpack.c.h.b16 %v2539
    %v2936 = vunpack.c.l.b16 %v2540
    %v2937 = vunpack.c.h.b16 %v2540
    %v2938 = vunpack.c.l.b16 %v2541
    %v2939 = vunpack.c.h.b16 %v2541
    %v2940 = vunpack.c.l.b16 %v2542
    %v2941 = vunpack.c.h.b16 %v2542
    %v2942 = vunpack.c.l.b16 %v2543
    %v2943 = vunpack.c.h.b16 %v2543
    %v2944 = vunpack.c.l.b16 %v2544
    %v2945 = vunpack.c.h.b16 %v2544
    %v2946 = vunpack.c.l.b16 %v2545
    %v2947 = vunpack.c.h.b16 %v2545
    %v2948 = vunpack.c.l.b16 %v2546
    %v2949 = vunpack.c.h.b16 %v2546
    %v2950 = vunpack.c.l.b16 %v2547
    %v2951 = vunpack.c.h.b16 %v2547
    %v2952 = vunpack.c.l.b16 %v2548
    %v2953 = vunpack.c.h.b16 %v2548
    %v2954 = vunpack.c.l.b16 %v2549
    %v2955 = vunpack.c.h.b16 %v2549
    %v2956 = vunpack.c.l.b16 %v2550
    %v2957 = vunpack.c.h.b16 %v2550
    %v2958 = vpack.c.b16 %v2706, %v2702
    %v2959 = vpack.c.b16 %v2707, %v2703
    %v2960 = vpack.c.b16 %v2708, %v2704
    %v2961 = vpack.c.b16 %v2709, %v2705
    %v2962 = vpack.c.b16 %v2714, %v2710
    %v2963 = vpack.c.b16 %v2715, %v2711
    %v2964 = vpack.c.b16 %v2716, %v2712
    %v2965 = vpack.c.b16 %v2717, %v2713
    %v2966 = vpack.c.b16 %v2722, %v2718
    %v2967 = vpack.c.b16 %v2723, %v2719
    %v2968 = vpack.c.b16 %v2724, %v2720
    %v2969 = vpack.c.b16 %v2725, %v2721
    %v2970 = vpack.c.b16 %v2730, %v2726
    %v2971 = vpack.c.b16 %v2731, %v2727
    %v2972 = vpack.c.b16 %v2732, %v2728
    %v2973 = vpack.c.b16 %v2733, %v2729
    %v2974 = vpack.c.b16 %v2738, %v2734
    %v2975 = vpack.c.b16 %v2739, %v2735
    %v2976 = vpack.c.b16 %v2740, %v2736
    %v2977 = vpack.c.b16 %v2741, %v2737
    %v2978 = vpack.c.b16 %v2746, %v2742
    %v2979 = vpack.c.b16 %v2747, %v2743
    %v2980 = vpack.c.b16 %v2748, %v2744
    %v2981 = vpack.c.b16 %v2749, %v2745
    %v2982 = vpack.c.b16 %v2754, %v2750
    %v2983 = vpack.c.b16 %v2755, %v2751
    %v2984 = vpack.c.b16 %v2756, %v2752
    %v2985 = vpack.c.b16 %v2757, %v2753
    %v2986 = vpack.c.b16 %v2762, %v2758
    %v2987 = vpack.c.b16 %v2763, %v2759
    %v2988 = vpack.c.b16 %v2764, %v2760
    %v2989 = vpack.c.b16 %v2765, %v2761
    %v2990 = vpack.c.b16 %v2770, %v2766
    %v2991 = vpack.c.b16 %v2771, %v2767
    %v2992 = vpack.c.b16 %v2772, %v2768
    %v2993 = vpack.c.b16 %v2773, %v2769
    %v2994 = vpack.c.b16 %v2778, %v2774
    %v2995 = vpack.c.b16 %v2779, %v2775
    %v2996 = vpack.c.b16 %v2780, %v2776
    %v2997 = vpack.c.b16 %v2781, %v2777
    %v2998 = vpack.c.b16 %v2786, %v2782
    %v2999 = vpack.c.b16 %v2787, %v2783
    %v3000 = vpack.c.b16 %v2788, %v2784
    %v3001 = vpack.c.b16 %v2789, %v2785
    %v3002 = vpack.c.b16 %v2794, %v2790
    %v3003 = vpack.c.b16 %v2795, %v2791
    %v3004 = vpack.c.b16 %v2796, %v2792
    %v3005 = vpack.c.b16 %v2797, %v2793
    %v3006 = vpack.c.b16 %v2802, %v2798
    %v3007 = vpack.c.b16 %v2803, %v2799
    %v3008 = vpack.c.b16 %v2804, %v2800
    %v3009 = vpack.c.b16 %v2805, %v2801
    %v3010 = vpack.c.b16 %v2810, %v2806
    %v3011 = vpack.c.b16 %v2811, %v2807
    %v3012 = vpack.c.b16 %v2812, %v2808
    %v3013 = vpack.c.b16 %v2813, %v2809
    %v3014 = vpack.c.b16 %v2818, %v2814
    %v3015 = vpack.c.b16 %v2819, %v2815
    %v3016 = vpack.c.b16 %v2820, %v2816
    %v3017 = vpack.c.b16 %v2821, %v2817
    %v3018 = vpack.c.b16 %v2826, %v2822
    %v3019 = vpack.c.b16 %v2827, %v2823
    %v3020 = vpack.c.b16 %v2828, %v2824
    %v3021 = vpack.c.b16 %v2829, %v2825
    %v3022 = vpack.c.b16 %v2834, %v2830
    %v3023 = vpack.c.b16 %v2835, %v2831
    %v3024 = vpack.c.b16 %v2836, %v2832
    %v3025 = vpack.c.b16 %v2837, %v2833
    %v3026 = vpack.c.b16 %v2842, %v2838
    %v3027 = vpack.c.b16 %v2843, %v2839
    %v3028 = vpack.c.b16 %v2844, %v2840
    %v3029 = vpack.c.b16 %v2845, %v2841
    %v3030 = vpack.c.b16 %v2850, %v2846
    %v3031 = vpack.c.b16 %v2851, %v2847
    %v3032 = vpack.c.b16 %v2852, %v2848
    %v3033 = vpack.c.b16 %v2853, %v2849
    %v3034 = vpack.c.b16 %v2858, %v2854
    %v3035 = vpack.c.b16 %v2859, %v2855
    %v3036 = vpack.c.b16 %v2860, %v2856
    %v3037 = vpack.c.b16 %v2861, %v2857
    %v3038 = vpack.c.b16 %v2866, %v2862
    %v3039 = vpack.c.b16 %v2867, %v2863
    %v3040 = vpack.c.b16 %v2868, %v2864
    %v3041 = vpack.c.b16 %v2869, %v2865
    %v3042 = vpack.c.b16 %v2874, %v2870
    %v3043 = vpack.c.b16 %v2875, %v2871
    %v3044 = vpack.c.b16 %v2876, %v2872
    %v3045 = vpack.c.b16 %v2877, %v2873
    %v3046 = vpack.c.b16 %v2882, %v2878
    %v3047 = vpack.c.b16 %v2883, %v2879
    %v3048 = vpack.c.b16 %v2884, %v2880
    %v3049 = vpack.c.b16 %v2885, %v2881
    %v3050 = vpack.c.b16 %v2890, %v2886
    %v3051 = vpack.c.b16 %v2891, %v2887
    %v3052 = vpack.c.b16 %v2892, %v2888
    %v3053 = vpack.c.b16 %v2893, %v2889
    %v3054 = vpack.c.b16 %v2898, %v2894
    %v3055 = vpack.c.b16 %v2899, %v2895
    %v3056 = vpack.c.b16 %v2900, %v2896
    %v3057 = vpack.c.b16 %v2901, %v2897
    %v3058 = vpack.c.b16 %v2906, %v2902
    %v3059 = vpack.c.b16 %v2907, %v2903
    %v3060 = vpack.c.b16 %v2908, %v2904
    %v3061 = vpack.c.b16 %v2909, %v2905
    %v3062 = vpack.c.b16 %v2914, %v2910
    %v3063 = vpack.c.b16 %v2915, %v2911
    %v3064 = vpack.c.b16 %v2916, %v2912
    %v3065 = vpack.c.b16 %v2917, %v2913
    %v3066 = vpack.c.b16 %v2922, %v2918
    %v3067 = vpack.c.b16 %v2923, %v2919
    %v3068 = vpack.c.b16 %v2924, %v2920
    %v3069 = vpack.c.b16 %v2925, %v2921
    %v3070 = vpack.c.b16 %v2930, %v2926
    %v3071 = vpack.c.b16 %v2931, %v2927
    %v3072 = vpack.c.b16 %v2932, %v2928
    %v3073 = vpack.c.b16 %v2933, %v2929
    %v3074 = vpack.c.b16 %v2938, %v2934
    %v3075 = vpack.c.b16 %v2939, %v2935
    %v3076 = vpack.c.b16 %v2940, %v2936
    %v3077 = vpack.c.b16 %v2941, %v2937
    %v3078 = vpack.c.b16 %v2946, %v2942
    %v3079 = vpack.c.b16 %v2947, %v2943
    %v3080 = vpack.c.b16 %v2948, %v2944
    %v3081 = vpack.c.b16 %v2949, %v2945
    %v3082 = vpack.c.b16 %v2954, %v2950
    %v3083 = vpack.c.b16 %v2955, %v2951
    %v3084 = vpack.c.b16 %v2956, %v2952
    %v3085 = vpack.c.b16 %v2957, %v2953
    %3214 = vmatprep.subr.bf16.mxu0 %v2987
    %3215 = vmatpush1.bf16.msra.mxu0 %v2986
    %3216 = vmatprep.subr.bf16.mxu0 %v2983
    %3217 = vmatpush1.bf16.msra.mxu0 %v2982
    %3218 = vmatprep.subr.bf16.mxu0 %v2979
    %3219 = vmatpush1.bf16.msra.mxu0 %v2978
    %3220 = vmatprep.subr.bf16.mxu0 %v2975
    %3221 = vmatpush1.bf16.msra.mxu0 %v2974
    %3222 = vmatprep.subr.bf16.mxu0 %v2971
    %3223 = vmatpush1.bf16.msra.mxu0 %v2970
    %3224 = vmatprep.subr.bf16.mxu0 %v2967
    %3225 = vmatpush1.bf16.msra.mxu0 %v2966
    %3226 = vmatprep.subr.bf16.mxu0 %v2963
    %3227 = vmatpush1.bf16.msra.mxu0 %v2962
    %3228 = vmatprep.subr.bf16.mxu0 %v2959
    %3229 = vmatpush1.bf16.msra.mxu0 %v2958
    %3230 = vmatprep.subr.bf16.mxu0 %v3019
    %3231 = vmatpush2.bf16.msra.mxu0 %v3018
    %3232 = vmatprep.subr.bf16.mxu0 %v3015
    %3233 = vmatpush2.bf16.msra.mxu0 %v3014
    %3234 = vmatprep.subr.bf16.mxu0 %v3011
    %3235 = vmatpush2.bf16.msra.mxu0 %v3010
    %3236 = vmatprep.subr.bf16.mxu0 %v3007
    %3237 = vmatpush2.bf16.msra.mxu0 %v3006
    %3238 = vmatprep.subr.bf16.mxu0 %v3003
    %3239 = vmatpush2.bf16.msra.mxu0 %v3002
    %3240 = vmatprep.subr.bf16.mxu0 %v2999
    %3241 = vmatpush2.bf16.msra.mxu0 %v2998
    %3242 = vmatprep.subr.bf16.mxu0 %v2995
    %3243 = vmatpush2.bf16.msra.mxu0 %v2994
    %3244 = vmatprep.subr.bf16.mxu0 %v2991
    %3245 = vmatpush2.bf16.msra.mxu0 %v2990
    %3246 = vmatprep.mubr.bf16.mxu0 %v2419
    %3247 = vmatmul.mubr.bf16.gmra.mxu0 %v2418
    %v3248 = vpop.f32.mrf.mxu0
    %v3249 = vadd.f32 %v2557, %v3248
    %v3250 = vpop.f32.mrf.mxu0
    %v3251 = vadd.f32 %v2561, %v3250
    %v3252 = vpop.f32.mrf.mxu0
    %v3253 = vpop.f32.mrf.mxu0
    %3254 = vdwg.mxu0
    %3255 = vmatprep.subr.bf16.mxu0 %v3051
    %3256 = vmatpush1.bf16.msra.mxu0 %v3050
    %3257 = vmatprep.subr.bf16.mxu0 %v3047
    %3258 = vmatpush1.bf16.msra.mxu0 %v3046
    %3259 = vmatprep.subr.bf16.mxu0 %v3043
    %3260 = vmatpush1.bf16.msra.mxu0 %v3042
    %3261 = vmatprep.subr.bf16.mxu0 %v3039
    %3262 = vmatpush1.bf16.msra.mxu0 %v3038
    %3263 = vmatprep.subr.bf16.mxu0 %v3035
    %3264 = vmatpush1.bf16.msra.mxu0 %v3034
    %3265 = vmatprep.subr.bf16.mxu0 %v3031
    %3266 = vmatpush1.bf16.msra.mxu0 %v3030
    %3267 = vmatprep.subr.bf16.mxu0 %v3027
    %3268 = vmatpush1.bf16.msra.mxu0 %v3026
    %3269 = vmatprep.subr.bf16.mxu0 %v3023
    %3270 = vmatpush1.bf16.msra.mxu0 %v3022
    %3271 = vmatprep.subr.bf16.mxu0 %v3083
    %3272 = vmatpush2.bf16.msra.mxu0 %v3082
    %3273 = vmatprep.subr.bf16.mxu0 %v3079
    %3274 = vmatpush2.bf16.msra.mxu0 %v3078
    %3275 = vmatprep.subr.bf16.mxu0 %v3075
    %3276 = vmatpush2.bf16.msra.mxu0 %v3074
    %3277 = vmatprep.subr.bf16.mxu0 %v3071
    %3278 = vmatpush2.bf16.msra.mxu0 %v3070
    %3279 = vmatprep.subr.bf16.mxu0 %v3067
    %3280 = vmatpush2.bf16.msra.mxu0 %v3066
    %3281 = vmatprep.subr.bf16.mxu0 %v3063
    %3282 = vmatpush2.bf16.msra.mxu0 %v3062
    %3283 = vmatprep.subr.bf16.mxu0 %v3059
    %3284 = vmatpush2.bf16.msra.mxu0 %v3058
    %3285 = vmatprep.subr.bf16.mxu0 %v3055
    %3286 = vmatpush2.bf16.msra.mxu0 %v3054
    %3287 = vmatprep.mubr.bf16.mxu0 %v2421
    %3288 = vmatmul.mubr.bf16.gmra.mxu0 %v2420
    %v3289 = vpop.f32.mrf.mxu0
    %v3290 = vadd.f32 %v3249, %v3289
    %v3291 = vpop.f32.mrf.mxu0
    %v3292 = vadd.f32 %v3251, %v3291
    %v3293 = vpop.f32.mrf.mxu0
    %v3294 = vpop.f32.mrf.mxu0
    %3295 = vdwg.mxu0
    %3296 = vmatprep.subr.bf16.mxu0 %v2989
    %3297 = vmatpush1.bf16.msra.mxu0 %v2988
    %3298 = vmatprep.subr.bf16.mxu0 %v2985
    %3299 = vmatpush1.bf16.msra.mxu0 %v2984
    %3300 = vmatprep.subr.bf16.mxu0 %v2981
    %3301 = vmatpush1.bf16.msra.mxu0 %v2980
    %3302 = vmatprep.subr.bf16.mxu0 %v2977
    %3303 = vmatpush1.bf16.msra.mxu0 %v2976
    %3304 = vmatprep.subr.bf16.mxu0 %v2973
    %3305 = vmatpush1.bf16.msra.mxu0 %v2972
    %3306 = vmatprep.subr.bf16.mxu0 %v2969
    %3307 = vmatpush1.bf16.msra.mxu0 %v2968
    %3308 = vmatprep.subr.bf16.mxu0 %v2965
    %3309 = vmatpush1.bf16.msra.mxu0 %v2964
    %3310 = vmatprep.subr.bf16.mxu0 %v2961
    %3311 = vmatpush1.bf16.msra.mxu0 %v2960
    %3312 = vmatprep.subr.bf16.mxu0 %v3021
    %3313 = vmatpush2.bf16.msra.mxu0 %v3020
    %3314 = vmatprep.subr.bf16.mxu0 %v3017
    %3315 = vmatpush2.bf16.msra.mxu0 %v3016
    %3316 = vmatprep.subr.bf16.mxu0 %v3013
    %3317 = vmatpush2.bf16.msra.mxu0 %v3012
    %3318 = vmatprep.subr.bf16.mxu0 %v3009
    %3319 = vmatpush2.bf16.msra.mxu0 %v3008
    %3320 = vmatprep.subr.bf16.mxu0 %v3005
    %3321 = vmatpush2.bf16.msra.mxu0 %v3004
    %3322 = vmatprep.subr.bf16.mxu0 %v3001
    %3323 = vmatpush2.bf16.msra.mxu0 %v3000
    %3324 = vmatprep.subr.bf16.mxu0 %v2997
    %3325 = vmatpush2.bf16.msra.mxu0 %v2996
    %3326 = vmatprep.subr.bf16.mxu0 %v2993
    %3327 = vmatpush2.bf16.msra.mxu0 %v2992
    %3328 = vmatprep.mubr.bf16.mxu0 %v2419
    %3329 = vmatmul.mubr.bf16.gmra.mxu0 %v2418
    %v3330 = vpop.f32.mrf.mxu0
    %v3331 = vadd.f32 %v2565, %v3330
    %v3332 = vpop.f32.mrf.mxu0
    %v3333 = vadd.f32 %v2569, %v3332
    %v3334 = vpop.f32.mrf.mxu0
    %v3335 = vpop.f32.mrf.mxu0
    %3336 = vdwg.mxu0
    %3337 = vmatprep.subr.bf16.mxu0 %v3053
    %3338 = vmatpush1.bf16.msra.mxu0 %v3052
    %3339 = vmatprep.subr.bf16.mxu0 %v3049
    %3340 = vmatpush1.bf16.msra.mxu0 %v3048
    %3341 = vmatprep.subr.bf16.mxu0 %v3045
    %3342 = vmatpush1.bf16.msra.mxu0 %v3044
    %3343 = vmatprep.subr.bf16.mxu0 %v3041
    %3344 = vmatpush1.bf16.msra.mxu0 %v3040
    %3345 = vmatprep.subr.bf16.mxu0 %v3037
    %3346 = vmatpush1.bf16.msra.mxu0 %v3036
    %3347 = vmatprep.subr.bf16.mxu0 %v3033
    %3348 = vmatpush1.bf16.msra.mxu0 %v3032
    %3349 = vmatprep.subr.bf16.mxu0 %v3029
    %3350 = vmatpush1.bf16.msra.mxu0 %v3028
    %3351 = vmatprep.subr.bf16.mxu0 %v3025
    %3352 = vmatpush1.bf16.msra.mxu0 %v3024
    %3353 = vmatprep.subr.bf16.mxu0 %v3085
    %3354 = vmatpush2.bf16.msra.mxu0 %v3084
    %3355 = vmatprep.subr.bf16.mxu0 %v3081
    %3356 = vmatpush2.bf16.msra.mxu0 %v3080
    %3357 = vmatprep.subr.bf16.mxu0 %v3077
    %3358 = vmatpush2.bf16.msra.mxu0 %v3076
    %3359 = vmatprep.subr.bf16.mxu0 %v3073
    %3360 = vmatpush2.bf16.msra.mxu0 %v3072
    %3361 = vmatprep.subr.bf16.mxu0 %v3069
    %3362 = vmatpush2.bf16.msra.mxu0 %v3068
    %3363 = vmatprep.subr.bf16.mxu0 %v3065
    %3364 = vmatpush2.bf16.msra.mxu0 %v3064
    %3365 = vmatprep.subr.bf16.mxu0 %v3061
    %3366 = vmatpush2.bf16.msra.mxu0 %v3060
    %3367 = vmatprep.subr.bf16.mxu0 %v3057
    %3368 = vmatpush2.bf16.msra.mxu0 %v3056
    %3369 = vmatprep.mubr.bf16.mxu0 %v2421
    %3370 = vmatmul.mubr.bf16.gmra.mxu0 %v2420
    %v3371 = vpop.f32.mrf.mxu0
    %v3372 = vadd.f32 %v3331, %v3371
    %v3373 = vpop.f32.mrf.mxu0
    %v3374 = vadd.f32 %v3333, %v3373
    %v3375 = vpop.f32.mrf.mxu0
    %v3376 = vpop.f32.mrf.mxu0
    %3377 = vdwg.mxu0
    %s3378 = sld [smem:[#allocation18 + $0x3]]
    %vm3379 = vcmp.gt.f32.partialorder %v3290, 0.0
    %vm3380 = vcmp.gt.f32.partialorder %v3292, 0.0
    %vm3381 = vcmp.gt.f32.partialorder %v3372, 0.0
    %vm3382 = vcmp.gt.f32.partialorder %v3374, 0.0
    %v3383 = vstv %s3378
    %v3384 = vmul.f32 %v3383, %v3290
    %v3385 = vmul.f32 %v3383, %v3292
    %v3386 = vmul.f32 %v3383, %v3372
    %v3387 = vmul.f32 %v3383, %v3374
    %v3388 = vsel %vm3379, %v3290, %v3384
    %v3389 = vsel %vm3380, %v3292, %v3385
    %v3390 = vsel %vm3381, %v3372, %v3386
    %v3391 = vsel %vm3382, %v3374, %v3387
    %v3392 = vpack.c.bf16 %v3388, %v3388
    %v3393 = vpack.c.bf16 %v3389, %v3389
    %v3394 = vpack.c.bf16 %v3390, %v3390
    %v3395 = vpack.c.bf16 %v3391, %v3391
    %v3396 = vld [vmem:[#allocation12] sm:$0xff]
    %v3397 = vld [vmem:[#allocation12 + $0x8] sm:$0xff]
    %v3398 = vld [vmem:[#allocation12 + $0x10] sm:$0xff]
    %v3399 = vld [vmem:[#allocation12 + $0x18] sm:$0xff]
    %v3400 = vld [vmem:[#allocation12 + $0x20] sm:$0xff]
    %v3401 = vld [vmem:[#allocation12 + $0x28] sm:$0xff]
    %v3402 = vld [vmem:[#allocation12 + $0x30] sm:$0xff]
    %v3403 = vld [vmem:[#allocation12 + $0x38] sm:$0xff]
    %v3404 = vld [vmem:[#allocation12 + $0x40] sm:$0xff]
    %v3405 = vld [vmem:[#allocation12 + $0x48] sm:$0xff]
    %v3406 = vld [vmem:[#allocation12 + $0x50] sm:$0xff]
    %v3407 = vld [vmem:[#allocation12 + $0x58] sm:$0xff]
    %v3408 = vld [vmem:[#allocation12 + $0x60] sm:$0xff]
    %v3409 = vld [vmem:[#allocation12 + $0x68] sm:$0xff]
    %v3410 = vld [vmem:[#allocation12 + $0x70] sm:$0xff]
    %v3411 = vld [vmem:[#allocation12 + $0x78] sm:$0xff]
    %v3412 = vld [vmem:[#allocation12 + $0x80] sm:$0xff]
    %v3413 = vld [vmem:[#allocation12 + $0x88] sm:$0xff]
    %v3414 = vld [vmem:[#allocation12 + $0x90] sm:$0xff]
    %v3415 = vld [vmem:[#allocation12 + $0x98] sm:$0xff]
    %v3416 = vld [vmem:[#allocation12 + $0xa0] sm:$0xff]
    %v3417 = vld [vmem:[#allocation12 + $0xa8] sm:$0xff]
    %v3418 = vld [vmem:[#allocation12 + $0xb0] sm:$0xff]
    %v3419 = vld [vmem:[#allocation12 + $0xb8] sm:$0xff]
    %v3420 = vld [vmem:[#allocation12 + $0xc0] sm:$0xff]
    %v3421 = vld [vmem:[#allocation12 + $0xc8] sm:$0xff]
    %v3422 = vld [vmem:[#allocation12 + $0xd0] sm:$0xff]
    %v3423 = vld [vmem:[#allocation12 + $0xd8] sm:$0xff]
    %v3424 = vld [vmem:[#allocation12 + $0xe0] sm:$0xff]
    %v3425 = vld [vmem:[#allocation12 + $0xe8] sm:$0xff]
    %v3426 = vld [vmem:[#allocation12 + $0xf0] sm:$0xff]
    %v3427 = vld [vmem:[#allocation12 + $0xf8] sm:$0xff]
    %v3428 = vld [vmem:[#allocation12 + $0x100] sm:$0xff]
    %v3429 = vld [vmem:[#allocation12 + $0x108] sm:$0xff]
    %v3430 = vld [vmem:[#allocation12 + $0x110] sm:$0xff]
    %v3431 = vld [vmem:[#allocation12 + $0x118] sm:$0xff]
    %v3432 = vld [vmem:[#allocation12 + $0x120] sm:$0xff]
    %v3433 = vld [vmem:[#allocation12 + $0x128] sm:$0xff]
    %v3434 = vld [vmem:[#allocation12 + $0x130] sm:$0xff]
    %v3435 = vld [vmem:[#allocation12 + $0x138] sm:$0xff]
    %v3436 = vld [vmem:[#allocation12 + $0x140] sm:$0xff]
    %v3437 = vld [vmem:[#allocation12 + $0x148] sm:$0xff]
    %v3438 = vld [vmem:[#allocation12 + $0x150] sm:$0xff]
    %v3439 = vld [vmem:[#allocation12 + $0x158] sm:$0xff]
    %v3440 = vld [vmem:[#allocation12 + $0x160] sm:$0xff]
    %v3441 = vld [vmem:[#allocation12 + $0x168] sm:$0xff]
    %v3442 = vld [vmem:[#allocation12 + $0x170] sm:$0xff]
    %v3443 = vld [vmem:[#allocation12 + $0x178] sm:$0xff]
    %v3444 = vld [vmem:[#allocation12 + $0x180] sm:$0xff]
    %v3445 = vld [vmem:[#allocation12 + $0x188] sm:$0xff]
    %v3446 = vld [vmem:[#allocation12 + $0x190] sm:$0xff]
    %v3447 = vld [vmem:[#allocation12 + $0x198] sm:$0xff]
    %v3448 = vld [vmem:[#allocation12 + $0x1a0] sm:$0xff]
    %v3449 = vld [vmem:[#allocation12 + $0x1a8] sm:$0xff]
    %v3450 = vld [vmem:[#allocation12 + $0x1b0] sm:$0xff]
    %v3451 = vld [vmem:[#allocation12 + $0x1b8] sm:$0xff]
    %v3452 = vld [vmem:[#allocation12 + $0x1c0] sm:$0xff]
    %v3453 = vld [vmem:[#allocation12 + $0x1c8] sm:$0xff]
    %v3454 = vld [vmem:[#allocation12 + $0x1d0] sm:$0xff]
    %v3455 = vld [vmem:[#allocation12 + $0x1d8] sm:$0xff]
    %v3456 = vld [vmem:[#allocation12 + $0x1e0] sm:$0xff]
    %v3457 = vld [vmem:[#allocation12 + $0x1e8] sm:$0xff]
    %v3458 = vld [vmem:[#allocation12 + $0x1f0] sm:$0xff]
    %v3459 = vld [vmem:[#allocation12 + $0x1f8] sm:$0xff]
    %v3460 = vld [vmem:[#allocation12 + $0x200] sm:$0xff]
    %v3461 = vld [vmem:[#allocation12 + $0x208] sm:$0xff]
    %v3462 = vld [vmem:[#allocation12 + $0x210] sm:$0xff]
    %v3463 = vld [vmem:[#allocation12 + $0x218] sm:$0xff]
    %v3464 = vld [vmem:[#allocation12 + $0x220] sm:$0xff]
    %v3465 = vld [vmem:[#allocation12 + $0x228] sm:$0xff]
    %v3466 = vld [vmem:[#allocation12 + $0x230] sm:$0xff]
    %v3467 = vld [vmem:[#allocation12 + $0x238] sm:$0xff]
    %v3468 = vld [vmem:[#allocation12 + $0x240] sm:$0xff]
    %v3469 = vld [vmem:[#allocation12 + $0x248] sm:$0xff]
    %v3470 = vld [vmem:[#allocation12 + $0x250] sm:$0xff]
    %v3471 = vld [vmem:[#allocation12 + $0x258] sm:$0xff]
    %v3472 = vld [vmem:[#allocation12 + $0x260] sm:$0xff]
    %v3473 = vld [vmem:[#allocation12 + $0x268] sm:$0xff]
    %v3474 = vld [vmem:[#allocation12 + $0x270] sm:$0xff]
    %v3475 = vld [vmem:[#allocation12 + $0x278] sm:$0xff]
    %v3476 = vld [vmem:[#allocation12 + $0x280] sm:$0xff]
    %v3477 = vld [vmem:[#allocation12 + $0x288] sm:$0xff]
    %v3478 = vld [vmem:[#allocation12 + $0x290] sm:$0xff]
    %v3479 = vld [vmem:[#allocation12 + $0x298] sm:$0xff]
    %v3480 = vld [vmem:[#allocation12 + $0x2a0] sm:$0xff]
    %v3481 = vld [vmem:[#allocation12 + $0x2a8] sm:$0xff]
    %v3482 = vld [vmem:[#allocation12 + $0x2b0] sm:$0xff]
    %v3483 = vld [vmem:[#allocation12 + $0x2b8] sm:$0xff]
    %v3484 = vld [vmem:[#allocation12 + $0x2c0] sm:$0xff]
    %v3485 = vld [vmem:[#allocation12 + $0x2c8] sm:$0xff]
    %v3486 = vld [vmem:[#allocation12 + $0x2d0] sm:$0xff]
    %v3487 = vld [vmem:[#allocation12 + $0x2d8] sm:$0xff]
    %v3488 = vld [vmem:[#allocation12 + $0x2e0] sm:$0xff]
    %v3489 = vld [vmem:[#allocation12 + $0x2e8] sm:$0xff]
    %v3490 = vld [vmem:[#allocation12 + $0x2f0] sm:$0xff]
    %v3491 = vld [vmem:[#allocation12 + $0x2f8] sm:$0xff]
    %v3492 = vld [vmem:[#allocation12 + $0x300] sm:$0xff]
    %v3493 = vld [vmem:[#allocation12 + $0x308] sm:$0xff]
    %v3494 = vld [vmem:[#allocation12 + $0x310] sm:$0xff]
    %v3495 = vld [vmem:[#allocation12 + $0x318] sm:$0xff]
    %v3496 = vld [vmem:[#allocation12 + $0x320] sm:$0xff]
    %v3497 = vld [vmem:[#allocation12 + $0x328] sm:$0xff]
    %v3498 = vld [vmem:[#allocation12 + $0x330] sm:$0xff]
    %v3499 = vld [vmem:[#allocation12 + $0x338] sm:$0xff]
    %v3500 = vld [vmem:[#allocation12 + $0x340] sm:$0xff]
    %v3501 = vld [vmem:[#allocation12 + $0x348] sm:$0xff]
    %v3502 = vld [vmem:[#allocation12 + $0x350] sm:$0xff]
    %v3503 = vld [vmem:[#allocation12 + $0x358] sm:$0xff]
    %v3504 = vld [vmem:[#allocation12 + $0x360] sm:$0xff]
    %v3505 = vld [vmem:[#allocation12 + $0x368] sm:$0xff]
    %v3506 = vld [vmem:[#allocation12 + $0x370] sm:$0xff]
    %v3507 = vld [vmem:[#allocation12 + $0x378] sm:$0xff]
    %v3508 = vld [vmem:[#allocation12 + $0x380] sm:$0xff]
    %v3509 = vld [vmem:[#allocation12 + $0x388] sm:$0xff]
    %v3510 = vld [vmem:[#allocation12 + $0x390] sm:$0xff]
    %v3511 = vld [vmem:[#allocation12 + $0x398] sm:$0xff]
    %v3512 = vld [vmem:[#allocation12 + $0x3a0] sm:$0xff]
    %v3513 = vld [vmem:[#allocation12 + $0x3a8] sm:$0xff]
    %v3514 = vld [vmem:[#allocation12 + $0x3b0] sm:$0xff]
    %v3515 = vld [vmem:[#allocation12 + $0x3b8] sm:$0xff]
    %v3516 = vld [vmem:[#allocation12 + $0x3c0] sm:$0xff]
    %v3517 = vld [vmem:[#allocation12 + $0x3c8] sm:$0xff]
    %v3518 = vld [vmem:[#allocation12 + $0x3d0] sm:$0xff]
    %v3519 = vld [vmem:[#allocation12 + $0x3d8] sm:$0xff]
    %v3520 = vld [vmem:[#allocation12 + $0x3e0] sm:$0xff]
    %v3521 = vld [vmem:[#allocation12 + $0x3e8] sm:$0xff]
    %v3522 = vld [vmem:[#allocation12 + $0x3f0] sm:$0xff]
    %v3523 = vld [vmem:[#allocation12 + $0x3f8] sm:$0xff]
    %v3524 = vld [vmem:[#allocation12 + $0x400] sm:$0xff]
    %v3525 = vld [vmem:[#allocation12 + $0x408] sm:$0xff]
    %v3526 = vld [vmem:[#allocation12 + $0x410] sm:$0xff]
    %v3527 = vld [vmem:[#allocation12 + $0x418] sm:$0xff]
    %v3528 = vld [vmem:[#allocation12 + $0x420] sm:$0xff]
    %v3529 = vld [vmem:[#allocation12 + $0x428] sm:$0xff]
    %v3530 = vld [vmem:[#allocation12 + $0x430] sm:$0xff]
    %v3531 = vld [vmem:[#allocation12 + $0x438] sm:$0xff]
    %v3532 = vld [vmem:[#allocation12 + $0x440] sm:$0xff]
    %v3533 = vld [vmem:[#allocation12 + $0x448] sm:$0xff]
    %v3534 = vld [vmem:[#allocation12 + $0x450] sm:$0xff]
    %v3535 = vld [vmem:[#allocation12 + $0x458] sm:$0xff]
    %v3536 = vld [vmem:[#allocation12 + $0x460] sm:$0xff]
    %v3537 = vld [vmem:[#allocation12 + $0x468] sm:$0xff]
    %v3538 = vld [vmem:[#allocation12 + $0x470] sm:$0xff]
    %v3539 = vld [vmem:[#allocation12 + $0x478] sm:$0xff]
    %v3540 = vld [vmem:[#allocation12 + $0x480] sm:$0xff]
    %v3541 = vld [vmem:[#allocation12 + $0x488] sm:$0xff]
    %v3542 = vld [vmem:[#allocation12 + $0x490] sm:$0xff]
    %v3543 = vld [vmem:[#allocation12 + $0x498] sm:$0xff]
    %v3544 = vld [vmem:[#allocation12 + $0x4a0] sm:$0xff]
    %v3545 = vld [vmem:[#allocation12 + $0x4a8] sm:$0xff]
    %v3546 = vld [vmem:[#allocation12 + $0x4b0] sm:$0xff]
    %v3547 = vld [vmem:[#allocation12 + $0x4b8] sm:$0xff]
    %v3548 = vld [vmem:[#allocation12 + $0x4c0] sm:$0xff]
    %v3549 = vld [vmem:[#allocation12 + $0x4c8] sm:$0xff]
    %v3550 = vld [vmem:[#allocation12 + $0x4d0] sm:$0xff]
    %v3551 = vld [vmem:[#allocation12 + $0x4d8] sm:$0xff]
    %v3552 = vld [vmem:[#allocation12 + $0x4e0] sm:$0xff]
    %v3553 = vld [vmem:[#allocation12 + $0x4e8] sm:$0xff]
    %v3554 = vld [vmem:[#allocation12 + $0x4f0] sm:$0xff]
    %v3555 = vld [vmem:[#allocation12 + $0x4f8] sm:$0xff]
    %v3556 = vld [vmem:[#allocation12 + $0x500] sm:$0xff]
    %v3557 = vld [vmem:[#allocation12 + $0x508] sm:$0xff]
    %v3558 = vld [vmem:[#allocation12 + $0x510] sm:$0xff]
    %v3559 = vld [vmem:[#allocation12 + $0x518] sm:$0xff]
    %v3560 = vld [vmem:[#allocation12 + $0x520] sm:$0xff]
    %v3561 = vld [vmem:[#allocation12 + $0x528] sm:$0xff]
    %v3562 = vld [vmem:[#allocation12 + $0x530] sm:$0xff]
    %v3563 = vld [vmem:[#allocation12 + $0x538] sm:$0xff]
    %v3564 = vld [vmem:[#allocation12 + $0x540] sm:$0xff]
    %v3565 = vld [vmem:[#allocation12 + $0x548] sm:$0xff]
    %v3566 = vld [vmem:[#allocation12 + $0x550] sm:$0xff]
    %v3567 = vld [vmem:[#allocation12 + $0x558] sm:$0xff]
    %v3568 = vld [vmem:[#allocation12 + $0x560] sm:$0xff]
    %v3569 = vld [vmem:[#allocation12 + $0x568] sm:$0xff]
    %v3570 = vld [vmem:[#allocation12 + $0x570] sm:$0xff]
    %v3571 = vld [vmem:[#allocation12 + $0x578] sm:$0xff]
    %v3572 = vld [vmem:[#allocation12 + $0x580] sm:$0xff]
    %v3573 = vld [vmem:[#allocation12 + $0x588] sm:$0xff]
    %v3574 = vld [vmem:[#allocation12 + $0x590] sm:$0xff]
    %v3575 = vld [vmem:[#allocation12 + $0x598] sm:$0xff]
    %v3576 = vld [vmem:[#allocation12 + $0x5a0] sm:$0xff]
    %v3577 = vld [vmem:[#allocation12 + $0x5a8] sm:$0xff]
    %v3578 = vld [vmem:[#allocation12 + $0x5b0] sm:$0xff]
    %v3579 = vld [vmem:[#allocation12 + $0x5b8] sm:$0xff]
    %v3580 = vld [vmem:[#allocation12 + $0x5c0] sm:$0xff]
    %v3581 = vld [vmem:[#allocation12 + $0x5c8] sm:$0xff]
    %v3582 = vld [vmem:[#allocation12 + $0x5d0] sm:$0xff]
    %v3583 = vld [vmem:[#allocation12 + $0x5d8] sm:$0xff]
    %v3584 = vld [vmem:[#allocation12 + $0x5e0] sm:$0xff]
    %v3585 = vld [vmem:[#allocation12 + $0x5e8] sm:$0xff]
    %v3586 = vld [vmem:[#allocation12 + $0x5f0] sm:$0xff]
    %v3587 = vld [vmem:[#allocation12 + $0x5f8] sm:$0xff]
    %v3588 = vld [vmem:[#allocation12 + $0x600] sm:$0xff]
    %v3589 = vld [vmem:[#allocation12 + $0x608] sm:$0xff]
    %v3590 = vld [vmem:[#allocation12 + $0x610] sm:$0xff]
    %v3591 = vld [vmem:[#allocation12 + $0x618] sm:$0xff]
    %v3592 = vld [vmem:[#allocation12 + $0x620] sm:$0xff]
    %v3593 = vld [vmem:[#allocation12 + $0x628] sm:$0xff]
    %v3594 = vld [vmem:[#allocation12 + $0x630] sm:$0xff]
    %v3595 = vld [vmem:[#allocation12 + $0x638] sm:$0xff]
    %v3596 = vld [vmem:[#allocation12 + $0x640] sm:$0xff]
    %v3597 = vld [vmem:[#allocation12 + $0x648] sm:$0xff]
    %v3598 = vld [vmem:[#allocation12 + $0x650] sm:$0xff]
    %v3599 = vld [vmem:[#allocation12 + $0x658] sm:$0xff]
    %v3600 = vld [vmem:[#allocation12 + $0x660] sm:$0xff]
    %v3601 = vld [vmem:[#allocation12 + $0x668] sm:$0xff]
    %v3602 = vld [vmem:[#allocation12 + $0x670] sm:$0xff]
    %v3603 = vld [vmem:[#allocation12 + $0x678] sm:$0xff]
    %v3604 = vld [vmem:[#allocation12 + $0x680] sm:$0xff]
    %v3605 = vld [vmem:[#allocation12 + $0x688] sm:$0xff]
    %v3606 = vld [vmem:[#allocation12 + $0x690] sm:$0xff]
    %v3607 = vld [vmem:[#allocation12 + $0x698] sm:$0xff]
    %v3608 = vld [vmem:[#allocation12 + $0x6a0] sm:$0xff]
    %v3609 = vld [vmem:[#allocation12 + $0x6a8] sm:$0xff]
    %v3610 = vld [vmem:[#allocation12 + $0x6b0] sm:$0xff]
    %v3611 = vld [vmem:[#allocation12 + $0x6b8] sm:$0xff]
    %v3612 = vld [vmem:[#allocation12 + $0x6c0] sm:$0xff]
    %v3613 = vld [vmem:[#allocation12 + $0x6c8] sm:$0xff]
    %v3614 = vld [vmem:[#allocation12 + $0x6d0] sm:$0xff]
    %v3615 = vld [vmem:[#allocation12 + $0x6d8] sm:$0xff]
    %v3616 = vld [vmem:[#allocation12 + $0x6e0] sm:$0xff]
    %v3617 = vld [vmem:[#allocation12 + $0x6e8] sm:$0xff]
    %v3618 = vld [vmem:[#allocation12 + $0x6f0] sm:$0xff]
    %v3619 = vld [vmem:[#allocation12 + $0x6f8] sm:$0xff]
    %v3620 = vld [vmem:[#allocation12 + $0x700] sm:$0xff]
    %v3621 = vld [vmem:[#allocation12 + $0x708] sm:$0xff]
    %v3622 = vld [vmem:[#allocation12 + $0x710] sm:$0xff]
    %v3623 = vld [vmem:[#allocation12 + $0x718] sm:$0xff]
    %v3624 = vld [vmem:[#allocation12 + $0x720] sm:$0xff]
    %v3625 = vld [vmem:[#allocation12 + $0x728] sm:$0xff]
    %v3626 = vld [vmem:[#allocation12 + $0x730] sm:$0xff]
    %v3627 = vld [vmem:[#allocation12 + $0x738] sm:$0xff]
    %v3628 = vld [vmem:[#allocation12 + $0x740] sm:$0xff]
    %v3629 = vld [vmem:[#allocation12 + $0x748] sm:$0xff]
    %v3630 = vld [vmem:[#allocation12 + $0x750] sm:$0xff]
    %v3631 = vld [vmem:[#allocation12 + $0x758] sm:$0xff]
    %v3632 = vld [vmem:[#allocation12 + $0x760] sm:$0xff]
    %v3633 = vld [vmem:[#allocation12 + $0x768] sm:$0xff]
    %v3634 = vld [vmem:[#allocation12 + $0x770] sm:$0xff]
    %v3635 = vld [vmem:[#allocation12 + $0x778] sm:$0xff]
    %v3636 = vld [vmem:[#allocation12 + $0x780] sm:$0xff]
    %v3637 = vld [vmem:[#allocation12 + $0x788] sm:$0xff]
    %v3638 = vld [vmem:[#allocation12 + $0x790] sm:$0xff]
    %v3639 = vld [vmem:[#allocation12 + $0x798] sm:$0xff]
    %v3640 = vld [vmem:[#allocation12 + $0x7a0] sm:$0xff]
    %v3641 = vld [vmem:[#allocation12 + $0x7a8] sm:$0xff]
    %v3642 = vld [vmem:[#allocation12 + $0x7b0] sm:$0xff]
    %v3643 = vld [vmem:[#allocation12 + $0x7b8] sm:$0xff]
    %v3644 = vld [vmem:[#allocation12 + $0x7c0] sm:$0xff]
    %v3645 = vld [vmem:[#allocation12 + $0x7c8] sm:$0xff]
    %v3646 = vld [vmem:[#allocation12 + $0x7d0] sm:$0xff]
    %v3647 = vld [vmem:[#allocation12 + $0x7d8] sm:$0xff]
    %v3648 = vld [vmem:[#allocation12 + $0x7e0] sm:$0xff]
    %v3649 = vld [vmem:[#allocation12 + $0x7e8] sm:$0xff]
    %v3650 = vld [vmem:[#allocation12 + $0x7f0] sm:$0xff]
    %v3651 = vld [vmem:[#allocation12 + $0x7f8] sm:$0xff]
    %v3652 = vld [vmem:[#allocation14] sm:$0xff]
    %v3654 = vlaneseq
    %v3655 = vshrl.u32 %v3654, 7
    %v3656 = vsub.s32 0, %v3655
    %v3657 = vrot.slane %v3652, %v3656
    %v3658 = vlaneseq
    %v3659 = vshrl.u32 %v3658, 7
    %v3660 = vsub.s32 1, %v3659
    %v3661 = vrot.slane %v3652, %v3660
    %v3662 = vlaneseq
    %v3663 = vshrl.u32 %v3662, 7
    %v3664 = vsub.s32 2, %v3663
    %v3665 = vrot.slane %v3652, %v3664
    %v3666 = vlaneseq
    %v3667 = vshrl.u32 %v3666, 7
    %v3668 = vsub.s32 3, %v3667
    %v3669 = vrot.slane %v3652, %v3668
    %v3670 = vlaneseq
    %v3671 = vshrl.u32 %v3670, 7
    %v3672 = vsub.s32 4, %v3671
    %v3673 = vrot.slane %v3652, %v3672
    %v3674 = vlaneseq
    %v3675 = vshrl.u32 %v3674, 7
    %v3676 = vsub.s32 5, %v3675
    %v3677 = vrot.slane %v3652, %v3676
    %v3678 = vlaneseq
    %v3679 = vshrl.u32 %v3678, 7
    %v3680 = vsub.s32 6, %v3679
    %v3681 = vrot.slane %v3652, %v3680
    %v3682 = vlaneseq
    %v3683 = vshrl.u32 %v3682, 7
    %v3684 = vsub.s32 7, %v3683
    %v3685 = vrot.slane %v3652, %v3684
    %v3950 = vunpack.c.l.b16 %v3396
    %v3951 = vunpack.c.h.b16 %v3396
    %v3952 = vunpack.c.l.b16 %v3397
    %v3953 = vunpack.c.h.b16 %v3397
    %v3954 = vunpack.c.l.b16 %v3398
    %v3955 = vunpack.c.h.b16 %v3398
    %v3956 = vunpack.c.l.b16 %v3399
    %v3957 = vunpack.c.h.b16 %v3399
    %v3958 = vunpack.c.l.b16 %v3400
    %v3959 = vunpack.c.h.b16 %v3400
    %v3960 = vunpack.c.l.b16 %v3401
    %v3961 = vunpack.c.h.b16 %v3401
    %v3962 = vunpack.c.l.b16 %v3402
    %v3963 = vunpack.c.h.b16 %v3402
    %v3964 = vunpack.c.l.b16 %v3403
    %v3965 = vunpack.c.h.b16 %v3403
    %v3966 = vunpack.c.l.b16 %v3404
    %v3967 = vunpack.c.h.b16 %v3404
    %v3968 = vunpack.c.l.b16 %v3405
    %v3969 = vunpack.c.h.b16 %v3405
    %v3970 = vunpack.c.l.b16 %v3406
    %v3971 = vunpack.c.h.b16 %v3406
    %v3972 = vunpack.c.l.b16 %v3407
    %v3973 = vunpack.c.h.b16 %v3407
    %v3974 = vunpack.c.l.b16 %v3408
    %v3975 = vunpack.c.h.b16 %v3408
    %v3976 = vunpack.c.l.b16 %v3409
    %v3977 = vunpack.c.h.b16 %v3409
    %v3978 = vunpack.c.l.b16 %v3410
    %v3979 = vunpack.c.h.b16 %v3410
    %v3980 = vunpack.c.l.b16 %v3411
    %v3981 = vunpack.c.h.b16 %v3411
    %v3982 = vunpack.c.l.b16 %v3412
    %v3983 = vunpack.c.h.b16 %v3412
    %v3984 = vunpack.c.l.b16 %v3413
    %v3985 = vunpack.c.h.b16 %v3413
    %v3986 = vunpack.c.l.b16 %v3414
    %v3987 = vunpack.c.h.b16 %v3414
    %v3988 = vunpack.c.l.b16 %v3415
    %v3989 = vunpack.c.h.b16 %v3415
    %v3990 = vunpack.c.l.b16 %v3416
    %v3991 = vunpack.c.h.b16 %v3416
    %v3992 = vunpack.c.l.b16 %v3417
    %v3993 = vunpack.c.h.b16 %v3417
    %v3994 = vunpack.c.l.b16 %v3418
    %v3995 = vunpack.c.h.b16 %v3418
    %v3996 = vunpack.c.l.b16 %v3419
    %v3997 = vunpack.c.h.b16 %v3419
    %v3998 = vunpack.c.l.b16 %v3420
    %v3999 = vunpack.c.h.b16 %v3420
    %v4000 = vunpack.c.l.b16 %v3421
    %v4001 = vunpack.c.h.b16 %v3421
    %v4002 = vunpack.c.l.b16 %v3422
    %v4003 = vunpack.c.h.b16 %v3422
    %v4004 = vunpack.c.l.b16 %v3423
    %v4005 = vunpack.c.h.b16 %v3423
    %v4006 = vunpack.c.l.b16 %v3424
    %v4007 = vunpack.c.h.b16 %v3424
    %v4008 = vunpack.c.l.b16 %v3425
    %v4009 = vunpack.c.h.b16 %v3425
    %v4010 = vunpack.c.l.b16 %v3426
    %v4011 = vunpack.c.h.b16 %v3426
    %v4012 = vunpack.c.l.b16 %v3427
    %v4013 = vunpack.c.h.b16 %v3427
    %v4014 = vunpack.c.l.b16 %v3428
    %v4015 = vunpack.c.h.b16 %v3428
    %v4016 = vunpack.c.l.b16 %v3429
    %v4017 = vunpack.c.h.b16 %v3429
    %v4018 = vunpack.c.l.b16 %v3430
    %v4019 = vunpack.c.h.b16 %v3430
    %v4020 = vunpack.c.l.b16 %v3431
    %v4021 = vunpack.c.h.b16 %v3431
    %v4022 = vunpack.c.l.b16 %v3432
    %v4023 = vunpack.c.h.b16 %v3432
    %v4024 = vunpack.c.l.b16 %v3433
    %v4025 = vunpack.c.h.b16 %v3433
    %v4026 = vunpack.c.l.b16 %v3434
    %v4027 = vunpack.c.h.b16 %v3434
    %v4028 = vunpack.c.l.b16 %v3435
    %v4029 = vunpack.c.h.b16 %v3435
    %v4030 = vunpack.c.l.b16 %v3436
    %v4031 = vunpack.c.h.b16 %v3436
    %v4032 = vunpack.c.l.b16 %v3437
    %v4033 = vunpack.c.h.b16 %v3437
    %v4034 = vunpack.c.l.b16 %v3438
    %v4035 = vunpack.c.h.b16 %v3438
    %v4036 = vunpack.c.l.b16 %v3439
    %v4037 = vunpack.c.h.b16 %v3439
    %v4038 = vunpack.c.l.b16 %v3440
    %v4039 = vunpack.c.h.b16 %v3440
    %v4040 = vunpack.c.l.b16 %v3441
    %v4041 = vunpack.c.h.b16 %v3441
    %v4042 = vunpack.c.l.b16 %v3442
    %v4043 = vunpack.c.h.b16 %v3442
    %v4044 = vunpack.c.l.b16 %v3443
    %v4045 = vunpack.c.h.b16 %v3443
    %v4046 = vunpack.c.l.b16 %v3444
    %v4047 = vunpack.c.h.b16 %v3444
    %v4048 = vunpack.c.l.b16 %v3445
    %v4049 = vunpack.c.h.b16 %v3445
    %v4050 = vunpack.c.l.b16 %v3446
    %v4051 = vunpack.c.h.b16 %v3446
    %v4052 = vunpack.c.l.b16 %v3447
    %v4053 = vunpack.c.h.b16 %v3447
    %v4054 = vunpack.c.l.b16 %v3448
    %v4055 = vunpack.c.h.b16 %v3448
    %v4056 = vunpack.c.l.b16 %v3449
    %v4057 = vunpack.c.h.b16 %v3449
    %v4058 = vunpack.c.l.b16 %v3450
    %v4059 = vunpack.c.h.b16 %v3450
    %v4060 = vunpack.c.l.b16 %v3451
    %v4061 = vunpack.c.h.b16 %v3451
    %v4062 = vunpack.c.l.b16 %v3452
    %v4063 = vunpack.c.h.b16 %v3452
    %v4064 = vunpack.c.l.b16 %v3453
    %v4065 = vunpack.c.h.b16 %v3453
    %v4066 = vunpack.c.l.b16 %v3454
    %v4067 = vunpack.c.h.b16 %v3454
    %v4068 = vunpack.c.l.b16 %v3455
    %v4069 = vunpack.c.h.b16 %v3455
    %v4070 = vunpack.c.l.b16 %v3456
    %v4071 = vunpack.c.h.b16 %v3456
    %v4072 = vunpack.c.l.b16 %v3457
    %v4073 = vunpack.c.h.b16 %v3457
    %v4074 = vunpack.c.l.b16 %v3458
    %v4075 = vunpack.c.h.b16 %v3458
    %v4076 = vunpack.c.l.b16 %v3459
    %v4077 = vunpack.c.h.b16 %v3459
    %v4078 = vunpack.c.l.b16 %v3460
    %v4079 = vunpack.c.h.b16 %v3460
    %v4080 = vunpack.c.l.b16 %v3461
    %v4081 = vunpack.c.h.b16 %v3461
    %v4082 = vunpack.c.l.b16 %v3462
    %v4083 = vunpack.c.h.b16 %v3462
    %v4084 = vunpack.c.l.b16 %v3463
    %v4085 = vunpack.c.h.b16 %v3463
    %v4086 = vunpack.c.l.b16 %v3464
    %v4087 = vunpack.c.h.b16 %v3464
    %v4088 = vunpack.c.l.b16 %v3465
    %v4089 = vunpack.c.h.b16 %v3465
    %v4090 = vunpack.c.l.b16 %v3466
    %v4091 = vunpack.c.h.b16 %v3466
    %v4092 = vunpack.c.l.b16 %v3467
    %v4093 = vunpack.c.h.b16 %v3467
    %v4094 = vunpack.c.l.b16 %v3468
    %v4095 = vunpack.c.h.b16 %v3468
    %v4096 = vunpack.c.l.b16 %v3469
    %v4097 = vunpack.c.h.b16 %v3469
    %v4098 = vunpack.c.l.b16 %v3470
    %v4099 = vunpack.c.h.b16 %v3470
    %v4100 = vunpack.c.l.b16 %v3471
    %v4101 = vunpack.c.h.b16 %v3471
    %v4102 = vunpack.c.l.b16 %v3472
    %v4103 = vunpack.c.h.b16 %v3472
    %v4104 = vunpack.c.l.b16 %v3473
    %v4105 = vunpack.c.h.b16 %v3473
    %v4106 = vunpack.c.l.b16 %v3474
    %v4107 = vunpack.c.h.b16 %v3474
    %v4108 = vunpack.c.l.b16 %v3475
    %v4109 = vunpack.c.h.b16 %v3475
    %v4110 = vunpack.c.l.b16 %v3476
    %v4111 = vunpack.c.h.b16 %v3476
    %v4112 = vunpack.c.l.b16 %v3477
    %v4113 = vunpack.c.h.b16 %v3477
    %v4114 = vunpack.c.l.b16 %v3478
    %v4115 = vunpack.c.h.b16 %v3478
    %v4116 = vunpack.c.l.b16 %v3479
    %v4117 = vunpack.c.h.b16 %v3479
    %v4118 = vunpack.c.l.b16 %v3480
    %v4119 = vunpack.c.h.b16 %v3480
    %v4120 = vunpack.c.l.b16 %v3481
    %v4121 = vunpack.c.h.b16 %v3481
    %v4122 = vunpack.c.l.b16 %v3482
    %v4123 = vunpack.c.h.b16 %v3482
    %v4124 = vunpack.c.l.b16 %v3483
    %v4125 = vunpack.c.h.b16 %v3483
    %v4126 = vunpack.c.l.b16 %v3484
    %v4127 = vunpack.c.h.b16 %v3484
    %v4128 = vunpack.c.l.b16 %v3485
    %v4129 = vunpack.c.h.b16 %v3485
    %v4130 = vunpack.c.l.b16 %v3486
    %v4131 = vunpack.c.h.b16 %v3486
    %v4132 = vunpack.c.l.b16 %v3487
    %v4133 = vunpack.c.h.b16 %v3487
    %v4134 = vunpack.c.l.b16 %v3488
    %v4135 = vunpack.c.h.b16 %v3488
    %v4136 = vunpack.c.l.b16 %v3489
    %v4137 = vunpack.c.h.b16 %v3489
    %v4138 = vunpack.c.l.b16 %v3490
    %v4139 = vunpack.c.h.b16 %v3490
    %v4140 = vunpack.c.l.b16 %v3491
    %v4141 = vunpack.c.h.b16 %v3491
    %v4142 = vunpack.c.l.b16 %v3492
    %v4143 = vunpack.c.h.b16 %v3492
    %v4144 = vunpack.c.l.b16 %v3493
    %v4145 = vunpack.c.h.b16 %v3493
    %v4146 = vunpack.c.l.b16 %v3494
    %v4147 = vunpack.c.h.b16 %v3494
    %v4148 = vunpack.c.l.b16 %v3495
    %v4149 = vunpack.c.h.b16 %v3495
    %v4150 = vunpack.c.l.b16 %v3496
    %v4151 = vunpack.c.h.b16 %v3496
    %v4152 = vunpack.c.l.b16 %v3497
    %v4153 = vunpack.c.h.b16 %v3497
    %v4154 = vunpack.c.l.b16 %v3498
    %v4155 = vunpack.c.h.b16 %v3498
    %v4156 = vunpack.c.l.b16 %v3499
    %v4157 = vunpack.c.h.b16 %v3499
    %v4158 = vunpack.c.l.b16 %v3500
    %v4159 = vunpack.c.h.b16 %v3500
    %v4160 = vunpack.c.l.b16 %v3501
    %v4161 = vunpack.c.h.b16 %v3501
    %v4162 = vunpack.c.l.b16 %v3502
    %v4163 = vunpack.c.h.b16 %v3502
    %v4164 = vunpack.c.l.b16 %v3503
    %v4165 = vunpack.c.h.b16 %v3503
    %v4166 = vunpack.c.l.b16 %v3504
    %v4167 = vunpack.c.h.b16 %v3504
    %v4168 = vunpack.c.l.b16 %v3505
    %v4169 = vunpack.c.h.b16 %v3505
    %v4170 = vunpack.c.l.b16 %v3506
    %v4171 = vunpack.c.h.b16 %v3506
    %v4172 = vunpack.c.l.b16 %v3507
    %v4173 = vunpack.c.h.b16 %v3507
    %v4174 = vunpack.c.l.b16 %v3508
    %v4175 = vunpack.c.h.b16 %v3508
    %v4176 = vunpack.c.l.b16 %v3509
    %v4177 = vunpack.c.h.b16 %v3509
    %v4178 = vunpack.c.l.b16 %v3510
    %v4179 = vunpack.c.h.b16 %v3510
    %v4180 = vunpack.c.l.b16 %v3511
    %v4181 = vunpack.c.h.b16 %v3511
    %v4182 = vunpack.c.l.b16 %v3512
    %v4183 = vunpack.c.h.b16 %v3512
    %v4184 = vunpack.c.l.b16 %v3513
    %v4185 = vunpack.c.h.b16 %v3513
    %v4186 = vunpack.c.l.b16 %v3514
    %v4187 = vunpack.c.h.b16 %v3514
    %v4188 = vunpack.c.l.b16 %v3515
    %v4189 = vunpack.c.h.b16 %v3515
    %v4190 = vunpack.c.l.b16 %v3516
    %v4191 = vunpack.c.h.b16 %v3516
    %v4192 = vunpack.c.l.b16 %v3517
    %v4193 = vunpack.c.h.b16 %v3517
    %v4194 = vunpack.c.l.b16 %v3518
    %v4195 = vunpack.c.h.b16 %v3518
    %v4196 = vunpack.c.l.b16 %v3519
    %v4197 = vunpack.c.h.b16 %v3519
    %v4198 = vunpack.c.l.b16 %v3520
    %v4199 = vunpack.c.h.b16 %v3520
    %v4200 = vunpack.c.l.b16 %v3521
    %v4201 = vunpack.c.h.b16 %v3521
    %v4202 = vunpack.c.l.b16 %v3522
    %v4203 = vunpack.c.h.b16 %v3522
    %v4204 = vunpack.c.l.b16 %v3523
    %v4205 = vunpack.c.h.b16 %v3523
    %v4206 = vunpack.c.l.b16 %v3524
    %v4207 = vunpack.c.h.b16 %v3524
    %v4208 = vunpack.c.l.b16 %v3525
    %v4209 = vunpack.c.h.b16 %v3525
    %v4210 = vunpack.c.l.b16 %v3526
    %v4211 = vunpack.c.h.b16 %v3526
    %v4212 = vunpack.c.l.b16 %v3527
    %v4213 = vunpack.c.h.b16 %v3527
    %v4214 = vunpack.c.l.b16 %v3528
    %v4215 = vunpack.c.h.b16 %v3528
    %v4216 = vunpack.c.l.b16 %v3529
    %v4217 = vunpack.c.h.b16 %v3529
    %v4218 = vunpack.c.l.b16 %v3530
    %v4219 = vunpack.c.h.b16 %v3530
    %v4220 = vunpack.c.l.b16 %v3531
    %v4221 = vunpack.c.h.b16 %v3531
    %v4222 = vunpack.c.l.b16 %v3532
    %v4223 = vunpack.c.h.b16 %v3532
    %v4224 = vunpack.c.l.b16 %v3533
    %v4225 = vunpack.c.h.b16 %v3533
    %v4226 = vunpack.c.l.b16 %v3534
    %v4227 = vunpack.c.h.b16 %v3534
    %v4228 = vunpack.c.l.b16 %v3535
    %v4229 = vunpack.c.h.b16 %v3535
    %v4230 = vunpack.c.l.b16 %v3536
    %v4231 = vunpack.c.h.b16 %v3536
    %v4232 = vunpack.c.l.b16 %v3537
    %v4233 = vunpack.c.h.b16 %v3537
    %v4234 = vunpack.c.l.b16 %v3538
    %v4235 = vunpack.c.h.b16 %v3538
    %v4236 = vunpack.c.l.b16 %v3539
    %v4237 = vunpack.c.h.b16 %v3539
    %v4238 = vunpack.c.l.b16 %v3540
    %v4239 = vunpack.c.h.b16 %v3540
    %v4240 = vunpack.c.l.b16 %v3541
    %v4241 = vunpack.c.h.b16 %v3541
    %v4242 = vunpack.c.l.b16 %v3542
    %v4243 = vunpack.c.h.b16 %v3542
    %v4244 = vunpack.c.l.b16 %v3543
    %v4245 = vunpack.c.h.b16 %v3543
    %v4246 = vunpack.c.l.b16 %v3544
    %v4247 = vunpack.c.h.b16 %v3544
    %v4248 = vunpack.c.l.b16 %v3545
    %v4249 = vunpack.c.h.b16 %v3545
    %v4250 = vunpack.c.l.b16 %v3546
    %v4251 = vunpack.c.h.b16 %v3546
    %v4252 = vunpack.c.l.b16 %v3547
    %v4253 = vunpack.c.h.b16 %v3547
    %v4254 = vunpack.c.l.b16 %v3548
    %v4255 = vunpack.c.h.b16 %v3548
    %v4256 = vunpack.c.l.b16 %v3549
    %v4257 = vunpack.c.h.b16 %v3549
    %v4258 = vunpack.c.l.b16 %v3550
    %v4259 = vunpack.c.h.b16 %v3550
    %v4260 = vunpack.c.l.b16 %v3551
    %v4261 = vunpack.c.h.b16 %v3551
    %v4262 = vunpack.c.l.b16 %v3552
    %v4263 = vunpack.c.h.b16 %v3552
    %v4264 = vunpack.c.l.b16 %v3553
    %v4265 = vunpack.c.h.b16 %v3553
    %v4266 = vunpack.c.l.b16 %v3554
    %v4267 = vunpack.c.h.b16 %v3554
    %v4268 = vunpack.c.l.b16 %v3555
    %v4269 = vunpack.c.h.b16 %v3555
    %v4270 = vunpack.c.l.b16 %v3556
    %v4271 = vunpack.c.h.b16 %v3556
    %v4272 = vunpack.c.l.b16 %v3557
    %v4273 = vunpack.c.h.b16 %v3557
    %v4274 = vunpack.c.l.b16 %v3558
    %v4275 = vunpack.c.h.b16 %v3558
    %v4276 = vunpack.c.l.b16 %v3559
    %v4277 = vunpack.c.h.b16 %v3559
    %v4278 = vunpack.c.l.b16 %v3560
    %v4279 = vunpack.c.h.b16 %v3560
    %v4280 = vunpack.c.l.b16 %v3561
    %v4281 = vunpack.c.h.b16 %v3561
    %v4282 = vunpack.c.l.b16 %v3562
    %v4283 = vunpack.c.h.b16 %v3562
    %v4284 = vunpack.c.l.b16 %v3563
    %v4285 = vunpack.c.h.b16 %v3563
    %v4286 = vunpack.c.l.b16 %v3564
    %v4287 = vunpack.c.h.b16 %v3564
    %v4288 = vunpack.c.l.b16 %v3565
    %v4289 = vunpack.c.h.b16 %v3565
    %v4290 = vunpack.c.l.b16 %v3566
    %v4291 = vunpack.c.h.b16 %v3566
    %v4292 = vunpack.c.l.b16 %v3567
    %v4293 = vunpack.c.h.b16 %v3567
    %v4294 = vunpack.c.l.b16 %v3568
    %v4295 = vunpack.c.h.b16 %v3568
    %v4296 = vunpack.c.l.b16 %v3569
    %v4297 = vunpack.c.h.b16 %v3569
    %v4298 = vunpack.c.l.b16 %v3570
    %v4299 = vunpack.c.h.b16 %v3570
    %v4300 = vunpack.c.l.b16 %v3571
    %v4301 = vunpack.c.h.b16 %v3571
    %v4302 = vunpack.c.l.b16 %v3572
    %v4303 = vunpack.c.h.b16 %v3572
    %v4304 = vunpack.c.l.b16 %v3573
    %v4305 = vunpack.c.h.b16 %v3573
    %v4306 = vunpack.c.l.b16 %v3574
    %v4307 = vunpack.c.h.b16 %v3574
    %v4308 = vunpack.c.l.b16 %v3575
    %v4309 = vunpack.c.h.b16 %v3575
    %v4310 = vunpack.c.l.b16 %v3576
    %v4311 = vunpack.c.h.b16 %v3576
    %v4312 = vunpack.c.l.b16 %v3577
    %v4313 = vunpack.c.h.b16 %v3577
    %v4314 = vunpack.c.l.b16 %v3578
    %v4315 = vunpack.c.h.b16 %v3578
    %v4316 = vunpack.c.l.b16 %v3579
    %v4317 = vunpack.c.h.b16 %v3579
    %v4318 = vunpack.c.l.b16 %v3580
    %v4319 = vunpack.c.h.b16 %v3580
    %v4320 = vunpack.c.l.b16 %v3581
    %v4321 = vunpack.c.h.b16 %v3581
    %v4322 = vunpack.c.l.b16 %v3582
    %v4323 = vunpack.c.h.b16 %v3582
    %v4324 = vunpack.c.l.b16 %v3583
    %v4325 = vunpack.c.h.b16 %v3583
    %v4326 = vunpack.c.l.b16 %v3584
    %v4327 = vunpack.c.h.b16 %v3584
    %v4328 = vunpack.c.l.b16 %v3585
    %v4329 = vunpack.c.h.b16 %v3585
    %v4330 = vunpack.c.l.b16 %v3586
    %v4331 = vunpack.c.h.b16 %v3586
    %v4332 = vunpack.c.l.b16 %v3587
    %v4333 = vunpack.c.h.b16 %v3587
    %v4334 = vunpack.c.l.b16 %v3588
    %v4335 = vunpack.c.h.b16 %v3588
    %v4336 = vunpack.c.l.b16 %v3589
    %v4337 = vunpack.c.h.b16 %v3589
    %v4338 = vunpack.c.l.b16 %v3590
    %v4339 = vunpack.c.h.b16 %v3590
    %v4340 = vunpack.c.l.b16 %v3591
    %v4341 = vunpack.c.h.b16 %v3591
    %v4342 = vunpack.c.l.b16 %v3592
    %v4343 = vunpack.c.h.b16 %v3592
    %v4344 = vunpack.c.l.b16 %v3593
    %v4345 = vunpack.c.h.b16 %v3593
    %v4346 = vunpack.c.l.b16 %v3594
    %v4347 = vunpack.c.h.b16 %v3594
    %v4348 = vunpack.c.l.b16 %v3595
    %v4349 = vunpack.c.h.b16 %v3595
    %v4350 = vunpack.c.l.b16 %v3596
    %v4351 = vunpack.c.h.b16 %v3596
    %v4352 = vunpack.c.l.b16 %v3597
    %v4353 = vunpack.c.h.b16 %v3597
    %v4354 = vunpack.c.l.b16 %v3598
    %v4355 = vunpack.c.h.b16 %v3598
    %v4356 = vunpack.c.l.b16 %v3599
    %v4357 = vunpack.c.h.b16 %v3599
    %v4358 = vunpack.c.l.b16 %v3600
    %v4359 = vunpack.c.h.b16 %v3600
    %v4360 = vunpack.c.l.b16 %v3601
    %v4361 = vunpack.c.h.b16 %v3601
    %v4362 = vunpack.c.l.b16 %v3602
    %v4363 = vunpack.c.h.b16 %v3602
    %v4364 = vunpack.c.l.b16 %v3603
    %v4365 = vunpack.c.h.b16 %v3603
    %v4366 = vunpack.c.l.b16 %v3604
    %v4367 = vunpack.c.h.b16 %v3604
    %v4368 = vunpack.c.l.b16 %v3605
    %v4369 = vunpack.c.h.b16 %v3605
    %v4370 = vunpack.c.l.b16 %v3606
    %v4371 = vunpack.c.h.b16 %v3606
    %v4372 = vunpack.c.l.b16 %v3607
    %v4373 = vunpack.c.h.b16 %v3607
    %v4374 = vunpack.c.l.b16 %v3608
    %v4375 = vunpack.c.h.b16 %v3608
    %v4376 = vunpack.c.l.b16 %v3609
    %v4377 = vunpack.c.h.b16 %v3609
    %v4378 = vunpack.c.l.b16 %v3610
    %v4379 = vunpack.c.h.b16 %v3610
    %v4380 = vunpack.c.l.b16 %v3611
    %v4381 = vunpack.c.h.b16 %v3611
    %v4382 = vunpack.c.l.b16 %v3612
    %v4383 = vunpack.c.h.b16 %v3612
    %v4384 = vunpack.c.l.b16 %v3613
    %v4385 = vunpack.c.h.b16 %v3613
    %v4386 = vunpack.c.l.b16 %v3614
    %v4387 = vunpack.c.h.b16 %v3614
    %v4388 = vunpack.c.l.b16 %v3615
    %v4389 = vunpack.c.h.b16 %v3615
    %v4390 = vunpack.c.l.b16 %v3616
    %v4391 = vunpack.c.h.b16 %v3616
    %v4392 = vunpack.c.l.b16 %v3617
    %v4393 = vunpack.c.h.b16 %v3617
    %v4394 = vunpack.c.l.b16 %v3618
    %v4395 = vunpack.c.h.b16 %v3618
    %v4396 = vunpack.c.l.b16 %v3619
    %v4397 = vunpack.c.h.b16 %v3619
    %v4398 = vunpack.c.l.b16 %v3620
    %v4399 = vunpack.c.h.b16 %v3620
    %v4400 = vunpack.c.l.b16 %v3621
    %v4401 = vunpack.c.h.b16 %v3621
    %v4402 = vunpack.c.l.b16 %v3622
    %v4403 = vunpack.c.h.b16 %v3622
    %v4404 = vunpack.c.l.b16 %v3623
    %v4405 = vunpack.c.h.b16 %v3623
    %v4406 = vunpack.c.l.b16 %v3624
    %v4407 = vunpack.c.h.b16 %v3624
    %v4408 = vunpack.c.l.b16 %v3625
    %v4409 = vunpack.c.h.b16 %v3625
    %v4410 = vunpack.c.l.b16 %v3626
    %v4411 = vunpack.c.h.b16 %v3626
    %v4412 = vunpack.c.l.b16 %v3627
    %v4413 = vunpack.c.h.b16 %v3627
    %v4414 = vunpack.c.l.b16 %v3628
    %v4415 = vunpack.c.h.b16 %v3628
    %v4416 = vunpack.c.l.b16 %v3629
    %v4417 = vunpack.c.h.b16 %v3629
    %v4418 = vunpack.c.l.b16 %v3630
    %v4419 = vunpack.c.h.b16 %v3630
    %v4420 = vunpack.c.l.b16 %v3631
    %v4421 = vunpack.c.h.b16 %v3631
    %v4422 = vunpack.c.l.b16 %v3632
    %v4423 = vunpack.c.h.b16 %v3632
    %v4424 = vunpack.c.l.b16 %v3633
    %v4425 = vunpack.c.h.b16 %v3633
    %v4426 = vunpack.c.l.b16 %v3634
    %v4427 = vunpack.c.h.b16 %v3634
    %v4428 = vunpack.c.l.b16 %v3635
    %v4429 = vunpack.c.h.b16 %v3635
    %v4430 = vunpack.c.l.b16 %v3636
    %v4431 = vunpack.c.h.b16 %v3636
    %v4432 = vunpack.c.l.b16 %v3637
    %v4433 = vunpack.c.h.b16 %v3637
    %v4434 = vunpack.c.l.b16 %v3638
    %v4435 = vunpack.c.h.b16 %v3638
    %v4436 = vunpack.c.l.b16 %v3639
    %v4437 = vunpack.c.h.b16 %v3639
    %v4438 = vunpack.c.l.b16 %v3640
    %v4439 = vunpack.c.h.b16 %v3640
    %v4440 = vunpack.c.l.b16 %v3641
    %v4441 = vunpack.c.h.b16 %v3641
    %v4442 = vunpack.c.l.b16 %v3642
    %v4443 = vunpack.c.h.b16 %v3642
    %v4444 = vunpack.c.l.b16 %v3643
    %v4445 = vunpack.c.h.b16 %v3643
    %v4446 = vunpack.c.l.b16 %v3644
    %v4447 = vunpack.c.h.b16 %v3644
    %v4448 = vunpack.c.l.b16 %v3645
    %v4449 = vunpack.c.h.b16 %v3645
    %v4450 = vunpack.c.l.b16 %v3646
    %v4451 = vunpack.c.h.b16 %v3646
    %v4452 = vunpack.c.l.b16 %v3647
    %v4453 = vunpack.c.h.b16 %v3647
    %v4454 = vunpack.c.l.b16 %v3648
    %v4455 = vunpack.c.h.b16 %v3648
    %v4456 = vunpack.c.l.b16 %v3649
    %v4457 = vunpack.c.h.b16 %v3649
    %v4458 = vunpack.c.l.b16 %v3650
    %v4459 = vunpack.c.h.b16 %v3650
    %v4460 = vunpack.c.l.b16 %v3651
    %v4461 = vunpack.c.h.b16 %v3651
    %v4462 = vpack.c.b16 %v3958, %v3950
    %v4463 = vpack.c.b16 %v3959, %v3951
    %v4464 = vpack.c.b16 %v3960, %v3952
    %v4465 = vpack.c.b16 %v3961, %v3953
    %v4466 = vpack.c.b16 %v3962, %v3954
    %v4467 = vpack.c.b16 %v3963, %v3955
    %v4468 = vpack.c.b16 %v3964, %v3956
    %v4469 = vpack.c.b16 %v3965, %v3957
    %v4470 = vpack.c.b16 %v3974, %v3966
    %v4471 = vpack.c.b16 %v3975, %v3967
    %v4472 = vpack.c.b16 %v3976, %v3968
    %v4473 = vpack.c.b16 %v3977, %v3969
    %v4474 = vpack.c.b16 %v3978, %v3970
    %v4475 = vpack.c.b16 %v3979, %v3971
    %v4476 = vpack.c.b16 %v3980, %v3972
    %v4477 = vpack.c.b16 %v3981, %v3973
    %v4478 = vpack.c.b16 %v3990, %v3982
    %v4479 = vpack.c.b16 %v3991, %v3983
    %v4480 = vpack.c.b16 %v3992, %v3984
    %v4481 = vpack.c.b16 %v3993, %v3985
    %v4482 = vpack.c.b16 %v3994, %v3986
    %v4483 = vpack.c.b16 %v3995, %v3987
    %v4484 = vpack.c.b16 %v3996, %v3988
    %v4485 = vpack.c.b16 %v3997, %v3989
    %v4486 = vpack.c.b16 %v4006, %v3998
    %v4487 = vpack.c.b16 %v4007, %v3999
    %v4488 = vpack.c.b16 %v4008, %v4000
    %v4489 = vpack.c.b16 %v4009, %v4001
    %v4490 = vpack.c.b16 %v4010, %v4002
    %v4491 = vpack.c.b16 %v4011, %v4003
    %v4492 = vpack.c.b16 %v4012, %v4004
    %v4493 = vpack.c.b16 %v4013, %v4005
    %v4494 = vpack.c.b16 %v4022, %v4014
    %v4495 = vpack.c.b16 %v4023, %v4015
    %v4496 = vpack.c.b16 %v4024, %v4016
    %v4497 = vpack.c.b16 %v4025, %v4017
    %v4498 = vpack.c.b16 %v4026, %v4018
    %v4499 = vpack.c.b16 %v4027, %v4019
    %v4500 = vpack.c.b16 %v4028, %v4020
    %v4501 = vpack.c.b16 %v4029, %v4021
    %v4502 = vpack.c.b16 %v4038, %v4030
    %v4503 = vpack.c.b16 %v4039, %v4031
    %v4504 = vpack.c.b16 %v4040, %v4032
    %v4505 = vpack.c.b16 %v4041, %v4033
    %v4506 = vpack.c.b16 %v4042, %v4034
    %v4507 = vpack.c.b16 %v4043, %v4035
    %v4508 = vpack.c.b16 %v4044, %v4036
    %v4509 = vpack.c.b16 %v4045, %v4037
    %v4510 = vpack.c.b16 %v4054, %v4046
    %v4511 = vpack.c.b16 %v4055, %v4047
    %v4512 = vpack.c.b16 %v4056, %v4048
    %v4513 = vpack.c.b16 %v4057, %v4049
    %v4514 = vpack.c.b16 %v4058, %v4050
    %v4515 = vpack.c.b16 %v4059, %v4051
    %v4516 = vpack.c.b16 %v4060, %v4052
    %v4517 = vpack.c.b16 %v4061, %v4053
    %v4518 = vpack.c.b16 %v4070, %v4062
    %v4519 = vpack.c.b16 %v4071, %v4063
    %v4520 = vpack.c.b16 %v4072, %v4064
    %v4521 = vpack.c.b16 %v4073, %v4065
    %v4522 = vpack.c.b16 %v4074, %v4066
    %v4523 = vpack.c.b16 %v4075, %v4067
    %v4524 = vpack.c.b16 %v4076, %v4068
    %v4525 = vpack.c.b16 %v4077, %v4069
    %v4526 = vpack.c.b16 %v4086, %v4078
    %v4527 = vpack.c.b16 %v4087, %v4079
    %v4528 = vpack.c.b16 %v4088, %v4080
    %v4529 = vpack.c.b16 %v4089, %v4081
    %v4530 = vpack.c.b16 %v4090, %v4082
    %v4531 = vpack.c.b16 %v4091, %v4083
    %v4532 = vpack.c.b16 %v4092, %v4084
    %v4533 = vpack.c.b16 %v4093, %v4085
    %v4534 = vpack.c.b16 %v4102, %v4094
    %v4535 = vpack.c.b16 %v4103, %v4095
    %v4536 = vpack.c.b16 %v4104, %v4096
    %v4537 = vpack.c.b16 %v4105, %v4097
    %v4538 = vpack.c.b16 %v4106, %v4098
    %v4539 = vpack.c.b16 %v4107, %v4099
    %v4540 = vpack.c.b16 %v4108, %v4100
    %v4541 = vpack.c.b16 %v4109, %v4101
    %v4542 = vpack.c.b16 %v4118, %v4110
    %v4543 = vpack.c.b16 %v4119, %v4111
    %v4544 = vpack.c.b16 %v4120, %v4112
    %v4545 = vpack.c.b16 %v4121, %v4113
    %v4546 = vpack.c.b16 %v4122, %v4114
    %v4547 = vpack.c.b16 %v4123, %v4115
    %v4548 = vpack.c.b16 %v4124, %v4116
    %v4549 = vpack.c.b16 %v4125, %v4117
    %v4550 = vpack.c.b16 %v4134, %v4126
    %v4551 = vpack.c.b16 %v4135, %v4127
    %v4552 = vpack.c.b16 %v4136, %v4128
    %v4553 = vpack.c.b16 %v4137, %v4129
    %v4554 = vpack.c.b16 %v4138, %v4130
    %v4555 = vpack.c.b16 %v4139, %v4131
    %v4556 = vpack.c.b16 %v4140, %v4132
    %v4557 = vpack.c.b16 %v4141, %v4133
    %v4558 = vpack.c.b16 %v4150, %v4142
    %v4559 = vpack.c.b16 %v4151, %v4143
    %v4560 = vpack.c.b16 %v4152, %v4144
    %v4561 = vpack.c.b16 %v4153, %v4145
    %v4562 = vpack.c.b16 %v4154, %v4146
    %v4563 = vpack.c.b16 %v4155, %v4147
    %v4564 = vpack.c.b16 %v4156, %v4148
    %v4565 = vpack.c.b16 %v4157, %v4149
    %v4566 = vpack.c.b16 %v4166, %v4158
    %v4567 = vpack.c.b16 %v4167, %v4159
    %v4568 = vpack.c.b16 %v4168, %v4160
    %v4569 = vpack.c.b16 %v4169, %v4161
    %v4570 = vpack.c.b16 %v4170, %v4162
    %v4571 = vpack.c.b16 %v4171, %v4163
    %v4572 = vpack.c.b16 %v4172, %v4164
    %v4573 = vpack.c.b16 %v4173, %v4165
    %v4574 = vpack.c.b16 %v4182, %v4174
    %v4575 = vpack.c.b16 %v4183, %v4175
    %v4576 = vpack.c.b16 %v4184, %v4176
    %v4577 = vpack.c.b16 %v4185, %v4177
    %v4578 = vpack.c.b16 %v4186, %v4178
    %v4579 = vpack.c.b16 %v4187, %v4179
    %v4580 = vpack.c.b16 %v4188, %v4180
    %v4581 = vpack.c.b16 %v4189, %v4181
    %v4582 = vpack.c.b16 %v4198, %v4190
    %v4583 = vpack.c.b16 %v4199, %v4191
    %v4584 = vpack.c.b16 %v4200, %v4192
    %v4585 = vpack.c.b16 %v4201, %v4193
    %v4586 = vpack.c.b16 %v4202, %v4194
    %v4587 = vpack.c.b16 %v4203, %v4195
    %v4588 = vpack.c.b16 %v4204, %v4196
    %v4589 = vpack.c.b16 %v4205, %v4197
    %v4590 = vpack.c.b16 %v4214, %v4206
    %v4591 = vpack.c.b16 %v4215, %v4207
    %v4592 = vpack.c.b16 %v4216, %v4208
    %v4593 = vpack.c.b16 %v4217, %v4209
    %v4594 = vpack.c.b16 %v4218, %v4210
    %v4595 = vpack.c.b16 %v4219, %v4211
    %v4596 = vpack.c.b16 %v4220, %v4212
    %v4597 = vpack.c.b16 %v4221, %v4213
    %v4598 = vpack.c.b16 %v4230, %v4222
    %v4599 = vpack.c.b16 %v4231, %v4223
    %v4600 = vpack.c.b16 %v4232, %v4224
    %v4601 = vpack.c.b16 %v4233, %v4225
    %v4602 = vpack.c.b16 %v4234, %v4226
    %v4603 = vpack.c.b16 %v4235, %v4227
    %v4604 = vpack.c.b16 %v4236, %v4228
    %v4605 = vpack.c.b16 %v4237, %v4229
    %v4606 = vpack.c.b16 %v4246, %v4238
    %v4607 = vpack.c.b16 %v4247, %v4239
    %v4608 = vpack.c.b16 %v4248, %v4240
    %v4609 = vpack.c.b16 %v4249, %v4241
    %v4610 = vpack.c.b16 %v4250, %v4242
    %v4611 = vpack.c.b16 %v4251, %v4243
    %v4612 = vpack.c.b16 %v4252, %v4244
    %v4613 = vpack.c.b16 %v4253, %v4245
    %v4614 = vpack.c.b16 %v4262, %v4254
    %v4615 = vpack.c.b16 %v4263, %v4255
    %v4616 = vpack.c.b16 %v4264, %v4256
    %v4617 = vpack.c.b16 %v4265, %v4257
    %v4618 = vpack.c.b16 %v4266, %v4258
    %v4619 = vpack.c.b16 %v4267, %v4259
    %v4620 = vpack.c.b16 %v4268, %v4260
    %v4621 = vpack.c.b16 %v4269, %v4261
    %v4622 = vpack.c.b16 %v4278, %v4270
    %v4623 = vpack.c.b16 %v4279, %v4271
    %v4624 = vpack.c.b16 %v4280, %v4272
    %v4625 = vpack.c.b16 %v4281, %v4273
    %v4626 = vpack.c.b16 %v4282, %v4274
    %v4627 = vpack.c.b16 %v4283, %v4275
    %v4628 = vpack.c.b16 %v4284, %v4276
    %v4629 = vpack.c.b16 %v4285, %v4277
    %v4630 = vpack.c.b16 %v4294, %v4286
    %v4631 = vpack.c.b16 %v4295, %v4287
    %v4632 = vpack.c.b16 %v4296, %v4288
    %v4633 = vpack.c.b16 %v4297, %v4289
    %v4634 = vpack.c.b16 %v4298, %v4290
    %v4635 = vpack.c.b16 %v4299, %v4291
    %v4636 = vpack.c.b16 %v4300, %v4292
    %v4637 = vpack.c.b16 %v4301, %v4293
    %v4638 = vpack.c.b16 %v4310, %v4302
    %v4639 = vpack.c.b16 %v4311, %v4303
    %v4640 = vpack.c.b16 %v4312, %v4304
    %v4641 = vpack.c.b16 %v4313, %v4305
    %v4642 = vpack.c.b16 %v4314, %v4306
    %v4643 = vpack.c.b16 %v4315, %v4307
    %v4644 = vpack.c.b16 %v4316, %v4308
    %v4645 = vpack.c.b16 %v4317, %v4309
    %v4646 = vpack.c.b16 %v4326, %v4318
    %v4647 = vpack.c.b16 %v4327, %v4319
    %v4648 = vpack.c.b16 %v4328, %v4320
    %v4649 = vpack.c.b16 %v4329, %v4321
    %v4650 = vpack.c.b16 %v4330, %v4322
    %v4651 = vpack.c.b16 %v4331, %v4323
    %v4652 = vpack.c.b16 %v4332, %v4324
    %v4653 = vpack.c.b16 %v4333, %v4325
    %v4654 = vpack.c.b16 %v4342, %v4334
    %v4655 = vpack.c.b16 %v4343, %v4335
    %v4656 = vpack.c.b16 %v4344, %v4336
    %v4657 = vpack.c.b16 %v4345, %v4337
    %v4658 = vpack.c.b16 %v4346, %v4338
    %v4659 = vpack.c.b16 %v4347, %v4339
    %v4660 = vpack.c.b16 %v4348, %v4340
    %v4661 = vpack.c.b16 %v4349, %v4341
    %v4662 = vpack.c.b16 %v4358, %v4350
    %v4663 = vpack.c.b16 %v4359, %v4351
    %v4664 = vpack.c.b16 %v4360, %v4352
    %v4665 = vpack.c.b16 %v4361, %v4353
    %v4666 = vpack.c.b16 %v4362, %v4354
    %v4667 = vpack.c.b16 %v4363, %v4355
    %v4668 = vpack.c.b16 %v4364, %v4356
    %v4669 = vpack.c.b16 %v4365, %v4357
    %v4670 = vpack.c.b16 %v4374, %v4366
    %v4671 = vpack.c.b16 %v4375, %v4367
    %v4672 = vpack.c.b16 %v4376, %v4368
    %v4673 = vpack.c.b16 %v4377, %v4369
    %v4674 = vpack.c.b16 %v4378, %v4370
    %v4675 = vpack.c.b16 %v4379, %v4371
    %v4676 = vpack.c.b16 %v4380, %v4372
    %v4677 = vpack.c.b16 %v4381, %v4373
    %v4678 = vpack.c.b16 %v4390, %v4382
    %v4679 = vpack.c.b16 %v4391, %v4383
    %v4680 = vpack.c.b16 %v4392, %v4384
    %v4681 = vpack.c.b16 %v4393, %v4385
    %v4682 = vpack.c.b16 %v4394, %v4386
    %v4683 = vpack.c.b16 %v4395, %v4387
    %v4684 = vpack.c.b16 %v4396, %v4388
    %v4685 = vpack.c.b16 %v4397, %v4389
    %v4686 = vpack.c.b16 %v4406, %v4398
    %v4687 = vpack.c.b16 %v4407, %v4399
    %v4688 = vpack.c.b16 %v4408, %v4400
    %v4689 = vpack.c.b16 %v4409, %v4401
    %v4690 = vpack.c.b16 %v4410, %v4402
    %v4691 = vpack.c.b16 %v4411, %v4403
    %v4692 = vpack.c.b16 %v4412, %v4404
    %v4693 = vpack.c.b16 %v4413, %v4405
    %v4694 = vpack.c.b16 %v4422, %v4414
    %v4695 = vpack.c.b16 %v4423, %v4415
    %v4696 = vpack.c.b16 %v4424, %v4416
    %v4697 = vpack.c.b16 %v4425, %v4417
    %v4698 = vpack.c.b16 %v4426, %v4418
    %v4699 = vpack.c.b16 %v4427, %v4419
    %v4700 = vpack.c.b16 %v4428, %v4420
    %v4701 = vpack.c.b16 %v4429, %v4421
    %v4702 = vpack.c.b16 %v4438, %v4430
    %v4703 = vpack.c.b16 %v4439, %v4431
    %v4704 = vpack.c.b16 %v4440, %v4432
    %v4705 = vpack.c.b16 %v4441, %v4433
    %v4706 = vpack.c.b16 %v4442, %v4434
    %v4707 = vpack.c.b16 %v4443, %v4435
    %v4708 = vpack.c.b16 %v4444, %v4436
    %v4709 = vpack.c.b16 %v4445, %v4437
    %v4710 = vpack.c.b16 %v4454, %v4446
    %v4711 = vpack.c.b16 %v4455, %v4447
    %v4712 = vpack.c.b16 %v4456, %v4448
    %v4713 = vpack.c.b16 %v4457, %v4449
    %v4714 = vpack.c.b16 %v4458, %v4450
    %v4715 = vpack.c.b16 %v4459, %v4451
    %v4716 = vpack.c.b16 %v4460, %v4452
    %v4717 = vpack.c.b16 %v4461, %v4453
    %4974 = vmatprep.subr.bf16.mxu0 %v4519
    %4975 = vmatpush1.bf16.msra.mxu0 %v4518
    %4976 = vmatprep.subr.bf16.mxu0 %v4511
    %4977 = vmatpush1.bf16.msra.mxu0 %v4510
    %4978 = vmatprep.subr.bf16.mxu0 %v4503
    %4979 = vmatpush1.bf16.msra.mxu0 %v4502
    %4980 = vmatprep.subr.bf16.mxu0 %v4495
    %4981 = vmatpush1.bf16.msra.mxu0 %v4494
    %4982 = vmatprep.subr.bf16.mxu0 %v4487
    %4983 = vmatpush1.bf16.msra.mxu0 %v4486
    %4984 = vmatprep.subr.bf16.mxu0 %v4479
    %4985 = vmatpush1.bf16.msra.mxu0 %v4478
    %4986 = vmatprep.subr.bf16.mxu0 %v4471
    %4987 = vmatpush1.bf16.msra.mxu0 %v4470
    %4988 = vmatprep.subr.bf16.mxu0 %v4463
    %4989 = vmatpush1.bf16.msra.mxu0 %v4462
    %4990 = vmatprep.subr.bf16.mxu0 %v4583
    %4991 = vmatpush2.bf16.msra.mxu0 %v4582
    %4992 = vmatprep.subr.bf16.mxu0 %v4575
    %4993 = vmatpush2.bf16.msra.mxu0 %v4574
    %4994 = vmatprep.subr.bf16.mxu0 %v4567
    %4995 = vmatpush2.bf16.msra.mxu0 %v4566
    %4996 = vmatprep.subr.bf16.mxu0 %v4559
    %4997 = vmatpush2.bf16.msra.mxu0 %v4558
    %4998 = vmatprep.subr.bf16.mxu0 %v4551
    %4999 = vmatpush2.bf16.msra.mxu0 %v4550
    %5000 = vmatprep.subr.bf16.mxu0 %v4543
    %5001 = vmatpush2.bf16.msra.mxu0 %v4542
    %5002 = vmatprep.subr.bf16.mxu0 %v4535
    %5003 = vmatpush2.bf16.msra.mxu0 %v4534
    %5004 = vmatprep.subr.bf16.mxu0 %v4527
    %5005 = vmatpush2.bf16.msra.mxu0 %v4526
    %5006 = vmatprep.mubr.bf16.mxu0 %v3393
    %5007 = vmatmul.mubr.bf16.gmra.mxu0 %v3392
    %v5008 = vpop.f32.mrf.mxu0
    %v5009 = vadd.f32 %v3657, %v5008
    %v5010 = vpop.f32.mrf.mxu0
    %v5011 = vadd.f32 %v3661, %v5010
    %v5012 = vpop.f32.mrf.mxu0
    %v5013 = vpop.f32.mrf.mxu0
    %5014 = vdwg.mxu0
    %5015 = vmatprep.subr.bf16.mxu0 %v4647
    %5016 = vmatpush1.bf16.msra.mxu0 %v4646
    %5017 = vmatprep.subr.bf16.mxu0 %v4639
    %5018 = vmatpush1.bf16.msra.mxu0 %v4638
    %5019 = vmatprep.subr.bf16.mxu0 %v4631
    %5020 = vmatpush1.bf16.msra.mxu0 %v4630
    %5021 = vmatprep.subr.bf16.mxu0 %v4623
    %5022 = vmatpush1.bf16.msra.mxu0 %v4622
    %5023 = vmatprep.subr.bf16.mxu0 %v4615
    %5024 = vmatpush1.bf16.msra.mxu0 %v4614
    %5025 = vmatprep.subr.bf16.mxu0 %v4607
    %5026 = vmatpush1.bf16.msra.mxu0 %v4606
    %5027 = vmatprep.subr.bf16.mxu0 %v4599
    %5028 = vmatpush1.bf16.msra.mxu0 %v4598
    %5029 = vmatprep.subr.bf16.mxu0 %v4591
    %5030 = vmatpush1.bf16.msra.mxu0 %v4590
    %5031 = vmatprep.subr.bf16.mxu0 %v4711
    %5032 = vmatpush2.bf16.msra.mxu0 %v4710
    %5033 = vmatprep.subr.bf16.mxu0 %v4703
    %5034 = vmatpush2.bf16.msra.mxu0 %v4702
    %5035 = vmatprep.subr.bf16.mxu0 %v4695
    %5036 = vmatpush2.bf16.msra.mxu0 %v4694
    %5037 = vmatprep.subr.bf16.mxu0 %v4687
    %5038 = vmatpush2.bf16.msra.mxu0 %v4686
    %5039 = vmatprep.subr.bf16.mxu0 %v4679
    %5040 = vmatpush2.bf16.msra.mxu0 %v4678
    %5041 = vmatprep.subr.bf16.mxu0 %v4671
    %5042 = vmatpush2.bf16.msra.mxu0 %v4670
    %5043 = vmatprep.subr.bf16.mxu0 %v4663
    %5044 = vmatpush2.bf16.msra.mxu0 %v4662
    %5045 = vmatprep.subr.bf16.mxu0 %v4655
    %5046 = vmatpush2.bf16.msra.mxu0 %v4654
    %5047 = vmatprep.mubr.bf16.mxu0 %v3395
    %5048 = vmatmul.mubr.bf16.gmra.mxu0 %v3394
    %v5049 = vpop.f32.mrf.mxu0
    %v5050 = vadd.f32 %v5009, %v5049
    %v5051 = vpop.f32.mrf.mxu0
    %v5052 = vadd.f32 %v5011, %v5051
    %v5053 = vpop.f32.mrf.mxu0
    %v5054 = vpop.f32.mrf.mxu0
    %5055 = vdwg.mxu0
    %5056 = vmatprep.subr.bf16.mxu0 %v4521
    %5057 = vmatpush1.bf16.msra.mxu0 %v4520
    %5058 = vmatprep.subr.bf16.mxu0 %v4513
    %5059 = vmatpush1.bf16.msra.mxu0 %v4512
    %5060 = vmatprep.subr.bf16.mxu0 %v4505
    %5061 = vmatpush1.bf16.msra.mxu0 %v4504
    %5062 = vmatprep.subr.bf16.mxu0 %v4497
    %5063 = vmatpush1.bf16.msra.mxu0 %v4496
    %5064 = vmatprep.subr.bf16.mxu0 %v4489
    %5065 = vmatpush1.bf16.msra.mxu0 %v4488
    %5066 = vmatprep.subr.bf16.mxu0 %v4481
    %5067 = vmatpush1.bf16.msra.mxu0 %v4480
    %5068 = vmatprep.subr.bf16.mxu0 %v4473
    %5069 = vmatpush1.bf16.msra.mxu0 %v4472
    %5070 = vmatprep.subr.bf16.mxu0 %v4465
    %5071 = vmatpush1.bf16.msra.mxu0 %v4464
    %5072 = vmatprep.subr.bf16.mxu0 %v4585
    %5073 = vmatpush2.bf16.msra.mxu0 %v4584
    %5074 = vmatprep.subr.bf16.mxu0 %v4577
    %5075 = vmatpush2.bf16.msra.mxu0 %v4576
    %5076 = vmatprep.subr.bf16.mxu0 %v4569
    %5077 = vmatpush2.bf16.msra.mxu0 %v4568
    %5078 = vmatprep.subr.bf16.mxu0 %v4561
    %5079 = vmatpush2.bf16.msra.mxu0 %v4560
    %5080 = vmatprep.subr.bf16.mxu0 %v4553
    %5081 = vmatpush2.bf16.msra.mxu0 %v4552
    %5082 = vmatprep.subr.bf16.mxu0 %v4545
    %5083 = vmatpush2.bf16.msra.mxu0 %v4544
    %5084 = vmatprep.subr.bf16.mxu0 %v4537
    %5085 = vmatpush2.bf16.msra.mxu0 %v4536
    %5086 = vmatprep.subr.bf16.mxu0 %v4529
    %5087 = vmatpush2.bf16.msra.mxu0 %v4528
    %5088 = vmatprep.mubr.bf16.mxu0 %v3393
    %5089 = vmatmul.mubr.bf16.gmra.mxu0 %v3392
    %v5090 = vpop.f32.mrf.mxu0
    %v5091 = vadd.f32 %v3665, %v5090
    %v5092 = vpop.f32.mrf.mxu0
    %v5093 = vadd.f32 %v3669, %v5092
    %v5094 = vpop.f32.mrf.mxu0
    %v5095 = vpop.f32.mrf.mxu0
    %5096 = vdwg.mxu0
    %5097 = vmatprep.subr.bf16.mxu0 %v4649
    %5098 = vmatpush1.bf16.msra.mxu0 %v4648
    %5099 = vmatprep.subr.bf16.mxu0 %v4641
    %5100 = vmatpush1.bf16.msra.mxu0 %v4640
    %5101 = vmatprep.subr.bf16.mxu0 %v4633
    %5102 = vmatpush1.bf16.msra.mxu0 %v4632
    %5103 = vmatprep.subr.bf16.mxu0 %v4625
    %5104 = vmatpush1.bf16.msra.mxu0 %v4624
    %5105 = vmatprep.subr.bf16.mxu0 %v4617
    %5106 = vmatpush1.bf16.msra.mxu0 %v4616
    %5107 = vmatprep.subr.bf16.mxu0 %v4609
    %5108 = vmatpush1.bf16.msra.mxu0 %v4608
    %5109 = vmatprep.subr.bf16.mxu0 %v4601
    %5110 = vmatpush1.bf16.msra.mxu0 %v4600
    %5111 = vmatprep.subr.bf16.mxu0 %v4593
    %5112 = vmatpush1.bf16.msra.mxu0 %v4592
    %5113 = vmatprep.subr.bf16.mxu0 %v4713
    %5114 = vmatpush2.bf16.msra.mxu0 %v4712
    %5115 = vmatprep.subr.bf16.mxu0 %v4705
    %5116 = vmatpush2.bf16.msra.mxu0 %v4704
    %5117 = vmatprep.subr.bf16.mxu0 %v4697
    %5118 = vmatpush2.bf16.msra.mxu0 %v4696
    %5119 = vmatprep.subr.bf16.mxu0 %v4689
    %5120 = vmatpush2.bf16.msra.mxu0 %v4688
    %5121 = vmatprep.subr.bf16.mxu0 %v4681
    %5122 = vmatpush2.bf16.msra.mxu0 %v4680
    %5123 = vmatprep.subr.bf16.mxu0 %v4673
    %5124 = vmatpush2.bf16.msra.mxu0 %v4672
    %5125 = vmatprep.subr.bf16.mxu0 %v4665
    %5126 = vmatpush2.bf16.msra.mxu0 %v4664
    %5127 = vmatprep.subr.bf16.mxu0 %v4657
    %5128 = vmatpush2.bf16.msra.mxu0 %v4656
    %5129 = vmatprep.mubr.bf16.mxu0 %v3395
    %5130 = vmatmul.mubr.bf16.gmra.mxu0 %v3394
    %v5131 = vpop.f32.mrf.mxu0
    %v5132 = vadd.f32 %v5091, %v5131
    %v5133 = vpop.f32.mrf.mxu0
    %v5134 = vadd.f32 %v5093, %v5133
    %v5135 = vpop.f32.mrf.mxu0
    %v5136 = vpop.f32.mrf.mxu0
    %5137 = vdwg.mxu0
    %5138 = vmatprep.subr.bf16.mxu0 %v4523
    %5139 = vmatpush1.bf16.msra.mxu0 %v4522
    %5140 = vmatprep.subr.bf16.mxu0 %v4515
    %5141 = vmatpush1.bf16.msra.mxu0 %v4514
    %5142 = vmatprep.subr.bf16.mxu0 %v4507
    %5143 = vmatpush1.bf16.msra.mxu0 %v4506
    %5144 = vmatprep.subr.bf16.mxu0 %v4499
    %5145 = vmatpush1.bf16.msra.mxu0 %v4498
    %5146 = vmatprep.subr.bf16.mxu0 %v4491
    %5147 = vmatpush1.bf16.msra.mxu0 %v4490
    %5148 = vmatprep.subr.bf16.mxu0 %v4483
    %5149 = vmatpush1.bf16.msra.mxu0 %v4482
    %5150 = vmatprep.subr.bf16.mxu0 %v4475
    %5151 = vmatpush1.bf16.msra.mxu0 %v4474
    %5152 = vmatprep.subr.bf16.mxu0 %v4467
    %5153 = vmatpush1.bf16.msra.mxu0 %v4466
    %5154 = vmatprep.subr.bf16.mxu0 %v4587
    %5155 = vmatpush2.bf16.msra.mxu0 %v4586
    %5156 = vmatprep.subr.bf16.mxu0 %v4579
    %5157 = vmatpush2.bf16.msra.mxu0 %v4578
    %5158 = vmatprep.subr.bf16.mxu0 %v4571
    %5159 = vmatpush2.bf16.msra.mxu0 %v4570
    %5160 = vmatprep.subr.bf16.mxu0 %v4563
    %5161 = vmatpush2.bf16.msra.mxu0 %v4562
    %5162 = vmatprep.subr.bf16.mxu0 %v4555
    %5163 = vmatpush2.bf16.msra.mxu0 %v4554
    %5164 = vmatprep.subr.bf16.mxu0 %v4547
    %5165 = vmatpush2.bf16.msra.mxu0 %v4546
    %5166 = vmatprep.subr.bf16.mxu0 %v4539
    %5167 = vmatpush2.bf16.msra.mxu0 %v4538
    %5168 = vmatprep.subr.bf16.mxu0 %v4531
    %5169 = vmatpush2.bf16.msra.mxu0 %v4530
    %5170 = vmatprep.mubr.bf16.mxu0 %v3393
    %5171 = vmatmul.mubr.bf16.gmra.mxu0 %v3392
    %v5172 = vpop.f32.mrf.mxu0
    %v5173 = vadd.f32 %v3673, %v5172
    %v5174 = vpop.f32.mrf.mxu0
    %v5175 = vadd.f32 %v3677, %v5174
    %v5176 = vpop.f32.mrf.mxu0
    %v5177 = vpop.f32.mrf.mxu0
    %5178 = vdwg.mxu0
    %5179 = vmatprep.subr.bf16.mxu0 %v4651
    %5180 = vmatpush1.bf16.msra.mxu0 %v4650
    %5181 = vmatprep.subr.bf16.mxu0 %v4643
    %5182 = vmatpush1.bf16.msra.mxu0 %v4642
    %5183 = vmatprep.subr.bf16.mxu0 %v4635
    %5184 = vmatpush1.bf16.msra.mxu0 %v4634
    %5185 = vmatprep.subr.bf16.mxu0 %v4627
    %5186 = vmatpush1.bf16.msra.mxu0 %v4626
    %5187 = vmatprep.subr.bf16.mxu0 %v4619
    %5188 = vmatpush1.bf16.msra.mxu0 %v4618
    %5189 = vmatprep.subr.bf16.mxu0 %v4611
    %5190 = vmatpush1.bf16.msra.mxu0 %v4610
    %5191 = vmatprep.subr.bf16.mxu0 %v4603
    %5192 = vmatpush1.bf16.msra.mxu0 %v4602
    %5193 = vmatprep.subr.bf16.mxu0 %v4595
    %5194 = vmatpush1.bf16.msra.mxu0 %v4594
    %5195 = vmatprep.subr.bf16.mxu0 %v4715
    %5196 = vmatpush2.bf16.msra.mxu0 %v4714
    %5197 = vmatprep.subr.bf16.mxu0 %v4707
    %5198 = vmatpush2.bf16.msra.mxu0 %v4706
    %5199 = vmatprep.subr.bf16.mxu0 %v4699
    %5200 = vmatpush2.bf16.msra.mxu0 %v4698
    %5201 = vmatprep.subr.bf16.mxu0 %v4691
    %5202 = vmatpush2.bf16.msra.mxu0 %v4690
    %5203 = vmatprep.subr.bf16.mxu0 %v4683
    %5204 = vmatpush2.bf16.msra.mxu0 %v4682
    %5205 = vmatprep.subr.bf16.mxu0 %v4675
    %5206 = vmatpush2.bf16.msra.mxu0 %v4674
    %5207 = vmatprep.subr.bf16.mxu0 %v4667
    %5208 = vmatpush2.bf16.msra.mxu0 %v4666
    %5209 = vmatprep.subr.bf16.mxu0 %v4659
    %5210 = vmatpush2.bf16.msra.mxu0 %v4658
    %5211 = vmatprep.mubr.bf16.mxu0 %v3395
    %5212 = vmatmul.mubr.bf16.gmra.mxu0 %v3394
    %v5213 = vpop.f32.mrf.mxu0
    %v5214 = vadd.f32 %v5173, %v5213
    %v5215 = vpop.f32.mrf.mxu0
    %v5216 = vadd.f32 %v5175, %v5215
    %v5217 = vpop.f32.mrf.mxu0
    %v5218 = vpop.f32.mrf.mxu0
    %5219 = vdwg.mxu0
    %5220 = vmatprep.subr.bf16.mxu0 %v4525
    %5221 = vmatpush1.bf16.msra.mxu0 %v4524
    %5222 = vmatprep.subr.bf16.mxu0 %v4517
    %5223 = vmatpush1.bf16.msra.mxu0 %v4516
    %5224 = vmatprep.subr.bf16.mxu0 %v4509
    %5225 = vmatpush1.bf16.msra.mxu0 %v4508
    %5226 = vmatprep.subr.bf16.mxu0 %v4501
    %5227 = vmatpush1.bf16.msra.mxu0 %v4500
    %5228 = vmatprep.subr.bf16.mxu0 %v4493
    %5229 = vmatpush1.bf16.msra.mxu0 %v4492
    %5230 = vmatprep.subr.bf16.mxu0 %v4485
    %5231 = vmatpush1.bf16.msra.mxu0 %v4484
    %5232 = vmatprep.subr.bf16.mxu0 %v4477
    %5233 = vmatpush1.bf16.msra.mxu0 %v4476
    %5234 = vmatprep.subr.bf16.mxu0 %v4469
    %5235 = vmatpush1.bf16.msra.mxu0 %v4468
    %5236 = vmatprep.subr.bf16.mxu0 %v4589
    %5237 = vmatpush2.bf16.msra.mxu0 %v4588
    %5238 = vmatprep.subr.bf16.mxu0 %v4581
    %5239 = vmatpush2.bf16.msra.mxu0 %v4580
    %5240 = vmatprep.subr.bf16.mxu0 %v4573
    %5241 = vmatpush2.bf16.msra.mxu0 %v4572
    %5242 = vmatprep.subr.bf16.mxu0 %v4565
    %5243 = vmatpush2.bf16.msra.mxu0 %v4564
    %5244 = vmatprep.subr.bf16.mxu0 %v4557
    %5245 = vmatpush2.bf16.msra.mxu0 %v4556
    %5246 = vmatprep.subr.bf16.mxu0 %v4549
    %5247 = vmatpush2.bf16.msra.mxu0 %v4548
    %5248 = vmatprep.subr.bf16.mxu0 %v4541
    %5249 = vmatpush2.bf16.msra.mxu0 %v4540
    %5250 = vmatprep.subr.bf16.mxu0 %v4533
    %5251 = vmatpush2.bf16.msra.mxu0 %v4532
    %5252 = vmatprep.mubr.bf16.mxu0 %v3393
    %5253 = vmatmul.mubr.bf16.gmra.mxu0 %v3392
    %v5254 = vpop.f32.mrf.mxu0
    %v5255 = vadd.f32 %v3681, %v5254
    %v5256 = vpop.f32.mrf.mxu0
    %v5257 = vadd.f32 %v3685, %v5256
    %v5258 = vpop.f32.mrf.mxu0
    %v5259 = vpop.f32.mrf.mxu0
    %5260 = vdwg.mxu0
    %5261 = vmatprep.subr.bf16.mxu0 %v4653
    %5262 = vmatpush1.bf16.msra.mxu0 %v4652
    %5263 = vmatprep.subr.bf16.mxu0 %v4645
    %5264 = vmatpush1.bf16.msra.mxu0 %v4644
    %5265 = vmatprep.subr.bf16.mxu0 %v4637
    %5266 = vmatpush1.bf16.msra.mxu0 %v4636
    %5267 = vmatprep.subr.bf16.mxu0 %v4629
    %5268 = vmatpush1.bf16.msra.mxu0 %v4628
    %5269 = vmatprep.subr.bf16.mxu0 %v4621
    %5270 = vmatpush1.bf16.msra.mxu0 %v4620
    %5271 = vmatprep.subr.bf16.mxu0 %v4613
    %5272 = vmatpush1.bf16.msra.mxu0 %v4612
    %5273 = vmatprep.subr.bf16.mxu0 %v4605
    %5274 = vmatpush1.bf16.msra.mxu0 %v4604
    %5275 = vmatprep.subr.bf16.mxu0 %v4597
    %5276 = vmatpush1.bf16.msra.mxu0 %v4596
    %5277 = vmatprep.subr.bf16.mxu0 %v4717
    %5278 = vmatpush2.bf16.msra.mxu0 %v4716
    %5279 = vmatprep.subr.bf16.mxu0 %v4709
    %5280 = vmatpush2.bf16.msra.mxu0 %v4708
    %5281 = vmatprep.subr.bf16.mxu0 %v4701
    %5282 = vmatpush2.bf16.msra.mxu0 %v4700
    %5283 = vmatprep.subr.bf16.mxu0 %v4693
    %5284 = vmatpush2.bf16.msra.mxu0 %v4692
    %5285 = vmatprep.subr.bf16.mxu0 %v4685
    %5286 = vmatpush2.bf16.msra.mxu0 %v4684
    %5287 = vmatprep.subr.bf16.mxu0 %v4677
    %5288 = vmatpush2.bf16.msra.mxu0 %v4676
    %5289 = vmatprep.subr.bf16.mxu0 %v4669
    %5290 = vmatpush2.bf16.msra.mxu0 %v4668
    %5291 = vmatprep.subr.bf16.mxu0 %v4661
    %5292 = vmatpush2.bf16.msra.mxu0 %v4660
    %5293 = vmatprep.mubr.bf16.mxu0 %v3395
    %5294 = vmatmul.mubr.bf16.gmra.mxu0 %v3394
    %v5295 = vpop.f32.mrf.mxu0
    %v5296 = vadd.f32 %v5255, %v5295
    %v5297 = vpop.f32.mrf.mxu0
    %v5298 = vadd.f32 %v5257, %v5297
    %v5299 = vpop.f32.mrf.mxu0
    %v5300 = vpop.f32.mrf.mxu0
    %5301 = vdwg.mxu0
    %s5302 = sld [smem:[#allocation18 + $0x4]]
    %vm5303 = vcmp.gt.f32.partialorder %v5050, 0.0
    %vm5304 = vcmp.gt.f32.partialorder %v5052, 0.0
    %vm5305 = vcmp.gt.f32.partialorder %v5132, 0.0
    %vm5306 = vcmp.gt.f32.partialorder %v5134, 0.0
    %v5307 = vstv %s5302
    %v5308 = vmul.f32 %v5307, %v5050
    %v5309 = vmul.f32 %v5307, %v5052
    %v5310 = vmul.f32 %v5307, %v5132
    %v5311 = vmul.f32 %v5307, %v5134
    %v5312 = vsel %vm5303, %v5050, %v5308
    %v5313 = vsel %vm5304, %v5052, %v5309
    %v5314 = vsel %vm5305, %v5132, %v5310
    %v5315 = vsel %vm5306, %v5134, %v5311
    %v5316 = vpack.c.bf16 %v5312, %v5312
    %v5317 = vpack.c.bf16 %v5313, %v5313
    %v5318 = vpack.c.bf16 %v5314, %v5314
    %v5319 = vpack.c.bf16 %v5315, %v5315
    %v5320 = vld [vmem:[#allocation15] sm:$0xff]
    %v5321 = vld [vmem:[#allocation15 + $0x8] sm:$0xff]
    %v5322 = vld [vmem:[#allocation15 + $0x10] sm:$0xff]
    %v5323 = vld [vmem:[#allocation15 + $0x18] sm:$0xff]
    %v5324 = vld [vmem:[#allocation15 + $0x20] sm:$0xff]
    %v5325 = vld [vmem:[#allocation15 + $0x28] sm:$0xff]
    %v5326 = vld [vmem:[#allocation15 + $0x30] sm:$0xff]
    %v5327 = vld [vmem:[#allocation15 + $0x38] sm:$0xff]
    %v5328 = vld [vmem:[#allocation15 + $0x40] sm:$0xff]
    %v5329 = vld [vmem:[#allocation15 + $0x48] sm:$0xff]
    %v5330 = vld [vmem:[#allocation15 + $0x50] sm:$0xff]
    %v5331 = vld [vmem:[#allocation15 + $0x58] sm:$0xff]
    %v5332 = vld [vmem:[#allocation15 + $0x60] sm:$0xff]
    %v5333 = vld [vmem:[#allocation15 + $0x68] sm:$0xff]
    %v5334 = vld [vmem:[#allocation15 + $0x70] sm:$0xff]
    %v5335 = vld [vmem:[#allocation15 + $0x78] sm:$0xff]
    %v5336 = vld [vmem:[#allocation15 + $0x80] sm:$0xff]
    %v5337 = vld [vmem:[#allocation15 + $0x88] sm:$0xff]
    %v5338 = vld [vmem:[#allocation15 + $0x90] sm:$0xff]
    %v5339 = vld [vmem:[#allocation15 + $0x98] sm:$0xff]
    %v5340 = vld [vmem:[#allocation15 + $0xa0] sm:$0xff]
    %v5341 = vld [vmem:[#allocation15 + $0xa8] sm:$0xff]
    %v5342 = vld [vmem:[#allocation15 + $0xb0] sm:$0xff]
    %v5343 = vld [vmem:[#allocation15 + $0xb8] sm:$0xff]
    %v5344 = vld [vmem:[#allocation15 + $0xc0] sm:$0xff]
    %v5345 = vld [vmem:[#allocation15 + $0xc8] sm:$0xff]
    %v5346 = vld [vmem:[#allocation15 + $0xd0] sm:$0xff]
    %v5347 = vld [vmem:[#allocation15 + $0xd8] sm:$0xff]
    %v5348 = vld [vmem:[#allocation15 + $0xe0] sm:$0xff]
    %v5349 = vld [vmem:[#allocation15 + $0xe8] sm:$0xff]
    %v5350 = vld [vmem:[#allocation15 + $0xf0] sm:$0xff]
    %v5351 = vld [vmem:[#allocation15 + $0xf8] sm:$0xff]
    %v5352 = vld [vmem:[#allocation15 + $0x100] sm:$0xff]
    %v5353 = vld [vmem:[#allocation15 + $0x108] sm:$0xff]
    %v5354 = vld [vmem:[#allocation15 + $0x110] sm:$0xff]
    %v5355 = vld [vmem:[#allocation15 + $0x118] sm:$0xff]
    %v5356 = vld [vmem:[#allocation15 + $0x120] sm:$0xff]
    %v5357 = vld [vmem:[#allocation15 + $0x128] sm:$0xff]
    %v5358 = vld [vmem:[#allocation15 + $0x130] sm:$0xff]
    %v5359 = vld [vmem:[#allocation15 + $0x138] sm:$0xff]
    %v5360 = vld [vmem:[#allocation15 + $0x140] sm:$0xff]
    %v5361 = vld [vmem:[#allocation15 + $0x148] sm:$0xff]
    %v5362 = vld [vmem:[#allocation15 + $0x150] sm:$0xff]
    %v5363 = vld [vmem:[#allocation15 + $0x158] sm:$0xff]
    %v5364 = vld [vmem:[#allocation15 + $0x160] sm:$0xff]
    %v5365 = vld [vmem:[#allocation15 + $0x168] sm:$0xff]
    %v5366 = vld [vmem:[#allocation15 + $0x170] sm:$0xff]
    %v5367 = vld [vmem:[#allocation15 + $0x178] sm:$0xff]
    %v5368 = vld [vmem:[#allocation15 + $0x180] sm:$0xff]
    %v5369 = vld [vmem:[#allocation15 + $0x188] sm:$0xff]
    %v5370 = vld [vmem:[#allocation15 + $0x190] sm:$0xff]
    %v5371 = vld [vmem:[#allocation15 + $0x198] sm:$0xff]
    %v5372 = vld [vmem:[#allocation15 + $0x1a0] sm:$0xff]
    %v5373 = vld [vmem:[#allocation15 + $0x1a8] sm:$0xff]
    %v5374 = vld [vmem:[#allocation15 + $0x1b0] sm:$0xff]
    %v5375 = vld [vmem:[#allocation15 + $0x1b8] sm:$0xff]
    %v5376 = vld [vmem:[#allocation15 + $0x1c0] sm:$0xff]
    %v5377 = vld [vmem:[#allocation15 + $0x1c8] sm:$0xff]
    %v5378 = vld [vmem:[#allocation15 + $0x1d0] sm:$0xff]
    %v5379 = vld [vmem:[#allocation15 + $0x1d8] sm:$0xff]
    %v5380 = vld [vmem:[#allocation15 + $0x1e0] sm:$0xff]
    %v5381 = vld [vmem:[#allocation15 + $0x1e8] sm:$0xff]
    %v5382 = vld [vmem:[#allocation15 + $0x1f0] sm:$0xff]
    %v5383 = vld [vmem:[#allocation15 + $0x1f8] sm:$0xff]
    %v5384 = vld [vmem:[#allocation15 + $0x200] sm:$0xff]
    %v5385 = vld [vmem:[#allocation15 + $0x208] sm:$0xff]
    %v5386 = vld [vmem:[#allocation15 + $0x210] sm:$0xff]
    %v5387 = vld [vmem:[#allocation15 + $0x218] sm:$0xff]
    %v5388 = vld [vmem:[#allocation15 + $0x220] sm:$0xff]
    %v5389 = vld [vmem:[#allocation15 + $0x228] sm:$0xff]
    %v5390 = vld [vmem:[#allocation15 + $0x230] sm:$0xff]
    %v5391 = vld [vmem:[#allocation15 + $0x238] sm:$0xff]
    %v5392 = vld [vmem:[#allocation15 + $0x240] sm:$0xff]
    %v5393 = vld [vmem:[#allocation15 + $0x248] sm:$0xff]
    %v5394 = vld [vmem:[#allocation15 + $0x250] sm:$0xff]
    %v5395 = vld [vmem:[#allocation15 + $0x258] sm:$0xff]
    %v5396 = vld [vmem:[#allocation15 + $0x260] sm:$0xff]
    %v5397 = vld [vmem:[#allocation15 + $0x268] sm:$0xff]
    %v5398 = vld [vmem:[#allocation15 + $0x270] sm:$0xff]
    %v5399 = vld [vmem:[#allocation15 + $0x278] sm:$0xff]
    %v5400 = vld [vmem:[#allocation15 + $0x280] sm:$0xff]
    %v5401 = vld [vmem:[#allocation15 + $0x288] sm:$0xff]
    %v5402 = vld [vmem:[#allocation15 + $0x290] sm:$0xff]
    %v5403 = vld [vmem:[#allocation15 + $0x298] sm:$0xff]
    %v5404 = vld [vmem:[#allocation15 + $0x2a0] sm:$0xff]
    %v5405 = vld [vmem:[#allocation15 + $0x2a8] sm:$0xff]
    %v5406 = vld [vmem:[#allocation15 + $0x2b0] sm:$0xff]
    %v5407 = vld [vmem:[#allocation15 + $0x2b8] sm:$0xff]
    %v5408 = vld [vmem:[#allocation15 + $0x2c0] sm:$0xff]
    %v5409 = vld [vmem:[#allocation15 + $0x2c8] sm:$0xff]
    %v5410 = vld [vmem:[#allocation15 + $0x2d0] sm:$0xff]
    %v5411 = vld [vmem:[#allocation15 + $0x2d8] sm:$0xff]
    %v5412 = vld [vmem:[#allocation15 + $0x2e0] sm:$0xff]
    %v5413 = vld [vmem:[#allocation15 + $0x2e8] sm:$0xff]
    %v5414 = vld [vmem:[#allocation15 + $0x2f0] sm:$0xff]
    %v5415 = vld [vmem:[#allocation15 + $0x2f8] sm:$0xff]
    %v5416 = vld [vmem:[#allocation15 + $0x300] sm:$0xff]
    %v5417 = vld [vmem:[#allocation15 + $0x308] sm:$0xff]
    %v5418 = vld [vmem:[#allocation15 + $0x310] sm:$0xff]
    %v5419 = vld [vmem:[#allocation15 + $0x318] sm:$0xff]
    %v5420 = vld [vmem:[#allocation15 + $0x320] sm:$0xff]
    %v5421 = vld [vmem:[#allocation15 + $0x328] sm:$0xff]
    %v5422 = vld [vmem:[#allocation15 + $0x330] sm:$0xff]
    %v5423 = vld [vmem:[#allocation15 + $0x338] sm:$0xff]
    %v5424 = vld [vmem:[#allocation15 + $0x340] sm:$0xff]
    %v5425 = vld [vmem:[#allocation15 + $0x348] sm:$0xff]
    %v5426 = vld [vmem:[#allocation15 + $0x350] sm:$0xff]
    %v5427 = vld [vmem:[#allocation15 + $0x358] sm:$0xff]
    %v5428 = vld [vmem:[#allocation15 + $0x360] sm:$0xff]
    %v5429 = vld [vmem:[#allocation15 + $0x368] sm:$0xff]
    %v5430 = vld [vmem:[#allocation15 + $0x370] sm:$0xff]
    %v5431 = vld [vmem:[#allocation15 + $0x378] sm:$0xff]
    %v5432 = vld [vmem:[#allocation15 + $0x380] sm:$0xff]
    %v5433 = vld [vmem:[#allocation15 + $0x388] sm:$0xff]
    %v5434 = vld [vmem:[#allocation15 + $0x390] sm:$0xff]
    %v5435 = vld [vmem:[#allocation15 + $0x398] sm:$0xff]
    %v5436 = vld [vmem:[#allocation15 + $0x3a0] sm:$0xff]
    %v5437 = vld [vmem:[#allocation15 + $0x3a8] sm:$0xff]
    %v5438 = vld [vmem:[#allocation15 + $0x3b0] sm:$0xff]
    %v5439 = vld [vmem:[#allocation15 + $0x3b8] sm:$0xff]
    %v5440 = vld [vmem:[#allocation15 + $0x3c0] sm:$0xff]
    %v5441 = vld [vmem:[#allocation15 + $0x3c8] sm:$0xff]
    %v5442 = vld [vmem:[#allocation15 + $0x3d0] sm:$0xff]
    %v5443 = vld [vmem:[#allocation15 + $0x3d8] sm:$0xff]
    %v5444 = vld [vmem:[#allocation15 + $0x3e0] sm:$0xff]
    %v5445 = vld [vmem:[#allocation15 + $0x3e8] sm:$0xff]
    %v5446 = vld [vmem:[#allocation15 + $0x3f0] sm:$0xff]
    %v5447 = vld [vmem:[#allocation15 + $0x3f8] sm:$0xff]
    %v5448 = vld [vmem:[#allocation15 + $0x400] sm:$0xff]
    %v5449 = vld [vmem:[#allocation15 + $0x408] sm:$0xff]
    %v5450 = vld [vmem:[#allocation15 + $0x410] sm:$0xff]
    %v5451 = vld [vmem:[#allocation15 + $0x418] sm:$0xff]
    %v5452 = vld [vmem:[#allocation15 + $0x420] sm:$0xff]
    %v5453 = vld [vmem:[#allocation15 + $0x428] sm:$0xff]
    %v5454 = vld [vmem:[#allocation15 + $0x430] sm:$0xff]
    %v5455 = vld [vmem:[#allocation15 + $0x438] sm:$0xff]
    %v5456 = vld [vmem:[#allocation15 + $0x440] sm:$0xff]
    %v5457 = vld [vmem:[#allocation15 + $0x448] sm:$0xff]
    %v5458 = vld [vmem:[#allocation15 + $0x450] sm:$0xff]
    %v5459 = vld [vmem:[#allocation15 + $0x458] sm:$0xff]
    %v5460 = vld [vmem:[#allocation15 + $0x460] sm:$0xff]
    %v5461 = vld [vmem:[#allocation15 + $0x468] sm:$0xff]
    %v5462 = vld [vmem:[#allocation15 + $0x470] sm:$0xff]
    %v5463 = vld [vmem:[#allocation15 + $0x478] sm:$0xff]
    %v5464 = vld [vmem:[#allocation15 + $0x480] sm:$0xff]
    %v5465 = vld [vmem:[#allocation15 + $0x488] sm:$0xff]
    %v5466 = vld [vmem:[#allocation15 + $0x490] sm:$0xff]
    %v5467 = vld [vmem:[#allocation15 + $0x498] sm:$0xff]
    %v5468 = vld [vmem:[#allocation15 + $0x4a0] sm:$0xff]
    %v5469 = vld [vmem:[#allocation15 + $0x4a8] sm:$0xff]
    %v5470 = vld [vmem:[#allocation15 + $0x4b0] sm:$0xff]
    %v5471 = vld [vmem:[#allocation15 + $0x4b8] sm:$0xff]
    %v5472 = vld [vmem:[#allocation15 + $0x4c0] sm:$0xff]
    %v5473 = vld [vmem:[#allocation15 + $0x4c8] sm:$0xff]
    %v5474 = vld [vmem:[#allocation15 + $0x4d0] sm:$0xff]
    %v5475 = vld [vmem:[#allocation15 + $0x4d8] sm:$0xff]
    %v5476 = vld [vmem:[#allocation15 + $0x4e0] sm:$0xff]
    %v5477 = vld [vmem:[#allocation15 + $0x4e8] sm:$0xff]
    %v5478 = vld [vmem:[#allocation15 + $0x4f0] sm:$0xff]
    %v5479 = vld [vmem:[#allocation15 + $0x4f8] sm:$0xff]
    %v5480 = vld [vmem:[#allocation15 + $0x500] sm:$0xff]
    %v5481 = vld [vmem:[#allocation15 + $0x508] sm:$0xff]
    %v5482 = vld [vmem:[#allocation15 + $0x510] sm:$0xff]
    %v5483 = vld [vmem:[#allocation15 + $0x518] sm:$0xff]
    %v5484 = vld [vmem:[#allocation15 + $0x520] sm:$0xff]
    %v5485 = vld [vmem:[#allocation15 + $0x528] sm:$0xff]
    %v5486 = vld [vmem:[#allocation15 + $0x530] sm:$0xff]
    %v5487 = vld [vmem:[#allocation15 + $0x538] sm:$0xff]
    %v5488 = vld [vmem:[#allocation15 + $0x540] sm:$0xff]
    %v5489 = vld [vmem:[#allocation15 + $0x548] sm:$0xff]
    %v5490 = vld [vmem:[#allocation15 + $0x550] sm:$0xff]
    %v5491 = vld [vmem:[#allocation15 + $0x558] sm:$0xff]
    %v5492 = vld [vmem:[#allocation15 + $0x560] sm:$0xff]
    %v5493 = vld [vmem:[#allocation15 + $0x568] sm:$0xff]
    %v5494 = vld [vmem:[#allocation15 + $0x570] sm:$0xff]
    %v5495 = vld [vmem:[#allocation15 + $0x578] sm:$0xff]
    %v5496 = vld [vmem:[#allocation15 + $0x580] sm:$0xff]
    %v5497 = vld [vmem:[#allocation15 + $0x588] sm:$0xff]
    %v5498 = vld [vmem:[#allocation15 + $0x590] sm:$0xff]
    %v5499 = vld [vmem:[#allocation15 + $0x598] sm:$0xff]
    %v5500 = vld [vmem:[#allocation15 + $0x5a0] sm:$0xff]
    %v5501 = vld [vmem:[#allocation15 + $0x5a8] sm:$0xff]
    %v5502 = vld [vmem:[#allocation15 + $0x5b0] sm:$0xff]
    %v5503 = vld [vmem:[#allocation15 + $0x5b8] sm:$0xff]
    %v5504 = vld [vmem:[#allocation15 + $0x5c0] sm:$0xff]
    %v5505 = vld [vmem:[#allocation15 + $0x5c8] sm:$0xff]
    %v5506 = vld [vmem:[#allocation15 + $0x5d0] sm:$0xff]
    %v5507 = vld [vmem:[#allocation15 + $0x5d8] sm:$0xff]
    %v5508 = vld [vmem:[#allocation15 + $0x5e0] sm:$0xff]
    %v5509 = vld [vmem:[#allocation15 + $0x5e8] sm:$0xff]
    %v5510 = vld [vmem:[#allocation15 + $0x5f0] sm:$0xff]
    %v5511 = vld [vmem:[#allocation15 + $0x5f8] sm:$0xff]
    %v5512 = vld [vmem:[#allocation15 + $0x600] sm:$0xff]
    %v5513 = vld [vmem:[#allocation15 + $0x608] sm:$0xff]
    %v5514 = vld [vmem:[#allocation15 + $0x610] sm:$0xff]
    %v5515 = vld [vmem:[#allocation15 + $0x618] sm:$0xff]
    %v5516 = vld [vmem:[#allocation15 + $0x620] sm:$0xff]
    %v5517 = vld [vmem:[#allocation15 + $0x628] sm:$0xff]
    %v5518 = vld [vmem:[#allocation15 + $0x630] sm:$0xff]
    %v5519 = vld [vmem:[#allocation15 + $0x638] sm:$0xff]
    %v5520 = vld [vmem:[#allocation15 + $0x640] sm:$0xff]
    %v5521 = vld [vmem:[#allocation15 + $0x648] sm:$0xff]
    %v5522 = vld [vmem:[#allocation15 + $0x650] sm:$0xff]
    %v5523 = vld [vmem:[#allocation15 + $0x658] sm:$0xff]
    %v5524 = vld [vmem:[#allocation15 + $0x660] sm:$0xff]
    %v5525 = vld [vmem:[#allocation15 + $0x668] sm:$0xff]
    %v5526 = vld [vmem:[#allocation15 + $0x670] sm:$0xff]
    %v5527 = vld [vmem:[#allocation15 + $0x678] sm:$0xff]
    %v5528 = vld [vmem:[#allocation15 + $0x680] sm:$0xff]
    %v5529 = vld [vmem:[#allocation15 + $0x688] sm:$0xff]
    %v5530 = vld [vmem:[#allocation15 + $0x690] sm:$0xff]
    %v5531 = vld [vmem:[#allocation15 + $0x698] sm:$0xff]
    %v5532 = vld [vmem:[#allocation15 + $0x6a0] sm:$0xff]
    %v5533 = vld [vmem:[#allocation15 + $0x6a8] sm:$0xff]
    %v5534 = vld [vmem:[#allocation15 + $0x6b0] sm:$0xff]
    %v5535 = vld [vmem:[#allocation15 + $0x6b8] sm:$0xff]
    %v5536 = vld [vmem:[#allocation15 + $0x6c0] sm:$0xff]
    %v5537 = vld [vmem:[#allocation15 + $0x6c8] sm:$0xff]
    %v5538 = vld [vmem:[#allocation15 + $0x6d0] sm:$0xff]
    %v5539 = vld [vmem:[#allocation15 + $0x6d8] sm:$0xff]
    %v5540 = vld [vmem:[#allocation15 + $0x6e0] sm:$0xff]
    %v5541 = vld [vmem:[#allocation15 + $0x6e8] sm:$0xff]
    %v5542 = vld [vmem:[#allocation15 + $0x6f0] sm:$0xff]
    %v5543 = vld [vmem:[#allocation15 + $0x6f8] sm:$0xff]
    %v5544 = vld [vmem:[#allocation15 + $0x700] sm:$0xff]
    %v5545 = vld [vmem:[#allocation15 + $0x708] sm:$0xff]
    %v5546 = vld [vmem:[#allocation15 + $0x710] sm:$0xff]
    %v5547 = vld [vmem:[#allocation15 + $0x718] sm:$0xff]
    %v5548 = vld [vmem:[#allocation15 + $0x720] sm:$0xff]
    %v5549 = vld [vmem:[#allocation15 + $0x728] sm:$0xff]
    %v5550 = vld [vmem:[#allocation15 + $0x730] sm:$0xff]
    %v5551 = vld [vmem:[#allocation15 + $0x738] sm:$0xff]
    %v5552 = vld [vmem:[#allocation15 + $0x740] sm:$0xff]
    %v5553 = vld [vmem:[#allocation15 + $0x748] sm:$0xff]
    %v5554 = vld [vmem:[#allocation15 + $0x750] sm:$0xff]
    %v5555 = vld [vmem:[#allocation15 + $0x758] sm:$0xff]
    %v5556 = vld [vmem:[#allocation15 + $0x760] sm:$0xff]
    %v5557 = vld [vmem:[#allocation15 + $0x768] sm:$0xff]
    %v5558 = vld [vmem:[#allocation15 + $0x770] sm:$0xff]
    %v5559 = vld [vmem:[#allocation15 + $0x778] sm:$0xff]
    %v5560 = vld [vmem:[#allocation15 + $0x780] sm:$0xff]
    %v5561 = vld [vmem:[#allocation15 + $0x788] sm:$0xff]
    %v5562 = vld [vmem:[#allocation15 + $0x790] sm:$0xff]
    %v5563 = vld [vmem:[#allocation15 + $0x798] sm:$0xff]
    %v5564 = vld [vmem:[#allocation15 + $0x7a0] sm:$0xff]
    %v5565 = vld [vmem:[#allocation15 + $0x7a8] sm:$0xff]
    %v5566 = vld [vmem:[#allocation15 + $0x7b0] sm:$0xff]
    %v5567 = vld [vmem:[#allocation15 + $0x7b8] sm:$0xff]
    %v5568 = vld [vmem:[#allocation15 + $0x7c0] sm:$0xff]
    %v5569 = vld [vmem:[#allocation15 + $0x7c8] sm:$0xff]
    %v5570 = vld [vmem:[#allocation15 + $0x7d0] sm:$0xff]
    %v5571 = vld [vmem:[#allocation15 + $0x7d8] sm:$0xff]
    %v5572 = vld [vmem:[#allocation15 + $0x7e0] sm:$0xff]
    %v5573 = vld [vmem:[#allocation15 + $0x7e8] sm:$0xff]
    %v5574 = vld [vmem:[#allocation15 + $0x7f0] sm:$0xff]
    %v5575 = vld [vmem:[#allocation15 + $0x7f8] sm:$0xff]
    %v5576 = vld [vmem:[#allocation17] ss:$2 sm:$0xff]
    %v5578 = vlaneseq
    %v5579 = vshrl.u32 %v5578, 7
    %v5580 = vsub.s32 0, %v5579
    %v5581 = vrot.slane %v5576, %v5580
    %v5582 = vlaneseq
    %v5583 = vshrl.u32 %v5582, 7
    %v5584 = vsub.s32 1, %v5583
    %v5585 = vrot.slane %v5576, %v5584
    %v5586 = vlaneseq
    %v5587 = vshrl.u32 %v5586, 7
    %v5588 = vsub.s32 2, %v5587
    %v5589 = vrot.slane %v5576, %v5588
    %v5590 = vlaneseq
    %v5591 = vshrl.u32 %v5590, 7
    %v5592 = vsub.s32 3, %v5591
    %v5593 = vrot.slane %v5576, %v5592
    %v5594 = vlaneseq
    %v5595 = vshrl.u32 %v5594, 7
    %v5596 = vsub.s32 4, %v5595
    %v5597 = vrot.slane %v5576, %v5596
    %v5598 = vlaneseq
    %v5599 = vshrl.u32 %v5598, 7
    %v5600 = vsub.s32 5, %v5599
    %v5601 = vrot.slane %v5576, %v5600
    %v5602 = vlaneseq
    %v5603 = vshrl.u32 %v5602, 7
    %v5604 = vsub.s32 6, %v5603
    %v5605 = vrot.slane %v5576, %v5604
    %v5606 = vlaneseq
    %v5607 = vshrl.u32 %v5606, 7
    %v5608 = vsub.s32 7, %v5607
    %v5609 = vrot.slane %v5576, %v5608
    %v5874 = vunpack.c.l.b16 %v5320
    %v5875 = vunpack.c.h.b16 %v5320
    %v5876 = vunpack.c.l.b16 %v5321
    %v5877 = vunpack.c.h.b16 %v5321
    %v5878 = vunpack.c.l.b16 %v5322
    %v5879 = vunpack.c.h.b16 %v5322
    %v5880 = vunpack.c.l.b16 %v5323
    %v5881 = vunpack.c.h.b16 %v5323
    %v5882 = vunpack.c.l.b16 %v5324
    %v5883 = vunpack.c.h.b16 %v5324
    %v5884 = vunpack.c.l.b16 %v5325
    %v5885 = vunpack.c.h.b16 %v5325
    %v5886 = vunpack.c.l.b16 %v5326
    %v5887 = vunpack.c.h.b16 %v5326
    %v5888 = vunpack.c.l.b16 %v5327
    %v5889 = vunpack.c.h.b16 %v5327
    %v5890 = vunpack.c.l.b16 %v5328
    %v5891 = vunpack.c.h.b16 %v5328
    %v5892 = vunpack.c.l.b16 %v5329
    %v5893 = vunpack.c.h.b16 %v5329
    %v5894 = vunpack.c.l.b16 %v5330
    %v5895 = vunpack.c.h.b16 %v5330
    %v5896 = vunpack.c.l.b16 %v5331
    %v5897 = vunpack.c.h.b16 %v5331
    %v5898 = vunpack.c.l.b16 %v5332
    %v5899 = vunpack.c.h.b16 %v5332
    %v5900 = vunpack.c.l.b16 %v5333
    %v5901 = vunpack.c.h.b16 %v5333
    %v5902 = vunpack.c.l.b16 %v5334
    %v5903 = vunpack.c.h.b16 %v5334
    %v5904 = vunpack.c.l.b16 %v5335
    %v5905 = vunpack.c.h.b16 %v5335
    %v5906 = vunpack.c.l.b16 %v5336
    %v5907 = vunpack.c.h.b16 %v5336
    %v5908 = vunpack.c.l.b16 %v5337
    %v5909 = vunpack.c.h.b16 %v5337
    %v5910 = vunpack.c.l.b16 %v5338
    %v5911 = vunpack.c.h.b16 %v5338
    %v5912 = vunpack.c.l.b16 %v5339
    %v5913 = vunpack.c.h.b16 %v5339
    %v5914 = vunpack.c.l.b16 %v5340
    %v5915 = vunpack.c.h.b16 %v5340
    %v5916 = vunpack.c.l.b16 %v5341
    %v5917 = vunpack.c.h.b16 %v5341
    %v5918 = vunpack.c.l.b16 %v5342
    %v5919 = vunpack.c.h.b16 %v5342
    %v5920 = vunpack.c.l.b16 %v5343
    %v5921 = vunpack.c.h.b16 %v5343
    %v5922 = vunpack.c.l.b16 %v5344
    %v5923 = vunpack.c.h.b16 %v5344
    %v5924 = vunpack.c.l.b16 %v5345
    %v5925 = vunpack.c.h.b16 %v5345
    %v5926 = vunpack.c.l.b16 %v5346
    %v5927 = vunpack.c.h.b16 %v5346
    %v5928 = vunpack.c.l.b16 %v5347
    %v5929 = vunpack.c.h.b16 %v5347
    %v5930 = vunpack.c.l.b16 %v5348
    %v5931 = vunpack.c.h.b16 %v5348
    %v5932 = vunpack.c.l.b16 %v5349
    %v5933 = vunpack.c.h.b16 %v5349
    %v5934 = vunpack.c.l.b16 %v5350
    %v5935 = vunpack.c.h.b16 %v5350
    %v5936 = vunpack.c.l.b16 %v5351
    %v5937 = vunpack.c.h.b16 %v5351
    %v5938 = vunpack.c.l.b16 %v5352
    %v5939 = vunpack.c.h.b16 %v5352
    %v5940 = vunpack.c.l.b16 %v5353
    %v5941 = vunpack.c.h.b16 %v5353
    %v5942 = vunpack.c.l.b16 %v5354
    %v5943 = vunpack.c.h.b16 %v5354
    %v5944 = vunpack.c.l.b16 %v5355
    %v5945 = vunpack.c.h.b16 %v5355
    %v5946 = vunpack.c.l.b16 %v5356
    %v5947 = vunpack.c.h.b16 %v5356
    %v5948 = vunpack.c.l.b16 %v5357
    %v5949 = vunpack.c.h.b16 %v5357
    %v5950 = vunpack.c.l.b16 %v5358
    %v5951 = vunpack.c.h.b16 %v5358
    %v5952 = vunpack.c.l.b16 %v5359
    %v5953 = vunpack.c.h.b16 %v5359
    %v5954 = vunpack.c.l.b16 %v5360
    %v5955 = vunpack.c.h.b16 %v5360
    %v5956 = vunpack.c.l.b16 %v5361
    %v5957 = vunpack.c.h.b16 %v5361
    %v5958 = vunpack.c.l.b16 %v5362
    %v5959 = vunpack.c.h.b16 %v5362
    %v5960 = vunpack.c.l.b16 %v5363
    %v5961 = vunpack.c.h.b16 %v5363
    %v5962 = vunpack.c.l.b16 %v5364
    %v5963 = vunpack.c.h.b16 %v5364
    %v5964 = vunpack.c.l.b16 %v5365
    %v5965 = vunpack.c.h.b16 %v5365
    %v5966 = vunpack.c.l.b16 %v5366
    %v5967 = vunpack.c.h.b16 %v5366
    %v5968 = vunpack.c.l.b16 %v5367
    %v5969 = vunpack.c.h.b16 %v5367
    %v5970 = vunpack.c.l.b16 %v5368
    %v5971 = vunpack.c.h.b16 %v5368
    %v5972 = vunpack.c.l.b16 %v5369
    %v5973 = vunpack.c.h.b16 %v5369
    %v5974 = vunpack.c.l.b16 %v5370
    %v5975 = vunpack.c.h.b16 %v5370
    %v5976 = vunpack.c.l.b16 %v5371
    %v5977 = vunpack.c.h.b16 %v5371
    %v5978 = vunpack.c.l.b16 %v5372
    %v5979 = vunpack.c.h.b16 %v5372
    %v5980 = vunpack.c.l.b16 %v5373
    %v5981 = vunpack.c.h.b16 %v5373
    %v5982 = vunpack.c.l.b16 %v5374
    %v5983 = vunpack.c.h.b16 %v5374
    %v5984 = vunpack.c.l.b16 %v5375
    %v5985 = vunpack.c.h.b16 %v5375
    %v5986 = vunpack.c.l.b16 %v5376
    %v5987 = vunpack.c.h.b16 %v5376
    %v5988 = vunpack.c.l.b16 %v5377
    %v5989 = vunpack.c.h.b16 %v5377
    %v5990 = vunpack.c.l.b16 %v5378
    %v5991 = vunpack.c.h.b16 %v5378
    %v5992 = vunpack.c.l.b16 %v5379
    %v5993 = vunpack.c.h.b16 %v5379
    %v5994 = vunpack.c.l.b16 %v5380
    %v5995 = vunpack.c.h.b16 %v5380
    %v5996 = vunpack.c.l.b16 %v5381
    %v5997 = vunpack.c.h.b16 %v5381
    %v5998 = vunpack.c.l.b16 %v5382
    %v5999 = vunpack.c.h.b16 %v5382
    %v6000 = vunpack.c.l.b16 %v5383
    %v6001 = vunpack.c.h.b16 %v5383
    %v6002 = vunpack.c.l.b16 %v5384
    %v6003 = vunpack.c.h.b16 %v5384
    %v6004 = vunpack.c.l.b16 %v5385
    %v6005 = vunpack.c.h.b16 %v5385
    %v6006 = vunpack.c.l.b16 %v5386
    %v6007 = vunpack.c.h.b16 %v5386
    %v6008 = vunpack.c.l.b16 %v5387
    %v6009 = vunpack.c.h.b16 %v5387
    %v6010 = vunpack.c.l.b16 %v5388
    %v6011 = vunpack.c.h.b16 %v5388
    %v6012 = vunpack.c.l.b16 %v5389
    %v6013 = vunpack.c.h.b16 %v5389
    %v6014 = vunpack.c.l.b16 %v5390
    %v6015 = vunpack.c.h.b16 %v5390
    %v6016 = vunpack.c.l.b16 %v5391
    %v6017 = vunpack.c.h.b16 %v5391
    %v6018 = vunpack.c.l.b16 %v5392
    %v6019 = vunpack.c.h.b16 %v5392
    %v6020 = vunpack.c.l.b16 %v5393
    %v6021 = vunpack.c.h.b16 %v5393
    %v6022 = vunpack.c.l.b16 %v5394
    %v6023 = vunpack.c.h.b16 %v5394
    %v6024 = vunpack.c.l.b16 %v5395
    %v6025 = vunpack.c.h.b16 %v5395
    %v6026 = vunpack.c.l.b16 %v5396
    %v6027 = vunpack.c.h.b16 %v5396
    %v6028 = vunpack.c.l.b16 %v5397
    %v6029 = vunpack.c.h.b16 %v5397
    %v6030 = vunpack.c.l.b16 %v5398
    %v6031 = vunpack.c.h.b16 %v5398
    %v6032 = vunpack.c.l.b16 %v5399
    %v6033 = vunpack.c.h.b16 %v5399
    %v6034 = vunpack.c.l.b16 %v5400
    %v6035 = vunpack.c.h.b16 %v5400
    %v6036 = vunpack.c.l.b16 %v5401
    %v6037 = vunpack.c.h.b16 %v5401
    %v6038 = vunpack.c.l.b16 %v5402
    %v6039 = vunpack.c.h.b16 %v5402
    %v6040 = vunpack.c.l.b16 %v5403
    %v6041 = vunpack.c.h.b16 %v5403
    %v6042 = vunpack.c.l.b16 %v5404
    %v6043 = vunpack.c.h.b16 %v5404
    %v6044 = vunpack.c.l.b16 %v5405
    %v6045 = vunpack.c.h.b16 %v5405
    %v6046 = vunpack.c.l.b16 %v5406
    %v6047 = vunpack.c.h.b16 %v5406
    %v6048 = vunpack.c.l.b16 %v5407
    %v6049 = vunpack.c.h.b16 %v5407
    %v6050 = vunpack.c.l.b16 %v5408
    %v6051 = vunpack.c.h.b16 %v5408
    %v6052 = vunpack.c.l.b16 %v5409
    %v6053 = vunpack.c.h.b16 %v5409
    %v6054 = vunpack.c.l.b16 %v5410
    %v6055 = vunpack.c.h.b16 %v5410
    %v6056 = vunpack.c.l.b16 %v5411
    %v6057 = vunpack.c.h.b16 %v5411
    %v6058 = vunpack.c.l.b16 %v5412
    %v6059 = vunpack.c.h.b16 %v5412
    %v6060 = vunpack.c.l.b16 %v5413
    %v6061 = vunpack.c.h.b16 %v5413
    %v6062 = vunpack.c.l.b16 %v5414
    %v6063 = vunpack.c.h.b16 %v5414
    %v6064 = vunpack.c.l.b16 %v5415
    %v6065 = vunpack.c.h.b16 %v5415
    %v6066 = vunpack.c.l.b16 %v5416
    %v6067 = vunpack.c.h.b16 %v5416
    %v6068 = vunpack.c.l.b16 %v5417
    %v6069 = vunpack.c.h.b16 %v5417
    %v6070 = vunpack.c.l.b16 %v5418
    %v6071 = vunpack.c.h.b16 %v5418
    %v6072 = vunpack.c.l.b16 %v5419
    %v6073 = vunpack.c.h.b16 %v5419
    %v6074 = vunpack.c.l.b16 %v5420
    %v6075 = vunpack.c.h.b16 %v5420
    %v6076 = vunpack.c.l.b16 %v5421
    %v6077 = vunpack.c.h.b16 %v5421
    %v6078 = vunpack.c.l.b16 %v5422
    %v6079 = vunpack.c.h.b16 %v5422
    %v6080 = vunpack.c.l.b16 %v5423
    %v6081 = vunpack.c.h.b16 %v5423
    %v6082 = vunpack.c.l.b16 %v5424
    %v6083 = vunpack.c.h.b16 %v5424
    %v6084 = vunpack.c.l.b16 %v5425
    %v6085 = vunpack.c.h.b16 %v5425
    %v6086 = vunpack.c.l.b16 %v5426
    %v6087 = vunpack.c.h.b16 %v5426
    %v6088 = vunpack.c.l.b16 %v5427
    %v6089 = vunpack.c.h.b16 %v5427
    %v6090 = vunpack.c.l.b16 %v5428
    %v6091 = vunpack.c.h.b16 %v5428
    %v6092 = vunpack.c.l.b16 %v5429
    %v6093 = vunpack.c.h.b16 %v5429
    %v6094 = vunpack.c.l.b16 %v5430
    %v6095 = vunpack.c.h.b16 %v5430
    %v6096 = vunpack.c.l.b16 %v5431
    %v6097 = vunpack.c.h.b16 %v5431
    %v6098 = vunpack.c.l.b16 %v5432
    %v6099 = vunpack.c.h.b16 %v5432
    %v6100 = vunpack.c.l.b16 %v5433
    %v6101 = vunpack.c.h.b16 %v5433
    %v6102 = vunpack.c.l.b16 %v5434
    %v6103 = vunpack.c.h.b16 %v5434
    %v6104 = vunpack.c.l.b16 %v5435
    %v6105 = vunpack.c.h.b16 %v5435
    %v6106 = vunpack.c.l.b16 %v5436
    %v6107 = vunpack.c.h.b16 %v5436
    %v6108 = vunpack.c.l.b16 %v5437
    %v6109 = vunpack.c.h.b16 %v5437
    %v6110 = vunpack.c.l.b16 %v5438
    %v6111 = vunpack.c.h.b16 %v5438
    %v6112 = vunpack.c.l.b16 %v5439
    %v6113 = vunpack.c.h.b16 %v5439
    %v6114 = vunpack.c.l.b16 %v5440
    %v6115 = vunpack.c.h.b16 %v5440
    %v6116 = vunpack.c.l.b16 %v5441
    %v6117 = vunpack.c.h.b16 %v5441
    %v6118 = vunpack.c.l.b16 %v5442
    %v6119 = vunpack.c.h.b16 %v5442
    %v6120 = vunpack.c.l.b16 %v5443
    %v6121 = vunpack.c.h.b16 %v5443
    %v6122 = vunpack.c.l.b16 %v5444
    %v6123 = vunpack.c.h.b16 %v5444
    %v6124 = vunpack.c.l.b16 %v5445
    %v6125 = vunpack.c.h.b16 %v5445
    %v6126 = vunpack.c.l.b16 %v5446
    %v6127 = vunpack.c.h.b16 %v5446
    %v6128 = vunpack.c.l.b16 %v5447
    %v6129 = vunpack.c.h.b16 %v5447
    %v6130 = vunpack.c.l.b16 %v5448
    %v6131 = vunpack.c.h.b16 %v5448
    %v6132 = vunpack.c.l.b16 %v5449
    %v6133 = vunpack.c.h.b16 %v5449
    %v6134 = vunpack.c.l.b16 %v5450
    %v6135 = vunpack.c.h.b16 %v5450
    %v6136 = vunpack.c.l.b16 %v5451
    %v6137 = vunpack.c.h.b16 %v5451
    %v6138 = vunpack.c.l.b16 %v5452
    %v6139 = vunpack.c.h.b16 %v5452
    %v6140 = vunpack.c.l.b16 %v5453
    %v6141 = vunpack.c.h.b16 %v5453
    %v6142 = vunpack.c.l.b16 %v5454
    %v6143 = vunpack.c.h.b16 %v5454
    %v6144 = vunpack.c.l.b16 %v5455
    %v6145 = vunpack.c.h.b16 %v5455
    %v6146 = vunpack.c.l.b16 %v5456
    %v6147 = vunpack.c.h.b16 %v5456
    %v6148 = vunpack.c.l.b16 %v5457
    %v6149 = vunpack.c.h.b16 %v5457
    %v6150 = vunpack.c.l.b16 %v5458
    %v6151 = vunpack.c.h.b16 %v5458
    %v6152 = vunpack.c.l.b16 %v5459
    %v6153 = vunpack.c.h.b16 %v5459
    %v6154 = vunpack.c.l.b16 %v5460
    %v6155 = vunpack.c.h.b16 %v5460
    %v6156 = vunpack.c.l.b16 %v5461
    %v6157 = vunpack.c.h.b16 %v5461
    %v6158 = vunpack.c.l.b16 %v5462
    %v6159 = vunpack.c.h.b16 %v5462
    %v6160 = vunpack.c.l.b16 %v5463
    %v6161 = vunpack.c.h.b16 %v5463
    %v6162 = vunpack.c.l.b16 %v5464
    %v6163 = vunpack.c.h.b16 %v5464
    %v6164 = vunpack.c.l.b16 %v5465
    %v6165 = vunpack.c.h.b16 %v5465
    %v6166 = vunpack.c.l.b16 %v5466
    %v6167 = vunpack.c.h.b16 %v5466
    %v6168 = vunpack.c.l.b16 %v5467
    %v6169 = vunpack.c.h.b16 %v5467
    %v6170 = vunpack.c.l.b16 %v5468
    %v6171 = vunpack.c.h.b16 %v5468
    %v6172 = vunpack.c.l.b16 %v5469
    %v6173 = vunpack.c.h.b16 %v5469
    %v6174 = vunpack.c.l.b16 %v5470
    %v6175 = vunpack.c.h.b16 %v5470
    %v6176 = vunpack.c.l.b16 %v5471
    %v6177 = vunpack.c.h.b16 %v5471
    %v6178 = vunpack.c.l.b16 %v5472
    %v6179 = vunpack.c.h.b16 %v5472
    %v6180 = vunpack.c.l.b16 %v5473
    %v6181 = vunpack.c.h.b16 %v5473
    %v6182 = vunpack.c.l.b16 %v5474
    %v6183 = vunpack.c.h.b16 %v5474
    %v6184 = vunpack.c.l.b16 %v5475
    %v6185 = vunpack.c.h.b16 %v5475
    %v6186 = vunpack.c.l.b16 %v5476
    %v6187 = vunpack.c.h.b16 %v5476
    %v6188 = vunpack.c.l.b16 %v5477
    %v6189 = vunpack.c.h.b16 %v5477
    %v6190 = vunpack.c.l.b16 %v5478
    %v6191 = vunpack.c.h.b16 %v5478
    %v6192 = vunpack.c.l.b16 %v5479
    %v6193 = vunpack.c.h.b16 %v5479
    %v6194 = vunpack.c.l.b16 %v5480
    %v6195 = vunpack.c.h.b16 %v5480
    %v6196 = vunpack.c.l.b16 %v5481
    %v6197 = vunpack.c.h.b16 %v5481
    %v6198 = vunpack.c.l.b16 %v5482
    %v6199 = vunpack.c.h.b16 %v5482
    %v6200 = vunpack.c.l.b16 %v5483
    %v6201 = vunpack.c.h.b16 %v5483
    %v6202 = vunpack.c.l.b16 %v5484
    %v6203 = vunpack.c.h.b16 %v5484
    %v6204 = vunpack.c.l.b16 %v5485
    %v6205 = vunpack.c.h.b16 %v5485
    %v6206 = vunpack.c.l.b16 %v5486
    %v6207 = vunpack.c.h.b16 %v5486
    %v6208 = vunpack.c.l.b16 %v5487
    %v6209 = vunpack.c.h.b16 %v5487
    %v6210 = vunpack.c.l.b16 %v5488
    %v6211 = vunpack.c.h.b16 %v5488
    %v6212 = vunpack.c.l.b16 %v5489
    %v6213 = vunpack.c.h.b16 %v5489
    %v6214 = vunpack.c.l.b16 %v5490
    %v6215 = vunpack.c.h.b16 %v5490
    %v6216 = vunpack.c.l.b16 %v5491
    %v6217 = vunpack.c.h.b16 %v5491
    %v6218 = vunpack.c.l.b16 %v5492
    %v6219 = vunpack.c.h.b16 %v5492
    %v6220 = vunpack.c.l.b16 %v5493
    %v6221 = vunpack.c.h.b16 %v5493
    %v6222 = vunpack.c.l.b16 %v5494
    %v6223 = vunpack.c.h.b16 %v5494
    %v6224 = vunpack.c.l.b16 %v5495
    %v6225 = vunpack.c.h.b16 %v5495
    %v6226 = vunpack.c.l.b16 %v5496
    %v6227 = vunpack.c.h.b16 %v5496
    %v6228 = vunpack.c.l.b16 %v5497
    %v6229 = vunpack.c.h.b16 %v5497
    %v6230 = vunpack.c.l.b16 %v5498
    %v6231 = vunpack.c.h.b16 %v5498
    %v6232 = vunpack.c.l.b16 %v5499
    %v6233 = vunpack.c.h.b16 %v5499
    %v6234 = vunpack.c.l.b16 %v5500
    %v6235 = vunpack.c.h.b16 %v5500
    %v6236 = vunpack.c.l.b16 %v5501
    %v6237 = vunpack.c.h.b16 %v5501
    %v6238 = vunpack.c.l.b16 %v5502
    %v6239 = vunpack.c.h.b16 %v5502
    %v6240 = vunpack.c.l.b16 %v5503
    %v6241 = vunpack.c.h.b16 %v5503
    %v6242 = vunpack.c.l.b16 %v5504
    %v6243 = vunpack.c.h.b16 %v5504
    %v6244 = vunpack.c.l.b16 %v5505
    %v6245 = vunpack.c.h.b16 %v5505
    %v6246 = vunpack.c.l.b16 %v5506
    %v6247 = vunpack.c.h.b16 %v5506
    %v6248 = vunpack.c.l.b16 %v5507
    %v6249 = vunpack.c.h.b16 %v5507
    %v6250 = vunpack.c.l.b16 %v5508
    %v6251 = vunpack.c.h.b16 %v5508
    %v6252 = vunpack.c.l.b16 %v5509
    %v6253 = vunpack.c.h.b16 %v5509
    %v6254 = vunpack.c.l.b16 %v5510
    %v6255 = vunpack.c.h.b16 %v5510
    %v6256 = vunpack.c.l.b16 %v5511
    %v6257 = vunpack.c.h.b16 %v5511
    %v6258 = vunpack.c.l.b16 %v5512
    %v6259 = vunpack.c.h.b16 %v5512
    %v6260 = vunpack.c.l.b16 %v5513
    %v6261 = vunpack.c.h.b16 %v5513
    %v6262 = vunpack.c.l.b16 %v5514
    %v6263 = vunpack.c.h.b16 %v5514
    %v6264 = vunpack.c.l.b16 %v5515
    %v6265 = vunpack.c.h.b16 %v5515
    %v6266 = vunpack.c.l.b16 %v5516
    %v6267 = vunpack.c.h.b16 %v5516
    %v6268 = vunpack.c.l.b16 %v5517
    %v6269 = vunpack.c.h.b16 %v5517
    %v6270 = vunpack.c.l.b16 %v5518
    %v6271 = vunpack.c.h.b16 %v5518
    %v6272 = vunpack.c.l.b16 %v5519
    %v6273 = vunpack.c.h.b16 %v5519
    %v6274 = vunpack.c.l.b16 %v5520
    %v6275 = vunpack.c.h.b16 %v5520
    %v6276 = vunpack.c.l.b16 %v5521
    %v6277 = vunpack.c.h.b16 %v5521
    %v6278 = vunpack.c.l.b16 %v5522
    %v6279 = vunpack.c.h.b16 %v5522
    %v6280 = vunpack.c.l.b16 %v5523
    %v6281 = vunpack.c.h.b16 %v5523
    %v6282 = vunpack.c.l.b16 %v5524
    %v6283 = vunpack.c.h.b16 %v5524
    %v6284 = vunpack.c.l.b16 %v5525
    %v6285 = vunpack.c.h.b16 %v5525
    %v6286 = vunpack.c.l.b16 %v5526
    %v6287 = vunpack.c.h.b16 %v5526
    %v6288 = vunpack.c.l.b16 %v5527
    %v6289 = vunpack.c.h.b16 %v5527
    %v6290 = vunpack.c.l.b16 %v5528
    %v6291 = vunpack.c.h.b16 %v5528
    %v6292 = vunpack.c.l.b16 %v5529
    %v6293 = vunpack.c.h.b16 %v5529
    %v6294 = vunpack.c.l.b16 %v5530
    %v6295 = vunpack.c.h.b16 %v5530
    %v6296 = vunpack.c.l.b16 %v5531
    %v6297 = vunpack.c.h.b16 %v5531
    %v6298 = vunpack.c.l.b16 %v5532
    %v6299 = vunpack.c.h.b16 %v5532
    %v6300 = vunpack.c.l.b16 %v5533
    %v6301 = vunpack.c.h.b16 %v5533
    %v6302 = vunpack.c.l.b16 %v5534
    %v6303 = vunpack.c.h.b16 %v5534
    %v6304 = vunpack.c.l.b16 %v5535
    %v6305 = vunpack.c.h.b16 %v5535
    %v6306 = vunpack.c.l.b16 %v5536
    %v6307 = vunpack.c.h.b16 %v5536
    %v6308 = vunpack.c.l.b16 %v5537
    %v6309 = vunpack.c.h.b16 %v5537
    %v6310 = vunpack.c.l.b16 %v5538
    %v6311 = vunpack.c.h.b16 %v5538
    %v6312 = vunpack.c.l.b16 %v5539
    %v6313 = vunpack.c.h.b16 %v5539
    %v6314 = vunpack.c.l.b16 %v5540
    %v6315 = vunpack.c.h.b16 %v5540
    %v6316 = vunpack.c.l.b16 %v5541
    %v6317 = vunpack.c.h.b16 %v5541
    %v6318 = vunpack.c.l.b16 %v5542
    %v6319 = vunpack.c.h.b16 %v5542
    %v6320 = vunpack.c.l.b16 %v5543
    %v6321 = vunpack.c.h.b16 %v5543
    %v6322 = vunpack.c.l.b16 %v5544
    %v6323 = vunpack.c.h.b16 %v5544
    %v6324 = vunpack.c.l.b16 %v5545
    %v6325 = vunpack.c.h.b16 %v5545
    %v6326 = vunpack.c.l.b16 %v5546
    %v6327 = vunpack.c.h.b16 %v5546
    %v6328 = vunpack.c.l.b16 %v5547
    %v6329 = vunpack.c.h.b16 %v5547
    %v6330 = vunpack.c.l.b16 %v5548
    %v6331 = vunpack.c.h.b16 %v5548
    %v6332 = vunpack.c.l.b16 %v5549
    %v6333 = vunpack.c.h.b16 %v5549
    %v6334 = vunpack.c.l.b16 %v5550
    %v6335 = vunpack.c.h.b16 %v5550
    %v6336 = vunpack.c.l.b16 %v5551
    %v6337 = vunpack.c.h.b16 %v5551
    %v6338 = vunpack.c.l.b16 %v5552
    %v6339 = vunpack.c.h.b16 %v5552
    %v6340 = vunpack.c.l.b16 %v5553
    %v6341 = vunpack.c.h.b16 %v5553
    %v6342 = vunpack.c.l.b16 %v5554
    %v6343 = vunpack.c.h.b16 %v5554
    %v6344 = vunpack.c.l.b16 %v5555
    %v6345 = vunpack.c.h.b16 %v5555
    %v6346 = vunpack.c.l.b16 %v5556
    %v6347 = vunpack.c.h.b16 %v5556
    %v6348 = vunpack.c.l.b16 %v5557
    %v6349 = vunpack.c.h.b16 %v5557
    %v6350 = vunpack.c.l.b16 %v5558
    %v6351 = vunpack.c.h.b16 %v5558
    %v6352 = vunpack.c.l.b16 %v5559
    %v6353 = vunpack.c.h.b16 %v5559
    %v6354 = vunpack.c.l.b16 %v5560
    %v6355 = vunpack.c.h.b16 %v5560
    %v6356 = vunpack.c.l.b16 %v5561
    %v6357 = vunpack.c.h.b16 %v5561
    %v6358 = vunpack.c.l.b16 %v5562
    %v6359 = vunpack.c.h.b16 %v5562
    %v6360 = vunpack.c.l.b16 %v5563
    %v6361 = vunpack.c.h.b16 %v5563
    %v6362 = vunpack.c.l.b16 %v5564
    %v6363 = vunpack.c.h.b16 %v5564
    %v6364 = vunpack.c.l.b16 %v5565
    %v6365 = vunpack.c.h.b16 %v5565
    %v6366 = vunpack.c.l.b16 %v5566
    %v6367 = vunpack.c.h.b16 %v5566
    %v6368 = vunpack.c.l.b16 %v5567
    %v6369 = vunpack.c.h.b16 %v5567
    %v6370 = vunpack.c.l.b16 %v5568
    %v6371 = vunpack.c.h.b16 %v5568
    %v6372 = vunpack.c.l.b16 %v5569
    %v6373 = vunpack.c.h.b16 %v5569
    %v6374 = vunpack.c.l.b16 %v5570
    %v6375 = vunpack.c.h.b16 %v5570
    %v6376 = vunpack.c.l.b16 %v5571
    %v6377 = vunpack.c.h.b16 %v5571
    %v6378 = vunpack.c.l.b16 %v5572
    %v6379 = vunpack.c.h.b16 %v5572
    %v6380 = vunpack.c.l.b16 %v5573
    %v6381 = vunpack.c.h.b16 %v5573
    %v6382 = vunpack.c.l.b16 %v5574
    %v6383 = vunpack.c.h.b16 %v5574
    %v6384 = vunpack.c.l.b16 %v5575
    %v6385 = vunpack.c.h.b16 %v5575
    %v6386 = vpack.c.b16 %v5882, %v5874
    %v6387 = vpack.c.b16 %v5883, %v5875
    %v6388 = vpack.c.b16 %v5884, %v5876
    %v6389 = vpack.c.b16 %v5885, %v5877
    %v6390 = vpack.c.b16 %v5886, %v5878
    %v6391 = vpack.c.b16 %v5887, %v5879
    %v6392 = vpack.c.b16 %v5888, %v5880
    %v6393 = vpack.c.b16 %v5889, %v5881
    %v6394 = vpack.c.b16 %v5898, %v5890
    %v6395 = vpack.c.b16 %v5899, %v5891
    %v6396 = vpack.c.b16 %v5900, %v5892
    %v6397 = vpack.c.b16 %v5901, %v5893
    %v6398 = vpack.c.b16 %v5902, %v5894
    %v6399 = vpack.c.b16 %v5903, %v5895
    %v6400 = vpack.c.b16 %v5904, %v5896
    %v6401 = vpack.c.b16 %v5905, %v5897
    %v6402 = vpack.c.b16 %v5914, %v5906
    %v6403 = vpack.c.b16 %v5915, %v5907
    %v6404 = vpack.c.b16 %v5916, %v5908
    %v6405 = vpack.c.b16 %v5917, %v5909
    %v6406 = vpack.c.b16 %v5918, %v5910
    %v6407 = vpack.c.b16 %v5919, %v5911
    %v6408 = vpack.c.b16 %v5920, %v5912
    %v6409 = vpack.c.b16 %v5921, %v5913
    %v6410 = vpack.c.b16 %v5930, %v5922
    %v6411 = vpack.c.b16 %v5931, %v5923
    %v6412 = vpack.c.b16 %v5932, %v5924
    %v6413 = vpack.c.b16 %v5933, %v5925
    %v6414 = vpack.c.b16 %v5934, %v5926
    %v6415 = vpack.c.b16 %v5935, %v5927
    %v6416 = vpack.c.b16 %v5936, %v5928
    %v6417 = vpack.c.b16 %v5937, %v5929
    %v6418 = vpack.c.b16 %v5946, %v5938
    %v6419 = vpack.c.b16 %v5947, %v5939
    %v6420 = vpack.c.b16 %v5948, %v5940
    %v6421 = vpack.c.b16 %v5949, %v5941
    %v6422 = vpack.c.b16 %v5950, %v5942
    %v6423 = vpack.c.b16 %v5951, %v5943
    %v6424 = vpack.c.b16 %v5952, %v5944
    %v6425 = vpack.c.b16 %v5953, %v5945
    %v6426 = vpack.c.b16 %v5962, %v5954
    %v6427 = vpack.c.b16 %v5963, %v5955
    %v6428 = vpack.c.b16 %v5964, %v5956
    %v6429 = vpack.c.b16 %v5965, %v5957
    %v6430 = vpack.c.b16 %v5966, %v5958
    %v6431 = vpack.c.b16 %v5967, %v5959
    %v6432 = vpack.c.b16 %v5968, %v5960
    %v6433 = vpack.c.b16 %v5969, %v5961
    %v6434 = vpack.c.b16 %v5978, %v5970
    %v6435 = vpack.c.b16 %v5979, %v5971
    %v6436 = vpack.c.b16 %v5980, %v5972
    %v6437 = vpack.c.b16 %v5981, %v5973
    %v6438 = vpack.c.b16 %v5982, %v5974
    %v6439 = vpack.c.b16 %v5983, %v5975
    %v6440 = vpack.c.b16 %v5984, %v5976
    %v6441 = vpack.c.b16 %v5985, %v5977
    %v6442 = vpack.c.b16 %v5994, %v5986
    %v6443 = vpack.c.b16 %v5995, %v5987
    %v6444 = vpack.c.b16 %v5996, %v5988
    %v6445 = vpack.c.b16 %v5997, %v5989
    %v6446 = vpack.c.b16 %v5998, %v5990
    %v6447 = vpack.c.b16 %v5999, %v5991
    %v6448 = vpack.c.b16 %v6000, %v5992
    %v6449 = vpack.c.b16 %v6001, %v5993
    %v6450 = vpack.c.b16 %v6010, %v6002
    %v6451 = vpack.c.b16 %v6011, %v6003
    %v6452 = vpack.c.b16 %v6012, %v6004
    %v6453 = vpack.c.b16 %v6013, %v6005
    %v6454 = vpack.c.b16 %v6014, %v6006
    %v6455 = vpack.c.b16 %v6015, %v6007
    %v6456 = vpack.c.b16 %v6016, %v6008
    %v6457 = vpack.c.b16 %v6017, %v6009
    %v6458 = vpack.c.b16 %v6026, %v6018
    %v6459 = vpack.c.b16 %v6027, %v6019
    %v6460 = vpack.c.b16 %v6028, %v6020
    %v6461 = vpack.c.b16 %v6029, %v6021
    %v6462 = vpack.c.b16 %v6030, %v6022
    %v6463 = vpack.c.b16 %v6031, %v6023
    %v6464 = vpack.c.b16 %v6032, %v6024
    %v6465 = vpack.c.b16 %v6033, %v6025
    %v6466 = vpack.c.b16 %v6042, %v6034
    %v6467 = vpack.c.b16 %v6043, %v6035
    %v6468 = vpack.c.b16 %v6044, %v6036
    %v6469 = vpack.c.b16 %v6045, %v6037
    %v6470 = vpack.c.b16 %v6046, %v6038
    %v6471 = vpack.c.b16 %v6047, %v6039
    %v6472 = vpack.c.b16 %v6048, %v6040
    %v6473 = vpack.c.b16 %v6049, %v6041
    %v6474 = vpack.c.b16 %v6058, %v6050
    %v6475 = vpack.c.b16 %v6059, %v6051
    %v6476 = vpack.c.b16 %v6060, %v6052
    %v6477 = vpack.c.b16 %v6061, %v6053
    %v6478 = vpack.c.b16 %v6062, %v6054
    %v6479 = vpack.c.b16 %v6063, %v6055
    %v6480 = vpack.c.b16 %v6064, %v6056
    %v6481 = vpack.c.b16 %v6065, %v6057
    %v6482 = vpack.c.b16 %v6074, %v6066
    %v6483 = vpack.c.b16 %v6075, %v6067
    %v6484 = vpack.c.b16 %v6076, %v6068
    %v6485 = vpack.c.b16 %v6077, %v6069
    %v6486 = vpack.c.b16 %v6078, %v6070
    %v6487 = vpack.c.b16 %v6079, %v6071
    %v6488 = vpack.c.b16 %v6080, %v6072
    %v6489 = vpack.c.b16 %v6081, %v6073
    %v6490 = vpack.c.b16 %v6090, %v6082
    %v6491 = vpack.c.b16 %v6091, %v6083
    %v6492 = vpack.c.b16 %v6092, %v6084
    %v6493 = vpack.c.b16 %v6093, %v6085
    %v6494 = vpack.c.b16 %v6094, %v6086
    %v6495 = vpack.c.b16 %v6095, %v6087
    %v6496 = vpack.c.b16 %v6096, %v6088
    %v6497 = vpack.c.b16 %v6097, %v6089
    %v6498 = vpack.c.b16 %v6106, %v6098
    %v6499 = vpack.c.b16 %v6107, %v6099
    %v6500 = vpack.c.b16 %v6108, %v6100
    %v6501 = vpack.c.b16 %v6109, %v6101
    %v6502 = vpack.c.b16 %v6110, %v6102
    %v6503 = vpack.c.b16 %v6111, %v6103
    %v6504 = vpack.c.b16 %v6112, %v6104
    %v6505 = vpack.c.b16 %v6113, %v6105
    %v6506 = vpack.c.b16 %v6122, %v6114
    %v6507 = vpack.c.b16 %v6123, %v6115
    %v6508 = vpack.c.b16 %v6124, %v6116
    %v6509 = vpack.c.b16 %v6125, %v6117
    %v6510 = vpack.c.b16 %v6126, %v6118
    %v6511 = vpack.c.b16 %v6127, %v6119
    %v6512 = vpack.c.b16 %v6128, %v6120
    %v6513 = vpack.c.b16 %v6129, %v6121
    %v6514 = vpack.c.b16 %v6138, %v6130
    %v6515 = vpack.c.b16 %v6139, %v6131
    %v6516 = vpack.c.b16 %v6140, %v6132
    %v6517 = vpack.c.b16 %v6141, %v6133
    %v6518 = vpack.c.b16 %v6142, %v6134
    %v6519 = vpack.c.b16 %v6143, %v6135
    %v6520 = vpack.c.b16 %v6144, %v6136
    %v6521 = vpack.c.b16 %v6145, %v6137
    %v6522 = vpack.c.b16 %v6154, %v6146
    %v6523 = vpack.c.b16 %v6155, %v6147
    %v6524 = vpack.c.b16 %v6156, %v6148
    %v6525 = vpack.c.b16 %v6157, %v6149
    %v6526 = vpack.c.b16 %v6158, %v6150
    %v6527 = vpack.c.b16 %v6159, %v6151
    %v6528 = vpack.c.b16 %v6160, %v6152
    %v6529 = vpack.c.b16 %v6161, %v6153
    %v6530 = vpack.c.b16 %v6170, %v6162
    %v6531 = vpack.c.b16 %v6171, %v6163
    %v6532 = vpack.c.b16 %v6172, %v6164
    %v6533 = vpack.c.b16 %v6173, %v6165
    %v6534 = vpack.c.b16 %v6174, %v6166
    %v6535 = vpack.c.b16 %v6175, %v6167
    %v6536 = vpack.c.b16 %v6176, %v6168
    %v6537 = vpack.c.b16 %v6177, %v6169
    %v6538 = vpack.c.b16 %v6186, %v6178
    %v6539 = vpack.c.b16 %v6187, %v6179
    %v6540 = vpack.c.b16 %v6188, %v6180
    %v6541 = vpack.c.b16 %v6189, %v6181
    %v6542 = vpack.c.b16 %v6190, %v6182
    %v6543 = vpack.c.b16 %v6191, %v6183
    %v6544 = vpack.c.b16 %v6192, %v6184
    %v6545 = vpack.c.b16 %v6193, %v6185
    %v6546 = vpack.c.b16 %v6202, %v6194
    %v6547 = vpack.c.b16 %v6203, %v6195
    %v6548 = vpack.c.b16 %v6204, %v6196
    %v6549 = vpack.c.b16 %v6205, %v6197
    %v6550 = vpack.c.b16 %v6206, %v6198
    %v6551 = vpack.c.b16 %v6207, %v6199
    %v6552 = vpack.c.b16 %v6208, %v6200
    %v6553 = vpack.c.b16 %v6209, %v6201
    %v6554 = vpack.c.b16 %v6218, %v6210
    %v6555 = vpack.c.b16 %v6219, %v6211
    %v6556 = vpack.c.b16 %v6220, %v6212
    %v6557 = vpack.c.b16 %v6221, %v6213
    %v6558 = vpack.c.b16 %v6222, %v6214
    %v6559 = vpack.c.b16 %v6223, %v6215
    %v6560 = vpack.c.b16 %v6224, %v6216
    %v6561 = vpack.c.b16 %v6225, %v6217
    %v6562 = vpack.c.b16 %v6234, %v6226
    %v6563 = vpack.c.b16 %v6235, %v6227
    %v6564 = vpack.c.b16 %v6236, %v6228
    %v6565 = vpack.c.b16 %v6237, %v6229
    %v6566 = vpack.c.b16 %v6238, %v6230
    %v6567 = vpack.c.b16 %v6239, %v6231
    %v6568 = vpack.c.b16 %v6240, %v6232
    %v6569 = vpack.c.b16 %v6241, %v6233
    %v6570 = vpack.c.b16 %v6250, %v6242
    %v6571 = vpack.c.b16 %v6251, %v6243
    %v6572 = vpack.c.b16 %v6252, %v6244
    %v6573 = vpack.c.b16 %v6253, %v6245
    %v6574 = vpack.c.b16 %v6254, %v6246
    %v6575 = vpack.c.b16 %v6255, %v6247
    %v6576 = vpack.c.b16 %v6256, %v6248
    %v6577 = vpack.c.b16 %v6257, %v6249
    %v6578 = vpack.c.b16 %v6266, %v6258
    %v6579 = vpack.c.b16 %v6267, %v6259
    %v6580 = vpack.c.b16 %v6268, %v6260
    %v6581 = vpack.c.b16 %v6269, %v6261
    %v6582 = vpack.c.b16 %v6270, %v6262
    %v6583 = vpack.c.b16 %v6271, %v6263
    %v6584 = vpack.c.b16 %v6272, %v6264
    %v6585 = vpack.c.b16 %v6273, %v6265
    %v6586 = vpack.c.b16 %v6282, %v6274
    %v6587 = vpack.c.b16 %v6283, %v6275
    %v6588 = vpack.c.b16 %v6284, %v6276
    %v6589 = vpack.c.b16 %v6285, %v6277
    %v6590 = vpack.c.b16 %v6286, %v6278
    %v6591 = vpack.c.b16 %v6287, %v6279
    %v6592 = vpack.c.b16 %v6288, %v6280
    %v6593 = vpack.c.b16 %v6289, %v6281
    %v6594 = vpack.c.b16 %v6298, %v6290
    %v6595 = vpack.c.b16 %v6299, %v6291
    %v6596 = vpack.c.b16 %v6300, %v6292
    %v6597 = vpack.c.b16 %v6301, %v6293
    %v6598 = vpack.c.b16 %v6302, %v6294
    %v6599 = vpack.c.b16 %v6303, %v6295
    %v6600 = vpack.c.b16 %v6304, %v6296
    %v6601 = vpack.c.b16 %v6305, %v6297
    %v6602 = vpack.c.b16 %v6314, %v6306
    %v6603 = vpack.c.b16 %v6315, %v6307
    %v6604 = vpack.c.b16 %v6316, %v6308
    %v6605 = vpack.c.b16 %v6317, %v6309
    %v6606 = vpack.c.b16 %v6318, %v6310
    %v6607 = vpack.c.b16 %v6319, %v6311
    %v6608 = vpack.c.b16 %v6320, %v6312
    %v6609 = vpack.c.b16 %v6321, %v6313
    %v6610 = vpack.c.b16 %v6330, %v6322
    %v6611 = vpack.c.b16 %v6331, %v6323
    %v6612 = vpack.c.b16 %v6332, %v6324
    %v6613 = vpack.c.b16 %v6333, %v6325
    %v6614 = vpack.c.b16 %v6334, %v6326
    %v6615 = vpack.c.b16 %v6335, %v6327
    %v6616 = vpack.c.b16 %v6336, %v6328
    %v6617 = vpack.c.b16 %v6337, %v6329
    %v6618 = vpack.c.b16 %v6346, %v6338
    %v6619 = vpack.c.b16 %v6347, %v6339
    %v6620 = vpack.c.b16 %v6348, %v6340
    %v6621 = vpack.c.b16 %v6349, %v6341
    %v6622 = vpack.c.b16 %v6350, %v6342
    %v6623 = vpack.c.b16 %v6351, %v6343
    %v6624 = vpack.c.b16 %v6352, %v6344
    %v6625 = vpack.c.b16 %v6353, %v6345
    %v6626 = vpack.c.b16 %v6362, %v6354
    %v6627 = vpack.c.b16 %v6363, %v6355
    %v6628 = vpack.c.b16 %v6364, %v6356
    %v6629 = vpack.c.b16 %v6365, %v6357
    %v6630 = vpack.c.b16 %v6366, %v6358
    %v6631 = vpack.c.b16 %v6367, %v6359
    %v6632 = vpack.c.b16 %v6368, %v6360
    %v6633 = vpack.c.b16 %v6369, %v6361
    %v6634 = vpack.c.b16 %v6378, %v6370
    %v6635 = vpack.c.b16 %v6379, %v6371
    %v6636 = vpack.c.b16 %v6380, %v6372
    %v6637 = vpack.c.b16 %v6381, %v6373
    %v6638 = vpack.c.b16 %v6382, %v6374
    %v6639 = vpack.c.b16 %v6383, %v6375
    %v6640 = vpack.c.b16 %v6384, %v6376
    %v6641 = vpack.c.b16 %v6385, %v6377
    %6898 = vmatprep.subr.bf16.mxu0 %v6443
    %6899 = vmatpush1.bf16.msra.mxu0 %v6442
    %6900 = vmatprep.subr.bf16.mxu0 %v6435
    %6901 = vmatpush1.bf16.msra.mxu0 %v6434
    %6902 = vmatprep.subr.bf16.mxu0 %v6427
    %6903 = vmatpush1.bf16.msra.mxu0 %v6426
    %6904 = vmatprep.subr.bf16.mxu0 %v6419
    %6905 = vmatpush1.bf16.msra.mxu0 %v6418
    %6906 = vmatprep.subr.bf16.mxu0 %v6411
    %6907 = vmatpush1.bf16.msra.mxu0 %v6410
    %6908 = vmatprep.subr.bf16.mxu0 %v6403
    %6909 = vmatpush1.bf16.msra.mxu0 %v6402
    %6910 = vmatprep.subr.bf16.mxu0 %v6395
    %6911 = vmatpush1.bf16.msra.mxu0 %v6394
    %6912 = vmatprep.subr.bf16.mxu0 %v6387
    %6913 = vmatpush1.bf16.msra.mxu0 %v6386
    %6914 = vmatprep.subr.bf16.mxu0 %v6507
    %6915 = vmatpush2.bf16.msra.mxu0 %v6506
    %6916 = vmatprep.subr.bf16.mxu0 %v6499
    %6917 = vmatpush2.bf16.msra.mxu0 %v6498
    %6918 = vmatprep.subr.bf16.mxu0 %v6491
    %6919 = vmatpush2.bf16.msra.mxu0 %v6490
    %6920 = vmatprep.subr.bf16.mxu0 %v6483
    %6921 = vmatpush2.bf16.msra.mxu0 %v6482
    %6922 = vmatprep.subr.bf16.mxu0 %v6475
    %6923 = vmatpush2.bf16.msra.mxu0 %v6474
    %6924 = vmatprep.subr.bf16.mxu0 %v6467
    %6925 = vmatpush2.bf16.msra.mxu0 %v6466
    %6926 = vmatprep.subr.bf16.mxu0 %v6459
    %6927 = vmatpush2.bf16.msra.mxu0 %v6458
    %6928 = vmatprep.subr.bf16.mxu0 %v6451
    %6929 = vmatpush2.bf16.msra.mxu0 %v6450
    %6930 = vmatprep.mubr.bf16.mxu0 %v5317
    %6931 = vmatmul.mubr.bf16.gmra.mxu0 %v5316
    %v6932 = vpop.f32.mrf.mxu0
    %v6933 = vadd.f32 %v5581, %v6932
    %v6934 = vpop.f32.mrf.mxu0
    %v6935 = vadd.f32 %v5585, %v6934
    %v6936 = vpop.f32.mrf.mxu0
    %v6937 = vpop.f32.mrf.mxu0
    %6938 = vdwg.mxu0
    %6939 = vmatprep.subr.bf16.mxu0 %v6571
    %6940 = vmatpush1.bf16.msra.mxu0 %v6570
    %6941 = vmatprep.subr.bf16.mxu0 %v6563
    %6942 = vmatpush1.bf16.msra.mxu0 %v6562
    %6943 = vmatprep.subr.bf16.mxu0 %v6555
    %6944 = vmatpush1.bf16.msra.mxu0 %v6554
    %6945 = vmatprep.subr.bf16.mxu0 %v6547
    %6946 = vmatpush1.bf16.msra.mxu0 %v6546
    %6947 = vmatprep.subr.bf16.mxu0 %v6539
    %6948 = vmatpush1.bf16.msra.mxu0 %v6538
    %6949 = vmatprep.subr.bf16.mxu0 %v6531
    %6950 = vmatpush1.bf16.msra.mxu0 %v6530
    %6951 = vmatprep.subr.bf16.mxu0 %v6523
    %6952 = vmatpush1.bf16.msra.mxu0 %v6522
    %6953 = vmatprep.subr.bf16.mxu0 %v6515
    %6954 = vmatpush1.bf16.msra.mxu0 %v6514
    %6955 = vmatprep.subr.bf16.mxu0 %v6635
    %6956 = vmatpush2.bf16.msra.mxu0 %v6634
    %6957 = vmatprep.subr.bf16.mxu0 %v6627
    %6958 = vmatpush2.bf16.msra.mxu0 %v6626
    %6959 = vmatprep.subr.bf16.mxu0 %v6619
    %6960 = vmatpush2.bf16.msra.mxu0 %v6618
    %6961 = vmatprep.subr.bf16.mxu0 %v6611
    %6962 = vmatpush2.bf16.msra.mxu0 %v6610
    %6963 = vmatprep.subr.bf16.mxu0 %v6603
    %6964 = vmatpush2.bf16.msra.mxu0 %v6602
    %6965 = vmatprep.subr.bf16.mxu0 %v6595
    %6966 = vmatpush2.bf16.msra.mxu0 %v6594
    %6967 = vmatprep.subr.bf16.mxu0 %v6587
    %6968 = vmatpush2.bf16.msra.mxu0 %v6586
    %6969 = vmatprep.subr.bf16.mxu0 %v6579
    %6970 = vmatpush2.bf16.msra.mxu0 %v6578
    %6971 = vmatprep.mubr.bf16.mxu0 %v5319
    %6972 = vmatmul.mubr.bf16.gmra.mxu0 %v5318
    %v6973 = vpop.f32.mrf.mxu0
    %v6974 = vadd.f32 %v6933, %v6973
    %v6975 = vpop.f32.mrf.mxu0
    %v6976 = vadd.f32 %v6935, %v6975
    %v6977 = vpop.f32.mrf.mxu0
    %v6978 = vpop.f32.mrf.mxu0
    %6979 = vdwg.mxu0
    %6980 = vmatprep.subr.bf16.mxu0 %v6445
    %6981 = vmatpush1.bf16.msra.mxu0 %v6444
    %6982 = vmatprep.subr.bf16.mxu0 %v6437
    %6983 = vmatpush1.bf16.msra.mxu0 %v6436
    %6984 = vmatprep.subr.bf16.mxu0 %v6429
    %6985 = vmatpush1.bf16.msra.mxu0 %v6428
    %6986 = vmatprep.subr.bf16.mxu0 %v6421
    %6987 = vmatpush1.bf16.msra.mxu0 %v6420
    %6988 = vmatprep.subr.bf16.mxu0 %v6413
    %6989 = vmatpush1.bf16.msra.mxu0 %v6412
    %6990 = vmatprep.subr.bf16.mxu0 %v6405
    %6991 = vmatpush1.bf16.msra.mxu0 %v6404
    %6992 = vmatprep.subr.bf16.mxu0 %v6397
    %6993 = vmatpush1.bf16.msra.mxu0 %v6396
    %6994 = vmatprep.subr.bf16.mxu0 %v6389
    %6995 = vmatpush1.bf16.msra.mxu0 %v6388
    %6996 = vmatprep.subr.bf16.mxu0 %v6509
    %6997 = vmatpush2.bf16.msra.mxu0 %v6508
    %6998 = vmatprep.subr.bf16.mxu0 %v6501
    %6999 = vmatpush2.bf16.msra.mxu0 %v6500
    %7000 = vmatprep.subr.bf16.mxu0 %v6493
    %7001 = vmatpush2.bf16.msra.mxu0 %v6492
    %7002 = vmatprep.subr.bf16.mxu0 %v6485
    %7003 = vmatpush2.bf16.msra.mxu0 %v6484
    %7004 = vmatprep.subr.bf16.mxu0 %v6477
    %7005 = vmatpush2.bf16.msra.mxu0 %v6476
    %7006 = vmatprep.subr.bf16.mxu0 %v6469
    %7007 = vmatpush2.bf16.msra.mxu0 %v6468
    %7008 = vmatprep.subr.bf16.mxu0 %v6461
    %7009 = vmatpush2.bf16.msra.mxu0 %v6460
    %7010 = vmatprep.subr.bf16.mxu0 %v6453
    %7011 = vmatpush2.bf16.msra.mxu0 %v6452
    %7012 = vmatprep.mubr.bf16.mxu0 %v5317
    %7013 = vmatmul.mubr.bf16.gmra.mxu0 %v5316
    %v7014 = vpop.f32.mrf.mxu0
    %v7015 = vadd.f32 %v5589, %v7014
    %v7016 = vpop.f32.mrf.mxu0
    %v7017 = vadd.f32 %v5593, %v7016
    %v7018 = vpop.f32.mrf.mxu0
    %v7019 = vpop.f32.mrf.mxu0
    %7020 = vdwg.mxu0
    %7021 = vmatprep.subr.bf16.mxu0 %v6573
    %7022 = vmatpush1.bf16.msra.mxu0 %v6572
    %7023 = vmatprep.subr.bf16.mxu0 %v6565
    %7024 = vmatpush1.bf16.msra.mxu0 %v6564
    %7025 = vmatprep.subr.bf16.mxu0 %v6557
    %7026 = vmatpush1.bf16.msra.mxu0 %v6556
    %7027 = vmatprep.subr.bf16.mxu0 %v6549
    %7028 = vmatpush1.bf16.msra.mxu0 %v6548
    %7029 = vmatprep.subr.bf16.mxu0 %v6541
    %7030 = vmatpush1.bf16.msra.mxu0 %v6540
    %7031 = vmatprep.subr.bf16.mxu0 %v6533
    %7032 = vmatpush1.bf16.msra.mxu0 %v6532
    %7033 = vmatprep.subr.bf16.mxu0 %v6525
    %7034 = vmatpush1.bf16.msra.mxu0 %v6524
    %7035 = vmatprep.subr.bf16.mxu0 %v6517
    %7036 = vmatpush1.bf16.msra.mxu0 %v6516
    %7037 = vmatprep.subr.bf16.mxu0 %v6637
    %7038 = vmatpush2.bf16.msra.mxu0 %v6636
    %7039 = vmatprep.subr.bf16.mxu0 %v6629
    %7040 = vmatpush2.bf16.msra.mxu0 %v6628
    %7041 = vmatprep.subr.bf16.mxu0 %v6621
    %7042 = vmatpush2.bf16.msra.mxu0 %v6620
    %7043 = vmatprep.subr.bf16.mxu0 %v6613
    %7044 = vmatpush2.bf16.msra.mxu0 %v6612
    %7045 = vmatprep.subr.bf16.mxu0 %v6605
    %7046 = vmatpush2.bf16.msra.mxu0 %v6604
    %7047 = vmatprep.subr.bf16.mxu0 %v6597
    %7048 = vmatpush2.bf16.msra.mxu0 %v6596
    %7049 = vmatprep.subr.bf16.mxu0 %v6589
    %7050 = vmatpush2.bf16.msra.mxu0 %v6588
    %7051 = vmatprep.subr.bf16.mxu0 %v6581
    %7052 = vmatpush2.bf16.msra.mxu0 %v6580
    %7053 = vmatprep.mubr.bf16.mxu0 %v5319
    %7054 = vmatmul.mubr.bf16.gmra.mxu0 %v5318
    %v7055 = vpop.f32.mrf.mxu0
    %v7056 = vadd.f32 %v7015, %v7055
    %v7057 = vpop.f32.mrf.mxu0
    %v7058 = vadd.f32 %v7017, %v7057
    %v7059 = vpop.f32.mrf.mxu0
    %v7060 = vpop.f32.mrf.mxu0
    %7061 = vdwg.mxu0
    %7062 = vmatprep.subr.bf16.mxu0 %v6447
    %7063 = vmatpush1.bf16.msra.mxu0 %v6446
    %7064 = vmatprep.subr.bf16.mxu0 %v6439
    %7065 = vmatpush1.bf16.msra.mxu0 %v6438
    %7066 = vmatprep.subr.bf16.mxu0 %v6431
    %7067 = vmatpush1.bf16.msra.mxu0 %v6430
    %7068 = vmatprep.subr.bf16.mxu0 %v6423
    %7069 = vmatpush1.bf16.msra.mxu0 %v6422
    %7070 = vmatprep.subr.bf16.mxu0 %v6415
    %7071 = vmatpush1.bf16.msra.mxu0 %v6414
    %7072 = vmatprep.subr.bf16.mxu0 %v6407
    %7073 = vmatpush1.bf16.msra.mxu0 %v6406
    %7074 = vmatprep.subr.bf16.mxu0 %v6399
    %7075 = vmatpush1.bf16.msra.mxu0 %v6398
    %7076 = vmatprep.subr.bf16.mxu0 %v6391
    %7077 = vmatpush1.bf16.msra.mxu0 %v6390
    %7078 = vmatprep.subr.bf16.mxu0 %v6511
    %7079 = vmatpush2.bf16.msra.mxu0 %v6510
    %7080 = vmatprep.subr.bf16.mxu0 %v6503
    %7081 = vmatpush2.bf16.msra.mxu0 %v6502
    %7082 = vmatprep.subr.bf16.mxu0 %v6495
    %7083 = vmatpush2.bf16.msra.mxu0 %v6494
    %7084 = vmatprep.subr.bf16.mxu0 %v6487
    %7085 = vmatpush2.bf16.msra.mxu0 %v6486
    %7086 = vmatprep.subr.bf16.mxu0 %v6479
    %7087 = vmatpush2.bf16.msra.mxu0 %v6478
    %7088 = vmatprep.subr.bf16.mxu0 %v6471
    %7089 = vmatpush2.bf16.msra.mxu0 %v6470
    %7090 = vmatprep.subr.bf16.mxu0 %v6463
    %7091 = vmatpush2.bf16.msra.mxu0 %v6462
    %7092 = vmatprep.subr.bf16.mxu0 %v6455
    %7093 = vmatpush2.bf16.msra.mxu0 %v6454
    %7094 = vmatprep.mubr.bf16.mxu0 %v5317
    %7095 = vmatmul.mubr.bf16.gmra.mxu0 %v5316
    %v7096 = vpop.f32.mrf.mxu0
    %v7097 = vadd.f32 %v5597, %v7096
    %v7098 = vpop.f32.mrf.mxu0
    %v7099 = vadd.f32 %v5601, %v7098
    %v7100 = vpop.f32.mrf.mxu0
    %v7101 = vpop.f32.mrf.mxu0
    %7102 = vdwg.mxu0
    %7103 = vmatprep.subr.bf16.mxu0 %v6575
    %7104 = vmatpush1.bf16.msra.mxu0 %v6574
    %7105 = vmatprep.subr.bf16.mxu0 %v6567
    %7106 = vmatpush1.bf16.msra.mxu0 %v6566
    %7107 = vmatprep.subr.bf16.mxu0 %v6559
    %7108 = vmatpush1.bf16.msra.mxu0 %v6558
    %7109 = vmatprep.subr.bf16.mxu0 %v6551
    %7110 = vmatpush1.bf16.msra.mxu0 %v6550
    %7111 = vmatprep.subr.bf16.mxu0 %v6543
    %7112 = vmatpush1.bf16.msra.mxu0 %v6542
    %7113 = vmatprep.subr.bf16.mxu0 %v6535
    %7114 = vmatpush1.bf16.msra.mxu0 %v6534
    %7115 = vmatprep.subr.bf16.mxu0 %v6527
    %7116 = vmatpush1.bf16.msra.mxu0 %v6526
    %7117 = vmatprep.subr.bf16.mxu0 %v6519
    %7118 = vmatpush1.bf16.msra.mxu0 %v6518
    %7119 = vmatprep.subr.bf16.mxu0 %v6639
    %7120 = vmatpush2.bf16.msra.mxu0 %v6638
    %7121 = vmatprep.subr.bf16.mxu0 %v6631
    %7122 = vmatpush2.bf16.msra.mxu0 %v6630
    %7123 = vmatprep.subr.bf16.mxu0 %v6623
    %7124 = vmatpush2.bf16.msra.mxu0 %v6622
    %7125 = vmatprep.subr.bf16.mxu0 %v6615
    %7126 = vmatpush2.bf16.msra.mxu0 %v6614
    %7127 = vmatprep.subr.bf16.mxu0 %v6607
    %7128 = vmatpush2.bf16.msra.mxu0 %v6606
    %7129 = vmatprep.subr.bf16.mxu0 %v6599
    %7130 = vmatpush2.bf16.msra.mxu0 %v6598
    %7131 = vmatprep.subr.bf16.mxu0 %v6591
    %7132 = vmatpush2.bf16.msra.mxu0 %v6590
    %7133 = vmatprep.subr.bf16.mxu0 %v6583
    %7134 = vmatpush2.bf16.msra.mxu0 %v6582
    %7135 = vmatprep.mubr.bf16.mxu0 %v5319
    %7136 = vmatmul.mubr.bf16.gmra.mxu0 %v5318
    %v7137 = vpop.f32.mrf.mxu0
    %v7138 = vadd.f32 %v7097, %v7137
    %v7139 = vpop.f32.mrf.mxu0
    %v7140 = vadd.f32 %v7099, %v7139
    %v7141 = vpop.f32.mrf.mxu0
    %v7142 = vpop.f32.mrf.mxu0
    %7143 = vdwg.mxu0
    %7144 = vmatprep.subr.bf16.mxu0 %v6449
    %7145 = vmatpush1.bf16.msra.mxu0 %v6448
    %7146 = vmatprep.subr.bf16.mxu0 %v6441
    %7147 = vmatpush1.bf16.msra.mxu0 %v6440
    %7148 = vmatprep.subr.bf16.mxu0 %v6433
    %7149 = vmatpush1.bf16.msra.mxu0 %v6432
    %7150 = vmatprep.subr.bf16.mxu0 %v6425
    %7151 = vmatpush1.bf16.msra.mxu0 %v6424
    %7152 = vmatprep.subr.bf16.mxu0 %v6417
    %7153 = vmatpush1.bf16.msra.mxu0 %v6416
    %7154 = vmatprep.subr.bf16.mxu0 %v6409
    %7155 = vmatpush1.bf16.msra.mxu0 %v6408
    %7156 = vmatprep.subr.bf16.mxu0 %v6401
    %7157 = vmatpush1.bf16.msra.mxu0 %v6400
    %7158 = vmatprep.subr.bf16.mxu0 %v6393
    %7159 = vmatpush1.bf16.msra.mxu0 %v6392
    %7160 = vmatprep.subr.bf16.mxu0 %v6513
    %7161 = vmatpush2.bf16.msra.mxu0 %v6512
    %7162 = vmatprep.subr.bf16.mxu0 %v6505
    %7163 = vmatpush2.bf16.msra.mxu0 %v6504
    %7164 = vmatprep.subr.bf16.mxu0 %v6497
    %7165 = vmatpush2.bf16.msra.mxu0 %v6496
    %7166 = vmatprep.subr.bf16.mxu0 %v6489
    %7167 = vmatpush2.bf16.msra.mxu0 %v6488
    %7168 = vmatprep.subr.bf16.mxu0 %v6481
    %7169 = vmatpush2.bf16.msra.mxu0 %v6480
    %7170 = vmatprep.subr.bf16.mxu0 %v6473
    %7171 = vmatpush2.bf16.msra.mxu0 %v6472
    %7172 = vmatprep.subr.bf16.mxu0 %v6465
    %7173 = vmatpush2.bf16.msra.mxu0 %v6464
    %7174 = vmatprep.subr.bf16.mxu0 %v6457
    %7175 = vmatpush2.bf16.msra.mxu0 %v6456
    %7176 = vmatprep.mubr.bf16.mxu0 %v5317
    %7177 = vmatmul.mubr.bf16.gmra.mxu0 %v5316
    %v7178 = vpop.f32.mrf.mxu0
    %v7179 = vadd.f32 %v5605, %v7178
    %v7180 = vpop.f32.mrf.mxu0
    %v7181 = vadd.f32 %v5609, %v7180
    %v7182 = vpop.f32.mrf.mxu0
    %v7183 = vpop.f32.mrf.mxu0
    %7184 = vdwg.mxu0
    %7185 = vmatprep.subr.bf16.mxu0 %v6577
    %7186 = vmatpush1.bf16.msra.mxu0 %v6576
    %7187 = vmatprep.subr.bf16.mxu0 %v6569
    %7188 = vmatpush1.bf16.msra.mxu0 %v6568
    %7189 = vmatprep.subr.bf16.mxu0 %v6561
    %7190 = vmatpush1.bf16.msra.mxu0 %v6560
    %7191 = vmatprep.subr.bf16.mxu0 %v6553
    %7192 = vmatpush1.bf16.msra.mxu0 %v6552
    %7193 = vmatprep.subr.bf16.mxu0 %v6545
    %7194 = vmatpush1.bf16.msra.mxu0 %v6544
    %7195 = vmatprep.subr.bf16.mxu0 %v6537
    %7196 = vmatpush1.bf16.msra.mxu0 %v6536
    %7197 = vmatprep.subr.bf16.mxu0 %v6529
    %7198 = vmatpush1.bf16.msra.mxu0 %v6528
    %7199 = vmatprep.subr.bf16.mxu0 %v6521
    %7200 = vmatpush1.bf16.msra.mxu0 %v6520
    %7201 = vmatprep.subr.bf16.mxu0 %v6641
    %7202 = vmatpush2.bf16.msra.mxu0 %v6640
    %7203 = vmatprep.subr.bf16.mxu0 %v6633
    %7204 = vmatpush2.bf16.msra.mxu0 %v6632
    %7205 = vmatprep.subr.bf16.mxu0 %v6625
    %7206 = vmatpush2.bf16.msra.mxu0 %v6624
    %7207 = vmatprep.subr.bf16.mxu0 %v6617
    %7208 = vmatpush2.bf16.msra.mxu0 %v6616
    %7209 = vmatprep.subr.bf16.mxu0 %v6609
    %7210 = vmatpush2.bf16.msra.mxu0 %v6608
    %7211 = vmatprep.subr.bf16.mxu0 %v6601
    %7212 = vmatpush2.bf16.msra.mxu0 %v6600
    %7213 = vmatprep.subr.bf16.mxu0 %v6593
    %7214 = vmatpush2.bf16.msra.mxu0 %v6592
    %7215 = vmatprep.subr.bf16.mxu0 %v6585
    %7216 = vmatpush2.bf16.msra.mxu0 %v6584
    %7217 = vmatprep.mubr.bf16.mxu0 %v5319
    %7218 = vmatmul.mubr.bf16.gmra.mxu0 %v5318
    %v7219 = vpop.f32.mrf.mxu0
    %v7220 = vadd.f32 %v7179, %v7219
    %v7221 = vpop.f32.mrf.mxu0
    %v7222 = vadd.f32 %v7181, %v7221
    %v7223 = vpop.f32.mrf.mxu0
    %v7224 = vpop.f32.mrf.mxu0
    %7225 = vdwg.mxu0
    %v7226 = vsub.f32 0.0, %v6974
    %v7227 = vsub.f32 0.0, %v6976
    %v7228 = vsub.f32 0.0, %v7056
    %v7229 = vsub.f32 0.0, %v7058
    %v7230 = vsub.f32 0.0, %v7138
    %v7231 = vsub.f32 0.0, %v7140
    %v7232 = vsub.f32 0.0, %v7220
    %v7233 = vsub.f32 0.0, %v7222
    %v7234 = vmul.f32 %v7226, 1.442695
    %v7235 = vpow.pop %v7234
    %v7236 = vmul.f32 %v7227, 1.442695
    %v7237 = vpow.pop %v7236
    %v7238 = vmul.f32 %v7228, 1.442695
    %v7239 = vpow.pop %v7238
    %v7240 = vmul.f32 %v7229, 1.442695
    %v7241 = vpow.pop %v7240
    %v7242 = vmul.f32 %v7230, 1.442695
    %v7243 = vpow.pop %v7242
    %v7244 = vmul.f32 %v7231, 1.442695
    %v7245 = vpow.pop %v7244
    %v7246 = vmul.f32 %v7232, 1.442695
    %v7247 = vpow.pop %v7246
    %v7248 = vmul.f32 %v7233, 1.442695
    %v7249 = vpow.pop %v7248
    %v7250 = vadd.f32 %v7235, 1.0
    %v7251 = vadd.f32 %v7237, 1.0
    %v7252 = vadd.f32 %v7239, 1.0
    %v7253 = vadd.f32 %v7241, 1.0
    %v7254 = vadd.f32 %v7243, 1.0
    %v7255 = vadd.f32 %v7245, 1.0
    %v7256 = vadd.f32 %v7247, 1.0
    %v7257 = vadd.f32 %v7249, 1.0
    %v7258 = vrcp.pop %v7250
    %v7259 = vrcp.pop %v7251
    %v7260 = vrcp.pop %v7252
    %v7261 = vrcp.pop %v7253
    %v7262 = vrcp.pop %v7254
    %v7263 = vrcp.pop %v7255
    %v7264 = vrcp.pop %v7256
    %v7265 = vrcp.pop %v7257
    %7266 = vst [vmem:[#allocation19] sm:$0xff] %v7258
    %7267 = vst [vmem:[#allocation19 + $0x8] sm:$0xff] %v7259
    %7268 = vst [vmem:[#allocation19 + $0x10] sm:$0xff] %v7260
    %7269 = vst [vmem:[#allocation19 + $0x18] sm:$0xff] %v7261
    %7270 = vst [vmem:[#allocation19 + $0x20] sm:$0xff] %v7262
    %7271 = vst [vmem:[#allocation19 + $0x28] sm:$0xff] %v7263
    %7272 = vst [vmem:[#allocation19 + $0x30] sm:$0xff] %v7264
    %7273 = vst [vmem:[#allocation19 + $0x38] sm:$0xff] %v7265
    %s7274 = sld [smem:[#allocation18 + $0x5]]
    %vm7275 = vcmp.gt.f32.partialorder %v5214, 0.0
    %vm7276 = vcmp.gt.f32.partialorder %v5216, 0.0
    %vm7277 = vcmp.gt.f32.partialorder %v5296, 0.0
    %vm7278 = vcmp.gt.f32.partialorder %v5298, 0.0
    %v7279 = vstv %s7274
    %v7280 = vmul.f32 %v7279, %v5214
    %v7281 = vmul.f32 %v7279, %v5216
    %v7282 = vmul.f32 %v7279, %v5296
    %v7283 = vmul.f32 %v7279, %v5298
    %v7284 = vsel %vm7275, %v5214, %v7280
    %v7285 = vsel %vm7276, %v5216, %v7281
    %v7286 = vsel %vm7277, %v5296, %v7282
    %v7287 = vsel %vm7278, %v5298, %v7283
    %v7288 = vpack.c.bf16 %v7284, %v7284
    %v7289 = vpack.c.bf16 %v7285, %v7285
    %v7290 = vpack.c.bf16 %v7286, %v7286
    %v7291 = vpack.c.bf16 %v7287, %v7287
    %s7292 = scalar_lea.vmem [#allocation15], 2048
    %v7293 = vld [vmem:[%s7292] sm:$0xff]
    %v7294 = vld [vmem:[%s7292 + $0x8] sm:$0xff]
    %v7295 = vld [vmem:[%s7292 + $0x10] sm:$0xff]
    %v7296 = vld [vmem:[%s7292 + $0x18] sm:$0xff]
    %v7297 = vld [vmem:[%s7292 + $0x20] sm:$0xff]
    %v7298 = vld [vmem:[%s7292 + $0x28] sm:$0xff]
    %v7299 = vld [vmem:[%s7292 + $0x30] sm:$0xff]
    %v7300 = vld [vmem:[%s7292 + $0x38] sm:$0xff]
    %v7301 = vld [vmem:[%s7292 + $0x40] sm:$0xff]
    %v7302 = vld [vmem:[%s7292 + $0x48] sm:$0xff]
    %v7303 = vld [vmem:[%s7292 + $0x50] sm:$0xff]
    %v7304 = vld [vmem:[%s7292 + $0x58] sm:$0xff]
    %v7305 = vld [vmem:[%s7292 + $0x60] sm:$0xff]
    %v7306 = vld [vmem:[%s7292 + $0x68] sm:$0xff]
    %v7307 = vld [vmem:[%s7292 + $0x70] sm:$0xff]
    %v7308 = vld [vmem:[%s7292 + $0x78] sm:$0xff]
    %v7309 = vld [vmem:[%s7292 + $0x80] sm:$0xff]
    %v7310 = vld [vmem:[%s7292 + $0x88] sm:$0xff]
    %v7311 = vld [vmem:[%s7292 + $0x90] sm:$0xff]
    %v7312 = vld [vmem:[%s7292 + $0x98] sm:$0xff]
    %v7313 = vld [vmem:[%s7292 + $0xa0] sm:$0xff]
    %v7314 = vld [vmem:[%s7292 + $0xa8] sm:$0xff]
    %v7315 = vld [vmem:[%s7292 + $0xb0] sm:$0xff]
    %v7316 = vld [vmem:[%s7292 + $0xb8] sm:$0xff]
    %v7317 = vld [vmem:[%s7292 + $0xc0] sm:$0xff]
    %v7318 = vld [vmem:[%s7292 + $0xc8] sm:$0xff]
    %v7319 = vld [vmem:[%s7292 + $0xd0] sm:$0xff]
    %v7320 = vld [vmem:[%s7292 + $0xd8] sm:$0xff]
    %v7321 = vld [vmem:[%s7292 + $0xe0] sm:$0xff]
    %v7322 = vld [vmem:[%s7292 + $0xe8] sm:$0xff]
    %v7323 = vld [vmem:[%s7292 + $0xf0] sm:$0xff]
    %v7324 = vld [vmem:[%s7292 + $0xf8] sm:$0xff]
    %v7325 = vld [vmem:[%s7292 + $0x100] sm:$0xff]
    %v7326 = vld [vmem:[%s7292 + $0x108] sm:$0xff]
    %v7327 = vld [vmem:[%s7292 + $0x110] sm:$0xff]
    %v7328 = vld [vmem:[%s7292 + $0x118] sm:$0xff]
    %v7329 = vld [vmem:[%s7292 + $0x120] sm:$0xff]
    %v7330 = vld [vmem:[%s7292 + $0x128] sm:$0xff]
    %v7331 = vld [vmem:[%s7292 + $0x130] sm:$0xff]
    %v7332 = vld [vmem:[%s7292 + $0x138] sm:$0xff]
    %v7333 = vld [vmem:[%s7292 + $0x140] sm:$0xff]
    %v7334 = vld [vmem:[%s7292 + $0x148] sm:$0xff]
    %v7335 = vld [vmem:[%s7292 + $0x150] sm:$0xff]
    %v7336 = vld [vmem:[%s7292 + $0x158] sm:$0xff]
    %v7337 = vld [vmem:[%s7292 + $0x160] sm:$0xff]
    %v7338 = vld [vmem:[%s7292 + $0x168] sm:$0xff]
    %v7339 = vld [vmem:[%s7292 + $0x170] sm:$0xff]
    %v7340 = vld [vmem:[%s7292 + $0x178] sm:$0xff]
    %v7341 = vld [vmem:[%s7292 + $0x180] sm:$0xff]
    %v7342 = vld [vmem:[%s7292 + $0x188] sm:$0xff]
    %v7343 = vld [vmem:[%s7292 + $0x190] sm:$0xff]
    %v7344 = vld [vmem:[%s7292 + $0x198] sm:$0xff]
    %v7345 = vld [vmem:[%s7292 + $0x1a0] sm:$0xff]
    %v7346 = vld [vmem:[%s7292 + $0x1a8] sm:$0xff]
    %v7347 = vld [vmem:[%s7292 + $0x1b0] sm:$0xff]
    %v7348 = vld [vmem:[%s7292 + $0x1b8] sm:$0xff]
    %v7349 = vld [vmem:[%s7292 + $0x1c0] sm:$0xff]
    %v7350 = vld [vmem:[%s7292 + $0x1c8] sm:$0xff]
    %v7351 = vld [vmem:[%s7292 + $0x1d0] sm:$0xff]
    %v7352 = vld [vmem:[%s7292 + $0x1d8] sm:$0xff]
    %v7353 = vld [vmem:[%s7292 + $0x1e0] sm:$0xff]
    %v7354 = vld [vmem:[%s7292 + $0x1e8] sm:$0xff]
    %v7355 = vld [vmem:[%s7292 + $0x1f0] sm:$0xff]
    %v7356 = vld [vmem:[%s7292 + $0x1f8] sm:$0xff]
    %v7357 = vld [vmem:[%s7292 + $0x200] sm:$0xff]
    %v7358 = vld [vmem:[%s7292 + $0x208] sm:$0xff]
    %v7359 = vld [vmem:[%s7292 + $0x210] sm:$0xff]
    %v7360 = vld [vmem:[%s7292 + $0x218] sm:$0xff]
    %v7361 = vld [vmem:[%s7292 + $0x220] sm:$0xff]
    %v7362 = vld [vmem:[%s7292 + $0x228] sm:$0xff]
    %v7363 = vld [vmem:[%s7292 + $0x230] sm:$0xff]
    %v7364 = vld [vmem:[%s7292 + $0x238] sm:$0xff]
    %v7365 = vld [vmem:[%s7292 + $0x240] sm:$0xff]
    %v7366 = vld [vmem:[%s7292 + $0x248] sm:$0xff]
    %v7367 = vld [vmem:[%s7292 + $0x250] sm:$0xff]
    %v7368 = vld [vmem:[%s7292 + $0x258] sm:$0xff]
    %v7369 = vld [vmem:[%s7292 + $0x260] sm:$0xff]
    %v7370 = vld [vmem:[%s7292 + $0x268] sm:$0xff]
    %v7371 = vld [vmem:[%s7292 + $0x270] sm:$0xff]
    %v7372 = vld [vmem:[%s7292 + $0x278] sm:$0xff]
    %v7373 = vld [vmem:[%s7292 + $0x280] sm:$0xff]
    %v7374 = vld [vmem:[%s7292 + $0x288] sm:$0xff]
    %v7375 = vld [vmem:[%s7292 + $0x290] sm:$0xff]
    %v7376 = vld [vmem:[%s7292 + $0x298] sm:$0xff]
    %v7377 = vld [vmem:[%s7292 + $0x2a0] sm:$0xff]
    %v7378 = vld [vmem:[%s7292 + $0x2a8] sm:$0xff]
    %v7379 = vld [vmem:[%s7292 + $0x2b0] sm:$0xff]
    %v7380 = vld [vmem:[%s7292 + $0x2b8] sm:$0xff]
    %v7381 = vld [vmem:[%s7292 + $0x2c0] sm:$0xff]
    %v7382 = vld [vmem:[%s7292 + $0x2c8] sm:$0xff]
    %v7383 = vld [vmem:[%s7292 + $0x2d0] sm:$0xff]
    %v7384 = vld [vmem:[%s7292 + $0x2d8] sm:$0xff]
    %v7385 = vld [vmem:[%s7292 + $0x2e0] sm:$0xff]
    %v7386 = vld [vmem:[%s7292 + $0x2e8] sm:$0xff]
    %v7387 = vld [vmem:[%s7292 + $0x2f0] sm:$0xff]
    %v7388 = vld [vmem:[%s7292 + $0x2f8] sm:$0xff]
    %v7389 = vld [vmem:[%s7292 + $0x300] sm:$0xff]
    %v7390 = vld [vmem:[%s7292 + $0x308] sm:$0xff]
    %v7391 = vld [vmem:[%s7292 + $0x310] sm:$0xff]
    %v7392 = vld [vmem:[%s7292 + $0x318] sm:$0xff]
    %v7393 = vld [vmem:[%s7292 + $0x320] sm:$0xff]
    %v7394 = vld [vmem:[%s7292 + $0x328] sm:$0xff]
    %v7395 = vld [vmem:[%s7292 + $0x330] sm:$0xff]
    %v7396 = vld [vmem:[%s7292 + $0x338] sm:$0xff]
    %v7397 = vld [vmem:[%s7292 + $0x340] sm:$0xff]
    %v7398 = vld [vmem:[%s7292 + $0x348] sm:$0xff]
    %v7399 = vld [vmem:[%s7292 + $0x350] sm:$0xff]
    %v7400 = vld [vmem:[%s7292 + $0x358] sm:$0xff]
    %v7401 = vld [vmem:[%s7292 + $0x360] sm:$0xff]
    %v7402 = vld [vmem:[%s7292 + $0x368] sm:$0xff]
    %v7403 = vld [vmem:[%s7292 + $0x370] sm:$0xff]
    %v7404 = vld [vmem:[%s7292 + $0x378] sm:$0xff]
    %v7405 = vld [vmem:[%s7292 + $0x380] sm:$0xff]
    %v7406 = vld [vmem:[%s7292 + $0x388] sm:$0xff]
    %v7407 = vld [vmem:[%s7292 + $0x390] sm:$0xff]
    %v7408 = vld [vmem:[%s7292 + $0x398] sm:$0xff]
    %v7409 = vld [vmem:[%s7292 + $0x3a0] sm:$0xff]
    %v7410 = vld [vmem:[%s7292 + $0x3a8] sm:$0xff]
    %v7411 = vld [vmem:[%s7292 + $0x3b0] sm:$0xff]
    %v7412 = vld [vmem:[%s7292 + $0x3b8] sm:$0xff]
    %v7413 = vld [vmem:[%s7292 + $0x3c0] sm:$0xff]
    %v7414 = vld [vmem:[%s7292 + $0x3c8] sm:$0xff]
    %v7415 = vld [vmem:[%s7292 + $0x3d0] sm:$0xff]
    %v7416 = vld [vmem:[%s7292 + $0x3d8] sm:$0xff]
    %v7417 = vld [vmem:[%s7292 + $0x3e0] sm:$0xff]
    %v7418 = vld [vmem:[%s7292 + $0x3e8] sm:$0xff]
    %v7419 = vld [vmem:[%s7292 + $0x3f0] sm:$0xff]
    %v7420 = vld [vmem:[%s7292 + $0x3f8] sm:$0xff]
    %v7421 = vld [vmem:[%s7292 + $0x400] sm:$0xff]
    %v7422 = vld [vmem:[%s7292 + $0x408] sm:$0xff]
    %v7423 = vld [vmem:[%s7292 + $0x410] sm:$0xff]
    %v7424 = vld [vmem:[%s7292 + $0x418] sm:$0xff]
    %v7425 = vld [vmem:[%s7292 + $0x420] sm:$0xff]
    %v7426 = vld [vmem:[%s7292 + $0x428] sm:$0xff]
    %v7427 = vld [vmem:[%s7292 + $0x430] sm:$0xff]
    %v7428 = vld [vmem:[%s7292 + $0x438] sm:$0xff]
    %v7429 = vld [vmem:[%s7292 + $0x440] sm:$0xff]
    %v7430 = vld [vmem:[%s7292 + $0x448] sm:$0xff]
    %v7431 = vld [vmem:[%s7292 + $0x450] sm:$0xff]
    %v7432 = vld [vmem:[%s7292 + $0x458] sm:$0xff]
    %v7433 = vld [vmem:[%s7292 + $0x460] sm:$0xff]
    %v7434 = vld [vmem:[%s7292 + $0x468] sm:$0xff]
    %v7435 = vld [vmem:[%s7292 + $0x470] sm:$0xff]
    %v7436 = vld [vmem:[%s7292 + $0x478] sm:$0xff]
    %v7437 = vld [vmem:[%s7292 + $0x480] sm:$0xff]
    %v7438 = vld [vmem:[%s7292 + $0x488] sm:$0xff]
    %v7439 = vld [vmem:[%s7292 + $0x490] sm:$0xff]
    %v7440 = vld [vmem:[%s7292 + $0x498] sm:$0xff]
    %v7441 = vld [vmem:[%s7292 + $0x4a0] sm:$0xff]
    %v7442 = vld [vmem:[%s7292 + $0x4a8] sm:$0xff]
    %v7443 = vld [vmem:[%s7292 + $0x4b0] sm:$0xff]
    %v7444 = vld [vmem:[%s7292 + $0x4b8] sm:$0xff]
    %v7445 = vld [vmem:[%s7292 + $0x4c0] sm:$0xff]
    %v7446 = vld [vmem:[%s7292 + $0x4c8] sm:$0xff]
    %v7447 = vld [vmem:[%s7292 + $0x4d0] sm:$0xff]
    %v7448 = vld [vmem:[%s7292 + $0x4d8] sm:$0xff]
    %v7449 = vld [vmem:[%s7292 + $0x4e0] sm:$0xff]
    %v7450 = vld [vmem:[%s7292 + $0x4e8] sm:$0xff]
    %v7451 = vld [vmem:[%s7292 + $0x4f0] sm:$0xff]
    %v7452 = vld [vmem:[%s7292 + $0x4f8] sm:$0xff]
    %v7453 = vld [vmem:[%s7292 + $0x500] sm:$0xff]
    %v7454 = vld [vmem:[%s7292 + $0x508] sm:$0xff]
    %v7455 = vld [vmem:[%s7292 + $0x510] sm:$0xff]
    %v7456 = vld [vmem:[%s7292 + $0x518] sm:$0xff]
    %v7457 = vld [vmem:[%s7292 + $0x520] sm:$0xff]
    %v7458 = vld [vmem:[%s7292 + $0x528] sm:$0xff]
    %v7459 = vld [vmem:[%s7292 + $0x530] sm:$0xff]
    %v7460 = vld [vmem:[%s7292 + $0x538] sm:$0xff]
    %v7461 = vld [vmem:[%s7292 + $0x540] sm:$0xff]
    %v7462 = vld [vmem:[%s7292 + $0x548] sm:$0xff]
    %v7463 = vld [vmem:[%s7292 + $0x550] sm:$0xff]
    %v7464 = vld [vmem:[%s7292 + $0x558] sm:$0xff]
    %v7465 = vld [vmem:[%s7292 + $0x560] sm:$0xff]
    %v7466 = vld [vmem:[%s7292 + $0x568] sm:$0xff]
    %v7467 = vld [vmem:[%s7292 + $0x570] sm:$0xff]
    %v7468 = vld [vmem:[%s7292 + $0x578] sm:$0xff]
    %v7469 = vld [vmem:[%s7292 + $0x580] sm:$0xff]
    %v7470 = vld [vmem:[%s7292 + $0x588] sm:$0xff]
    %v7471 = vld [vmem:[%s7292 + $0x590] sm:$0xff]
    %v7472 = vld [vmem:[%s7292 + $0x598] sm:$0xff]
    %v7473 = vld [vmem:[%s7292 + $0x5a0] sm:$0xff]
    %v7474 = vld [vmem:[%s7292 + $0x5a8] sm:$0xff]
    %v7475 = vld [vmem:[%s7292 + $0x5b0] sm:$0xff]
    %v7476 = vld [vmem:[%s7292 + $0x5b8] sm:$0xff]
    %v7477 = vld [vmem:[%s7292 + $0x5c0] sm:$0xff]
    %v7478 = vld [vmem:[%s7292 + $0x5c8] sm:$0xff]
    %v7479 = vld [vmem:[%s7292 + $0x5d0] sm:$0xff]
    %v7480 = vld [vmem:[%s7292 + $0x5d8] sm:$0xff]
    %v7481 = vld [vmem:[%s7292 + $0x5e0] sm:$0xff]
    %v7482 = vld [vmem:[%s7292 + $0x5e8] sm:$0xff]
    %v7483 = vld [vmem:[%s7292 + $0x5f0] sm:$0xff]
    %v7484 = vld [vmem:[%s7292 + $0x5f8] sm:$0xff]
    %v7485 = vld [vmem:[%s7292 + $0x600] sm:$0xff]
    %v7486 = vld [vmem:[%s7292 + $0x608] sm:$0xff]
    %v7487 = vld [vmem:[%s7292 + $0x610] sm:$0xff]
    %v7488 = vld [vmem:[%s7292 + $0x618] sm:$0xff]
    %v7489 = vld [vmem:[%s7292 + $0x620] sm:$0xff]
    %v7490 = vld [vmem:[%s7292 + $0x628] sm:$0xff]
    %v7491 = vld [vmem:[%s7292 + $0x630] sm:$0xff]
    %v7492 = vld [vmem:[%s7292 + $0x638] sm:$0xff]
    %v7493 = vld [vmem:[%s7292 + $0x640] sm:$0xff]
    %v7494 = vld [vmem:[%s7292 + $0x648] sm:$0xff]
    %v7495 = vld [vmem:[%s7292 + $0x650] sm:$0xff]
    %v7496 = vld [vmem:[%s7292 + $0x658] sm:$0xff]
    %v7497 = vld [vmem:[%s7292 + $0x660] sm:$0xff]
    %v7498 = vld [vmem:[%s7292 + $0x668] sm:$0xff]
    %v7499 = vld [vmem:[%s7292 + $0x670] sm:$0xff]
    %v7500 = vld [vmem:[%s7292 + $0x678] sm:$0xff]
    %v7501 = vld [vmem:[%s7292 + $0x680] sm:$0xff]
    %v7502 = vld [vmem:[%s7292 + $0x688] sm:$0xff]
    %v7503 = vld [vmem:[%s7292 + $0x690] sm:$0xff]
    %v7504 = vld [vmem:[%s7292 + $0x698] sm:$0xff]
    %v7505 = vld [vmem:[%s7292 + $0x6a0] sm:$0xff]
    %v7506 = vld [vmem:[%s7292 + $0x6a8] sm:$0xff]
    %v7507 = vld [vmem:[%s7292 + $0x6b0] sm:$0xff]
    %v7508 = vld [vmem:[%s7292 + $0x6b8] sm:$0xff]
    %v7509 = vld [vmem:[%s7292 + $0x6c0] sm:$0xff]
    %v7510 = vld [vmem:[%s7292 + $0x6c8] sm:$0xff]
    %v7511 = vld [vmem:[%s7292 + $0x6d0] sm:$0xff]
    %v7512 = vld [vmem:[%s7292 + $0x6d8] sm:$0xff]
    %v7513 = vld [vmem:[%s7292 + $0x6e0] sm:$0xff]
    %v7514 = vld [vmem:[%s7292 + $0x6e8] sm:$0xff]
    %v7515 = vld [vmem:[%s7292 + $0x6f0] sm:$0xff]
    %v7516 = vld [vmem:[%s7292 + $0x6f8] sm:$0xff]
    %v7517 = vld [vmem:[%s7292 + $0x700] sm:$0xff]
    %v7518 = vld [vmem:[%s7292 + $0x708] sm:$0xff]
    %v7519 = vld [vmem:[%s7292 + $0x710] sm:$0xff]
    %v7520 = vld [vmem:[%s7292 + $0x718] sm:$0xff]
    %v7521 = vld [vmem:[%s7292 + $0x720] sm:$0xff]
    %v7522 = vld [vmem:[%s7292 + $0x728] sm:$0xff]
    %v7523 = vld [vmem:[%s7292 + $0x730] sm:$0xff]
    %v7524 = vld [vmem:[%s7292 + $0x738] sm:$0xff]
    %v7525 = vld [vmem:[%s7292 + $0x740] sm:$0xff]
    %v7526 = vld [vmem:[%s7292 + $0x748] sm:$0xff]
    %v7527 = vld [vmem:[%s7292 + $0x750] sm:$0xff]
    %v7528 = vld [vmem:[%s7292 + $0x758] sm:$0xff]
    %v7529 = vld [vmem:[%s7292 + $0x760] sm:$0xff]
    %v7530 = vld [vmem:[%s7292 + $0x768] sm:$0xff]
    %v7531 = vld [vmem:[%s7292 + $0x770] sm:$0xff]
    %v7532 = vld [vmem:[%s7292 + $0x778] sm:$0xff]
    %v7533 = vld [vmem:[%s7292 + $0x780] sm:$0xff]
    %v7534 = vld [vmem:[%s7292 + $0x788] sm:$0xff]
    %v7535 = vld [vmem:[%s7292 + $0x790] sm:$0xff]
    %v7536 = vld [vmem:[%s7292 + $0x798] sm:$0xff]
    %v7537 = vld [vmem:[%s7292 + $0x7a0] sm:$0xff]
    %v7538 = vld [vmem:[%s7292 + $0x7a8] sm:$0xff]
    %v7539 = vld [vmem:[%s7292 + $0x7b0] sm:$0xff]
    %v7540 = vld [vmem:[%s7292 + $0x7b8] sm:$0xff]
    %v7541 = vld [vmem:[%s7292 + $0x7c0] sm:$0xff]
    %v7542 = vld [vmem:[%s7292 + $0x7c8] sm:$0xff]
    %v7543 = vld [vmem:[%s7292 + $0x7d0] sm:$0xff]
    %v7544 = vld [vmem:[%s7292 + $0x7d8] sm:$0xff]
    %v7545 = vld [vmem:[%s7292 + $0x7e0] sm:$0xff]
    %v7546 = vld [vmem:[%s7292 + $0x7e8] sm:$0xff]
    %v7547 = vld [vmem:[%s7292 + $0x7f0] sm:$0xff]
    %v7548 = vld [vmem:[%s7292 + $0x7f8] sm:$0xff]
    %s7549 = scalar_lea.vmem [#allocation17], 1
    %v7550 = vld [vmem:[%s7549] ss:$2 sm:$0xff]
    %v7552 = vlaneseq
    %v7553 = vshrl.u32 %v7552, 7
    %v7554 = vsub.s32 0, %v7553
    %v7555 = vrot.slane %v7550, %v7554
    %v7556 = vlaneseq
    %v7557 = vshrl.u32 %v7556, 7
    %v7558 = vsub.s32 1, %v7557
    %v7559 = vrot.slane %v7550, %v7558
    %v7560 = vlaneseq
    %v7561 = vshrl.u32 %v7560, 7
    %v7562 = vsub.s32 2, %v7561
    %v7563 = vrot.slane %v7550, %v7562
    %v7564 = vlaneseq
    %v7565 = vshrl.u32 %v7564, 7
    %v7566 = vsub.s32 3, %v7565
    %v7567 = vrot.slane %v7550, %v7566
    %v7568 = vlaneseq
    %v7569 = vshrl.u32 %v7568, 7
    %v7570 = vsub.s32 4, %v7569
    %v7571 = vrot.slane %v7550, %v7570
    %v7572 = vlaneseq
    %v7573 = vshrl.u32 %v7572, 7
    %v7574 = vsub.s32 5, %v7573
    %v7575 = vrot.slane %v7550, %v7574
    %v7576 = vlaneseq
    %v7577 = vshrl.u32 %v7576, 7
    %v7578 = vsub.s32 6, %v7577
    %v7579 = vrot.slane %v7550, %v7578
    %v7580 = vlaneseq
    %v7581 = vshrl.u32 %v7580, 7
    %v7582 = vsub.s32 7, %v7581
    %v7583 = vrot.slane %v7550, %v7582
    %v7848 = vunpack.c.l.b16 %v7293
    %v7849 = vunpack.c.h.b16 %v7293
    %v7850 = vunpack.c.l.b16 %v7294
    %v7851 = vunpack.c.h.b16 %v7294
    %v7852 = vunpack.c.l.b16 %v7295
    %v7853 = vunpack.c.h.b16 %v7295
    %v7854 = vunpack.c.l.b16 %v7296
    %v7855 = vunpack.c.h.b16 %v7296
    %v7856 = vunpack.c.l.b16 %v7297
    %v7857 = vunpack.c.h.b16 %v7297
    %v7858 = vunpack.c.l.b16 %v7298
    %v7859 = vunpack.c.h.b16 %v7298
    %v7860 = vunpack.c.l.b16 %v7299
    %v7861 = vunpack.c.h.b16 %v7299
    %v7862 = vunpack.c.l.b16 %v7300
    %v7863 = vunpack.c.h.b16 %v7300
    %v7864 = vunpack.c.l.b16 %v7301
    %v7865 = vunpack.c.h.b16 %v7301
    %v7866 = vunpack.c.l.b16 %v7302
    %v7867 = vunpack.c.h.b16 %v7302
    %v7868 = vunpack.c.l.b16 %v7303
    %v7869 = vunpack.c.h.b16 %v7303
    %v7870 = vunpack.c.l.b16 %v7304
    %v7871 = vunpack.c.h.b16 %v7304
    %v7872 = vunpack.c.l.b16 %v7305
    %v7873 = vunpack.c.h.b16 %v7305
    %v7874 = vunpack.c.l.b16 %v7306
    %v7875 = vunpack.c.h.b16 %v7306
    %v7876 = vunpack.c.l.b16 %v7307
    %v7877 = vunpack.c.h.b16 %v7307
    %v7878 = vunpack.c.l.b16 %v7308
    %v7879 = vunpack.c.h.b16 %v7308
    %v7880 = vunpack.c.l.b16 %v7309
    %v7881 = vunpack.c.h.b16 %v7309
    %v7882 = vunpack.c.l.b16 %v7310
    %v7883 = vunpack.c.h.b16 %v7310
    %v7884 = vunpack.c.l.b16 %v7311
    %v7885 = vunpack.c.h.b16 %v7311
    %v7886 = vunpack.c.l.b16 %v7312
    %v7887 = vunpack.c.h.b16 %v7312
    %v7888 = vunpack.c.l.b16 %v7313
    %v7889 = vunpack.c.h.b16 %v7313
    %v7890 = vunpack.c.l.b16 %v7314
    %v7891 = vunpack.c.h.b16 %v7314
    %v7892 = vunpack.c.l.b16 %v7315
    %v7893 = vunpack.c.h.b16 %v7315
    %v7894 = vunpack.c.l.b16 %v7316
    %v7895 = vunpack.c.h.b16 %v7316
    %v7896 = vunpack.c.l.b16 %v7317
    %v7897 = vunpack.c.h.b16 %v7317
    %v7898 = vunpack.c.l.b16 %v7318
    %v7899 = vunpack.c.h.b16 %v7318
    %v7900 = vunpack.c.l.b16 %v7319
    %v7901 = vunpack.c.h.b16 %v7319
    %v7902 = vunpack.c.l.b16 %v7320
    %v7903 = vunpack.c.h.b16 %v7320
    %v7904 = vunpack.c.l.b16 %v7321
    %v7905 = vunpack.c.h.b16 %v7321
    %v7906 = vunpack.c.l.b16 %v7322
    %v7907 = vunpack.c.h.b16 %v7322
    %v7908 = vunpack.c.l.b16 %v7323
    %v7909 = vunpack.c.h.b16 %v7323
    %v7910 = vunpack.c.l.b16 %v7324
    %v7911 = vunpack.c.h.b16 %v7324
    %v7912 = vunpack.c.l.b16 %v7325
    %v7913 = vunpack.c.h.b16 %v7325
    %v7914 = vunpack.c.l.b16 %v7326
    %v7915 = vunpack.c.h.b16 %v7326
    %v7916 = vunpack.c.l.b16 %v7327
    %v7917 = vunpack.c.h.b16 %v7327
    %v7918 = vunpack.c.l.b16 %v7328
    %v7919 = vunpack.c.h.b16 %v7328
    %v7920 = vunpack.c.l.b16 %v7329
    %v7921 = vunpack.c.h.b16 %v7329
    %v7922 = vunpack.c.l.b16 %v7330
    %v7923 = vunpack.c.h.b16 %v7330
    %v7924 = vunpack.c.l.b16 %v7331
    %v7925 = vunpack.c.h.b16 %v7331
    %v7926 = vunpack.c.l.b16 %v7332
    %v7927 = vunpack.c.h.b16 %v7332
    %v7928 = vunpack.c.l.b16 %v7333
    %v7929 = vunpack.c.h.b16 %v7333
    %v7930 = vunpack.c.l.b16 %v7334
    %v7931 = vunpack.c.h.b16 %v7334
    %v7932 = vunpack.c.l.b16 %v7335
    %v7933 = vunpack.c.h.b16 %v7335
    %v7934 = vunpack.c.l.b16 %v7336
    %v7935 = vunpack.c.h.b16 %v7336
    %v7936 = vunpack.c.l.b16 %v7337
    %v7937 = vunpack.c.h.b16 %v7337
    %v7938 = vunpack.c.l.b16 %v7338
    %v7939 = vunpack.c.h.b16 %v7338
    %v7940 = vunpack.c.l.b16 %v7339
    %v7941 = vunpack.c.h.b16 %v7339
    %v7942 = vunpack.c.l.b16 %v7340
    %v7943 = vunpack.c.h.b16 %v7340
    %v7944 = vunpack.c.l.b16 %v7341
    %v7945 = vunpack.c.h.b16 %v7341
    %v7946 = vunpack.c.l.b16 %v7342
    %v7947 = vunpack.c.h.b16 %v7342
    %v7948 = vunpack.c.l.b16 %v7343
    %v7949 = vunpack.c.h.b16 %v7343
    %v7950 = vunpack.c.l.b16 %v7344
    %v7951 = vunpack.c.h.b16 %v7344
    %v7952 = vunpack.c.l.b16 %v7345
    %v7953 = vunpack.c.h.b16 %v7345
    %v7954 = vunpack.c.l.b16 %v7346
    %v7955 = vunpack.c.h.b16 %v7346
    %v7956 = vunpack.c.l.b16 %v7347
    %v7957 = vunpack.c.h.b16 %v7347
    %v7958 = vunpack.c.l.b16 %v7348
    %v7959 = vunpack.c.h.b16 %v7348
    %v7960 = vunpack.c.l.b16 %v7349
    %v7961 = vunpack.c.h.b16 %v7349
    %v7962 = vunpack.c.l.b16 %v7350
    %v7963 = vunpack.c.h.b16 %v7350
    %v7964 = vunpack.c.l.b16 %v7351
    %v7965 = vunpack.c.h.b16 %v7351
    %v7966 = vunpack.c.l.b16 %v7352
    %v7967 = vunpack.c.h.b16 %v7352
    %v7968 = vunpack.c.l.b16 %v7353
    %v7969 = vunpack.c.h.b16 %v7353
    %v7970 = vunpack.c.l.b16 %v7354
    %v7971 = vunpack.c.h.b16 %v7354
    %v7972 = vunpack.c.l.b16 %v7355
    %v7973 = vunpack.c.h.b16 %v7355
    %v7974 = vunpack.c.l.b16 %v7356
    %v7975 = vunpack.c.h.b16 %v7356
    %v7976 = vunpack.c.l.b16 %v7357
    %v7977 = vunpack.c.h.b16 %v7357
    %v7978 = vunpack.c.l.b16 %v7358
    %v7979 = vunpack.c.h.b16 %v7358
    %v7980 = vunpack.c.l.b16 %v7359
    %v7981 = vunpack.c.h.b16 %v7359
    %v7982 = vunpack.c.l.b16 %v7360
    %v7983 = vunpack.c.h.b16 %v7360
    %v7984 = vunpack.c.l.b16 %v7361
    %v7985 = vunpack.c.h.b16 %v7361
    %v7986 = vunpack.c.l.b16 %v7362
    %v7987 = vunpack.c.h.b16 %v7362
    %v7988 = vunpack.c.l.b16 %v7363
    %v7989 = vunpack.c.h.b16 %v7363
    %v7990 = vunpack.c.l.b16 %v7364
    %v7991 = vunpack.c.h.b16 %v7364
    %v7992 = vunpack.c.l.b16 %v7365
    %v7993 = vunpack.c.h.b16 %v7365
    %v7994 = vunpack.c.l.b16 %v7366
    %v7995 = vunpack.c.h.b16 %v7366
    %v7996 = vunpack.c.l.b16 %v7367
    %v7997 = vunpack.c.h.b16 %v7367
    %v7998 = vunpack.c.l.b16 %v7368
    %v7999 = vunpack.c.h.b16 %v7368
    %v8000 = vunpack.c.l.b16 %v7369
    %v8001 = vunpack.c.h.b16 %v7369
    %v8002 = vunpack.c.l.b16 %v7370
    %v8003 = vunpack.c.h.b16 %v7370
    %v8004 = vunpack.c.l.b16 %v7371
    %v8005 = vunpack.c.h.b16 %v7371
    %v8006 = vunpack.c.l.b16 %v7372
    %v8007 = vunpack.c.h.b16 %v7372
    %v8008 = vunpack.c.l.b16 %v7373
    %v8009 = vunpack.c.h.b16 %v7373
    %v8010 = vunpack.c.l.b16 %v7374
    %v8011 = vunpack.c.h.b16 %v7374
    %v8012 = vunpack.c.l.b16 %v7375
    %v8013 = vunpack.c.h.b16 %v7375
    %v8014 = vunpack.c.l.b16 %v7376
    %v8015 = vunpack.c.h.b16 %v7376
    %v8016 = vunpack.c.l.b16 %v7377
    %v8017 = vunpack.c.h.b16 %v7377
    %v8018 = vunpack.c.l.b16 %v7378
    %v8019 = vunpack.c.h.b16 %v7378
    %v8020 = vunpack.c.l.b16 %v7379
    %v8021 = vunpack.c.h.b16 %v7379
    %v8022 = vunpack.c.l.b16 %v7380
    %v8023 = vunpack.c.h.b16 %v7380
    %v8024 = vunpack.c.l.b16 %v7381
    %v8025 = vunpack.c.h.b16 %v7381
    %v8026 = vunpack.c.l.b16 %v7382
    %v8027 = vunpack.c.h.b16 %v7382
    %v8028 = vunpack.c.l.b16 %v7383
    %v8029 = vunpack.c.h.b16 %v7383
    %v8030 = vunpack.c.l.b16 %v7384
    %v8031 = vunpack.c.h.b16 %v7384
    %v8032 = vunpack.c.l.b16 %v7385
    %v8033 = vunpack.c.h.b16 %v7385
    %v8034 = vunpack.c.l.b16 %v7386
    %v8035 = vunpack.c.h.b16 %v7386
    %v8036 = vunpack.c.l.b16 %v7387
    %v8037 = vunpack.c.h.b16 %v7387
    %v8038 = vunpack.c.l.b16 %v7388
    %v8039 = vunpack.c.h.b16 %v7388
    %v8040 = vunpack.c.l.b16 %v7389
    %v8041 = vunpack.c.h.b16 %v7389
    %v8042 = vunpack.c.l.b16 %v7390
    %v8043 = vunpack.c.h.b16 %v7390
    %v8044 = vunpack.c.l.b16 %v7391
    %v8045 = vunpack.c.h.b16 %v7391
    %v8046 = vunpack.c.l.b16 %v7392
    %v8047 = vunpack.c.h.b16 %v7392
    %v8048 = vunpack.c.l.b16 %v7393
    %v8049 = vunpack.c.h.b16 %v7393
    %v8050 = vunpack.c.l.b16 %v7394
    %v8051 = vunpack.c.h.b16 %v7394
    %v8052 = vunpack.c.l.b16 %v7395
    %v8053 = vunpack.c.h.b16 %v7395
    %v8054 = vunpack.c.l.b16 %v7396
    %v8055 = vunpack.c.h.b16 %v7396
    %v8056 = vunpack.c.l.b16 %v7397
    %v8057 = vunpack.c.h.b16 %v7397
    %v8058 = vunpack.c.l.b16 %v7398
    %v8059 = vunpack.c.h.b16 %v7398
    %v8060 = vunpack.c.l.b16 %v7399
    %v8061 = vunpack.c.h.b16 %v7399
    %v8062 = vunpack.c.l.b16 %v7400
    %v8063 = vunpack.c.h.b16 %v7400
    %v8064 = vunpack.c.l.b16 %v7401
    %v8065 = vunpack.c.h.b16 %v7401
    %v8066 = vunpack.c.l.b16 %v7402
    %v8067 = vunpack.c.h.b16 %v7402
    %v8068 = vunpack.c.l.b16 %v7403
    %v8069 = vunpack.c.h.b16 %v7403
    %v8070 = vunpack.c.l.b16 %v7404
    %v8071 = vunpack.c.h.b16 %v7404
    %v8072 = vunpack.c.l.b16 %v7405
    %v8073 = vunpack.c.h.b16 %v7405
    %v8074 = vunpack.c.l.b16 %v7406
    %v8075 = vunpack.c.h.b16 %v7406
    %v8076 = vunpack.c.l.b16 %v7407
    %v8077 = vunpack.c.h.b16 %v7407
    %v8078 = vunpack.c.l.b16 %v7408
    %v8079 = vunpack.c.h.b16 %v7408
    %v8080 = vunpack.c.l.b16 %v7409
    %v8081 = vunpack.c.h.b16 %v7409
    %v8082 = vunpack.c.l.b16 %v7410
    %v8083 = vunpack.c.h.b16 %v7410
    %v8084 = vunpack.c.l.b16 %v7411
    %v8085 = vunpack.c.h.b16 %v7411
    %v8086 = vunpack.c.l.b16 %v7412
    %v8087 = vunpack.c.h.b16 %v7412
    %v8088 = vunpack.c.l.b16 %v7413
    %v8089 = vunpack.c.h.b16 %v7413
    %v8090 = vunpack.c.l.b16 %v7414
    %v8091 = vunpack.c.h.b16 %v7414
    %v8092 = vunpack.c.l.b16 %v7415
    %v8093 = vunpack.c.h.b16 %v7415
    %v8094 = vunpack.c.l.b16 %v7416
    %v8095 = vunpack.c.h.b16 %v7416
    %v8096 = vunpack.c.l.b16 %v7417
    %v8097 = vunpack.c.h.b16 %v7417
    %v8098 = vunpack.c.l.b16 %v7418
    %v8099 = vunpack.c.h.b16 %v7418
    %v8100 = vunpack.c.l.b16 %v7419
    %v8101 = vunpack.c.h.b16 %v7419
    %v8102 = vunpack.c.l.b16 %v7420
    %v8103 = vunpack.c.h.b16 %v7420
    %v8104 = vunpack.c.l.b16 %v7421
    %v8105 = vunpack.c.h.b16 %v7421
    %v8106 = vunpack.c.l.b16 %v7422
    %v8107 = vunpack.c.h.b16 %v7422
    %v8108 = vunpack.c.l.b16 %v7423
    %v8109 = vunpack.c.h.b16 %v7423
    %v8110 = vunpack.c.l.b16 %v7424
    %v8111 = vunpack.c.h.b16 %v7424
    %v8112 = vunpack.c.l.b16 %v7425
    %v8113 = vunpack.c.h.b16 %v7425
    %v8114 = vunpack.c.l.b16 %v7426
    %v8115 = vunpack.c.h.b16 %v7426
    %v8116 = vunpack.c.l.b16 %v7427
    %v8117 = vunpack.c.h.b16 %v7427
    %v8118 = vunpack.c.l.b16 %v7428
    %v8119 = vunpack.c.h.b16 %v7428
    %v8120 = vunpack.c.l.b16 %v7429
    %v8121 = vunpack.c.h.b16 %v7429
    %v8122 = vunpack.c.l.b16 %v7430
    %v8123 = vunpack.c.h.b16 %v7430
    %v8124 = vunpack.c.l.b16 %v7431
    %v8125 = vunpack.c.h.b16 %v7431
    %v8126 = vunpack.c.l.b16 %v7432
    %v8127 = vunpack.c.h.b16 %v7432
    %v8128 = vunpack.c.l.b16 %v7433
    %v8129 = vunpack.c.h.b16 %v7433
    %v8130 = vunpack.c.l.b16 %v7434
    %v8131 = vunpack.c.h.b16 %v7434
    %v8132 = vunpack.c.l.b16 %v7435
    %v8133 = vunpack.c.h.b16 %v7435
    %v8134 = vunpack.c.l.b16 %v7436
    %v8135 = vunpack.c.h.b16 %v7436
    %v8136 = vunpack.c.l.b16 %v7437
    %v8137 = vunpack.c.h.b16 %v7437
    %v8138 = vunpack.c.l.b16 %v7438
    %v8139 = vunpack.c.h.b16 %v7438
    %v8140 = vunpack.c.l.b16 %v7439
    %v8141 = vunpack.c.h.b16 %v7439
    %v8142 = vunpack.c.l.b16 %v7440
    %v8143 = vunpack.c.h.b16 %v7440
    %v8144 = vunpack.c.l.b16 %v7441
    %v8145 = vunpack.c.h.b16 %v7441
    %v8146 = vunpack.c.l.b16 %v7442
    %v8147 = vunpack.c.h.b16 %v7442
    %v8148 = vunpack.c.l.b16 %v7443
    %v8149 = vunpack.c.h.b16 %v7443
    %v8150 = vunpack.c.l.b16 %v7444
    %v8151 = vunpack.c.h.b16 %v7444
    %v8152 = vunpack.c.l.b16 %v7445
    %v8153 = vunpack.c.h.b16 %v7445
    %v8154 = vunpack.c.l.b16 %v7446
    %v8155 = vunpack.c.h.b16 %v7446
    %v8156 = vunpack.c.l.b16 %v7447
    %v8157 = vunpack.c.h.b16 %v7447
    %v8158 = vunpack.c.l.b16 %v7448
    %v8159 = vunpack.c.h.b16 %v7448
    %v8160 = vunpack.c.l.b16 %v7449
    %v8161 = vunpack.c.h.b16 %v7449
    %v8162 = vunpack.c.l.b16 %v7450
    %v8163 = vunpack.c.h.b16 %v7450
    %v8164 = vunpack.c.l.b16 %v7451
    %v8165 = vunpack.c.h.b16 %v7451
    %v8166 = vunpack.c.l.b16 %v7452
    %v8167 = vunpack.c.h.b16 %v7452
    %v8168 = vunpack.c.l.b16 %v7453
    %v8169 = vunpack.c.h.b16 %v7453
    %v8170 = vunpack.c.l.b16 %v7454
    %v8171 = vunpack.c.h.b16 %v7454
    %v8172 = vunpack.c.l.b16 %v7455
    %v8173 = vunpack.c.h.b16 %v7455
    %v8174 = vunpack.c.l.b16 %v7456
    %v8175 = vunpack.c.h.b16 %v7456
    %v8176 = vunpack.c.l.b16 %v7457
    %v8177 = vunpack.c.h.b16 %v7457
    %v8178 = vunpack.c.l.b16 %v7458
    %v8179 = vunpack.c.h.b16 %v7458
    %v8180 = vunpack.c.l.b16 %v7459
    %v8181 = vunpack.c.h.b16 %v7459
    %v8182 = vunpack.c.l.b16 %v7460
    %v8183 = vunpack.c.h.b16 %v7460
    %v8184 = vunpack.c.l.b16 %v7461
    %v8185 = vunpack.c.h.b16 %v7461
    %v8186 = vunpack.c.l.b16 %v7462
    %v8187 = vunpack.c.h.b16 %v7462
    %v8188 = vunpack.c.l.b16 %v7463
    %v8189 = vunpack.c.h.b16 %v7463
    %v8190 = vunpack.c.l.b16 %v7464
    %v8191 = vunpack.c.h.b16 %v7464
    %v8192 = vunpack.c.l.b16 %v7465
    %v8193 = vunpack.c.h.b16 %v7465
    %v8194 = vunpack.c.l.b16 %v7466
    %v8195 = vunpack.c.h.b16 %v7466
    %v8196 = vunpack.c.l.b16 %v7467
    %v8197 = vunpack.c.h.b16 %v7467
    %v8198 = vunpack.c.l.b16 %v7468
    %v8199 = vunpack.c.h.b16 %v7468
    %v8200 = vunpack.c.l.b16 %v7469
    %v8201 = vunpack.c.h.b16 %v7469
    %v8202 = vunpack.c.l.b16 %v7470
    %v8203 = vunpack.c.h.b16 %v7470
    %v8204 = vunpack.c.l.b16 %v7471
    %v8205 = vunpack.c.h.b16 %v7471
    %v8206 = vunpack.c.l.b16 %v7472
    %v8207 = vunpack.c.h.b16 %v7472
    %v8208 = vunpack.c.l.b16 %v7473
    %v8209 = vunpack.c.h.b16 %v7473
    %v8210 = vunpack.c.l.b16 %v7474
    %v8211 = vunpack.c.h.b16 %v7474
    %v8212 = vunpack.c.l.b16 %v7475
    %v8213 = vunpack.c.h.b16 %v7475
    %v8214 = vunpack.c.l.b16 %v7476
    %v8215 = vunpack.c.h.b16 %v7476
    %v8216 = vunpack.c.l.b16 %v7477
    %v8217 = vunpack.c.h.b16 %v7477
    %v8218 = vunpack.c.l.b16 %v7478
    %v8219 = vunpack.c.h.b16 %v7478
    %v8220 = vunpack.c.l.b16 %v7479
    %v8221 = vunpack.c.h.b16 %v7479
    %v8222 = vunpack.c.l.b16 %v7480
    %v8223 = vunpack.c.h.b16 %v7480
    %v8224 = vunpack.c.l.b16 %v7481
    %v8225 = vunpack.c.h.b16 %v7481
    %v8226 = vunpack.c.l.b16 %v7482
    %v8227 = vunpack.c.h.b16 %v7482
    %v8228 = vunpack.c.l.b16 %v7483
    %v8229 = vunpack.c.h.b16 %v7483
    %v8230 = vunpack.c.l.b16 %v7484
    %v8231 = vunpack.c.h.b16 %v7484
    %v8232 = vunpack.c.l.b16 %v7485
    %v8233 = vunpack.c.h.b16 %v7485
    %v8234 = vunpack.c.l.b16 %v7486
    %v8235 = vunpack.c.h.b16 %v7486
    %v8236 = vunpack.c.l.b16 %v7487
    %v8237 = vunpack.c.h.b16 %v7487
    %v8238 = vunpack.c.l.b16 %v7488
    %v8239 = vunpack.c.h.b16 %v7488
    %v8240 = vunpack.c.l.b16 %v7489
    %v8241 = vunpack.c.h.b16 %v7489
    %v8242 = vunpack.c.l.b16 %v7490
    %v8243 = vunpack.c.h.b16 %v7490
    %v8244 = vunpack.c.l.b16 %v7491
    %v8245 = vunpack.c.h.b16 %v7491
    %v8246 = vunpack.c.l.b16 %v7492
    %v8247 = vunpack.c.h.b16 %v7492
    %v8248 = vunpack.c.l.b16 %v7493
    %v8249 = vunpack.c.h.b16 %v7493
    %v8250 = vunpack.c.l.b16 %v7494
    %v8251 = vunpack.c.h.b16 %v7494
    %v8252 = vunpack.c.l.b16 %v7495
    %v8253 = vunpack.c.h.b16 %v7495
    %v8254 = vunpack.c.l.b16 %v7496
    %v8255 = vunpack.c.h.b16 %v7496
    %v8256 = vunpack.c.l.b16 %v7497
    %v8257 = vunpack.c.h.b16 %v7497
    %v8258 = vunpack.c.l.b16 %v7498
    %v8259 = vunpack.c.h.b16 %v7498
    %v8260 = vunpack.c.l.b16 %v7499
    %v8261 = vunpack.c.h.b16 %v7499
    %v8262 = vunpack.c.l.b16 %v7500
    %v8263 = vunpack.c.h.b16 %v7500
    %v8264 = vunpack.c.l.b16 %v7501
    %v8265 = vunpack.c.h.b16 %v7501
    %v8266 = vunpack.c.l.b16 %v7502
    %v8267 = vunpack.c.h.b16 %v7502
    %v8268 = vunpack.c.l.b16 %v7503
    %v8269 = vunpack.c.h.b16 %v7503
    %v8270 = vunpack.c.l.b16 %v7504
    %v8271 = vunpack.c.h.b16 %v7504
    %v8272 = vunpack.c.l.b16 %v7505
    %v8273 = vunpack.c.h.b16 %v7505
    %v8274 = vunpack.c.l.b16 %v7506
    %v8275 = vunpack.c.h.b16 %v7506
    %v8276 = vunpack.c.l.b16 %v7507
    %v8277 = vunpack.c.h.b16 %v7507
    %v8278 = vunpack.c.l.b16 %v7508
    %v8279 = vunpack.c.h.b16 %v7508
    %v8280 = vunpack.c.l.b16 %v7509
    %v8281 = vunpack.c.h.b16 %v7509
    %v8282 = vunpack.c.l.b16 %v7510
    %v8283 = vunpack.c.h.b16 %v7510
    %v8284 = vunpack.c.l.b16 %v7511
    %v8285 = vunpack.c.h.b16 %v7511
    %v8286 = vunpack.c.l.b16 %v7512
    %v8287 = vunpack.c.h.b16 %v7512
    %v8288 = vunpack.c.l.b16 %v7513
    %v8289 = vunpack.c.h.b16 %v7513
    %v8290 = vunpack.c.l.b16 %v7514
    %v8291 = vunpack.c.h.b16 %v7514
    %v8292 = vunpack.c.l.b16 %v7515
    %v8293 = vunpack.c.h.b16 %v7515
    %v8294 = vunpack.c.l.b16 %v7516
    %v8295 = vunpack.c.h.b16 %v7516
    %v8296 = vunpack.c.l.b16 %v7517
    %v8297 = vunpack.c.h.b16 %v7517
    %v8298 = vunpack.c.l.b16 %v7518
    %v8299 = vunpack.c.h.b16 %v7518
    %v8300 = vunpack.c.l.b16 %v7519
    %v8301 = vunpack.c.h.b16 %v7519
    %v8302 = vunpack.c.l.b16 %v7520
    %v8303 = vunpack.c.h.b16 %v7520
    %v8304 = vunpack.c.l.b16 %v7521
    %v8305 = vunpack.c.h.b16 %v7521
    %v8306 = vunpack.c.l.b16 %v7522
    %v8307 = vunpack.c.h.b16 %v7522
    %v8308 = vunpack.c.l.b16 %v7523
    %v8309 = vunpack.c.h.b16 %v7523
    %v8310 = vunpack.c.l.b16 %v7524
    %v8311 = vunpack.c.h.b16 %v7524
    %v8312 = vunpack.c.l.b16 %v7525
    %v8313 = vunpack.c.h.b16 %v7525
    %v8314 = vunpack.c.l.b16 %v7526
    %v8315 = vunpack.c.h.b16 %v7526
    %v8316 = vunpack.c.l.b16 %v7527
    %v8317 = vunpack.c.h.b16 %v7527
    %v8318 = vunpack.c.l.b16 %v7528
    %v8319 = vunpack.c.h.b16 %v7528
    %v8320 = vunpack.c.l.b16 %v7529
    %v8321 = vunpack.c.h.b16 %v7529
    %v8322 = vunpack.c.l.b16 %v7530
    %v8323 = vunpack.c.h.b16 %v7530
    %v8324 = vunpack.c.l.b16 %v7531
    %v8325 = vunpack.c.h.b16 %v7531
    %v8326 = vunpack.c.l.b16 %v7532
    %v8327 = vunpack.c.h.b16 %v7532
    %v8328 = vunpack.c.l.b16 %v7533
    %v8329 = vunpack.c.h.b16 %v7533
    %v8330 = vunpack.c.l.b16 %v7534
    %v8331 = vunpack.c.h.b16 %v7534
    %v8332 = vunpack.c.l.b16 %v7535
    %v8333 = vunpack.c.h.b16 %v7535
    %v8334 = vunpack.c.l.b16 %v7536
    %v8335 = vunpack.c.h.b16 %v7536
    %v8336 = vunpack.c.l.b16 %v7537
    %v8337 = vunpack.c.h.b16 %v7537
    %v8338 = vunpack.c.l.b16 %v7538
    %v8339 = vunpack.c.h.b16 %v7538
    %v8340 = vunpack.c.l.b16 %v7539
    %v8341 = vunpack.c.h.b16 %v7539
    %v8342 = vunpack.c.l.b16 %v7540
    %v8343 = vunpack.c.h.b16 %v7540
    %v8344 = vunpack.c.l.b16 %v7541
    %v8345 = vunpack.c.h.b16 %v7541
    %v8346 = vunpack.c.l.b16 %v7542
    %v8347 = vunpack.c.h.b16 %v7542
    %v8348 = vunpack.c.l.b16 %v7543
    %v8349 = vunpack.c.h.b16 %v7543
    %v8350 = vunpack.c.l.b16 %v7544
    %v8351 = vunpack.c.h.b16 %v7544
    %v8352 = vunpack.c.l.b16 %v7545
    %v8353 = vunpack.c.h.b16 %v7545
    %v8354 = vunpack.c.l.b16 %v7546
    %v8355 = vunpack.c.h.b16 %v7546
    %v8356 = vunpack.c.l.b16 %v7547
    %v8357 = vunpack.c.h.b16 %v7547
    %v8358 = vunpack.c.l.b16 %v7548
    %v8359 = vunpack.c.h.b16 %v7548
    %v8360 = vpack.c.b16 %v7856, %v7848
    %v8361 = vpack.c.b16 %v7857, %v7849
    %v8362 = vpack.c.b16 %v7858, %v7850
    %v8363 = vpack.c.b16 %v7859, %v7851
    %v8364 = vpack.c.b16 %v7860, %v7852
    %v8365 = vpack.c.b16 %v7861, %v7853
    %v8366 = vpack.c.b16 %v7862, %v7854
    %v8367 = vpack.c.b16 %v7863, %v7855
    %v8368 = vpack.c.b16 %v7872, %v7864
    %v8369 = vpack.c.b16 %v7873, %v7865
    %v8370 = vpack.c.b16 %v7874, %v7866
    %v8371 = vpack.c.b16 %v7875, %v7867
    %v8372 = vpack.c.b16 %v7876, %v7868
    %v8373 = vpack.c.b16 %v7877, %v7869
    %v8374 = vpack.c.b16 %v7878, %v7870
    %v8375 = vpack.c.b16 %v7879, %v7871
    %v8376 = vpack.c.b16 %v7888, %v7880
    %v8377 = vpack.c.b16 %v7889, %v7881
    %v8378 = vpack.c.b16 %v7890, %v7882
    %v8379 = vpack.c.b16 %v7891, %v7883
    %v8380 = vpack.c.b16 %v7892, %v7884
    %v8381 = vpack.c.b16 %v7893, %v7885
    %v8382 = vpack.c.b16 %v7894, %v7886
    %v8383 = vpack.c.b16 %v7895, %v7887
    %v8384 = vpack.c.b16 %v7904, %v7896
    %v8385 = vpack.c.b16 %v7905, %v7897
    %v8386 = vpack.c.b16 %v7906, %v7898
    %v8387 = vpack.c.b16 %v7907, %v7899
    %v8388 = vpack.c.b16 %v7908, %v7900
    %v8389 = vpack.c.b16 %v7909, %v7901
    %v8390 = vpack.c.b16 %v7910, %v7902
    %v8391 = vpack.c.b16 %v7911, %v7903
    %v8392 = vpack.c.b16 %v7920, %v7912
    %v8393 = vpack.c.b16 %v7921, %v7913
    %v8394 = vpack.c.b16 %v7922, %v7914
    %v8395 = vpack.c.b16 %v7923, %v7915
    %v8396 = vpack.c.b16 %v7924, %v7916
    %v8397 = vpack.c.b16 %v7925, %v7917
    %v8398 = vpack.c.b16 %v7926, %v7918
    %v8399 = vpack.c.b16 %v7927, %v7919
    %v8400 = vpack.c.b16 %v7936, %v7928
    %v8401 = vpack.c.b16 %v7937, %v7929
    %v8402 = vpack.c.b16 %v7938, %v7930
    %v8403 = vpack.c.b16 %v7939, %v7931
    %v8404 = vpack.c.b16 %v7940, %v7932
    %v8405 = vpack.c.b16 %v7941, %v7933
    %v8406 = vpack.c.b16 %v7942, %v7934
    %v8407 = vpack.c.b16 %v7943, %v7935
    %v8408 = vpack.c.b16 %v7952, %v7944
    %v8409 = vpack.c.b16 %v7953, %v7945
    %v8410 = vpack.c.b16 %v7954, %v7946
    %v8411 = vpack.c.b16 %v7955, %v7947
    %v8412 = vpack.c.b16 %v7956, %v7948
    %v8413 = vpack.c.b16 %v7957, %v7949
    %v8414 = vpack.c.b16 %v7958, %v7950
    %v8415 = vpack.c.b16 %v7959, %v7951
    %v8416 = vpack.c.b16 %v7968, %v7960
    %v8417 = vpack.c.b16 %v7969, %v7961
    %v8418 = vpack.c.b16 %v7970, %v7962
    %v8419 = vpack.c.b16 %v7971, %v7963
    %v8420 = vpack.c.b16 %v7972, %v7964
    %v8421 = vpack.c.b16 %v7973, %v7965
    %v8422 = vpack.c.b16 %v7974, %v7966
    %v8423 = vpack.c.b16 %v7975, %v7967
    %v8424 = vpack.c.b16 %v7984, %v7976
    %v8425 = vpack.c.b16 %v7985, %v7977
    %v8426 = vpack.c.b16 %v7986, %v7978
    %v8427 = vpack.c.b16 %v7987, %v7979
    %v8428 = vpack.c.b16 %v7988, %v7980
    %v8429 = vpack.c.b16 %v7989, %v7981
    %v8430 = vpack.c.b16 %v7990, %v7982
    %v8431 = vpack.c.b16 %v7991, %v7983
    %v8432 = vpack.c.b16 %v8000, %v7992
    %v8433 = vpack.c.b16 %v8001, %v7993
    %v8434 = vpack.c.b16 %v8002, %v7994
    %v8435 = vpack.c.b16 %v8003, %v7995
    %v8436 = vpack.c.b16 %v8004, %v7996
    %v8437 = vpack.c.b16 %v8005, %v7997
    %v8438 = vpack.c.b16 %v8006, %v7998
    %v8439 = vpack.c.b16 %v8007, %v7999
    %v8440 = vpack.c.b16 %v8016, %v8008
    %v8441 = vpack.c.b16 %v8017, %v8009
    %v8442 = vpack.c.b16 %v8018, %v8010
    %v8443 = vpack.c.b16 %v8019, %v8011
    %v8444 = vpack.c.b16 %v8020, %v8012
    %v8445 = vpack.c.b16 %v8021, %v8013
    %v8446 = vpack.c.b16 %v8022, %v8014
    %v8447 = vpack.c.b16 %v8023, %v8015
    %v8448 = vpack.c.b16 %v8032, %v8024
    %v8449 = vpack.c.b16 %v8033, %v8025
    %v8450 = vpack.c.b16 %v8034, %v8026
    %v8451 = vpack.c.b16 %v8035, %v8027
    %v8452 = vpack.c.b16 %v8036, %v8028
    %v8453 = vpack.c.b16 %v8037, %v8029
    %v8454 = vpack.c.b16 %v8038, %v8030
    %v8455 = vpack.c.b16 %v8039, %v8031
    %v8456 = vpack.c.b16 %v8048, %v8040
    %v8457 = vpack.c.b16 %v8049, %v8041
    %v8458 = vpack.c.b16 %v8050, %v8042
    %v8459 = vpack.c.b16 %v8051, %v8043
    %v8460 = vpack.c.b16 %v8052, %v8044
    %v8461 = vpack.c.b16 %v8053, %v8045
    %v8462 = vpack.c.b16 %v8054, %v8046
    %v8463 = vpack.c.b16 %v8055, %v8047
    %v8464 = vpack.c.b16 %v8064, %v8056
    %v8465 = vpack.c.b16 %v8065, %v8057
    %v8466 = vpack.c.b16 %v8066, %v8058
    %v8467 = vpack.c.b16 %v8067, %v8059
    %v8468 = vpack.c.b16 %v8068, %v8060
    %v8469 = vpack.c.b16 %v8069, %v8061
    %v8470 = vpack.c.b16 %v8070, %v8062
    %v8471 = vpack.c.b16 %v8071, %v8063
    %v8472 = vpack.c.b16 %v8080, %v8072
    %v8473 = vpack.c.b16 %v8081, %v8073
    %v8474 = vpack.c.b16 %v8082, %v8074
    %v8475 = vpack.c.b16 %v8083, %v8075
    %v8476 = vpack.c.b16 %v8084, %v8076
    %v8477 = vpack.c.b16 %v8085, %v8077
    %v8478 = vpack.c.b16 %v8086, %v8078
    %v8479 = vpack.c.b16 %v8087, %v8079
    %v8480 = vpack.c.b16 %v8096, %v8088
    %v8481 = vpack.c.b16 %v8097, %v8089
    %v8482 = vpack.c.b16 %v8098, %v8090
    %v8483 = vpack.c.b16 %v8099, %v8091
    %v8484 = vpack.c.b16 %v8100, %v8092
    %v8485 = vpack.c.b16 %v8101, %v8093
    %v8486 = vpack.c.b16 %v8102, %v8094
    %v8487 = vpack.c.b16 %v8103, %v8095
    %v8488 = vpack.c.b16 %v8112, %v8104
    %v8489 = vpack.c.b16 %v8113, %v8105
    %v8490 = vpack.c.b16 %v8114, %v8106
    %v8491 = vpack.c.b16 %v8115, %v8107
    %v8492 = vpack.c.b16 %v8116, %v8108
    %v8493 = vpack.c.b16 %v8117, %v8109
    %v8494 = vpack.c.b16 %v8118, %v8110
    %v8495 = vpack.c.b16 %v8119, %v8111
    %v8496 = vpack.c.b16 %v8128, %v8120
    %v8497 = vpack.c.b16 %v8129, %v8121
    %v8498 = vpack.c.b16 %v8130, %v8122
    %v8499 = vpack.c.b16 %v8131, %v8123
    %v8500 = vpack.c.b16 %v8132, %v8124
    %v8501 = vpack.c.b16 %v8133, %v8125
    %v8502 = vpack.c.b16 %v8134, %v8126
    %v8503 = vpack.c.b16 %v8135, %v8127
    %v8504 = vpack.c.b16 %v8144, %v8136
    %v8505 = vpack.c.b16 %v8145, %v8137
    %v8506 = vpack.c.b16 %v8146, %v8138
    %v8507 = vpack.c.b16 %v8147, %v8139
    %v8508 = vpack.c.b16 %v8148, %v8140
    %v8509 = vpack.c.b16 %v8149, %v8141
    %v8510 = vpack.c.b16 %v8150, %v8142
    %v8511 = vpack.c.b16 %v8151, %v8143
    %v8512 = vpack.c.b16 %v8160, %v8152
    %v8513 = vpack.c.b16 %v8161, %v8153
    %v8514 = vpack.c.b16 %v8162, %v8154
    %v8515 = vpack.c.b16 %v8163, %v8155
    %v8516 = vpack.c.b16 %v8164, %v8156
    %v8517 = vpack.c.b16 %v8165, %v8157
    %v8518 = vpack.c.b16 %v8166, %v8158
    %v8519 = vpack.c.b16 %v8167, %v8159
    %v8520 = vpack.c.b16 %v8176, %v8168
    %v8521 = vpack.c.b16 %v8177, %v8169
    %v8522 = vpack.c.b16 %v8178, %v8170
    %v8523 = vpack.c.b16 %v8179, %v8171
    %v8524 = vpack.c.b16 %v8180, %v8172
    %v8525 = vpack.c.b16 %v8181, %v8173
    %v8526 = vpack.c.b16 %v8182, %v8174
    %v8527 = vpack.c.b16 %v8183, %v8175
    %v8528 = vpack.c.b16 %v8192, %v8184
    %v8529 = vpack.c.b16 %v8193, %v8185
    %v8530 = vpack.c.b16 %v8194, %v8186
    %v8531 = vpack.c.b16 %v8195, %v8187
    %v8532 = vpack.c.b16 %v8196, %v8188
    %v8533 = vpack.c.b16 %v8197, %v8189
    %v8534 = vpack.c.b16 %v8198, %v8190
    %v8535 = vpack.c.b16 %v8199, %v8191
    %v8536 = vpack.c.b16 %v8208, %v8200
    %v8537 = vpack.c.b16 %v8209, %v8201
    %v8538 = vpack.c.b16 %v8210, %v8202
    %v8539 = vpack.c.b16 %v8211, %v8203
    %v8540 = vpack.c.b16 %v8212, %v8204
    %v8541 = vpack.c.b16 %v8213, %v8205
    %v8542 = vpack.c.b16 %v8214, %v8206
    %v8543 = vpack.c.b16 %v8215, %v8207
    %v8544 = vpack.c.b16 %v8224, %v8216
    %v8545 = vpack.c.b16 %v8225, %v8217
    %v8546 = vpack.c.b16 %v8226, %v8218
    %v8547 = vpack.c.b16 %v8227, %v8219
    %v8548 = vpack.c.b16 %v8228, %v8220
    %v8549 = vpack.c.b16 %v8229, %v8221
    %v8550 = vpack.c.b16 %v8230, %v8222
    %v8551 = vpack.c.b16 %v8231, %v8223
    %v8552 = vpack.c.b16 %v8240, %v8232
    %v8553 = vpack.c.b16 %v8241, %v8233
    %v8554 = vpack.c.b16 %v8242, %v8234
    %v8555 = vpack.c.b16 %v8243, %v8235
    %v8556 = vpack.c.b16 %v8244, %v8236
    %v8557 = vpack.c.b16 %v8245, %v8237
    %v8558 = vpack.c.b16 %v8246, %v8238
    %v8559 = vpack.c.b16 %v8247, %v8239
    %v8560 = vpack.c.b16 %v8256, %v8248
    %v8561 = vpack.c.b16 %v8257, %v8249
    %v8562 = vpack.c.b16 %v8258, %v8250
    %v8563 = vpack.c.b16 %v8259, %v8251
    %v8564 = vpack.c.b16 %v8260, %v8252
    %v8565 = vpack.c.b16 %v8261, %v8253
    %v8566 = vpack.c.b16 %v8262, %v8254
    %v8567 = vpack.c.b16 %v8263, %v8255
    %v8568 = vpack.c.b16 %v8272, %v8264
    %v8569 = vpack.c.b16 %v8273, %v8265
    %v8570 = vpack.c.b16 %v8274, %v8266
    %v8571 = vpack.c.b16 %v8275, %v8267
    %v8572 = vpack.c.b16 %v8276, %v8268
    %v8573 = vpack.c.b16 %v8277, %v8269
    %v8574 = vpack.c.b16 %v8278, %v8270
    %v8575 = vpack.c.b16 %v8279, %v8271
    %v8576 = vpack.c.b16 %v8288, %v8280
    %v8577 = vpack.c.b16 %v8289, %v8281
    %v8578 = vpack.c.b16 %v8290, %v8282
    %v8579 = vpack.c.b16 %v8291, %v8283
    %v8580 = vpack.c.b16 %v8292, %v8284
    %v8581 = vpack.c.b16 %v8293, %v8285
    %v8582 = vpack.c.b16 %v8294, %v8286
    %v8583 = vpack.c.b16 %v8295, %v8287
    %v8584 = vpack.c.b16 %v8304, %v8296
    %v8585 = vpack.c.b16 %v8305, %v8297
    %v8586 = vpack.c.b16 %v8306, %v8298
    %v8587 = vpack.c.b16 %v8307, %v8299
    %v8588 = vpack.c.b16 %v8308, %v8300
    %v8589 = vpack.c.b16 %v8309, %v8301
    %v8590 = vpack.c.b16 %v8310, %v8302
    %v8591 = vpack.c.b16 %v8311, %v8303
    %v8592 = vpack.c.b16 %v8320, %v8312
    %v8593 = vpack.c.b16 %v8321, %v8313
    %v8594 = vpack.c.b16 %v8322, %v8314
    %v8595 = vpack.c.b16 %v8323, %v8315
    %v8596 = vpack.c.b16 %v8324, %v8316
    %v8597 = vpack.c.b16 %v8325, %v8317
    %v8598 = vpack.c.b16 %v8326, %v8318
    %v8599 = vpack.c.b16 %v8327, %v8319
    %v8600 = vpack.c.b16 %v8336, %v8328
    %v8601 = vpack.c.b16 %v8337, %v8329
    %v8602 = vpack.c.b16 %v8338, %v8330
    %v8603 = vpack.c.b16 %v8339, %v8331
    %v8604 = vpack.c.b16 %v8340, %v8332
    %v8605 = vpack.c.b16 %v8341, %v8333
    %v8606 = vpack.c.b16 %v8342, %v8334
    %v8607 = vpack.c.b16 %v8343, %v8335
    %v8608 = vpack.c.b16 %v8352, %v8344
    %v8609 = vpack.c.b16 %v8353, %v8345
    %v8610 = vpack.c.b16 %v8354, %v8346
    %v8611 = vpack.c.b16 %v8355, %v8347
    %v8612 = vpack.c.b16 %v8356, %v8348
    %v8613 = vpack.c.b16 %v8357, %v8349
    %v8614 = vpack.c.b16 %v8358, %v8350
    %v8615 = vpack.c.b16 %v8359, %v8351
    %8872 = vmatprep.subr.bf16.mxu0 %v8417
    %8873 = vmatpush1.bf16.msra.mxu0 %v8416
    %8874 = vmatprep.subr.bf16.mxu0 %v8409
    %8875 = vmatpush1.bf16.msra.mxu0 %v8408
    %8876 = vmatprep.subr.bf16.mxu0 %v8401
    %8877 = vmatpush1.bf16.msra.mxu0 %v8400
    %8878 = vmatprep.subr.bf16.mxu0 %v8393
    %8879 = vmatpush1.bf16.msra.mxu0 %v8392
    %8880 = vmatprep.subr.bf16.mxu0 %v8385
    %8881 = vmatpush1.bf16.msra.mxu0 %v8384
    %8882 = vmatprep.subr.bf16.mxu0 %v8377
    %8883 = vmatpush1.bf16.msra.mxu0 %v8376
    %8884 = vmatprep.subr.bf16.mxu0 %v8369
    %8885 = vmatpush1.bf16.msra.mxu0 %v8368
    %8886 = vmatprep.subr.bf16.mxu0 %v8361
    %8887 = vmatpush1.bf16.msra.mxu0 %v8360
    %8888 = vmatprep.subr.bf16.mxu0 %v8481
    %8889 = vmatpush2.bf16.msra.mxu0 %v8480
    %8890 = vmatprep.subr.bf16.mxu0 %v8473
    %8891 = vmatpush2.bf16.msra.mxu0 %v8472
    %8892 = vmatprep.subr.bf16.mxu0 %v8465
    %8893 = vmatpush2.bf16.msra.mxu0 %v8464
    %8894 = vmatprep.subr.bf16.mxu0 %v8457
    %8895 = vmatpush2.bf16.msra.mxu0 %v8456
    %8896 = vmatprep.subr.bf16.mxu0 %v8449
    %8897 = vmatpush2.bf16.msra.mxu0 %v8448
    %8898 = vmatprep.subr.bf16.mxu0 %v8441
    %8899 = vmatpush2.bf16.msra.mxu0 %v8440
    %8900 = vmatprep.subr.bf16.mxu0 %v8433
    %8901 = vmatpush2.bf16.msra.mxu0 %v8432
    %8902 = vmatprep.subr.bf16.mxu0 %v8425
    %8903 = vmatpush2.bf16.msra.mxu0 %v8424
    %8904 = vmatprep.mubr.bf16.mxu0 %v7289
    %8905 = vmatmul.mubr.bf16.gmra.mxu0 %v7288
    %v8906 = vpop.f32.mrf.mxu0
    %v8907 = vadd.f32 %v7555, %v8906
    %v8908 = vpop.f32.mrf.mxu0
    %v8909 = vadd.f32 %v7559, %v8908
    %v8910 = vpop.f32.mrf.mxu0
    %v8911 = vpop.f32.mrf.mxu0
    %8912 = vdwg.mxu0
    %8913 = vmatprep.subr.bf16.mxu0 %v8545
    %8914 = vmatpush1.bf16.msra.mxu0 %v8544
    %8915 = vmatprep.subr.bf16.mxu0 %v8537
    %8916 = vmatpush1.bf16.msra.mxu0 %v8536
    %8917 = vmatprep.subr.bf16.mxu0 %v8529
    %8918 = vmatpush1.bf16.msra.mxu0 %v8528
    %8919 = vmatprep.subr.bf16.mxu0 %v8521
    %8920 = vmatpush1.bf16.msra.mxu0 %v8520
    %8921 = vmatprep.subr.bf16.mxu0 %v8513
    %8922 = vmatpush1.bf16.msra.mxu0 %v8512
    %8923 = vmatprep.subr.bf16.mxu0 %v8505
    %8924 = vmatpush1.bf16.msra.mxu0 %v8504
    %8925 = vmatprep.subr.bf16.mxu0 %v8497
    %8926 = vmatpush1.bf16.msra.mxu0 %v8496
    %8927 = vmatprep.subr.bf16.mxu0 %v8489
    %8928 = vmatpush1.bf16.msra.mxu0 %v8488
    %8929 = vmatprep.subr.bf16.mxu0 %v8609
    %8930 = vmatpush2.bf16.msra.mxu0 %v8608
    %8931 = vmatprep.subr.bf16.mxu0 %v8601
    %8932 = vmatpush2.bf16.msra.mxu0 %v8600
    %8933 = vmatprep.subr.bf16.mxu0 %v8593
    %8934 = vmatpush2.bf16.msra.mxu0 %v8592
    %8935 = vmatprep.subr.bf16.mxu0 %v8585
    %8936 = vmatpush2.bf16.msra.mxu0 %v8584
    %8937 = vmatprep.subr.bf16.mxu0 %v8577
    %8938 = vmatpush2.bf16.msra.mxu0 %v8576
    %8939 = vmatprep.subr.bf16.mxu0 %v8569
    %8940 = vmatpush2.bf16.msra.mxu0 %v8568
    %8941 = vmatprep.subr.bf16.mxu0 %v8561
    %8942 = vmatpush2.bf16.msra.mxu0 %v8560
    %8943 = vmatprep.subr.bf16.mxu0 %v8553
    %8944 = vmatpush2.bf16.msra.mxu0 %v8552
    %8945 = vmatprep.mubr.bf16.mxu0 %v7291
    %8946 = vmatmul.mubr.bf16.gmra.mxu0 %v7290
    %v8947 = vpop.f32.mrf.mxu0
    %v8948 = vadd.f32 %v8907, %v8947
    %v8949 = vpop.f32.mrf.mxu0
    %v8950 = vadd.f32 %v8909, %v8949
    %v8951 = vpop.f32.mrf.mxu0
    %v8952 = vpop.f32.mrf.mxu0
    %8953 = vdwg.mxu0
    %8954 = vmatprep.subr.bf16.mxu0 %v8419
    %8955 = vmatpush1.bf16.msra.mxu0 %v8418
    %8956 = vmatprep.subr.bf16.mxu0 %v8411
    %8957 = vmatpush1.bf16.msra.mxu0 %v8410
    %8958 = vmatprep.subr.bf16.mxu0 %v8403
    %8959 = vmatpush1.bf16.msra.mxu0 %v8402
    %8960 = vmatprep.subr.bf16.mxu0 %v8395
    %8961 = vmatpush1.bf16.msra.mxu0 %v8394
    %8962 = vmatprep.subr.bf16.mxu0 %v8387
    %8963 = vmatpush1.bf16.msra.mxu0 %v8386
    %8964 = vmatprep.subr.bf16.mxu0 %v8379
    %8965 = vmatpush1.bf16.msra.mxu0 %v8378
    %8966 = vmatprep.subr.bf16.mxu0 %v8371
    %8967 = vmatpush1.bf16.msra.mxu0 %v8370
    %8968 = vmatprep.subr.bf16.mxu0 %v8363
    %8969 = vmatpush1.bf16.msra.mxu0 %v8362
    %8970 = vmatprep.subr.bf16.mxu0 %v8483
    %8971 = vmatpush2.bf16.msra.mxu0 %v8482
    %8972 = vmatprep.subr.bf16.mxu0 %v8475
    %8973 = vmatpush2.bf16.msra.mxu0 %v8474
    %8974 = vmatprep.subr.bf16.mxu0 %v8467
    %8975 = vmatpush2.bf16.msra.mxu0 %v8466
    %8976 = vmatprep.subr.bf16.mxu0 %v8459
    %8977 = vmatpush2.bf16.msra.mxu0 %v8458
    %8978 = vmatprep.subr.bf16.mxu0 %v8451
    %8979 = vmatpush2.bf16.msra.mxu0 %v8450
    %8980 = vmatprep.subr.bf16.mxu0 %v8443
    %8981 = vmatpush2.bf16.msra.mxu0 %v8442
    %8982 = vmatprep.subr.bf16.mxu0 %v8435
    %8983 = vmatpush2.bf16.msra.mxu0 %v8434
    %8984 = vmatprep.subr.bf16.mxu0 %v8427
    %8985 = vmatpush2.bf16.msra.mxu0 %v8426
    %8986 = vmatprep.mubr.bf16.mxu0 %v7289
    %8987 = vmatmul.mubr.bf16.gmra.mxu0 %v7288
    %v8988 = vpop.f32.mrf.mxu0
    %v8989 = vadd.f32 %v7563, %v8988
    %v8990 = vpop.f32.mrf.mxu0
    %v8991 = vadd.f32 %v7567, %v8990
    %v8992 = vpop.f32.mrf.mxu0
    %v8993 = vpop.f32.mrf.mxu0
    %8994 = vdwg.mxu0
    %8995 = vmatprep.subr.bf16.mxu0 %v8547
    %8996 = vmatpush1.bf16.msra.mxu0 %v8546
    %8997 = vmatprep.subr.bf16.mxu0 %v8539
    %8998 = vmatpush1.bf16.msra.mxu0 %v8538
    %8999 = vmatprep.subr.bf16.mxu0 %v8531
    %9000 = vmatpush1.bf16.msra.mxu0 %v8530
    %9001 = vmatprep.subr.bf16.mxu0 %v8523
    %9002 = vmatpush1.bf16.msra.mxu0 %v8522
    %9003 = vmatprep.subr.bf16.mxu0 %v8515
    %9004 = vmatpush1.bf16.msra.mxu0 %v8514
    %9005 = vmatprep.subr.bf16.mxu0 %v8507
    %9006 = vmatpush1.bf16.msra.mxu0 %v8506
    %9007 = vmatprep.subr.bf16.mxu0 %v8499
    %9008 = vmatpush1.bf16.msra.mxu0 %v8498
    %9009 = vmatprep.subr.bf16.mxu0 %v8491
    %9010 = vmatpush1.bf16.msra.mxu0 %v8490
    %9011 = vmatprep.subr.bf16.mxu0 %v8611
    %9012 = vmatpush2.bf16.msra.mxu0 %v8610
    %9013 = vmatprep.subr.bf16.mxu0 %v8603
    %9014 = vmatpush2.bf16.msra.mxu0 %v8602
    %9015 = vmatprep.subr.bf16.mxu0 %v8595
    %9016 = vmatpush2.bf16.msra.mxu0 %v8594
    %9017 = vmatprep.subr.bf16.mxu0 %v8587
    %9018 = vmatpush2.bf16.msra.mxu0 %v8586
    %9019 = vmatprep.subr.bf16.mxu0 %v8579
    %9020 = vmatpush2.bf16.msra.mxu0 %v8578
    %9021 = vmatprep.subr.bf16.mxu0 %v8571
    %9022 = vmatpush2.bf16.msra.mxu0 %v8570
    %9023 = vmatprep.subr.bf16.mxu0 %v8563
    %9024 = vmatpush2.bf16.msra.mxu0 %v8562
    %9025 = vmatprep.subr.bf16.mxu0 %v8555
    %9026 = vmatpush2.bf16.msra.mxu0 %v8554
    %9027 = vmatprep.mubr.bf16.mxu0 %v7291
    %9028 = vmatmul.mubr.bf16.gmra.mxu0 %v7290
    %v9029 = vpop.f32.mrf.mxu0
    %v9030 = vadd.f32 %v8989, %v9029
    %v9031 = vpop.f32.mrf.mxu0
    %v9032 = vadd.f32 %v8991, %v9031
    %v9033 = vpop.f32.mrf.mxu0
    %v9034 = vpop.f32.mrf.mxu0
    %9035 = vdwg.mxu0
    %9036 = vmatprep.subr.bf16.mxu0 %v8421
    %9037 = vmatpush1.bf16.msra.mxu0 %v8420
    %9038 = vmatprep.subr.bf16.mxu0 %v8413
    %9039 = vmatpush1.bf16.msra.mxu0 %v8412
    %9040 = vmatprep.subr.bf16.mxu0 %v8405
    %9041 = vmatpush1.bf16.msra.mxu0 %v8404
    %9042 = vmatprep.subr.bf16.mxu0 %v8397
    %9043 = vmatpush1.bf16.msra.mxu0 %v8396
    %9044 = vmatprep.subr.bf16.mxu0 %v8389
    %9045 = vmatpush1.bf16.msra.mxu0 %v8388
    %9046 = vmatprep.subr.bf16.mxu0 %v8381
    %9047 = vmatpush1.bf16.msra.mxu0 %v8380
    %9048 = vmatprep.subr.bf16.mxu0 %v8373
    %9049 = vmatpush1.bf16.msra.mxu0 %v8372
    %9050 = vmatprep.subr.bf16.mxu0 %v8365
    %9051 = vmatpush1.bf16.msra.mxu0 %v8364
    %9052 = vmatprep.subr.bf16.mxu0 %v8485
    %9053 = vmatpush2.bf16.msra.mxu0 %v8484
    %9054 = vmatprep.subr.bf16.mxu0 %v8477
    %9055 = vmatpush2.bf16.msra.mxu0 %v8476
    %9056 = vmatprep.subr.bf16.mxu0 %v8469
    %9057 = vmatpush2.bf16.msra.mxu0 %v8468
    %9058 = vmatprep.subr.bf16.mxu0 %v8461
    %9059 = vmatpush2.bf16.msra.mxu0 %v8460
    %9060 = vmatprep.subr.bf16.mxu0 %v8453
    %9061 = vmatpush2.bf16.msra.mxu0 %v8452
    %9062 = vmatprep.subr.bf16.mxu0 %v8445
    %9063 = vmatpush2.bf16.msra.mxu0 %v8444
    %9064 = vmatprep.subr.bf16.mxu0 %v8437
    %9065 = vmatpush2.bf16.msra.mxu0 %v8436
    %9066 = vmatprep.subr.bf16.mxu0 %v8429
    %9067 = vmatpush2.bf16.msra.mxu0 %v8428
    %9068 = vmatprep.mubr.bf16.mxu0 %v7289
    %9069 = vmatmul.mubr.bf16.gmra.mxu0 %v7288
    %v9070 = vpop.f32.mrf.mxu0
    %v9071 = vadd.f32 %v7571, %v9070
    %v9072 = vpop.f32.mrf.mxu0
    %v9073 = vadd.f32 %v7575, %v9072
    %v9074 = vpop.f32.mrf.mxu0
    %v9075 = vpop.f32.mrf.mxu0
    %9076 = vdwg.mxu0
    %9077 = vmatprep.subr.bf16.mxu0 %v8549
    %9078 = vmatpush1.bf16.msra.mxu0 %v8548
    %9079 = vmatprep.subr.bf16.mxu0 %v8541
    %9080 = vmatpush1.bf16.msra.mxu0 %v8540
    %9081 = vmatprep.subr.bf16.mxu0 %v8533
    %9082 = vmatpush1.bf16.msra.mxu0 %v8532
    %9083 = vmatprep.subr.bf16.mxu0 %v8525
    %9084 = vmatpush1.bf16.msra.mxu0 %v8524
    %9085 = vmatprep.subr.bf16.mxu0 %v8517
    %9086 = vmatpush1.bf16.msra.mxu0 %v8516
    %9087 = vmatprep.subr.bf16.mxu0 %v8509
    %9088 = vmatpush1.bf16.msra.mxu0 %v8508
    %9089 = vmatprep.subr.bf16.mxu0 %v8501
    %9090 = vmatpush1.bf16.msra.mxu0 %v8500
    %9091 = vmatprep.subr.bf16.mxu0 %v8493
    %9092 = vmatpush1.bf16.msra.mxu0 %v8492
    %9093 = vmatprep.subr.bf16.mxu0 %v8613
    %9094 = vmatpush2.bf16.msra.mxu0 %v8612
    %9095 = vmatprep.subr.bf16.mxu0 %v8605
    %9096 = vmatpush2.bf16.msra.mxu0 %v8604
    %9097 = vmatprep.subr.bf16.mxu0 %v8597
    %9098 = vmatpush2.bf16.msra.mxu0 %v8596
    %9099 = vmatprep.subr.bf16.mxu0 %v8589
    %9100 = vmatpush2.bf16.msra.mxu0 %v8588
    %9101 = vmatprep.subr.bf16.mxu0 %v8581
    %9102 = vmatpush2.bf16.msra.mxu0 %v8580
    %9103 = vmatprep.subr.bf16.mxu0 %v8573
    %9104 = vmatpush2.bf16.msra.mxu0 %v8572
    %9105 = vmatprep.subr.bf16.mxu0 %v8565
    %9106 = vmatpush2.bf16.msra.mxu0 %v8564
    %9107 = vmatprep.subr.bf16.mxu0 %v8557
    %9108 = vmatpush2.bf16.msra.mxu0 %v8556
    %9109 = vmatprep.mubr.bf16.mxu0 %v7291
    %9110 = vmatmul.mubr.bf16.gmra.mxu0 %v7290
    %v9111 = vpop.f32.mrf.mxu0
    %v9112 = vadd.f32 %v9071, %v9111
    %v9113 = vpop.f32.mrf.mxu0
    %v9114 = vadd.f32 %v9073, %v9113
    %v9115 = vpop.f32.mrf.mxu0
    %v9116 = vpop.f32.mrf.mxu0
    %9117 = vdwg.mxu0
    %9118 = vmatprep.subr.bf16.mxu0 %v8423
    %9119 = vmatpush1.bf16.msra.mxu0 %v8422
    %9120 = vmatprep.subr.bf16.mxu0 %v8415
    %9121 = vmatpush1.bf16.msra.mxu0 %v8414
    %9122 = vmatprep.subr.bf16.mxu0 %v8407
    %9123 = vmatpush1.bf16.msra.mxu0 %v8406
    %9124 = vmatprep.subr.bf16.mxu0 %v8399
    %9125 = vmatpush1.bf16.msra.mxu0 %v8398
    %9126 = vmatprep.subr.bf16.mxu0 %v8391
    %9127 = vmatpush1.bf16.msra.mxu0 %v8390
    %9128 = vmatprep.subr.bf16.mxu0 %v8383
    %9129 = vmatpush1.bf16.msra.mxu0 %v8382
    %9130 = vmatprep.subr.bf16.mxu0 %v8375
    %9131 = vmatpush1.bf16.msra.mxu0 %v8374
    %9132 = vmatprep.subr.bf16.mxu0 %v8367
    %9133 = vmatpush1.bf16.msra.mxu0 %v8366
    %9134 = vmatprep.subr.bf16.mxu0 %v8487
    %9135 = vmatpush2.bf16.msra.mxu0 %v8486
    %9136 = vmatprep.subr.bf16.mxu0 %v8479
    %9137 = vmatpush2.bf16.msra.mxu0 %v8478
    %9138 = vmatprep.subr.bf16.mxu0 %v8471
    %9139 = vmatpush2.bf16.msra.mxu0 %v8470
    %9140 = vmatprep.subr.bf16.mxu0 %v8463
    %9141 = vmatpush2.bf16.msra.mxu0 %v8462
    %9142 = vmatprep.subr.bf16.mxu0 %v8455
    %9143 = vmatpush2.bf16.msra.mxu0 %v8454
    %9144 = vmatprep.subr.bf16.mxu0 %v8447
    %9145 = vmatpush2.bf16.msra.mxu0 %v8446
    %9146 = vmatprep.subr.bf16.mxu0 %v8439
    %9147 = vmatpush2.bf16.msra.mxu0 %v8438
    %9148 = vmatprep.subr.bf16.mxu0 %v8431
    %9149 = vmatpush2.bf16.msra.mxu0 %v8430
    %9150 = vmatprep.mubr.bf16.mxu0 %v7289
    %9151 = vmatmul.mubr.bf16.gmra.mxu0 %v7288
    %v9152 = vpop.f32.mrf.mxu0
    %v9153 = vadd.f32 %v7579, %v9152
    %v9154 = vpop.f32.mrf.mxu0
    %v9155 = vadd.f32 %v7583, %v9154
    %v9156 = vpop.f32.mrf.mxu0
    %v9157 = vpop.f32.mrf.mxu0
    %9158 = vdwg.mxu0
    %9159 = vmatprep.subr.bf16.mxu0 %v8551
    %9160 = vmatpush1.bf16.msra.mxu0 %v8550
    %9161 = vmatprep.subr.bf16.mxu0 %v8543
    %9162 = vmatpush1.bf16.msra.mxu0 %v8542
    %9163 = vmatprep.subr.bf16.mxu0 %v8535
    %9164 = vmatpush1.bf16.msra.mxu0 %v8534
    %9165 = vmatprep.subr.bf16.mxu0 %v8527
    %9166 = vmatpush1.bf16.msra.mxu0 %v8526
    %9167 = vmatprep.subr.bf16.mxu0 %v8519
    %9168 = vmatpush1.bf16.msra.mxu0 %v8518
    %9169 = vmatprep.subr.bf16.mxu0 %v8511
    %9170 = vmatpush1.bf16.msra.mxu0 %v8510
    %9171 = vmatprep.subr.bf16.mxu0 %v8503
    %9172 = vmatpush1.bf16.msra.mxu0 %v8502
    %9173 = vmatprep.subr.bf16.mxu0 %v8495
    %9174 = vmatpush1.bf16.msra.mxu0 %v8494
    %9175 = vmatprep.subr.bf16.mxu0 %v8615
    %9176 = vmatpush2.bf16.msra.mxu0 %v8614
    %9177 = vmatprep.subr.bf16.mxu0 %v8607
    %9178 = vmatpush2.bf16.msra.mxu0 %v8606
    %9179 = vmatprep.subr.bf16.mxu0 %v8599
    %9180 = vmatpush2.bf16.msra.mxu0 %v8598
    %9181 = vmatprep.subr.bf16.mxu0 %v8591
    %9182 = vmatpush2.bf16.msra.mxu0 %v8590
    %9183 = vmatprep.subr.bf16.mxu0 %v8583
    %9184 = vmatpush2.bf16.msra.mxu0 %v8582
    %9185 = vmatprep.subr.bf16.mxu0 %v8575
    %9186 = vmatpush2.bf16.msra.mxu0 %v8574
    %9187 = vmatprep.subr.bf16.mxu0 %v8567
    %9188 = vmatpush2.bf16.msra.mxu0 %v8566
    %9189 = vmatprep.subr.bf16.mxu0 %v8559
    %9190 = vmatpush2.bf16.msra.mxu0 %v8558
    %9191 = vmatprep.mubr.bf16.mxu0 %v7291
    %9192 = vmatmul.mubr.bf16.gmra.mxu0 %v7290
    %v9193 = vpop.f32.mrf.mxu0
    %v9194 = vadd.f32 %v9153, %v9193
    %v9195 = vpop.f32.mrf.mxu0
    %v9196 = vadd.f32 %v9155, %v9195
    %v9197 = vpop.f32.mrf.mxu0
    %v9198 = vpop.f32.mrf.mxu0
    %9199 = vdwg.mxu0
    %v9200 = vsub.f32 0.0, %v8948
    %v9201 = vsub.f32 0.0, %v8950
    %v9202 = vsub.f32 0.0, %v9030
    %v9203 = vsub.f32 0.0, %v9032
    %v9204 = vsub.f32 0.0, %v9112
    %v9205 = vsub.f32 0.0, %v9114
    %v9206 = vsub.f32 0.0, %v9194
    %v9207 = vsub.f32 0.0, %v9196
    %v9208 = vmul.f32 %v9200, 1.442695
    %v9209 = vpow.pop %v9208
    %v9210 = vmul.f32 %v9201, 1.442695
    %v9211 = vpow.pop %v9210
    %v9212 = vmul.f32 %v9202, 1.442695
    %v9213 = vpow.pop %v9212
    %v9214 = vmul.f32 %v9203, 1.442695
    %v9215 = vpow.pop %v9214
    %v9216 = vmul.f32 %v9204, 1.442695
    %v9217 = vpow.pop %v9216
    %v9218 = vmul.f32 %v9205, 1.442695
    %v9219 = vpow.pop %v9218
    %v9220 = vmul.f32 %v9206, 1.442695
    %v9221 = vpow.pop %v9220
    %v9222 = vmul.f32 %v9207, 1.442695
    %v9223 = vpow.pop %v9222
    %v9224 = vadd.f32 %v9209, 1.0
    %v9225 = vadd.f32 %v9211, 1.0
    %v9226 = vadd.f32 %v9213, 1.0
    %v9227 = vadd.f32 %v9215, 1.0
    %v9228 = vadd.f32 %v9217, 1.0
    %v9229 = vadd.f32 %v9219, 1.0
    %v9230 = vadd.f32 %v9221, 1.0
    %v9231 = vadd.f32 %v9223, 1.0
    %v9232 = vrcp.pop %v9224
    %v9233 = vrcp.pop %v9225
    %v9234 = vrcp.pop %v9226
    %v9235 = vrcp.pop %v9227
    %v9236 = vrcp.pop %v9228
    %v9237 = vrcp.pop %v9229
    %v9238 = vrcp.pop %v9230
    %v9239 = vrcp.pop %v9231
    %9240 = vst [vmem:[#allocation19 + $0x40] sm:$0xff] %v9232
    %9241 = vst [vmem:[#allocation19 + $0x48] sm:$0xff] %v9233
    %9242 = vst [vmem:[#allocation19 + $0x50] sm:$0xff] %v9234
    %9243 = vst [vmem:[#allocation19 + $0x58] sm:$0xff] %v9235
    %9244 = vst [vmem:[#allocation19 + $0x60] sm:$0xff] %v9236
    %9245 = vst [vmem:[#allocation19 + $0x68] sm:$0xff] %v9237
    %9246 = vst [vmem:[#allocation19 + $0x70] sm:$0xff] %v9238
    %9247 = vst [vmem:[#allocation19 + $0x78] sm:$0xff] %v9239
    // Predicated region
    $region82: #{tpu_custom_call.1} parent=1 // pred_check
      _
    $region83: #{tpu_custom_call.1} parent=1 // pred_check_branch
      %9249 = sbr.rel (0) target = $region85
    $region84: #{tpu_custom_call.1} parent=1 // pred_region
      %s9251 = ssub.s32 2048, 2048
      %9252 = vsyncadd [#allocation4], %s9251
      %s9254 = sshll.u32 [#allocation19], 4
      %s9255 = int_to_ptr.vmem [resolvable:$true] %s9254
      %9257 = dma.vmem_to_hbm [thread:$0]  %s9255, 2048, %s10, [#allocation4]
    $region85: #{tpu_custom_call.1} parent=1 // pred_fallthru
      _
    // Predicated region
    $region86: #{tpu_custom_call.1} parent=1 // pred_check
      _
    $region87: #{tpu_custom_call.1} parent=1 // pred_check_branch
      %9259 = sbr.rel (0) target = $region89
    $region88: #{tpu_custom_call.1} parent=1 // pred_region
      %9260 = dma.done [#allocation4], 2048
    $region89: #{tpu_custom_call.1} parent=1 // pred_fallthru
      _
    %9261 = vsyncpa [#allocation3], 1
    %9262 = vsyncpa [#allocation7], 1
    %9263 = vsyncpa [#allocation10], 1
    %9264 = vsyncpa [#allocation13], 1
    %9265 = vsyncpa [#allocation16], 1
    %9266 = vsyncpa [#allocation4], 1
    %9267 = vsyncpa [#allocation5], 1

</llo_original>
